<compile_context>
chip_gen: v5e
topology: v5e:2x2
jax: 0.10.0
libtpu: 0.0.40
codegen_flags: <defaults>
</compile_context>

<pallas_src>
import functools
import math

import jax
import jax.numpy as jnp
from jax import lax
from jax.experimental import pallas as pl
from jax.experimental.pallas import tpu as pltpu

LN_EPS = 1e-5
IN_EPS = 1e-5
LEAKY_SLOPE = 0.01


# ----------------------------------------------------------------------------
# Pallas kernels
# ----------------------------------------------------------------------------
def conv_in_kernel(pT_ref, wT_ref, b_ref, o_ref, *, group, slope, eps):
    # TODO(synk): HexConv's hexagonal kernel mask is not reproduced; dense conv is used.
    # pT: (group, CK, S) transposed im2col patches of `group` frames
    # wT: (C1, CK) transposed conv weights, b: (C1, 1)
    # o : (group, C1, S)  channel-on-sublane / spatial-on-lane activations
    wT = wT_ref[...]
    b = b_ref[...]
    for f in range(group):
        y = jnp.dot(wT, pT_ref[f], preferred_element_type=jnp.float32) + b   # (C1, S)
        y = jnp.where(y >= 0, y, slope * y)                                  # LeakyReLU
        mu = jnp.mean(y, axis=-1, keepdims=True)                             # InstanceNorm
        var = jnp.mean((y - mu) ** 2, axis=-1, keepdims=True)
        o_ref[f] = (y - mu) * lax.rsqrt(var + eps)


def conv_out_kernel(pT_ref, w2T_ref, b2_ref, w3_ref, b3_ref, mseg_ref, bexp_ref, o_ref,
                    *, n_frames, n_pos, slope, eps):
    # Fused layers 2+3 of ShallowFollowerStateCNN, transposed layout.
    # pT: (CK2, n_pos*n_frames) position-major columns; w2T: (C2, CK2); b2: (C2, 1)
    # w3: (n_pos, E, C2); b3: (E, 1)
    # mseg: (n_pos*n_frames, n_frames) one-hot/n_pos; bexp: (n_frames, n_pos*n_frames)
    y = jnp.dot(w2T_ref[...], pT_ref[...], preferred_element_type=jnp.float32) + b2_ref[...]
    y = jnp.where(y >= 0, y, slope * y)                                      # LeakyReLU
    mseg = mseg_ref[...]
    bexp = bexp_ref[...]
    mean = jnp.dot(y, mseg, preferred_element_type=jnp.float32)              # (C2, N)
    var = jnp.maximum(jnp.dot(y * y, mseg, preferred_element_type=jnp.float32)
                      - mean * mean, 0.0)
    y = (y - jnp.dot(mean, bexp, preferred_element_type=jnp.float32)) * \
        jnp.dot(lax.rsqrt(var + eps), bexp, preferred_element_type=jnp.float32)
    # Layer 3: 5x5 conv whose output is 1x1 -> sum over positions of (E,C2)x(C2,N)
    # matmuls against the per-position lane blocks [pos*N, (pos+1)*N).
    w3 = w3_ref[...]                                                          # (n_pos, E, C2)
    acc = jnp.zeros((w3.shape[1], n_frames), jnp.float32) + b3_ref[...]
    for pos in range(n_pos):
        acc = acc + jnp.dot(w3[pos], y[:, pos * n_frames:(pos + 1) * n_frames],
                            preferred_element_type=jnp.float32)
    o_ref[...] = jnp.where(acc >= 0, acc, slope * acc)                        # final LeakyReLU (no IN)


def fused_transformer_kernel(x_ref, pos_ref, bias_ref, ln_io_ref, ln_stack_ref,
                             wq_ref, wk_ref, wv_ref, bq_ref, bk_ref, bv_ref,
                             wph_ref, bp_ref, wf_ref, bf_ref, wf2_ref, bf2_ref,
                             predw_ref, predb_ref, o_ref,
                             *, n_layer, n_head, eps):
    x = x_ref[0]                                   # (R, E) = (BG*L, E) folded batch rows
    R, E = x.shape
    hd = E // n_head
    scale = 1.0 / math.sqrt(hd)
    bias = bias_ref[0]                             # (R, R) block-diag causal+padding bias
    lio = ln_io_ref[...]                           # (4, E): emb_g, emb_b, f_g, f_b

    def ln(h, g, b):
        mu = jnp.mean(h, axis=-1, keepdims=True)
        var = jnp.mean((h - mu) ** 2, axis=-1, keepdims=True)
        return (h - mu) * lax.rsqrt(var + eps) * g + b

    # embed_ln, then +wpe (GPT2Model adds position embeddings internally)
    h = ln(x, lio[0:1, :], lio[1:2, :]) + pos_ref[0]

    gelu_c = math.sqrt(2.0 / math.pi)
    for l in range(n_layer):
        lnp = ln_stack_ref[l]                      # (4, E)
        a = ln(h, lnp[0:1, :], lnp[1:2, :])
        attn = jnp.zeros((R, E), jnp.float32)
        for hh in range(n_head):
            i = l * n_head + hh
            # per-head weights pre-packed -> no lane slicing of a (R, 3E) qkv result
            q = jnp.dot(a, wq_ref[i], preferred_element_type=jnp.float32) + bq_ref[i]
            k = jnp.dot(a, wk_ref[i], preferred_element_type=jnp.float32) + bk_ref[i]
            v = jnp.dot(a, wv_ref[i], preferred_element_type=jnp.float32) + bv_ref[i]
            s = lax.dot_general(q, k, (((1,), (1,)), ((), ())),
                                preferred_element_type=jnp.float32) * scale + bias
            s = s - jnp.max(s, axis=-1, keepdims=True)
            p = jnp.exp(s)
            p = p * pl.reciprocal(jnp.sum(p, axis=-1, keepdims=True), approx=True)
            ctx = jnp.dot(p, v, preferred_element_type=jnp.float32)
            attn = attn + jnp.dot(ctx, wph_ref[i], preferred_element_type=jnp.float32)
        h = h + attn + bp_ref[l]

        a2 = ln(h, lnp[2:3, :], lnp[3:4, :])
        # MLP slabs stored bf16; bf16 x bf16 MXU matmuls with f32 accumulation
        m1 = jnp.dot(a2.astype(jnp.bfloat16), wf_ref[l],
                     preferred_element_type=jnp.float32) + bf_ref[l]
        # GPT-2 "gelu_new" (tanh approximation)
        m1 = 0.5 * m1 * (1.0 + jnp.tanh(gelu_c * (m1 + 0.044715 * m1 ** 3)))
        h = h + jnp.dot(m1.astype(jnp.bfloat16), wf2_ref[l],
                        preferred_element_type=jnp.float32) + bf2_ref[l]

    h = ln(h, lio[2:3, :], lio[3:4, :])            # ln_f
    # lane-dense logits (A padded to 128) for ALL rows; state-token selection,
    # the A-slice and masked_fill(-inf) happen in XLA outside the kernel.
    o_ref[0] = jnp.dot(h, predw_ref[...], preferred_element_type=jnp.float32) + predb_ref[...]


# ----------------------------------------------------------------------------
# Pallas call wrappers
# ----------------------------------------------------------------------------
def conv_in_pallas(pT, wT, b, *, group):
    N, CK, S = pT.shape
    C = wT.shape[0]
    return pl.pallas_call(
        functools.partial(conv_in_kernel, group=group, slope=LEAKY_SLOPE, eps=IN_EPS),
        out_shape=jax.ShapeDtypeStruct((N, C, S), jnp.float32),
        grid=(N // group,),                      # pipelines the per-frame-group patch DMA
        in_specs=[
            pl.BlockSpec((group, CK, S), lambda i: (i, 0, 0)),
            pl.BlockSpec((C, CK), lambda i: (0, 0)),
            pl.BlockSpec((C, 1), lambda i: (0, 0)),
        ],
        out_specs=pl.BlockSpec((group, C, S), lambda i: (i, 0, 0)),
        compiler_params=pltpu.CompilerParams(dimension_semantics=("parallel",)),
    )(pT, wT, b)


def conv_out_pallas(pT, w2T, b2, w3, b3, mseg, bexp):
    CK2, COLS = pT.shape
    C2 = w2T.shape[0]
    n_pos, E, _ = w3.shape
    N = mseg.shape[1]
    return pl.pallas_call(
        functools.partial(conv_out_kernel, n_frames=N, n_pos=n_pos,
                          slope=LEAKY_SLOPE, eps=IN_EPS),
        out_shape=jax.ShapeDtypeStruct((E, N), jnp.float32),
        grid=(1,),
        in_specs=[
            pl.BlockSpec((CK2, COLS), lambda i: (0, 0)),
            pl.BlockSpec((C2, CK2), lambda i: (0, 0)),
            pl.BlockSpec((C2, 1), lambda i: (0, 0)),
            pl.BlockSpec((n_pos, E, C2), lambda i: (0, 0, 0)),
            pl.BlockSpec((E, 1), lambda i: (0, 0)),
            pl.BlockSpec((COLS, N), lambda i: (0, 0)),
            pl.BlockSpec((N, COLS), lambda i: (0, 0)),
        ],
        out_specs=pl.BlockSpec((E, N), lambda i: (0, 0)),
    )(pT, w2T, b2, w3, b3, mseg, bexp)


def fused_transformer(x, pos_emb, attn_bias, packed, pred_w_pad, pred_b_pad,
                      *, n_head, n_layer):
    G, R, E = x.shape
    AP = pred_w_pad.shape[1]
    weights = list(packed) + [pred_w_pad, pred_b_pad]
    in_specs = [
        pl.BlockSpec((1, R, E), lambda g: (g, 0, 0)),
        pl.BlockSpec((1, R, E), lambda g: (g, 0, 0)),
        pl.BlockSpec((1, R, R), lambda g: (g, 0, 0)),
    ]
    for wgt in weights:
        in_specs.append(pl.BlockSpec(wgt.shape, lambda g, _n=wgt.ndim: (0,) * _n))
    return pl.pallas_call(
        functools.partial(fused_transformer_kernel, n_layer=n_layer, n_head=n_head,
                          eps=LN_EPS),
        out_shape=jax.ShapeDtypeStruct((G, R, AP), jnp.float32),
        grid=(G,),                               # G = #TensorCores (2 on v7x, else 1)
        in_specs=in_specs,
        out_specs=pl.BlockSpec((1, R, AP), lambda g: (g, 0, 0)),
        compiler_params=pltpu.CompilerParams(
            dimension_semantics=("parallel",),
            vmem_limit_bytes=32 * 1024 * 1024),
    )(x, pos_emb, attn_bias, *weights)


# ----------------------------------------------------------------------------
# Host-side glue (XLA): gathers, im2col, packing
# ----------------------------------------------------------------------------
def _im2col_taps(x, kh, kw):
    # x: (N, H, W, C) NHWC -> (N, OH*OW, kh*kw*C) with (tap, channel) minor ordering.
    N, H, W, C = x.shape
    OH, OW = H - kh + 1, W - kw + 1
    taps = []
    for i in range(kh):
        for j in range(kw):
            taps.append(x[:, i:i + OH, j:j + OW, :])          # (N, OH, OW, C)
    p = jnp.stack(taps, axis=3)                               # (N, OH, OW, kh*kw, C)
    return p.reshape(N, OH * OW, kh * kw * C), OH, OW


def _oihw_to_gemm(w):
    # PyTorch OIHW (Cout, Cin, kh, kw) -> (kh*kw*Cin, Cout), matching (tap, channel) patches.
    cout, cin, kh, kw = w.shape
    return jnp.transpose(w, (2, 3, 1, 0)).reshape(kh * kw * cin, cout)


def state_cnn(x_nhwc, conv_params):
    # ShallowFollowerStateCNN: (conv7+LReLU+IN), (conv5+LReLU+IN), (conv5+LReLU)
    N = x_nhwc.shape[0]
    w1, b1 = conv_params[0]["w"], conv_params[0]["b"]
    w2, b2 = conv_params[1]["w"], conv_params[1]["b"]
    w3, b3 = conv_params[2]["w"], conv_params[2]["b"]
    C1, _, k1, _ = w1.shape
    C2, _, k2, _ = w2.shape
    E, _, k3, _ = w3.shape

    # layer 1 (transposed GEMM, gridded per frame group)
    p1, OH1, OW1 = _im2col_taps(x_nhwc, k1, k1)               # (N, 81, 196)
    p1T = jnp.transpose(p1, (0, 2, 1))                        # (N, 196, 81)
    w1T = _oihw_to_gemm(w1).T                                 # (C1, 196)
    group = next(g for g in (4, 2, 1) if N % g == 0)
    y1 = conv_in_pallas(p1T, w1T, b1.reshape(-1, 1), group=group)   # (N, C1, 81)

    # layers 2 + 3 (fused, transposed GEMM, whole batch)
    y1_nhwc = jnp.transpose(y1, (0, 2, 1)).reshape(N, OH1, OW1, C1)
    p2, OH2, OW2 = _im2col_taps(y1_nhwc, k2, k2)              # (N, 25, 200)
    S2 = OH2 * OW2
    assert OH2 == k3 and OW2 == k3, "layer-3 kernel must cover layer-2 output exactly"
    p2T = jnp.transpose(p2, (2, 1, 0)).reshape(p2.shape[-1], S2 * N)   # position-major columns
    w2T = _oihw_to_gemm(w2).T                                 # (C2, 200)
    w3s = jnp.transpose(w3, (2, 3, 0, 1)).reshape(k3 * k3, E, C2)      # (25, E, C2)
    b3c = b3.reshape(-1, 1)
    col = jnp.arange(S2 * N)
    onehot = (col[:, None] % N == jnp.arange(N)[None, :]).astype(jnp.float32)   # (25N, N)
    outT = conv_out_pallas(p2T, w2T, b2.reshape(-1, 1), w3s, b3c,
                           onehot / float(S2), onehot.T)      # (E, N)
    return outT.T                                             # (N, E)


def pack_gpt2_params(params, E, n_head):
    layers = params["layers"]
    hd = E // n_head
    ln_io = jnp.stack([params["ln_emb_g"], params["ln_emb_b"],
                       params["lnf_g"], params["lnf_b"]])                   # (4, E)
    ln_stack = jnp.stack([jnp.stack([lp["ln1_g"], lp["ln1_b"], lp["ln2_g"], lp["ln2_b"]])
                          for lp in layers])                                # (nl, 4, E)

    def heads_w(w):                               # (E, E) -> (n_head, E, hd)
        return jnp.transpose(w.reshape(E, n_head, hd), (1, 0, 2))

    wq = jnp.concatenate([heads_w(lp["w_qkv"][:, 0:E]) for lp in layers])          # (nl*nh, E, hd)
    wk = jnp.concatenate([heads_w(lp["w_qkv"][:, E:2 * E]) for lp in layers])
    wv = jnp.concatenate([heads_w(lp["w_qkv"][:, 2 * E:3 * E]) for lp in layers])
    bq = jnp.concatenate([lp["b_qkv"][0:E].reshape(n_head, 1, hd) for lp in layers])       # (nl*nh, 1, hd)
    bk = jnp.concatenate([lp["b_qkv"][E:2 * E].reshape(n_head, 1, hd) for lp in layers])
    bv = jnp.concatenate([lp["b_qkv"][2 * E:3 * E].reshape(n_head, 1, hd) for lp in layers])
    wph = jnp.concatenate([lp["w_proj"].reshape(n_head, hd, E) for lp in layers])  # (nl*nh, hd, E)
    bp = jnp.stack([lp["b_proj"].reshape(1, E) for lp in layers])                  # (nl, 1, E)
    wf = jnp.stack([lp["w_fc"] for lp in layers]).astype(jnp.bfloat16)             # (nl, E, 4E) bf16
    bf = jnp.stack([lp["b_fc"].reshape(1, 4 * E) for lp in layers])                # (nl, 1, 4E)
    wf2 = jnp.stack([lp["w_fc2"] for lp in layers]).astype(jnp.bfloat16)           # (nl, 4E, E) bf16
    bf2 = jnp.stack([lp["b_fc2"].reshape(1, E) for lp in layers])                  # (nl, 1, E)
    return (ln_io, ln_stack, wq, wk, wv, bq, bk, bv, wph, bp, wf, bf, wf2, bf2)


# ----------------------------------------------------------------------------
# Parameters (deterministic, synthetic)
# ----------------------------------------------------------------------------
def init_params(key, *, vocab, n_embd, n_layer, act_dim, num_props, p_dim,
                max_ep, max_pos):
    ks = iter(jax.random.split(key, 128))

    def nrm(shape, scale=0.02):
        return (scale * jax.random.normal(next(ks), shape)).astype(jnp.float32)

    params = {}
    wte = nrm((vocab + 1, n_embd))
    params["wte"] = wte.at[vocab].set(0.0)                 # TEXT_PAD_IDX = vocab
    wtime = nrm((max_ep + 1, n_embd))
    params["wtime"] = wtime.at[max_ep].set(0.0)            # timestep padding_idx
    wact = nrm((act_dim, n_embd))
    params["wact"] = wact.at[0].set(0.0)                   # ActionEnums['PAD'] = 0
    sembed = nrm((num_props, p_dim))
    params["state_embed"] = sembed.at[0].set(0.0)          # STATE_PAD_IDX = 0
    params["wpe"] = nrm((max_pos, n_embd))

    c1, c2 = 2 * p_dim, 4 * p_dim                          # ShallowFollowerStateCNN
    params["conv"] = [
        dict(w=nrm((c1, p_dim, 7, 7)), b=nrm((c1,))),
        dict(w=nrm((c2, c1, 5, 5)), b=nrm((c2,))),
        dict(w=nrm((n_embd, c2, 5, 5)), b=nrm((n_embd,))),
    ]

    params["ln_emb_g"] = jnp.ones((n_embd,), jnp.float32)
    params["ln_emb_b"] = jnp.zeros((n_embd,), jnp.float32)

    layers = []
    for _ in range(n_layer):
        layers.append(dict(
            ln1_g=jnp.ones((n_embd,), jnp.float32), ln1_b=jnp.zeros((n_embd,), jnp.float32),
            w_qkv=nrm((n_embd, 3 * n_embd)), b_qkv=jnp.zeros((3 * n_embd,), jnp.float32),
            w_proj=nrm((n_embd, n_embd)), b_proj=jnp.zeros((n_embd,), jnp.float32),
            ln2_g=jnp.ones((n_embd,), jnp.float32), ln2_b=jnp.zeros((n_embd,), jnp.float32),
            w_fc=nrm((n_embd, 4 * n_embd)), b_fc=jnp.zeros((4 * n_embd,), jnp.float32),
            w_fc2=nrm((4 * n_embd, n_embd)), b_fc2=jnp.zeros((n_embd,), jnp.float32),
        ))
    params["layers"] = layers

    params["lnf_g"] = jnp.ones((n_embd,), jnp.float32)
    params["lnf_b"] = jnp.zeros((n_embd,), jnp.float32)

    params["pred_w"] = nrm((act_dim, n_embd), scale=0.1)   # PyTorch (out, in) layout
    params["pred_b"] = jnp.zeros((act_dim,), jnp.float32)
    return params


# ----------------------------------------------------------------------------
# Forward pass (DecisionTransformer.forward semantics)
# ----------------------------------------------------------------------------
def decision_transformer_forward(params, states, actions, timesteps, text_conditioning,
                                 pos_idx, attention_mask, text_attention_mask, action_mask,
                                 *, n_head, batch_groups=1):
    B, T = states.shape[0], states.shape[1]
    E = params["wte"].shape[1]
    A = params["pred_b"].shape[0]

    # --- embeddings (gathers are XLA glue) ---
    text_emb = jnp.take(params["wte"], text_conditioning, axis=0)       # (B, Lt, E)
    Lt = text_emb.shape[1]

    # StateEmbedder: embed property indices, sum over property slots -> NHWC frames
    se = jnp.take(params["state_embed"], states, axis=0)                # (B,T,K,H,W,P)
    se = jnp.sum(se, axis=2)                                            # (B,T,H,W,P)
    H, W, P = se.shape[2], se.shape[3], se.shape[4]
    x_nhwc = se.reshape(B * T, H, W, P)
    state_emb = state_cnn(x_nhwc, params["conv"]).reshape(B, T, E)      # (B,T,E)

    action_emb = jnp.tanh(jnp.take(params["wact"], actions, axis=0))    # (B,T,E)
    time_emb = jnp.take(params["wtime"], timesteps, axis=0)             # (B,T,E)
    state_emb = state_emb + time_emb
    action_emb = action_emb + time_emb

    # interleave (state_t, action_t) after the text context
    stacked = jnp.stack([state_emb, action_emb], axis=1)                # (B,2,T,E)
    stacked = jnp.transpose(stacked, (0, 2, 1, 3)).reshape(B, 2 * T, E)
    stacked = jnp.concatenate([text_emb, stacked], axis=1)              # (B,L,E)
    L = Lt + 2 * T

    am = attention_mask.astype(jnp.float32)
    smask = jnp.transpose(jnp.stack([am, am], axis=1), (0, 2, 1)).reshape(B, 2 * T)
    full_mask = jnp.concatenate([text_attention_mask.astype(jnp.float32), smask], axis=1)

    pos_emb = jnp.take(params["wpe"], pos_idx, axis=0)                  # (B,L,E)

    # causal + padding additive bias per batch row, then block-diagonal per group
    if B % batch_groups != 0:
        batch_groups = 1
    G = batch_groups
    BG = B // G
    R = BG * L
    qi = jnp.arange(L)[:, None]
    ki = jnp.arange(L)[None, :]
    causal = jnp.where(ki <= qi, 0.0, -1e9).astype(jnp.float32)
    per_batch = causal[None, :, :] + (1.0 - full_mask)[:, None, :] * (-1e9)   # (B,L,L)
    pb = per_batch.reshape(G, BG, L, L)
    same = jnp.arange(BG)[:, None] == jnp.arange(BG)[None, :]
    attn_bias = jnp.where(same[None, :, None, :, None],
                          pb[:, :, :, None, :], -1e9).reshape(G, R, R)

    xg = stacked.reshape(G, R, E)
    pg = pos_emb.reshape(G, R, E)

    packed = pack_gpt2_params(params, E, n_head)
    AP = ((A + 127) // 128) * 128                                       # lane-dense logits
    pred_w_pad = jnp.pad(params["pred_w"].T, ((0, 0), (0, AP - A)))
    pred_b_pad = jnp.pad(params["pred_b"], (0, AP - A)).reshape(1, AP)

    logits_full = fused_transformer(xg, pg, attn_bias, packed, pred_w_pad, pred_b_pad,
                                    n_head=n_head, n_layer=len(params["layers"]))
    logits_full = logits_full.reshape(B, L, AP)
    st_rows = Lt + 2 * jnp.arange(T)                                    # state-token rows
    logits = jnp.take(logits_full, st_rows, axis=1)[..., :A]            # (B,T,A)
    return jnp.where(action_mask, -jnp.inf, logits)                     # masked_fill(-inf)


# ----------------------------------------------------------------------------
if __name__ == "__main__":
    B, T, K, H, W = 2, 4, 3, 15, 15      # 15x15 spatial required by Shallow CNN (7,5,5 valid convs)
    P_DIM = 4                            # state_embedding_dimension (CNN_EMB_DIM)
    E = 32                               # embedding_size (GPT_EMB_DIM)
    N_HEAD = 4
    N_LAYER = 2
    ACT_DIM = 8
    NUM_PROPERTIES = 16
    VOCAB = 50
    MAX_EP = 64
    MAX_POS = 128
    LT = 4
    L = LT + 2 * T

    key = jax.random.PRNGKey(0)
    kp, k1, k2, k3, k4 = jax.random.split(key, 5)

    params = init_params(kp, vocab=VOCAB, n_embd=E, n_layer=N_LAYER, act_dim=ACT_DIM,
                         num_props=NUM_PROPERTIES, p_dim=P_DIM, max_ep=MAX_EP, max_pos=MAX_POS)

    states = jax.random.randint(k1, (B, T, K, H, W), 0, NUM_PROPERTIES)
    actions = jax.random.randint(k2, (B, T), 0, ACT_DIM)
    timesteps = jnp.broadcast_to(jnp.arange(T, dtype=jnp.int32), (B, T))
    text_conditioning = jax.random.randint(k3, (B, LT), 0, VOCAB)
    pos_idx = jnp.broadcast_to(jnp.arange(L, dtype=jnp.int32), (B, L))
    attention_mask = jnp.ones((B, T), jnp.int32)
    text_attention_mask = jnp.ones((B, LT), jnp.int32)
    action_mask = jax.random.uniform(k4, (B, T, ACT_DIM)) < 0.2

    # one "parallel" batch group per TensorCore: 2 on v7x (2 TCs/chip), else 1
    try:
        kind = jax.devices()[0].device_kind.lower()
        n_tc = 2 if "7" in kind else 1
    except Exception:
        n_tc = 1
    batch_groups = n_tc if B % n_tc == 0 else 1

    fwd = jax.jit(functools.partial(decision_transformer_forward, n_head=N_HEAD,
                                    batch_groups=batch_groups))
    out = fwd(params, states, actions, timesteps, text_conditioning,
              pos_idx, attention_mask, text_attention_mask, action_mask)
    jax.block_until_ready(out)

    assert out.shape == (B, T, ACT_DIM), out.shape
    print("KERNEL_OK")
</pallas_src>

<mosaic_0001>
module attributes {stable_mosaic.version = 11 : i64} {
  func.func @conv_in_kernel(%arg0: i32, %arg1: memref<4x196x81xf32, #tpu.memory_space<vmem>>, %arg2: memref<8x196xf32, #tpu.memory_space<vmem>>, %arg3: memref<8x1xf32, #tpu.memory_space<vmem>>, %arg4: memref<4x8x81xf32, #tpu.memory_space<vmem>>) attributes {dimension_semantics = [#tpu.dimension_semantics<parallel>], iteration_bounds = array<i64: 2>, scalar_prefetch = 0 : i64, scratch_operands = 0 : i64, tpu.core_type = #tpu.core_type<tc>, window_params = [{transform_indices = @transform_0, window_bounds = array<i64: 4, 196, 81>}, {pipeline_mode = #tpu.pipeline_mode<synchronous>, transform_indices = @transform_1, window_bounds = array<i64: 8, 196>}, {pipeline_mode = #tpu.pipeline_mode<synchronous>, transform_indices = @transform_2, window_bounds = array<i64: 8, 1>}, {transform_indices = @transform_3, window_bounds = array<i64: 4, 8, 81>}]} {
    %c0 = arith.constant 0 : index
    %c0_0 = arith.constant 0 : index
    %0 = vector.load %arg2[%c0, %c0_0] : memref<8x196xf32, #tpu.memory_space<vmem>>, vector<8x196xf32>
    %c0_1 = arith.constant 0 : index
    %c0_2 = arith.constant 0 : index
    %1 = vector.load %arg3[%c0_1, %c0_2] : memref<8x1xf32, #tpu.memory_space<vmem>>, vector<8x1xf32>
    %c0_3 = arith.constant 0 : index
    %c0_4 = arith.constant 0 : index
    %c0_5 = arith.constant 0 : index
    %2 = vector.load %arg1[%c0_3, %c0_4, %c0_5] : memref<4x196x81xf32, #tpu.memory_space<vmem>>, vector<1x196x81xf32>
    %3 = vector.shape_cast %2 : vector<1x196x81xf32> to vector<196x81xf32>
    %cst = arith.constant dense<0.000000e+00> : vector<8x81xf32>
    %4 = tpu.matmul %0, %3, %cst {dimension_numbers = #tpu.dot_dimension_numbers<[1], [0], [0], [1], [0, 0, 1, 1], [], []>} : vector<8x196xf32>, vector<196x81xf32>, vector<8x81xf32> -> vector<8x81xf32>
    %5 = vector.broadcast %1 : vector<8x1xf32> to vector<8x81xf32>
    %6 = arith.addf %4, %5 : vector<8x81xf32>
    %cst_6 = arith.constant 0.000000e+00 : f32
    %7 = vector.broadcast %cst_6 : f32 to vector<8x81xf32>
    %8 = arith.cmpf oge, %6, %7 : vector<8x81xf32>
    %cst_7 = arith.constant 0.00999999977 : f32
    %9 = vector.broadcast %cst_7 : f32 to vector<8x81xf32>
    %10 = arith.mulf %9, %6 : vector<8x81xf32>
    %11 = arith.select %8, %6, %10 : vector<8x81xi1>, vector<8x81xf32>
    %cst_8 = arith.constant dense<0.000000e+00> : vector<8xf32>
    %12 = vector.multi_reduction <add>, %11, %cst_8 [1] : vector<8x81xf32> to vector<8xf32>
    %13 = vector.shape_cast %12 : vector<8xf32> to vector<8x1xf32>
    %cst_9 = arith.constant 8.100000e+01 : f32
    %14 = vector.broadcast %cst_9 : f32 to vector<8x1xf32>
    %15 = arith.divf %13, %14 : vector<8x1xf32>
    %16 = vector.broadcast %15 : vector<8x1xf32> to vector<8x81xf32>
    %17 = arith.subf %11, %16 : vector<8x81xf32>
    %18 = arith.mulf %17, %17 : vector<8x81xf32>
    %cst_10 = arith.constant dense<0.000000e+00> : vector<8xf32>
    %19 = vector.multi_reduction <add>, %18, %cst_10 [1] : vector<8x81xf32> to vector<8xf32>
    %20 = vector.shape_cast %19 : vector<8xf32> to vector<8x1xf32>
    %cst_11 = arith.constant 8.100000e+01 : f32
    %21 = vector.broadcast %cst_11 : f32 to vector<8x1xf32>
    %22 = arith.divf %20, %21 : vector<8x1xf32>
    %23 = vector.broadcast %15 : vector<8x1xf32> to vector<8x81xf32>
    %24 = arith.subf %11, %23 : vector<8x81xf32>
    %cst_12 = arith.constant 9.99999974E-6 : f32
    %25 = vector.broadcast %cst_12 : f32 to vector<8x1xf32>
    %26 = arith.addf %22, %25 : vector<8x1xf32>
    %27 = math.rsqrt %26 : vector<8x1xf32>
    %28 = vector.broadcast %27 : vector<8x1xf32> to vector<8x81xf32>
    %29 = arith.mulf %24, %28 : vector<8x81xf32>
    %c0_13 = arith.constant 0 : index
    %c0_14 = arith.constant 0 : index
    %c0_15 = arith.constant 0 : index
    %30 = vector.load %arg4[%c0_13, %c0_14, %c0_15] : memref<4x8x81xf32, #tpu.memory_space<vmem>>, vector<1x8x81xf32>
    %31 = vector.shape_cast %30 : vector<1x8x81xf32> to vector<8x81xf32>
    %32 = vector.shape_cast %29 : vector<8x81xf32> to vector<1x8x81xf32>
    tpu.vector_store %arg4[%c0_13, %c0_14, %c0_15], %32 {strides = array<i32>} : memref<4x8x81xf32, #tpu.memory_space<vmem>>, vector<1x8x81xf32>,
    %c1 = arith.constant 1 : index
    %c0_16 = arith.constant 0 : index
    %c0_17 = arith.constant 0 : index
    %33 = vector.load %arg1[%c1, %c0_16, %c0_17] : memref<4x196x81xf32, #tpu.memory_space<vmem>>, vector<1x196x81xf32>
    %34 = vector.shape_cast %33 : vector<1x196x81xf32> to vector<196x81xf32>
    %cst_18 = arith.constant dense<0.000000e+00> : vector<8x81xf32>
    %35 = tpu.matmul %0, %34, %cst_18 {dimension_numbers = #tpu.dot_dimension_numbers<[1], [0], [0], [1], [0, 0, 1, 1], [], []>} : vector<8x196xf32>, vector<196x81xf32>, vector<8x81xf32> -> vector<8x81xf32>
    %36 = vector.broadcast %1 : vector<8x1xf32> to vector<8x81xf32>
    %37 = arith.addf %35, %36 : vector<8x81xf32>
    %cst_19 = arith.constant 0.000000e+00 : f32
    %38 = vector.broadcast %cst_19 : f32 to vector<8x81xf32>
    %39 = arith.cmpf oge, %37, %38 : vector<8x81xf32>
    %cst_20 = arith.constant 0.00999999977 : f32
    %40 = vector.broadcast %cst_20 : f32 to vector<8x81xf32>
    %41 = arith.mulf %40, %37 : vector<8x81xf32>
    %42 = arith.select %39, %37, %41 : vector<8x81xi1>, vector<8x81xf32>
    %cst_21 = arith.constant dense<0.000000e+00> : vector<8xf32>
    %43 = vector.multi_reduction <add>, %42, %cst_21 [1] : vector<8x81xf32> to vector<8xf32>
    %44 = vector.shape_cast %43 : vector<8xf32> to vector<8x1xf32>
    %cst_22 = arith.constant 8.100000e+01 : f32
    %45 = vector.broadcast %cst_22 : f32 to vector<8x1xf32>
    %46 = arith.divf %44, %45 : vector<8x1xf32>
    %47 = vector.broadcast %46 : vector<8x1xf32> to vector<8x81xf32>
    %48 = arith.subf %42, %47 : vector<8x81xf32>
    %49 = arith.mulf %48, %48 : vector<8x81xf32>
    %cst_23 = arith.constant dense<0.000000e+00> : vector<8xf32>
    %50 = vector.multi_reduction <add>, %49, %cst_23 [1] : vector<8x81xf32> to vector<8xf32>
    %51 = vector.shape_cast %50 : vector<8xf32> to vector<8x1xf32>
    %cst_24 = arith.constant 8.100000e+01 : f32
    %52 = vector.broadcast %cst_24 : f32 to vector<8x1xf32>
    %53 = arith.divf %51, %52 : vector<8x1xf32>
    %54 = vector.broadcast %46 : vector<8x1xf32> to vector<8x81xf32>
    %55 = arith.subf %42, %54 : vector<8x81xf32>
    %cst_25 = arith.constant 9.99999974E-6 : f32
    %56 = vector.broadcast %cst_25 : f32 to vector<8x1xf32>
    %57 = arith.addf %53, %56 : vector<8x1xf32>
    %58 = math.rsqrt %57 : vector<8x1xf32>
    %59 = vector.broadcast %58 : vector<8x1xf32> to vector<8x81xf32>
    %60 = arith.mulf %55, %59 : vector<8x81xf32>
    %c1_26 = arith.constant 1 : index
    %c0_27 = arith.constant 0 : index
    %c0_28 = arith.constant 0 : index
    %61 = vector.load %arg4[%c1_26, %c0_27, %c0_28] : memref<4x8x81xf32, #tpu.memory_space<vmem>>, vector<1x8x81xf32>
    %62 = vector.shape_cast %61 : vector<1x8x81xf32> to vector<8x81xf32>
    %63 = vector.shape_cast %60 : vector<8x81xf32> to vector<1x8x81xf32>
    tpu.vector_store %arg4[%c1_26, %c0_27, %c0_28], %63 {strides = array<i32>} : memref<4x8x81xf32, #tpu.memory_space<vmem>>, vector<1x8x81xf32>,
    %c2 = arith.constant 2 : index
    %c0_29 = arith.constant 0 : index
    %c0_30 = arith.constant 0 : index
    %64 = vector.load %arg1[%c2, %c0_29, %c0_30] : memref<4x196x81xf32, #tpu.memory_space<vmem>>, vector<1x196x81xf32>
    %65 = vector.shape_cast %64 : vector<1x196x81xf32> to vector<196x81xf32>
    %cst_31 = arith.constant dense<0.000000e+00> : vector<8x81xf32>
    %66 = tpu.matmul %0, %65, %cst_31 {dimension_numbers = #tpu.dot_dimension_numbers<[1], [0], [0], [1], [0, 0, 1, 1], [], []>} : vector<8x196xf32>, vector<196x81xf32>, vector<8x81xf32> -> vector<8x81xf32>
    %67 = vector.broadcast %1 : vector<8x1xf32> to vector<8x81xf32>
    %68 = arith.addf %66, %67 : vector<8x81xf32>
    %cst_32 = arith.constant 0.000000e+00 : f32
    %69 = vector.broadcast %cst_32 : f32 to vector<8x81xf32>
    %70 = arith.cmpf oge, %68, %69 : vector<8x81xf32>
    %cst_33 = arith.constant 0.00999999977 : f32
    %71 = vector.broadcast %cst_33 : f32 to vector<8x81xf32>
    %72 = arith.mulf %71, %68 : vector<8x81xf32>
    %73 = arith.select %70, %68, %72 : vector<8x81xi1>, vector<8x81xf32>
    %cst_34 = arith.constant dense<0.000000e+00> : vector<8xf32>
    %74 = vector.multi_reduction <add>, %73, %cst_34 [1] : vector<8x81xf32> to vector<8xf32>
    %75 = vector.shape_cast %74 : vector<8xf32> to vector<8x1xf32>
    %cst_35 = arith.constant 8.100000e+01 : f32
    %76 = vector.broadcast %cst_35 : f32 to vector<8x1xf32>
    %77 = arith.divf %75, %76 : vector<8x1xf32>
    %78 = vector.broadcast %77 : vector<8x1xf32> to vector<8x81xf32>
    %79 = arith.subf %73, %78 : vector<8x81xf32>
    %80 = arith.mulf %79, %79 : vector<8x81xf32>
    %cst_36 = arith.constant dense<0.000000e+00> : vector<8xf32>
    %81 = vector.multi_reduction <add>, %80, %cst_36 [1] : vector<8x81xf32> to vector<8xf32>
    %82 = vector.shape_cast %81 : vector<8xf32> to vector<8x1xf32>
    %cst_37 = arith.constant 8.100000e+01 : f32
    %83 = vector.broadcast %cst_37 : f32 to vector<8x1xf32>
    %84 = arith.divf %82, %83 : vector<8x1xf32>
    %85 = vector.broadcast %77 : vector<8x1xf32> to vector<8x81xf32>
    %86 = arith.subf %73, %85 : vector<8x81xf32>
    %cst_38 = arith.constant 9.99999974E-6 : f32
    %87 = vector.broadcast %cst_38 : f32 to vector<8x1xf32>
    %88 = arith.addf %84, %87 : vector<8x1xf32>
    %89 = math.rsqrt %88 : vector<8x1xf32>
    %90 = vector.broadcast %89 : vector<8x1xf32> to vector<8x81xf32>
    %91 = arith.mulf %86, %90 : vector<8x81xf32>
    %c2_39 = arith.constant 2 : index
    %c0_40 = arith.constant 0 : index
    %c0_41 = arith.constant 0 : index
    %92 = vector.load %arg4[%c2_39, %c0_40, %c0_41] : memref<4x8x81xf32, #tpu.memory_space<vmem>>, vector<1x8x81xf32>
    %93 = vector.shape_cast %92 : vector<1x8x81xf32> to vector<8x81xf32>
    %94 = vector.shape_cast %91 : vector<8x81xf32> to vector<1x8x81xf32>
    tpu.vector_store %arg4[%c2_39, %c0_40, %c0_41], %94 {strides = array<i32>} : memref<4x8x81xf32, #tpu.memory_space<vmem>>, vector<1x8x81xf32>,
    %c3 = arith.constant 3 : index
    %c0_42 = arith.constant 0 : index
    %c0_43 = arith.constant 0 : index
    %95 = vector.load %arg1[%c3, %c0_42, %c0_43] : memref<4x196x81xf32, #tpu.memory_space<vmem>>, vector<1x196x81xf32>
    %96 = vector.shape_cast %95 : vector<1x196x81xf32> to vector<196x81xf32>
    %cst_44 = arith.constant dense<0.000000e+00> : vector<8x81xf32>
    %97 = tpu.matmul %0, %96, %cst_44 {dimension_numbers = #tpu.dot_dimension_numbers<[1], [0], [0], [1], [0, 0, 1, 1], [], []>} : vector<8x196xf32>, vector<196x81xf32>, vector<8x81xf32> -> vector<8x81xf32>
    %98 = vector.broadcast %1 : vector<8x1xf32> to vector<8x81xf32>
    %99 = arith.addf %97, %98 : vector<8x81xf32>
    %cst_45 = arith.constant 0.000000e+00 : f32
    %100 = vector.broadcast %cst_45 : f32 to vector<8x81xf32>
    %101 = arith.cmpf oge, %99, %100 : vector<8x81xf32>
    %cst_46 = arith.constant 0.00999999977 : f32
    %102 = vector.broadcast %cst_46 : f32 to vector<8x81xf32>
    %103 = arith.mulf %102, %99 : vector<8x81xf32>
    %104 = arith.select %101, %99, %103 : vector<8x81xi1>, vector<8x81xf32>
    %cst_47 = arith.constant dense<0.000000e+00> : vector<8xf32>
    %105 = vector.multi_reduction <add>, %104, %cst_47 [1] : vector<8x81xf32> to vector<8xf32>
    %106 = vector.shape_cast %105 : vector<8xf32> to vector<8x1xf32>
    %cst_48 = arith.constant 8.100000e+01 : f32
    %107 = vector.broadcast %cst_48 : f32 to vector<8x1xf32>
    %108 = arith.divf %106, %107 : vector<8x1xf32>
    %109 = vector.broadcast %108 : vector<8x1xf32> to vector<8x81xf32>
    %110 = arith.subf %104, %109 : vector<8x81xf32>
    %111 = arith.mulf %110, %110 : vector<8x81xf32>
    %cst_49 = arith.constant dense<0.000000e+00> : vector<8xf32>
    %112 = vector.multi_reduction <add>, %111, %cst_49 [1] : vector<8x81xf32> to vector<8xf32>
    %113 = vector.shape_cast %112 : vector<8xf32> to vector<8x1xf32>
    %cst_50 = arith.constant 8.100000e+01 : f32
    %114 = vector.broadcast %cst_50 : f32 to vector<8x1xf32>
    %115 = arith.divf %113, %114 : vector<8x1xf32>
    %116 = vector.broadcast %108 : vector<8x1xf32> to vector<8x81xf32>
    %117 = arith.subf %104, %116 : vector<8x81xf32>
    %cst_51 = arith.constant 9.99999974E-6 : f32
    %118 = vector.broadcast %cst_51 : f32 to vector<8x1xf32>
    %119 = arith.addf %115, %118 : vector<8x1xf32>
    %120 = math.rsqrt %119 : vector<8x1xf32>
    %121 = vector.broadcast %120 : vector<8x1xf32> to vector<8x81xf32>
    %122 = arith.mulf %117, %121 : vector<8x81xf32>
    %c3_52 = arith.constant 3 : index
    %c0_53 = arith.constant 0 : index
    %c0_54 = arith.constant 0 : index
    %123 = vector.load %arg4[%c3_52, %c0_53, %c0_54] : memref<4x8x81xf32, #tpu.memory_space<vmem>>, vector<1x8x81xf32>
    %124 = vector.shape_cast %123 : vector<1x8x81xf32> to vector<8x81xf32>
    %125 = vector.shape_cast %122 : vector<8x81xf32> to vector<1x8x81xf32>
    tpu.vector_store %arg4[%c3_52, %c0_53, %c0_54], %125 {strides = array<i32>} : memref<4x8x81xf32, #tpu.memory_space<vmem>>, vector<1x8x81xf32>,
    return
  }
  func.func @transform_0(%arg0: i32) -> (i32, i32, i32) {
    %c0_i32 = arith.constant 0 : i32
    %c0_i32_0 = arith.constant 0 : i32
    %c0_i32_1 = arith.constant 0 : i32
    return %arg0, %c0_i32, %c0_i32_0 : i32, i32, i32
  }
  func.func @transform_1(%arg0: i32) -> (i32, i32) {
    %c0_i32 = arith.constant 0 : i32
    %c0_i32_0 = arith.constant 0 : i32
    %c0_i32_1 = arith.constant 0 : i32
    return %c0_i32, %c0_i32_0 : i32, i32
  }
  func.func @transform_2(%arg0: i32) -> (i32, i32) {
    %c0_i32 = arith.constant 0 : i32
    %c0_i32_0 = arith.constant 0 : i32
    %c0_i32_1 = arith.constant 0 : i32
    return %c0_i32, %c0_i32_0 : i32, i32
  }
  func.func @transform_3(%arg0: i32) -> (i32, i32, i32) {
    %c0_i32 = arith.constant 0 : i32
    %c0_i32_0 = arith.constant 0 : i32
    %c0_i32_1 = arith.constant 0 : i32
    return %arg0, %c0_i32, %c0_i32_0 : i32, i32, i32
  }
}

module attributes {stable_mosaic.version = 11 : i64} {
  func.func @conv_out_kernel(%arg0: i32, %arg1: memref<200x200xf32, #tpu.memory_space<vmem>>, %arg2: memref<16x200xf32, #tpu.memory_space<vmem>>, %arg3: memref<16x1xf32, #tpu.memory_space<vmem>>, %arg4: memref<25x32x16xf32, #tpu.memory_space<vmem>>, %arg5: memref<32x1xf32, #tpu.memory_space<vmem>>, %arg6: memref<200x8xf32, #tpu.memory_space<vmem>>, %arg7: memref<8x200xf32, #tpu.memory_space<vmem>>, %arg8: memref<32x8xf32, #tpu.memory_space<vmem>>) attributes {dimension_semantics = [#tpu.dimension_semantics<arbitrary>], iteration_bounds = array<i64: 1>, scalar_prefetch = 0 : i64, scratch_operands = 0 : i64, tpu.core_type = #tpu.core_type<tc>, window_params = [{pipeline_mode = #tpu.pipeline_mode<synchronous>, transform_indices = @transform_0, window_bounds = array<i64: 200, 200>}, {pipeline_mode = #tpu.pipeline_mode<synchronous>, transform_indices = @transform_1, window_bounds = array<i64: 16, 200>}, {pipeline_mode = #tpu.pipeline_mode<synchronous>, transform_indices = @transform_2, window_bounds = array<i64: 16, 1>}, {pipeline_mode = #tpu.pipeline_mode<synchronous>, transform_indices = @transform_3, window_bounds = array<i64: 25, 32, 16>}, {pipeline_mode = #tpu.pipeline_mode<synchronous>, transform_indices = @transform_4, window_bounds = array<i64: 32, 1>}, {pipeline_mode = #tpu.pipeline_mode<synchronous>, transform_indices = @transform_5, window_bounds = array<i64: 200, 8>}, {pipeline_mode = #tpu.pipeline_mode<synchronous>, transform_indices = @transform_6, window_bounds = array<i64: 8, 200>}, {pipeline_mode = #tpu.pipeline_mode<synchronous>, transform_indices = @transform_7, window_bounds = array<i64: 32, 8>}]} {
    %c0 = arith.constant 0 : index
    %c0_0 = arith.constant 0 : index
    %0 = vector.load %arg2[%c0, %c0_0] : memref<16x200xf32, #tpu.memory_space<vmem>>, vector<16x200xf32>
    %c0_1 = arith.constant 0 : index
    %c0_2 = arith.constant 0 : index
    %1 = vector.load %arg1[%c0_1, %c0_2] : memref<200x200xf32, #tpu.memory_space<vmem>>, vector<200x200xf32>
    %cst = arith.constant dense<0.000000e+00> : vector<16x200xf32>
    %2 = tpu.matmul %0, %1, %cst {dimension_numbers = #tpu.dot_dimension_numbers<[1], [0], [0], [1], [0, 0, 1, 1], [], []>} : vector<16x200xf32>, vector<200x200xf32>, vector<16x200xf32> -> vector<16x200xf32>
    %c0_3 = arith.constant 0 : index
    %c0_4 = arith.constant 0 : index
    %3 = vector.load %arg3[%c0_3, %c0_4] : memref<16x1xf32, #tpu.memory_space<vmem>>, vector<16x1xf32>
    %4 = vector.broadcast %3 : vector<16x1xf32> to vector<16x200xf32>
    %5 = arith.addf %2, %4 : vector<16x200xf32>
    %cst_5 = arith.constant 0.000000e+00 : f32
    %6 = vector.broadcast %cst_5 : f32 to vector<16x200xf32>
    %7 = arith.cmpf oge, %5, %6 : vector<16x200xf32>
    %cst_6 = arith.constant 0.00999999977 : f32
    %8 = vector.broadcast %cst_6 : f32 to vector<16x200xf32>
    %9 = arith.mulf %8, %5 : vector<16x200xf32>
    %10 = arith.select %7, %5, %9 : vector<16x200xi1>, vector<16x200xf32>
    %c0_7 = arith.constant 0 : index
    %c0_8 = arith.constant 0 : index
    %11 = vector.load %arg6[%c0_7, %c0_8] : memref<200x8xf32, #tpu.memory_space<vmem>>, vector<200x8xf32>
    %c0_9 = arith.constant 0 : index
    %c0_10 = arith.constant 0 : index
    %12 = vector.load %arg7[%c0_9, %c0_10] : memref<8x200xf32, #tpu.memory_space<vmem>>, vector<8x200xf32>
    %cst_11 = arith.constant dense<0.000000e+00> : vector<16x8xf32>
    %13 = tpu.matmul %10, %11, %cst_11 {dimension_numbers = #tpu.dot_dimension_numbers<[1], [0], [0], [1], [0, 0, 1, 1], [], []>} : vector<16x200xf32>, vector<200x8xf32>, vector<16x8xf32> -> vector<16x8xf32>
    %14 = arith.mulf %10, %10 : vector<16x200xf32>
    %cst_12 = arith.constant dense<0.000000e+00> : vector<16x8xf32>
    %15 = tpu.matmul %14, %11, %cst_12 {dimension_numbers = #tpu.dot_dimension_numbers<[1], [0], [0], [1], [0, 0, 1, 1], [], []>} : vector<16x200xf32>, vector<200x8xf32>, vector<16x8xf32> -> vector<16x8xf32>
    %16 = arith.mulf %13, %13 : vector<16x8xf32>
    %17 = arith.subf %15, %16 : vector<16x8xf32>
    %cst_13 = arith.constant 0.000000e+00 : f32
    %18 = vector.broadcast %cst_13 : f32 to vector<16x8xf32>
    %19 = arith.maximumf %17, %18 : vector<16x8xf32>
    %cst_14 = arith.constant dense<0.000000e+00> : vector<16x200xf32>
    %20 = tpu.matmul %13, %12, %cst_14 {dimension_numbers = #tpu.dot_dimension_numbers<[1], [0], [0], [1], [0, 0, 1, 1], [], []>} : vector<16x8xf32>, vector<8x200xf32>, vector<16x200xf32> -> vector<16x200xf32>
    %21 = arith.subf %10, %20 : vector<16x200xf32>
    %cst_15 = arith.constant 9.99999974E-6 : f32
    %22 = vector.broadcast %cst_15 : f32 to vector<16x8xf32>
    %23 = arith.addf %19, %22 : vector<16x8xf32>
    %24 = math.rsqrt %23 : vector<16x8xf32>
    %cst_16 = arith.constant dense<0.000000e+00> : vector<16x200xf32>
    %25 = tpu.matmul %24, %12, %cst_16 {dimension_numbers = #tpu.dot_dimension_numbers<[1], [0], [0], [1], [0, 0, 1, 1], [], []>} : vector<16x8xf32>, vector<8x200xf32>, vector<16x200xf32> -> vector<16x200xf32>
    %26 = arith.mulf %21, %25 : vector<16x200xf32>
    %c0_17 = arith.constant 0 : index
    %c0_18 = arith.constant 0 : index
    %c0_19 = arith.constant 0 : index
    %27 = vector.load %arg4[%c0_17, %c0_18, %c0_19] : memref<25x32x16xf32, #tpu.memory_space<vmem>>, vector<25x32x16xf32>
    %cst_20 = arith.constant 0.000000e+00 : f32
    %28 = vector.broadcast %cst_20 : f32 to vector<32x8xf32>
    %c0_21 = arith.constant 0 : index
    %c0_22 = arith.constant 0 : index
    %29 = vector.load %arg5[%c0_21, %c0_22] : memref<32x1xf32, #tpu.memory_space<vmem>>, vector<32x1xf32>
    %30 = vector.broadcast %29 : vector<32x1xf32> to vector<32x8xf32>
    %31 = arith.addf %28, %30 : vector<32x8xf32>
    %32 = vector.extract_strided_slice %27 {offsets = [0, 0, 0], sizes = [1, 32, 16], strides = [1, 1, 1]} : vector<25x32x16xf32> to vector<1x32x16xf32>
    %33 = vector.shape_cast %32 : vector<1x32x16xf32> to vector<32x16xf32>
    %34 = vector.extract_strided_slice %26 {offsets = [0, 0], sizes = [16, 8], strides = [1, 1]} : vector<16x200xf32> to vector<16x8xf32>
    %cst_23 = arith.constant dense<0.000000e+00> : vector<32x8xf32>
    %35 = tpu.matmul %33, %34, %cst_23 {dimension_numbers = #tpu.dot_dimension_numbers<[1], [0], [0], [1], [0, 0, 1, 1], [], []>} : vector<32x16xf32>, vector<16x8xf32>, vector<32x8xf32> -> vector<32x8xf32>
    %36 = arith.addf %31, %35 : vector<32x8xf32>
    %37 = vector.extract_strided_slice %27 {offsets = [1, 0, 0], sizes = [1, 32, 16], strides = [1, 1, 1]} : vector<25x32x16xf32> to vector<1x32x16xf32>
    %38 = vector.shape_cast %37 : vector<1x32x16xf32> to vector<32x16xf32>
    %39 = vector.extract_strided_slice %26 {offsets = [0, 8], sizes = [16, 8], strides = [1, 1]} : vector<16x200xf32> to vector<16x8xf32>
    %cst_24 = arith.constant dense<0.000000e+00> : vector<32x8xf32>
    %40 = tpu.matmul %38, %39, %cst_24 {dimension_numbers = #tpu.dot_dimension_numbers<[1], [0], [0], [1], [0, 0, 1, 1], [], []>} : vector<32x16xf32>, vector<16x8xf32>, vector<32x8xf32> -> vector<32x8xf32>
    %41 = arith.addf %36, %40 : vector<32x8xf32>
    %42 = vector.extract_strided_slice %27 {offsets = [2, 0, 0], sizes = [1, 32, 16], strides = [1, 1, 1]} : vector<25x32x16xf32> to vector<1x32x16xf32>
    %43 = vector.shape_cast %42 : vector<1x32x16xf32> to vector<32x16xf32>
    %44 = vector.extract_strided_slice %26 {offsets = [0, 16], sizes = [16, 8], strides = [1, 1]} : vector<16x200xf32> to vector<16x8xf32>
    %cst_25 = arith.constant dense<0.000000e+00> : vector<32x8xf32>
    %45 = tpu.matmul %43, %44, %cst_25 {dimension_numbers = #tpu.dot_dimension_numbers<[1], [0], [0], [1], [0, 0, 1, 1], [], []>} : vector<32x16xf32>, vector<16x8xf32>, vector<32x8xf32> -> vector<32x8xf32>
    %46 = arith.addf %41, %45 : vector<32x8xf32>
    %47 = vector.extract_strided_slice %27 {offsets = [3, 0, 0], sizes = [1, 32, 16], strides = [1, 1, 1]} : vector<25x32x16xf32> to vector<1x32x16xf32>
    %48 = vector.shape_cast %47 : vector<1x32x16xf32> to vector<32x16xf32>
    %49 = vector.extract_strided_slice %26 {offsets = [0, 24], sizes = [16, 8], strides = [1, 1]} : vector<16x200xf32> to vector<16x8xf32>
    %cst_26 = arith.constant dense<0.000000e+00> : vector<32x8xf32>
    %50 = tpu.matmul %48, %49, %cst_26 {dimension_numbers = #tpu.dot_dimension_numbers<[1], [0], [0], [1], [0, 0, 1, 1], [], []>} : vector<32x16xf32>, vector<16x8xf32>, vector<32x8xf32> -> vector<32x8xf32>
    %51 = arith.addf %46, %50 : vector<32x8xf32>
    %52 = vector.extract_strided_slice %27 {offsets = [4, 0, 0], sizes = [1, 32, 16], strides = [1, 1, 1]} : vector<25x32x16xf32> to vector<1x32x16xf32>
    %53 = vector.shape_cast %52 : vector<1x32x16xf32> to vector<32x16xf32>
    %54 = vector.extract_strided_slice %26 {offsets = [0, 32], sizes = [16, 8], strides = [1, 1]} : vector<16x200xf32> to vector<16x8xf32>
    %cst_27 = arith.constant dense<0.000000e+00> : vector<32x8xf32>
    %55 = tpu.matmul %53, %54, %cst_27 {dimension_numbers = #tpu.dot_dimension_numbers<[1], [0], [0], [1], [0, 0, 1, 1], [], []>} : vector<32x16xf32>, vector<16x8xf32>, vector<32x8xf32> -> vector<32x8xf32>
    %56 = arith.addf %51, %55 : vector<32x8xf32>
    %57 = vector.extract_strided_slice %27 {offsets = [5, 0, 0], sizes = [1, 32, 16], strides = [1, 1, 1]} : vector<25x32x16xf32> to vector<1x32x16xf32>
    %58 = vector.shape_cast %57 : vector<1x32x16xf32> to vector<32x16xf32>
    %59 = vector.extract_strided_slice %26 {offsets = [0, 40], sizes = [16, 8], strides = [1, 1]} : vector<16x200xf32> to vector<16x8xf32>
    %cst_28 = arith.constant dense<0.000000e+00> : vector<32x8xf32>
    %60 = tpu.matmul %58, %59, %cst_28 {dimension_numbers = #tpu.dot_dimension_numbers<[1], [0], [0], [1], [0, 0, 1, 1], [], []>} : vector<32x16xf32>, vector<16x8xf32>, vector<32x8xf32> -> vector<32x8xf32>
    %61 = arith.addf %56, %60 : vector<32x8xf32>
    %62 = vector.extract_strided_slice %27 {offsets = [6, 0, 0], sizes = [1, 32, 16], strides = [1, 1, 1]} : vector<25x32x16xf32> to vector<1x32x16xf32>
    %63 = vector.shape_cast %62 : vector<1x32x16xf32> to vector<32x16xf32>
    %64 = vector.extract_strided_slice %26 {offsets = [0, 48], sizes = [16, 8], strides = [1, 1]} : vector<16x200xf32> to vector<16x8xf32>
    %cst_29 = arith.constant dense<0.000000e+00> : vector<32x8xf32>
    %65 = tpu.matmul %63, %64, %cst_29 {dimension_numbers = #tpu.dot_dimension_numbers<[1], [0], [0], [1], [0, 0, 1, 1], [], []>} : vector<32x16xf32>, vector<16x8xf32>, vector<32x8xf32> -> vector<32x8xf32>
    %66 = arith.addf %61, %65 : vector<32x8xf32>
    %67 = vector.extract_strided_slice %27 {offsets = [7, 0, 0], sizes = [1, 32, 16], strides = [1, 1, 1]} : vector<25x32x16xf32> to vector<1x32x16xf32>
    %68 = vector.shape_cast %67 : vector<1x32x16xf32> to vector<32x16xf32>
    %69 = vector.extract_strided_slice %26 {offsets = [0, 56], sizes = [16, 8], strides = [1, 1]} : vector<16x200xf32> to vector<16x8xf32>
    %cst_30 = arith.constant dense<0.000000e+00> : vector<32x8xf32>
    %70 = tpu.matmul %68, %69, %cst_30 {dimension_numbers = #tpu.dot_dimension_numbers<[1], [0], [0], [1], [0, 0, 1, 1], [], []>} : vector<32x16xf32>, vector<16x8xf32>, vector<32x8xf32> -> vector<32x8xf32>
    %71 = arith.addf %66, %70 : vector<32x8xf32>
    %72 = vector.extract_strided_slice %27 {offsets = [8, 0, 0], sizes = [1, 32, 16], strides = [1, 1, 1]} : vector<25x32x16xf32> to vector<1x32x16xf32>
    %73 = vector.shape_cast %72 : vector<1x32x16xf32> to vector<32x16xf32>
    %74 = vector.extract_strided_slice %26 {offsets = [0, 64], sizes = [16, 8], strides = [1, 1]} : vector<16x200xf32> to vector<16x8xf32>
    %cst_31 = arith.constant dense<0.000000e+00> : vector<32x8xf32>
    %75 = tpu.matmul %73, %74, %cst_31 {dimension_numbers = #tpu.dot_dimension_numbers<[1], [0], [0], [1], [0, 0, 1, 1], [], []>} : vector<32x16xf32>, vector<16x8xf32>, vector<32x8xf32> -> vector<32x8xf32>
    %76 = arith.addf %71, %75 : vector<32x8xf32>
    %77 = vector.extract_strided_slice %27 {offsets = [9, 0, 0], sizes = [1, 32, 16], strides = [1, 1, 1]} : vector<25x32x16xf32> to vector<1x32x16xf32>
    %78 = vector.shape_cast %77 : vector<1x32x16xf32> to vector<32x16xf32>
    %79 = vector.extract_strided_slice %26 {offsets = [0, 72], sizes = [16, 8], strides = [1, 1]} : vector<16x200xf32> to vector<16x8xf32>
    %cst_32 = arith.constant dense<0.000000e+00> : vector<32x8xf32>
    %80 = tpu.matmul %78, %79, %cst_32 {dimension_numbers = #tpu.dot_dimension_numbers<[1], [0], [0], [1], [0, 0, 1, 1], [], []>} : vector<32x16xf32>, vector<16x8xf32>, vector<32x8xf32> -> vector<32x8xf32>
    %81 = arith.addf %76, %80 : vector<32x8xf32>
    %82 = vector.extract_strided_slice %27 {offsets = [10, 0, 0], sizes = [1, 32, 16], strides = [1, 1, 1]} : vector<25x32x16xf32> to vector<1x32x16xf32>
    %83 = vector.shape_cast %82 : vector<1x32x16xf32> to vector<32x16xf32>
    %84 = vector.extract_strided_slice %26 {offsets = [0, 80], sizes = [16, 8], strides = [1, 1]} : vector<16x200xf32> to vector<16x8xf32>
    %cst_33 = arith.constant dense<0.000000e+00> : vector<32x8xf32>
    %85 = tpu.matmul %83, %84, %cst_33 {dimension_numbers = #tpu.dot_dimension_numbers<[1], [0], [0], [1], [0, 0, 1, 1], [], []>} : vector<32x16xf32>, vector<16x8xf32>, vector<32x8xf32> -> vector<32x8xf32>
    %86 = arith.addf %81, %85 : vector<32x8xf32>
    %87 = vector.extract_strided_slice %27 {offsets = [11, 0, 0], sizes = [1, 32, 16], strides = [1, 1, 1]} : vector<25x32x16xf32> to vector<1x32x16xf32>
    %88 = vector.shape_cast %87 : vector<1x32x16xf32> to vector<32x16xf32>
    %89 = vector.extract_strided_slice %26 {offsets = [0, 88], sizes = [16, 8], strides = [1, 1]} : vector<16x200xf32> to vector<16x8xf32>
    %cst_34 = arith.constant dense<0.000000e+00> : vector<32x8xf32>
    %90 = tpu.matmul %88, %89, %cst_34 {dimension_numbers = #tpu.dot_dimension_numbers<[1], [0], [0], [1], [0, 0, 1, 1], [], []>} : vector<32x16xf32>, vector<16x8xf32>, vector<32x8xf32> -> vector<32x8xf32>
    %91 = arith.addf %86, %90 : vector<32x8xf32>
    %92 = vector.extract_strided_slice %27 {offsets = [12, 0, 0], sizes = [1, 32, 16], strides = [1, 1, 1]} : vector<25x32x16xf32> to vector<1x32x16xf32>
    %93 = vector.shape_cast %92 : vector<1x32x16xf32> to vector<32x16xf32>
    %94 = vector.extract_strided_slice %26 {offsets = [0, 96], sizes = [16, 8], strides = [1, 1]} : vector<16x200xf32> to vector<16x8xf32>
    %cst_35 = arith.constant dense<0.000000e+00> : vector<32x8xf32>
    %95 = tpu.matmul %93, %94, %cst_35 {dimension_numbers = #tpu.dot_dimension_numbers<[1], [0], [0], [1], [0, 0, 1, 1], [], []>} : vector<32x16xf32>, vector<16x8xf32>, vector<32x8xf32> -> vector<32x8xf32>
    %96 = arith.addf %91, %95 : vector<32x8xf32>
    %97 = vector.extract_strided_slice %27 {offsets = [13, 0, 0], sizes = [1, 32, 16], strides = [1, 1, 1]} : vector<25x32x16xf32> to vector<1x32x16xf32>
    %98 = vector.shape_cast %97 : vector<1x32x16xf32> to vector<32x16xf32>
    %99 = vector.extract_strided_slice %26 {offsets = [0, 104], sizes = [16, 8], strides = [1, 1]} : vector<16x200xf32> to vector<16x8xf32>
    %cst_36 = arith.constant dense<0.000000e+00> : vector<32x8xf32>
    %100 = tpu.matmul %98, %99, %cst_36 {dimension_numbers = #tpu.dot_dimension_numbers<[1], [0], [0], [1], [0, 0, 1, 1], [], []>} : vector<32x16xf32>, vector<16x8xf32>, vector<32x8xf32> -> vector<32x8xf32>
    %101 = arith.addf %96, %100 : vector<32x8xf32>
    %102 = vector.extract_strided_slice %27 {offsets = [14, 0, 0], sizes = [1, 32, 16], strides = [1, 1, 1]} : vector<25x32x16xf32> to vector<1x32x16xf32>
    %103 = vector.shape_cast %102 : vector<1x32x16xf32> to vector<32x16xf32>
    %104 = vector.extract_strided_slice %26 {offsets = [0, 112], sizes = [16, 8], strides = [1, 1]} : vector<16x200xf32> to vector<16x8xf32>
    %cst_37 = arith.constant dense<0.000000e+00> : vector<32x8xf32>
    %105 = tpu.matmul %103, %104, %cst_37 {dimension_numbers = #tpu.dot_dimension_numbers<[1], [0], [0], [1], [0, 0, 1, 1], [], []>} : vector<32x16xf32>, vector<16x8xf32>, vector<32x8xf32> -> vector<32x8xf32>
    %106 = arith.addf %101, %105 : vector<32x8xf32>
    %107 = vector.extract_strided_slice %27 {offsets = [15, 0, 0], sizes = [1, 32, 16], strides = [1, 1, 1]} : vector<25x32x16xf32> to vector<1x32x16xf32>
    %108 = vector.shape_cast %107 : vector<1x32x16xf32> to vector<32x16xf32>
    %109 = vector.extract_strided_slice %26 {offsets = [0, 120], sizes = [16, 8], strides = [1, 1]} : vector<16x200xf32> to vector<16x8xf32>
    %cst_38 = arith.constant dense<0.000000e+00> : vector<32x8xf32>
    %110 = tpu.matmul %108, %109, %cst_38 {dimension_numbers = #tpu.dot_dimension_numbers<[1], [0], [0], [1], [0, 0, 1, 1], [], []>} : vector<32x16xf32>, vector<16x8xf32>, vector<32x8xf32> -> vector<32x8xf32>
    %111 = arith.addf %106, %110 : vector<32x8xf32>
    %112 = vector.extract_strided_slice %27 {offsets = [16, 0, 0], sizes = [1, 32, 16], strides = [1, 1, 1]} : vector<25x32x16xf32> to vector<1x32x16xf32>
    %113 = vector.shape_cast %112 : vector<1x32x16xf32> to vector<32x16xf32>
    %114 = vector.extract_strided_slice %26 {offsets = [0, 128], sizes = [16, 8], strides = [1, 1]} : vector<16x200xf32> to vector<16x8xf32>
    %cst_39 = arith.constant dense<0.000000e+00> : vector<32x8xf32>
    %115 = tpu.matmul %113, %114, %cst_39 {dimension_numbers = #tpu.dot_dimension_numbers<[1], [0], [0], [1], [0, 0, 1, 1], [], []>} : vector<32x16xf32>, vector<16x8xf32>, vector<32x8xf32> -> vector<32x8xf32>
    %116 = arith.addf %111, %115 : vector<32x8xf32>
    %117 = vector.extract_strided_slice %27 {offsets = [17, 0, 0], sizes = [1, 32, 16], strides = [1, 1, 1]} : vector<25x32x16xf32> to vector<1x32x16xf32>
    %118 = vector.shape_cast %117 : vector<1x32x16xf32> to vector<32x16xf32>
    %119 = vector.extract_strided_slice %26 {offsets = [0, 136], sizes = [16, 8], strides = [1, 1]} : vector<16x200xf32> to vector<16x8xf32>
    %cst_40 = arith.constant dense<0.000000e+00> : vector<32x8xf32>
    %120 = tpu.matmul %118, %119, %cst_40 {dimension_numbers = #tpu.dot_dimension_numbers<[1], [0], [0], [1], [0, 0, 1, 1], [], []>} : vector<32x16xf32>, vector<16x8xf32>, vector<32x8xf32> -> vector<32x8xf32>
    %121 = arith.addf %116, %120 : vector<32x8xf32>
    %122 = vector.extract_strided_slice %27 {offsets = [18, 0, 0], sizes = [1, 32, 16], strides = [1, 1, 1]} : vector<25x32x16xf32> to vector<1x32x16xf32>
    %123 = vector.shape_cast %122 : vector<1x32x16xf32> to vector<32x16xf32>
    %124 = vector.extract_strided_slice %26 {offsets = [0, 144], sizes = [16, 8], strides = [1, 1]} : vector<16x200xf32> to vector<16x8xf32>
    %cst_41 = arith.constant dense<0.000000e+00> : vector<32x8xf32>
    %125 = tpu.matmul %123, %124, %cst_41 {dimension_numbers = #tpu.dot_dimension_numbers<[1], [0], [0], [1], [0, 0, 1, 1], [], []>} : vector<32x16xf32>, vector<16x8xf32>, vector<32x8xf32> -> vector<32x8xf32>
    %126 = arith.addf %121, %125 : vector<32x8xf32>
    %127 = vector.extract_strided_slice %27 {offsets = [19, 0, 0], sizes = [1, 32, 16], strides = [1, 1, 1]} : vector<25x32x16xf32> to vector<1x32x16xf32>
    %128 = vector.shape_cast %127 : vector<1x32x16xf32> to vector<32x16xf32>
    %129 = vector.extract_strided_slice %26 {offsets = [0, 152], sizes = [16, 8], strides = [1, 1]} : vector<16x200xf32> to vector<16x8xf32>
    %cst_42 = arith.constant dense<0.000000e+00> : vector<32x8xf32>
    %130 = tpu.matmul %128, %129, %cst_42 {dimension_numbers = #tpu.dot_dimension_numbers<[1], [0], [0], [1], [0, 0, 1, 1], [], []>} : vector<32x16xf32>, vector<16x8xf32>, vector<32x8xf32> -> vector<32x8xf32>
    %131 = arith.addf %126, %130 : vector<32x8xf32>
    %132 = vector.extract_strided_slice %27 {offsets = [20, 0, 0], sizes = [1, 32, 16], strides = [1, 1, 1]} : vector<25x32x16xf32> to vector<1x32x16xf32>
    %133 = vector.shape_cast %132 : vector<1x32x16xf32> to vector<32x16xf32>
    %134 = vector.extract_strided_slice %26 {offsets = [0, 160], sizes = [16, 8], strides = [1, 1]} : vector<16x200xf32> to vector<16x8xf32>
    %cst_43 = arith.constant dense<0.000000e+00> : vector<32x8xf32>
    %135 = tpu.matmul %133, %134, %cst_43 {dimension_numbers = #tpu.dot_dimension_numbers<[1], [0], [0], [1], [0, 0, 1, 1], [], []>} : vector<32x16xf32>, vector<16x8xf32>, vector<32x8xf32> -> vector<32x8xf32>
    %136 = arith.addf %131, %135 : vector<32x8xf32>
    %137 = vector.extract_strided_slice %27 {offsets = [21, 0, 0], sizes = [1, 32, 16], strides = [1, 1, 1]} : vector<25x32x16xf32> to vector<1x32x16xf32>
    %138 = vector.shape_cast %137 : vector<1x32x16xf32> to vector<32x16xf32>
    %139 = vector.extract_strided_slice %26 {offsets = [0, 168], sizes = [16, 8], strides = [1, 1]} : vector<16x200xf32> to vector<16x8xf32>
    %cst_44 = arith.constant dense<0.000000e+00> : vector<32x8xf32>
    %140 = tpu.matmul %138, %139, %cst_44 {dimension_numbers = #tpu.dot_dimension_numbers<[1], [0], [0], [1], [0, 0, 1, 1], [], []>} : vector<32x16xf32>, vector<16x8xf32>, vector<32x8xf32> -> vector<32x8xf32>
    %141 = arith.addf %136, %140 : vector<32x8xf32>
    %142 = vector.extract_strided_slice %27 {offsets = [22, 0, 0], sizes = [1, 32, 16], strides = [1, 1, 1]} : vector<25x32x16xf32> to vector<1x32x16xf32>
    %143 = vector.shape_cast %142 : vector<1x32x16xf32> to vector<32x16xf32>
    %144 = vector.extract_strided_slice %26 {offsets = [0, 176], sizes = [16, 8], strides = [1, 1]} : vector<16x200xf32> to vector<16x8xf32>
    %cst_45 = arith.constant dense<0.000000e+00> : vector<32x8xf32>
    %145 = tpu.matmul %143, %144, %cst_45 {dimension_numbers = #tpu.dot_dimension_numbers<[1], [0], [0], [1], [0, 0, 1, 1], [], []>} : vector<32x16xf32>, vector<16x8xf32>, vector<32x8xf32> -> vector<32x8xf32>
    %146 = arith.addf %141, %145 : vector<32x8xf32>
    %147 = vector.extract_strided_slice %27 {offsets = [23, 0, 0], sizes = [1, 32, 16], strides = [1, 1, 1]} : vector<25x32x16xf32> to vector<1x32x16xf32>
    %148 = vector.shape_cast %147 : vector<1x32x16xf32> to vector<32x16xf32>
    %149 = vector.extract_strided_slice %26 {offsets = [0, 184], sizes = [16, 8], strides = [1, 1]} : vector<16x200xf32> to vector<16x8xf32>
    %cst_46 = arith.constant dense<0.000000e+00> : vector<32x8xf32>
    %150 = tpu.matmul %148, %149, %cst_46 {dimension_numbers = #tpu.dot_dimension_numbers<[1], [0], [0], [1], [0, 0, 1, 1], [], []>} : vector<32x16xf32>, vector<16x8xf32>, vector<32x8xf32> -> vector<32x8xf32>
    %151 = arith.addf %146, %150 : vector<32x8xf32>
    %152 = vector.extract_strided_slice %27 {offsets = [24, 0, 0], sizes = [1, 32, 16], strides = [1, 1, 1]} : vector<25x32x16xf32> to vector<1x32x16xf32>
    %153 = vector.shape_cast %152 : vector<1x32x16xf32> to vector<32x16xf32>
    %154 = vector.extract_strided_slice %26 {offsets = [0, 192], sizes = [16, 8], strides = [1, 1]} : vector<16x200xf32> to vector<16x8xf32>
    %cst_47 = arith.constant dense<0.000000e+00> : vector<32x8xf32>
    %155 = tpu.matmul %153, %154, %cst_47 {dimension_numbers = #tpu.dot_dimension_numbers<[1], [0], [0], [1], [0, 0, 1, 1], [], []>} : vector<32x16xf32>, vector<16x8xf32>, vector<32x8xf32> -> vector<32x8xf32>
    %156 = arith.addf %151, %155 : vector<32x8xf32>
    %cst_48 = arith.constant 0.000000e+00 : f32
    %157 = vector.broadcast %cst_48 : f32 to vector<32x8xf32>
    %158 = arith.cmpf oge, %156, %157 : vector<32x8xf32>
    %cst_49 = arith.constant 0.00999999977 : f32
    %159 = vector.broadcast %cst_49 : f32 to vector<32x8xf32>
    %160 = arith.mulf %159, %156 : vector<32x8xf32>
    %161 = arith.select %158, %156, %160 : vector<32x8xi1>, vector<32x8xf32>
    %c0_50 = arith.constant 0 : index
    %c0_51 = arith.constant 0 : index
    %162 = vector.load %arg8[%c0_50, %c0_51] : memref<32x8xf32, #tpu.memory_space<vmem>>, vector<32x8xf32>
    tpu.vector_store %arg8[%c0_50, %c0_51], %161 {strides = array<i32>} : memref<32x8xf32, #tpu.memory_space<vmem>>, vector<32x8xf32>,
    return
  }
  func.func @transform_0(%arg0: i32) -> (i32, i32) {
    %c0_i32 = arith.constant 0 : i32
    %c0_i32_0 = arith.constant 0 : i32
    %c0_i32_1 = arith.constant 0 : i32
    return %c0_i32, %c0_i32_0 : i32, i32
  }
  func.func @transform_1(%arg0: i32) -> (i32, i32) {
    %c0_i32 = arith.constant 0 : i32
    %c0_i32_0 = arith.constant 0 : i32
    %c0_i32_1 = arith.constant 0 : i32
    return %c0_i32, %c0_i32_0 : i32, i32
  }
  func.func @transform_2(%arg0: i32) -> (i32, i32) {
    %c0_i32 = arith.constant 0 : i32
    %c0_i32_0 = arith.constant 0 : i32
    %c0_i32_1 = arith.constant 0 : i32
    return %c0_i32, %c0_i32_0 : i32, i32
  }
  func.func @transform_3(%arg0: i32) -> (i32, i32, i32) {
    %c0_i32 = arith.constant 0 : i32
    %c0_i32_0 = arith.constant 0 : i32
    %c0_i32_1 = arith.constant 0 : i32
    %c0_i32_2 = arith.constant 0 : i32
    return %c0_i32, %c0_i32_0, %c0_i32_1 : i32, i32, i32
  }
  func.func @transform_4(%arg0: i32) -> (i32, i32) {
    %c0_i32 = arith.constant 0 : i32
    %c0_i32_0 = arith.constant 0 : i32
    %c0_i32_1 = arith.constant 0 : i32
    return %c0_i32, %c0_i32_0 : i32, i32
  }
  func.func @transform_5(%arg0: i32) -> (i32, i32) {
    %c0_i32 = arith.constant 0 : i32
    %c0_i32_0 = arith.constant 0 : i32
    %c0_i32_1 = arith.constant 0 : i32
    return %c0_i32, %c0_i32_0 : i32, i32
  }
  func.func @transform_6(%arg0: i32) -> (i32, i32) {
    %c0_i32 = arith.constant 0 : i32
    %c0_i32_0 = arith.constant 0 : i32
    %c0_i32_1 = arith.constant 0 : i32
    return %c0_i32, %c0_i32_0 : i32, i32
  }
  func.func @transform_7(%arg0: i32) -> (i32, i32) {
    %c0_i32 = arith.constant 0 : i32
    %c0_i32_0 = arith.constant 0 : i32
    %c0_i32_1 = arith.constant 0 : i32
    return %c0_i32, %c0_i32_0 : i32, i32
  }
}

module attributes {stable_mosaic.version = 11 : i64} {
  func.func @fused_transformer_kernel(%arg0: i32, %arg1: memref<1x24x32xf32, #tpu.memory_space<vmem>>, %arg2: memref<1x24x32xf32, #tpu.memory_space<vmem>>, %arg3: memref<1x24x24xf32, #tpu.memory_space<vmem>>, %arg4: memref<4x32xf32, #tpu.memory_space<vmem>>, %arg5: memref<2x4x32xf32, #tpu.memory_space<vmem>>, %arg6: memref<8x32x8xf32, #tpu.memory_space<vmem>>, %arg7: memref<8x32x8xf32, #tpu.memory_space<vmem>>, %arg8: memref<8x32x8xf32, #tpu.memory_space<vmem>>, %arg9: memref<8x1x8xf32, #tpu.memory_space<vmem>>, %arg10: memref<8x1x8xf32, #tpu.memory_space<vmem>>, %arg11: memref<8x1x8xf32, #tpu.memory_space<vmem>>, %arg12: memref<8x8x32xf32, #tpu.memory_space<vmem>>, %arg13: memref<2x1x32xf32, #tpu.memory_space<vmem>>, %arg14: memref<2x32x128xbf16, #tpu.memory_space<vmem>>, %arg15: memref<2x1x128xf32, #tpu.memory_space<vmem>>, %arg16: memref<2x128x32xbf16, #tpu.memory_space<vmem>>, %arg17: memref<2x1x32xf32, #tpu.memory_space<vmem>>, %arg18: memref<32x128xf32, #tpu.memory_space<vmem>>, %arg19: memref<1x128xf32, #tpu.memory_space<vmem>>, %arg20: memref<1x24x128xf32, #tpu.memory_space<vmem>>) attributes {dimension_semantics = [#tpu.dimension_semantics<parallel>], iteration_bounds = array<i64: 1>, scalar_prefetch = 0 : i64, scratch_operands = 0 : i64, tpu.core_type = #tpu.core_type<tc>, window_params = [{transform_indices = @transform_0, window_bounds = array<i64: 1, 24, 32>}, {transform_indices = @transform_1, window_bounds = array<i64: 1, 24, 32>}, {transform_indices = @transform_2, window_bounds = array<i64: 1, 24, 24>}, {pipeline_mode = #tpu.pipeline_mode<synchronous>, transform_indices = @transform_3, window_bounds = array<i64: 4, 32>}, {pipeline_mode = #tpu.pipeline_mode<synchronous>, transform_indices = @transform_4, window_bounds = array<i64: 2, 4, 32>}, {pipeline_mode = #tpu.pipeline_mode<synchronous>, transform_indices = @transform_5, window_bounds = array<i64: 8, 32, 8>}, {pipeline_mode = #tpu.pipeline_mode<synchronous>, transform_indices = @transform_6, window_bounds = array<i64: 8, 32, 8>}, {pipeline_mode = #tpu.pipeline_mode<synchronous>, transform_indices = @transform_7, window_bounds = array<i64: 8, 32, 8>}, {pipeline_mode = #tpu.pipeline_mode<synchronous>, transform_indices = @transform_8, window_bounds = array<i64: 8, 1, 8>}, {pipeline_mode = #tpu.pipeline_mode<synchronous>, transform_indices = @transform_9, window_bounds = array<i64: 8, 1, 8>}, {pipeline_mode = #tpu.pipeline_mode<synchronous>, transform_indices = @transform_10, window_bounds = array<i64: 8, 1, 8>}, {pipeline_mode = #tpu.pipeline_mode<synchronous>, transform_indices = @transform_11, window_bounds = array<i64: 8, 8, 32>}, {pipeline_mode = #tpu.pipeline_mode<synchronous>, transform_indices = @transform_12, window_bounds = array<i64: 2, 1, 32>}, {pipeline_mode = #tpu.pipeline_mode<synchronous>, transform_indices = @transform_13, window_bounds = array<i64: 2, 32, 128>}, {pipeline_mode = #tpu.pipeline_mode<synchronous>, transform_indices = @transform_14, window_bounds = array<i64: 2, 1, 128>}, {pipeline_mode = #tpu.pipeline_mode<synchronous>, transform_indices = @transform_15, window_bounds = array<i64: 2, 128, 32>}, {pipeline_mode = #tpu.pipeline_mode<synchronous>, transform_indices = @transform_16, window_bounds = array<i64: 2, 1, 32>}, {pipeline_mode = #tpu.pipeline_mode<synchronous>, transform_indices = @transform_17, window_bounds = array<i64: 32, 128>}, {pipeline_mode = #tpu.pipeline_mode<synchronous>, transform_indices = @transform_18, window_bounds = array<i64: 1, 128>}, {transform_indices = @transform_19, window_bounds = array<i64: 1, 24, 128>}]} {
    %c0 = arith.constant 0 : index
    %c0_0 = arith.constant 0 : index
    %c0_1 = arith.constant 0 : index
    %0 = vector.load %arg1[%c0, %c0_0, %c0_1] : memref<1x24x32xf32, #tpu.memory_space<vmem>>, vector<1x24x32xf32>
    %1 = vector.shape_cast %0 : vector<1x24x32xf32> to vector<24x32xf32>
    %c0_2 = arith.constant 0 : index
    %c0_3 = arith.constant 0 : index
    %c0_4 = arith.constant 0 : index
    %2 = vector.load %arg3[%c0_2, %c0_3, %c0_4] : memref<1x24x24xf32, #tpu.memory_space<vmem>>, vector<1x24x24xf32>
    %3 = vector.shape_cast %2 : vector<1x24x24xf32> to vector<24x24xf32>
    %c0_5 = arith.constant 0 : index
    %c0_6 = arith.constant 0 : index
    %4 = vector.load %arg4[%c0_5, %c0_6] : memref<4x32xf32, #tpu.memory_space<vmem>>, vector<4x32xf32>
    %5 = vector.extract_strided_slice %4 {offsets = [0, 0], sizes = [1, 32], strides = [1, 1]} : vector<4x32xf32> to vector<1x32xf32>
    %6 = vector.extract_strided_slice %4 {offsets = [1, 0], sizes = [1, 32], strides = [1, 1]} : vector<4x32xf32> to vector<1x32xf32>
    %cst = arith.constant dense<0.000000e+00> : vector<24xf32>
    %7 = vector.multi_reduction <add>, %1, %cst [1] : vector<24x32xf32> to vector<24xf32>
    %8 = vector.shape_cast %7 : vector<24xf32> to vector<24x1xf32>
    %cst_7 = arith.constant 3.200000e+01 : f32
    %9 = vector.broadcast %cst_7 : f32 to vector<24x1xf32>
    %10 = arith.divf %8, %9 : vector<24x1xf32>
    %11 = vector.broadcast %10 : vector<24x1xf32> to vector<24x32xf32>
    %12 = arith.subf %1, %11 : vector<24x32xf32>
    %13 = arith.mulf %12, %12 : vector<24x32xf32>
    %cst_8 = arith.constant dense<0.000000e+00> : vector<24xf32>
    %14 = vector.multi_reduction <add>, %13, %cst_8 [1] : vector<24x32xf32> to vector<24xf32>
    %15 = vector.shape_cast %14 : vector<24xf32> to vector<24x1xf32>
    %cst_9 = arith.constant 3.200000e+01 : f32
    %16 = vector.broadcast %cst_9 : f32 to vector<24x1xf32>
    %17 = arith.divf %15, %16 : vector<24x1xf32>
    %18 = vector.broadcast %10 : vector<24x1xf32> to vector<24x32xf32>
    %19 = arith.subf %1, %18 : vector<24x32xf32>
    %cst_10 = arith.constant 9.99999974E-6 : f32
    %20 = vector.broadcast %cst_10 : f32 to vector<24x1xf32>
    %21 = arith.addf %17, %20 : vector<24x1xf32>
    %22 = math.rsqrt %21 : vector<24x1xf32>
    %23 = vector.broadcast %22 : vector<24x1xf32> to vector<24x32xf32>
    %24 = arith.mulf %19, %23 : vector<24x32xf32>
    %25 = vector.broadcast %5 : vector<1x32xf32> to vector<24x32xf32>
    %26 = arith.mulf %24, %25 : vector<24x32xf32>
    %27 = vector.broadcast %6 : vector<1x32xf32> to vector<24x32xf32>
    %28 = arith.addf %26, %27 : vector<24x32xf32>
    %c0_11 = arith.constant 0 : index
    %c0_12 = arith.constant 0 : index
    %c0_13 = arith.constant 0 : index
    %29 = vector.load %arg2[%c0_11, %c0_12, %c0_13] : memref<1x24x32xf32, #tpu.memory_space<vmem>>, vector<1x24x32xf32>
    %30 = vector.shape_cast %29 : vector<1x24x32xf32> to vector<24x32xf32>
    %31 = arith.addf %28, %30 : vector<24x32xf32>
    %c0_14 = arith.constant 0 : index
    %c0_15 = arith.constant 0 : index
    %c0_16 = arith.constant 0 : index
    %32 = vector.load %arg5[%c0_14, %c0_15, %c0_16] : memref<2x4x32xf32, #tpu.memory_space<vmem>>, vector<1x4x32xf32>
    %33 = vector.shape_cast %32 : vector<1x4x32xf32> to vector<4x32xf32>
    %34 = vector.extract_strided_slice %33 {offsets = [0, 0], sizes = [1, 32], strides = [1, 1]} : vector<4x32xf32> to vector<1x32xf32>
    %35 = vector.extract_strided_slice %33 {offsets = [1, 0], sizes = [1, 32], strides = [1, 1]} : vector<4x32xf32> to vector<1x32xf32>
    %cst_17 = arith.constant dense<0.000000e+00> : vector<24xf32>
    %36 = vector.multi_reduction <add>, %31, %cst_17 [1] : vector<24x32xf32> to vector<24xf32>
    %37 = vector.shape_cast %36 : vector<24xf32> to vector<24x1xf32>
    %cst_18 = arith.constant 3.200000e+01 : f32
    %38 = vector.broadcast %cst_18 : f32 to vector<24x1xf32>
    %39 = arith.divf %37, %38 : vector<24x1xf32>
    %40 = vector.broadcast %39 : vector<24x1xf32> to vector<24x32xf32>
    %41 = arith.subf %31, %40 : vector<24x32xf32>
    %42 = arith.mulf %41, %41 : vector<24x32xf32>
    %cst_19 = arith.constant dense<0.000000e+00> : vector<24xf32>
    %43 = vector.multi_reduction <add>, %42, %cst_19 [1] : vector<24x32xf32> to vector<24xf32>
    %44 = vector.shape_cast %43 : vector<24xf32> to vector<24x1xf32>
    %cst_20 = arith.constant 3.200000e+01 : f32
    %45 = vector.broadcast %cst_20 : f32 to vector<24x1xf32>
    %46 = arith.divf %44, %45 : vector<24x1xf32>
    %47 = vector.broadcast %39 : vector<24x1xf32> to vector<24x32xf32>
    %48 = arith.subf %31, %47 : vector<24x32xf32>
    %cst_21 = arith.constant 9.99999974E-6 : f32
    %49 = vector.broadcast %cst_21 : f32 to vector<24x1xf32>
    %50 = arith.addf %46, %49 : vector<24x1xf32>
    %51 = math.rsqrt %50 : vector<24x1xf32>
    %52 = vector.broadcast %51 : vector<24x1xf32> to vector<24x32xf32>
    %53 = arith.mulf %48, %52 : vector<24x32xf32>
    %54 = vector.broadcast %34 : vector<1x32xf32> to vector<24x32xf32>
    %55 = arith.mulf %53, %54 : vector<24x32xf32>
    %56 = vector.broadcast %35 : vector<1x32xf32> to vector<24x32xf32>
    %57 = arith.addf %55, %56 : vector<24x32xf32>
    %cst_22 = arith.constant 0.000000e+00 : f32
    %58 = vector.broadcast %cst_22 : f32 to vector<24x32xf32>
    %c0_23 = arith.constant 0 : index
    %c0_24 = arith.constant 0 : index
    %c0_25 = arith.constant 0 : index
    %59 = vector.load %arg6[%c0_23, %c0_24, %c0_25] : memref<8x32x8xf32, #tpu.memory_space<vmem>>, vector<1x32x8xf32>
    %60 = vector.shape_cast %59 : vector<1x32x8xf32> to vector<32x8xf32>
    %cst_26 = arith.constant dense<0.000000e+00> : vector<24x8xf32>
    %61 = tpu.matmul %57, %60, %cst_26 {dimension_numbers = #tpu.dot_dimension_numbers<[1], [0], [0], [1], [0, 0, 1, 1], [], []>} : vector<24x32xf32>, vector<32x8xf32>, vector<24x8xf32> -> vector<24x8xf32>
    %c0_27 = arith.constant 0 : index
    %c0_28 = arith.constant 0 : index
    %c0_29 = arith.constant 0 : index
    %62 = vector.load %arg9[%c0_27, %c0_28, %c0_29] : memref<8x1x8xf32, #tpu.memory_space<vmem>>, vector<1x1x8xf32>
    %63 = vector.shape_cast %62 : vector<1x1x8xf32> to vector<1x8xf32>
    %64 = vector.broadcast %63 : vector<1x8xf32> to vector<24x8xf32>
    %65 = arith.addf %61, %64 : vector<24x8xf32>
    %c0_30 = arith.constant 0 : index
    %c0_31 = arith.constant 0 : index
    %c0_32 = arith.constant 0 : index
    %66 = vector.load %arg7[%c0_30, %c0_31, %c0_32] : memref<8x32x8xf32, #tpu.memory_space<vmem>>, vector<1x32x8xf32>
    %67 = vector.shape_cast %66 : vector<1x32x8xf32> to vector<32x8xf32>
    %cst_33 = arith.constant dense<0.000000e+00> : vector<24x8xf32>
    %68 = tpu.matmul %57, %67, %cst_33 {dimension_numbers = #tpu.dot_dimension_numbers<[1], [0], [0], [1], [0, 0, 1, 1], [], []>} : vector<24x32xf32>, vector<32x8xf32>, vector<24x8xf32> -> vector<24x8xf32>
    %c0_34 = arith.constant 0 : index
    %c0_35 = arith.constant 0 : index
    %c0_36 = arith.constant 0 : index
    %69 = vector.load %arg10[%c0_34, %c0_35, %c0_36] : memref<8x1x8xf32, #tpu.memory_space<vmem>>, vector<1x1x8xf32>
    %70 = vector.shape_cast %69 : vector<1x1x8xf32> to vector<1x8xf32>
    %71 = vector.broadcast %70 : vector<1x8xf32> to vector<24x8xf32>
    %72 = arith.addf %68, %71 : vector<24x8xf32>
    %c0_37 = arith.constant 0 : index
    %c0_38 = arith.constant 0 : index
    %c0_39 = arith.constant 0 : index
    %73 = vector.load %arg8[%c0_37, %c0_38, %c0_39] : memref<8x32x8xf32, #tpu.memory_space<vmem>>, vector<1x32x8xf32>
    %74 = vector.shape_cast %73 : vector<1x32x8xf32> to vector<32x8xf32>
    %cst_40 = arith.constant dense<0.000000e+00> : vector<24x8xf32>
    %75 = tpu.matmul %57, %74, %cst_40 {dimension_numbers = #tpu.dot_dimension_numbers<[1], [0], [0], [1], [0, 0, 1, 1], [], []>} : vector<24x32xf32>, vector<32x8xf32>, vector<24x8xf32> -> vector<24x8xf32>
    %c0_41 = arith.constant 0 : index
    %c0_42 = arith.constant 0 : index
    %c0_43 = arith.constant 0 : index
    %76 = vector.load %arg11[%c0_41, %c0_42, %c0_43] : memref<8x1x8xf32, #tpu.memory_space<vmem>>, vector<1x1x8xf32>
    %77 = vector.shape_cast %76 : vector<1x1x8xf32> to vector<1x8xf32>
    %78 = vector.broadcast %77 : vector<1x8xf32> to vector<24x8xf32>
    %79 = arith.addf %75, %78 : vector<24x8xf32>
    %cst_44 = arith.constant dense<0.000000e+00> : vector<24x24xf32>
    %80 = tpu.matmul %65, %72, %cst_44 {dimension_numbers = #tpu.dot_dimension_numbers<[1], [1], [0], [0], [0, 0, 1, 0], [], []>} : vector<24x8xf32>, vector<24x8xf32>, vector<24x24xf32> -> vector<24x24xf32>
    %cst_45 = arith.constant 0.353553385 : f32
    %81 = vector.broadcast %cst_45 : f32 to vector<24x24xf32>
    %82 = arith.mulf %80, %81 : vector<24x24xf32>
    %83 = arith.addf %82, %3 : vector<24x24xf32>
    %cst_46 = arith.constant dense<0xFF800000> : vector<24xf32>
    %84 = vector.multi_reduction <maximumf>, %83, %cst_46 [1] : vector<24x24xf32> to vector<24xf32>
    %85 = vector.shape_cast %84 : vector<24xf32> to vector<24x1xf32>
    %86 = vector.broadcast %85 : vector<24x1xf32> to vector<24x24xf32>
    %87 = arith.subf %83, %86 : vector<24x24xf32>
    %88 = math.exp %87 : vector<24x24xf32>
    %cst_47 = arith.constant dense<0.000000e+00> : vector<24xf32>
    %89 = vector.multi_reduction <add>, %88, %cst_47 [1] : vector<24x24xf32> to vector<24xf32>
    %90 = vector.shape_cast %89 : vector<24xf32> to vector<24x1xf32>
    %91 = tpu.reciprocal %90 {approx = true} : vector<24x1xf32> -> vector<24x1xf32>
    %92 = vector.broadcast %91 : vector<24x1xf32> to vector<24x24xf32>
    %93 = arith.mulf %88, %92 : vector<24x24xf32>
    %cst_48 = arith.constant dense<0.000000e+00> : vector<24x8xf32>
    %94 = tpu.matmul %93, %79, %cst_48 {dimension_numbers = #tpu.dot_dimension_numbers<[1], [0], [0], [1], [0, 0, 1, 1], [], []>} : vector<24x24xf32>, vector<24x8xf32>, vector<24x8xf32> -> vector<24x8xf32>
    %c0_49 = arith.constant 0 : index
    %c0_50 = arith.constant 0 : index
    %c0_51 = arith.constant 0 : index
    %95 = vector.load %arg12[%c0_49, %c0_50, %c0_51] : memref<8x8x32xf32, #tpu.memory_space<vmem>>, vector<1x8x32xf32>
    %96 = vector.shape_cast %95 : vector<1x8x32xf32> to vector<8x32xf32>
    %cst_52 = arith.constant dense<0.000000e+00> : vector<24x32xf32>
    %97 = tpu.matmul %94, %96, %cst_52 {dimension_numbers = #tpu.dot_dimension_numbers<[1], [0], [0], [1], [0, 0, 1, 1], [], []>} : vector<24x8xf32>, vector<8x32xf32>, vector<24x32xf32> -> vector<24x32xf32>
    %98 = arith.addf %58, %97 : vector<24x32xf32>
    %c1 = arith.constant 1 : index
    %c0_53 = arith.constant 0 : index
    %c0_54 = arith.constant 0 : index
    %99 = vector.load %arg6[%c1, %c0_53, %c0_54] : memref<8x32x8xf32, #tpu.memory_space<vmem>>, vector<1x32x8xf32>
    %100 = vector.shape_cast %99 : vector<1x32x8xf32> to vector<32x8xf32>
    %cst_55 = arith.constant dense<0.000000e+00> : vector<24x8xf32>
    %101 = tpu.matmul %57, %100, %cst_55 {dimension_numbers = #tpu.dot_dimension_numbers<[1], [0], [0], [1], [0, 0, 1, 1], [], []>} : vector<24x32xf32>, vector<32x8xf32>, vector<24x8xf32> -> vector<24x8xf32>
    %c1_56 = arith.constant 1 : index
    %c0_57 = arith.constant 0 : index
    %c0_58 = arith.constant 0 : index
    %102 = vector.load %arg9[%c1_56, %c0_57, %c0_58] : memref<8x1x8xf32, #tpu.memory_space<vmem>>, vector<1x1x8xf32>
    %103 = vector.shape_cast %102 : vector<1x1x8xf32> to vector<1x8xf32>
    %104 = vector.broadcast %103 : vector<1x8xf32> to vector<24x8xf32>
    %105 = arith.addf %101, %104 : vector<24x8xf32>
    %c1_59 = arith.constant 1 : index
    %c0_60 = arith.constant 0 : index
    %c0_61 = arith.constant 0 : index
    %106 = vector.load %arg7[%c1_59, %c0_60, %c0_61] : memref<8x32x8xf32, #tpu.memory_space<vmem>>, vector<1x32x8xf32>
    %107 = vector.shape_cast %106 : vector<1x32x8xf32> to vector<32x8xf32>
    %cst_62 = arith.constant dense<0.000000e+00> : vector<24x8xf32>
    %108 = tpu.matmul %57, %107, %cst_62 {dimension_numbers = #tpu.dot_dimension_numbers<[1], [0], [0], [1], [0, 0, 1, 1], [], []>} : vector<24x32xf32>, vector<32x8xf32>, vector<24x8xf32> -> vector<24x8xf32>
    %c1_63 = arith.constant 1 : index
    %c0_64 = arith.constant 0 : index
    %c0_65 = arith.constant 0 : index
    %109 = vector.load %arg10[%c1_63, %c0_64, %c0_65] : memref<8x1x8xf32, #tpu.memory_space<vmem>>, vector<1x1x8xf32>
    %110 = vector.shape_cast %109 : vector<1x1x8xf32> to vector<1x8xf32>
    %111 = vector.broadcast %110 : vector<1x8xf32> to vector<24x8xf32>
    %112 = arith.addf %108, %111 : vector<24x8xf32>
    %c1_66 = arith.constant 1 : index
    %c0_67 = arith.constant 0 : index
    %c0_68 = arith.constant 0 : index
    %113 = vector.load %arg8[%c1_66, %c0_67, %c0_68] : memref<8x32x8xf32, #tpu.memory_space<vmem>>, vector<1x32x8xf32>
    %114 = vector.shape_cast %113 : vector<1x32x8xf32> to vector<32x8xf32>
    %cst_69 = arith.constant dense<0.000000e+00> : vector<24x8xf32>
    %115 = tpu.matmul %57, %114, %cst_69 {dimension_numbers = #tpu.dot_dimension_numbers<[1], [0], [0], [1], [0, 0, 1, 1], [], []>} : vector<24x32xf32>, vector<32x8xf32>, vector<24x8xf32> -> vector<24x8xf32>
    %c1_70 = arith.constant 1 : index
    %c0_71 = arith.constant 0 : index
    %c0_72 = arith.constant 0 : index
    %116 = vector.load %arg11[%c1_70, %c0_71, %c0_72] : memref<8x1x8xf32, #tpu.memory_space<vmem>>, vector<1x1x8xf32>
    %117 = vector.shape_cast %116 : vector<1x1x8xf32> to vector<1x8xf32>
    %118 = vector.broadcast %117 : vector<1x8xf32> to vector<24x8xf32>
    %119 = arith.addf %115, %118 : vector<24x8xf32>
    %cst_73 = arith.constant dense<0.000000e+00> : vector<24x24xf32>
    %120 = tpu.matmul %105, %112, %cst_73 {dimension_numbers = #tpu.dot_dimension_numbers<[1], [1], [0], [0], [0, 0, 1, 0], [], []>} : vector<24x8xf32>, vector<24x8xf32>, vector<24x24xf32> -> vector<24x24xf32>
    %cst_74 = arith.constant 0.353553385 : f32
    %121 = vector.broadcast %cst_74 : f32 to vector<24x24xf32>
    %122 = arith.mulf %120, %121 : vector<24x24xf32>
    %123 = arith.addf %122, %3 : vector<24x24xf32>
    %cst_75 = arith.constant dense<0xFF800000> : vector<24xf32>
    %124 = vector.multi_reduction <maximumf>, %123, %cst_75 [1] : vector<24x24xf32> to vector<24xf32>
    %125 = vector.shape_cast %124 : vector<24xf32> to vector<24x1xf32>
    %126 = vector.broadcast %125 : vector<24x1xf32> to vector<24x24xf32>
    %127 = arith.subf %123, %126 : vector<24x24xf32>
    %128 = math.exp %127 : vector<24x24xf32>
    %cst_76 = arith.constant dense<0.000000e+00> : vector<24xf32>
    %129 = vector.multi_reduction <add>, %128, %cst_76 [1] : vector<24x24xf32> to vector<24xf32>
    %130 = vector.shape_cast %129 : vector<24xf32> to vector<24x1xf32>
    %131 = tpu.reciprocal %130 {approx = true} : vector<24x1xf32> -> vector<24x1xf32>
    %132 = vector.broadcast %131 : vector<24x1xf32> to vector<24x24xf32>
    %133 = arith.mulf %128, %132 : vector<24x24xf32>
    %cst_77 = arith.constant dense<0.000000e+00> : vector<24x8xf32>
    %134 = tpu.matmul %133, %119, %cst_77 {dimension_numbers = #tpu.dot_dimension_numbers<[1], [0], [0], [1], [0, 0, 1, 1], [], []>} : vector<24x24xf32>, vector<24x8xf32>, vector<24x8xf32> -> vector<24x8xf32>
    %c1_78 = arith.constant 1 : index
    %c0_79 = arith.constant 0 : index
    %c0_80 = arith.constant 0 : index
    %135 = vector.load %arg12[%c1_78, %c0_79, %c0_80] : memref<8x8x32xf32, #tpu.memory_space<vmem>>, vector<1x8x32xf32>
    %136 = vector.shape_cast %135 : vector<1x8x32xf32> to vector<8x32xf32>
    %cst_81 = arith.constant dense<0.000000e+00> : vector<24x32xf32>
    %137 = tpu.matmul %134, %136, %cst_81 {dimension_numbers = #tpu.dot_dimension_numbers<[1], [0], [0], [1], [0, 0, 1, 1], [], []>} : vector<24x8xf32>, vector<8x32xf32>, vector<24x32xf32> -> vector<24x32xf32>
    %138 = arith.addf %98, %137 : vector<24x32xf32>
    %c2 = arith.constant 2 : index
    %c0_82 = arith.constant 0 : index
    %c0_83 = arith.constant 0 : index
    %139 = vector.load %arg6[%c2, %c0_82, %c0_83] : memref<8x32x8xf32, #tpu.memory_space<vmem>>, vector<1x32x8xf32>
    %140 = vector.shape_cast %139 : vector<1x32x8xf32> to vector<32x8xf32>
    %cst_84 = arith.constant dense<0.000000e+00> : vector<24x8xf32>
    %141 = tpu.matmul %57, %140, %cst_84 {dimension_numbers = #tpu.dot_dimension_numbers<[1], [0], [0], [1], [0, 0, 1, 1], [], []>} : vector<24x32xf32>, vector<32x8xf32>, vector<24x8xf32> -> vector<24x8xf32>
    %c2_85 = arith.constant 2 : index
    %c0_86 = arith.constant 0 : index
    %c0_87 = arith.constant 0 : index
    %142 = vector.load %arg9[%c2_85, %c0_86, %c0_87] : memref<8x1x8xf32, #tpu.memory_space<vmem>>, vector<1x1x8xf32>
    %143 = vector.shape_cast %142 : vector<1x1x8xf32> to vector<1x8xf32>
    %144 = vector.broadcast %143 : vector<1x8xf32> to vector<24x8xf32>
    %145 = arith.addf %141, %144 : vector<24x8xf32>
    %c2_88 = arith.constant 2 : index
    %c0_89 = arith.constant 0 : index
    %c0_90 = arith.constant 0 : index
    %146 = vector.load %arg7[%c2_88, %c0_89, %c0_90] : memref<8x32x8xf32, #tpu.memory_space<vmem>>, vector<1x32x8xf32>
    %147 = vector.shape_cast %146 : vector<1x32x8xf32> to vector<32x8xf32>
    %cst_91 = arith.constant dense<0.000000e+00> : vector<24x8xf32>
    %148 = tpu.matmul %57, %147, %cst_91 {dimension_numbers = #tpu.dot_dimension_numbers<[1], [0], [0], [1], [0, 0, 1, 1], [], []>} : vector<24x32xf32>, vector<32x8xf32>, vector<24x8xf32> -> vector<24x8xf32>
    %c2_92 = arith.constant 2 : index
    %c0_93 = arith.constant 0 : index
    %c0_94 = arith.constant 0 : index
    %149 = vector.load %arg10[%c2_92, %c0_93, %c0_94] : memref<8x1x8xf32, #tpu.memory_space<vmem>>, vector<1x1x8xf32>
    %150 = vector.shape_cast %149 : vector<1x1x8xf32> to vector<1x8xf32>
    %151 = vector.broadcast %150 : vector<1x8xf32> to vector<24x8xf32>
    %152 = arith.addf %148, %151 : vector<24x8xf32>
    %c2_95 = arith.constant 2 : index
    %c0_96 = arith.constant 0 : index
    %c0_97 = arith.constant 0 : index
    %153 = vector.load %arg8[%c2_95, %c0_96, %c0_97] : memref<8x32x8xf32, #tpu.memory_space<vmem>>, vector<1x32x8xf32>
    %154 = vector.shape_cast %153 : vector<1x32x8xf32> to vector<32x8xf32>
    %cst_98 = arith.constant dense<0.000000e+00> : vector<24x8xf32>
    %155 = tpu.matmul %57, %154, %cst_98 {dimension_numbers = #tpu.dot_dimension_numbers<[1], [0], [0], [1], [0, 0, 1, 1], [], []>} : vector<24x32xf32>, vector<32x8xf32>, vector<24x8xf32> -> vector<24x8xf32>
    %c2_99 = arith.constant 2 : index
    %c0_100 = arith.constant 0 : index
    %c0_101 = arith.constant 0 : index
    %156 = vector.load %arg11[%c2_99, %c0_100, %c0_101] : memref<8x1x8xf32, #tpu.memory_space<vmem>>, vector<1x1x8xf32>
    %157 = vector.shape_cast %156 : vector<1x1x8xf32> to vector<1x8xf32>
    %158 = vector.broadcast %157 : vector<1x8xf32> to vector<24x8xf32>
    %159 = arith.addf %155, %158 : vector<24x8xf32>
    %cst_102 = arith.constant dense<0.000000e+00> : vector<24x24xf32>
    %160 = tpu.matmul %145, %152, %cst_102 {dimension_numbers = #tpu.dot_dimension_numbers<[1], [1], [0], [0], [0, 0, 1, 0], [], []>} : vector<24x8xf32>, vector<24x8xf32>, vector<24x24xf32> -> vector<24x24xf32>
    %cst_103 = arith.constant 0.353553385 : f32
    %161 = vector.broadcast %cst_103 : f32 to vector<24x24xf32>
    %162 = arith.mulf %160, %161 : vector<24x24xf32>
    %163 = arith.addf %162, %3 : vector<24x24xf32>
    %cst_104 = arith.constant dense<0xFF800000> : vector<24xf32>
    %164 = vector.multi_reduction <maximumf>, %163, %cst_104 [1] : vector<24x24xf32> to vector<24xf32>
    %165 = vector.shape_cast %164 : vector<24xf32> to vector<24x1xf32>
    %166 = vector.broadcast %165 : vector<24x1xf32> to vector<24x24xf32>
    %167 = arith.subf %163, %166 : vector<24x24xf32>
    %168 = math.exp %167 : vector<24x24xf32>
    %cst_105 = arith.constant dense<0.000000e+00> : vector<24xf32>
    %169 = vector.multi_reduction <add>, %168, %cst_105 [1] : vector<24x24xf32> to vector<24xf32>
    %170 = vector.shape_cast %169 : vector<24xf32> to vector<24x1xf32>
    %171 = tpu.reciprocal %170 {approx = true} : vector<24x1xf32> -> vector<24x1xf32>
    %172 = vector.broadcast %171 : vector<24x1xf32> to vector<24x24xf32>
    %173 = arith.mulf %168, %172 : vector<24x24xf32>
    %cst_106 = arith.constant dense<0.000000e+00> : vector<24x8xf32>
    %174 = tpu.matmul %173, %159, %cst_106 {dimension_numbers = #tpu.dot_dimension_numbers<[1], [0], [0], [1], [0, 0, 1, 1], [], []>} : vector<24x24xf32>, vector<24x8xf32>, vector<24x8xf32> -> vector<24x8xf32>
    %c2_107 = arith.constant 2 : index
    %c0_108 = arith.constant 0 : index
    %c0_109 = arith.constant 0 : index
    %175 = vector.load %arg12[%c2_107, %c0_108, %c0_109] : memref<8x8x32xf32, #tpu.memory_space<vmem>>, vector<1x8x32xf32>
    %176 = vector.shape_cast %175 : vector<1x8x32xf32> to vector<8x32xf32>
    %cst_110 = arith.constant dense<0.000000e+00> : vector<24x32xf32>
    %177 = tpu.matmul %174, %176, %cst_110 {dimension_numbers = #tpu.dot_dimension_numbers<[1], [0], [0], [1], [0, 0, 1, 1], [], []>} : vector<24x8xf32>, vector<8x32xf32>, vector<24x32xf32> -> vector<24x32xf32>
    %178 = arith.addf %138, %177 : vector<24x32xf32>
    %c3 = arith.constant 3 : index
    %c0_111 = arith.constant 0 : index
    %c0_112 = arith.constant 0 : index
    %179 = vector.load %arg6[%c3, %c0_111, %c0_112] : memref<8x32x8xf32, #tpu.memory_space<vmem>>, vector<1x32x8xf32>
    %180 = vector.shape_cast %179 : vector<1x32x8xf32> to vector<32x8xf32>
    %cst_113 = arith.constant dense<0.000000e+00> : vector<24x8xf32>
    %181 = tpu.matmul %57, %180, %cst_113 {dimension_numbers = #tpu.dot_dimension_numbers<[1], [0], [0], [1], [0, 0, 1, 1], [], []>} : vector<24x32xf32>, vector<32x8xf32>, vector<24x8xf32> -> vector<24x8xf32>
    %c3_114 = arith.constant 3 : index
    %c0_115 = arith.constant 0 : index
    %c0_116 = arith.constant 0 : index
    %182 = vector.load %arg9[%c3_114, %c0_115, %c0_116] : memref<8x1x8xf32, #tpu.memory_space<vmem>>, vector<1x1x8xf32>
    %183 = vector.shape_cast %182 : vector<1x1x8xf32> to vector<1x8xf32>
    %184 = vector.broadcast %183 : vector<1x8xf32> to vector<24x8xf32>
    %185 = arith.addf %181, %184 : vector<24x8xf32>
    %c3_117 = arith.constant 3 : index
    %c0_118 = arith.constant 0 : index
    %c0_119 = arith.constant 0 : index
    %186 = vector.load %arg7[%c3_117, %c0_118, %c0_119] : memref<8x32x8xf32, #tpu.memory_space<vmem>>, vector<1x32x8xf32>
    %187 = vector.shape_cast %186 : vector<1x32x8xf32> to vector<32x8xf32>
    %cst_120 = arith.constant dense<0.000000e+00> : vector<24x8xf32>
    %188 = tpu.matmul %57, %187, %cst_120 {dimension_numbers = #tpu.dot_dimension_numbers<[1], [0], [0], [1], [0, 0, 1, 1], [], []>} : vector<24x32xf32>, vector<32x8xf32>, vector<24x8xf32> -> vector<24x8xf32>
    %c3_121 = arith.constant 3 : index
    %c0_122 = arith.constant 0 : index
    %c0_123 = arith.constant 0 : index
    %189 = vector.load %arg10[%c3_121, %c0_122, %c0_123] : memref<8x1x8xf32, #tpu.memory_space<vmem>>, vector<1x1x8xf32>
    %190 = vector.shape_cast %189 : vector<1x1x8xf32> to vector<1x8xf32>
    %191 = vector.broadcast %190 : vector<1x8xf32> to vector<24x8xf32>
    %192 = arith.addf %188, %191 : vector<24x8xf32>
    %c3_124 = arith.constant 3 : index
    %c0_125 = arith.constant 0 : index
    %c0_126 = arith.constant 0 : index
    %193 = vector.load %arg8[%c3_124, %c0_125, %c0_126] : memref<8x32x8xf32, #tpu.memory_space<vmem>>, vector<1x32x8xf32>
    %194 = vector.shape_cast %193 : vector<1x32x8xf32> to vector<32x8xf32>
    %cst_127 = arith.constant dense<0.000000e+00> : vector<24x8xf32>
    %195 = tpu.matmul %57, %194, %cst_127 {dimension_numbers = #tpu.dot_dimension_numbers<[1], [0], [0], [1], [0, 0, 1, 1], [], []>} : vector<24x32xf32>, vector<32x8xf32>, vector<24x8xf32> -> vector<24x8xf32>
    %c3_128 = arith.constant 3 : index
    %c0_129 = arith.constant 0 : index
    %c0_130 = arith.constant 0 : index
    %196 = vector.load %arg11[%c3_128, %c0_129, %c0_130] : memref<8x1x8xf32, #tpu.memory_space<vmem>>, vector<1x1x8xf32>
    %197 = vector.shape_cast %196 : vector<1x1x8xf32> to vector<1x8xf32>
    %198 = vector.broadcast %197 : vector<1x8xf32> to vector<24x8xf32>
    %199 = arith.addf %195, %198 : vector<24x8xf32>
    %cst_131 = arith.constant dense<0.000000e+00> : vector<24x24xf32>
    %200 = tpu.matmul %185, %192, %cst_131 {dimension_numbers = #tpu.dot_dimension_numbers<[1], [1], [0], [0], [0, 0, 1, 0], [], []>} : vector<24x8xf32>, vector<24x8xf32>, vector<24x24xf32> -> vector<24x24xf32>
    %cst_132 = arith.constant 0.353553385 : f32
    %201 = vector.broadcast %cst_132 : f32 to vector<24x24xf32>
    %202 = arith.mulf %200, %201 : vector<24x24xf32>
    %203 = arith.addf %202, %3 : vector<24x24xf32>
    %cst_133 = arith.constant dense<0xFF800000> : vector<24xf32>
    %204 = vector.multi_reduction <maximumf>, %203, %cst_133 [1] : vector<24x24xf32> to vector<24xf32>
    %205 = vector.shape_cast %204 : vector<24xf32> to vector<24x1xf32>
    %206 = vector.broadcast %205 : vector<24x1xf32> to vector<24x24xf32>
    %207 = arith.subf %203, %206 : vector<24x24xf32>
    %208 = math.exp %207 : vector<24x24xf32>
    %cst_134 = arith.constant dense<0.000000e+00> : vector<24xf32>
    %209 = vector.multi_reduction <add>, %208, %cst_134 [1] : vector<24x24xf32> to vector<24xf32>
    %210 = vector.shape_cast %209 : vector<24xf32> to vector<24x1xf32>
    %211 = tpu.reciprocal %210 {approx = true} : vector<24x1xf32> -> vector<24x1xf32>
    %212 = vector.broadcast %211 : vector<24x1xf32> to vector<24x24xf32>
    %213 = arith.mulf %208, %212 : vector<24x24xf32>
    %cst_135 = arith.constant dense<0.000000e+00> : vector<24x8xf32>
    %214 = tpu.matmul %213, %199, %cst_135 {dimension_numbers = #tpu.dot_dimension_numbers<[1], [0], [0], [1], [0, 0, 1, 1], [], []>} : vector<24x24xf32>, vector<24x8xf32>, vector<24x8xf32> -> vector<24x8xf32>
    %c3_136 = arith.constant 3 : index
    %c0_137 = arith.constant 0 : index
    %c0_138 = arith.constant 0 : index
    %215 = vector.load %arg12[%c3_136, %c0_137, %c0_138] : memref<8x8x32xf32, #tpu.memory_space<vmem>>, vector<1x8x32xf32>
    %216 = vector.shape_cast %215 : vector<1x8x32xf32> to vector<8x32xf32>
    %cst_139 = arith.constant dense<0.000000e+00> : vector<24x32xf32>
    %217 = tpu.matmul %214, %216, %cst_139 {dimension_numbers = #tpu.dot_dimension_numbers<[1], [0], [0], [1], [0, 0, 1, 1], [], []>} : vector<24x8xf32>, vector<8x32xf32>, vector<24x32xf32> -> vector<24x32xf32>
    %218 = arith.addf %178, %217 : vector<24x32xf32>
    %219 = arith.addf %31, %218 : vector<24x32xf32>
    %c0_140 = arith.constant 0 : index
    %c0_141 = arith.constant 0 : index
    %c0_142 = arith.constant 0 : index
    %220 = vector.load %arg13[%c0_140, %c0_141, %c0_142] : memref<2x1x32xf32, #tpu.memory_space<vmem>>, vector<1x1x32xf32>
    %221 = vector.shape_cast %220 : vector<1x1x32xf32> to vector<1x32xf32>
    %222 = vector.broadcast %221 : vector<1x32xf32> to vector<24x32xf32>
    %223 = arith.addf %219, %222 : vector<24x32xf32>
    %224 = vector.extract_strided_slice %33 {offsets = [2, 0], sizes = [1, 32], strides = [1, 1]} : vector<4x32xf32> to vector<1x32xf32>
    %225 = vector.extract_strided_slice %33 {offsets = [3, 0], sizes = [1, 32], strides = [1, 1]} : vector<4x32xf32> to vector<1x32xf32>
    %cst_143 = arith.constant dense<0.000000e+00> : vector<24xf32>
    %226 = vector.multi_reduction <add>, %223, %cst_143 [1] : vector<24x32xf32> to vector<24xf32>
    %227 = vector.shape_cast %226 : vector<24xf32> to vector<24x1xf32>
    %cst_144 = arith.constant 3.200000e+01 : f32
    %228 = vector.broadcast %cst_144 : f32 to vector<24x1xf32>
    %229 = arith.divf %227, %228 : vector<24x1xf32>
    %230 = vector.broadcast %229 : vector<24x1xf32> to vector<24x32xf32>
    %231 = arith.subf %223, %230 : vector<24x32xf32>
    %232 = arith.mulf %231, %231 : vector<24x32xf32>
    %cst_145 = arith.constant dense<0.000000e+00> : vector<24xf32>
    %233 = vector.multi_reduction <add>, %232, %cst_145 [1] : vector<24x32xf32> to vector<24xf32>
    %234 = vector.shape_cast %233 : vector<24xf32> to vector<24x1xf32>
    %cst_146 = arith.constant 3.200000e+01 : f32
    %235 = vector.broadcast %cst_146 : f32 to vector<24x1xf32>
    %236 = arith.divf %234, %235 : vector<24x1xf32>
    %237 = vector.broadcast %229 : vector<24x1xf32> to vector<24x32xf32>
    %238 = arith.subf %223, %237 : vector<24x32xf32>
    %cst_147 = arith.constant 9.99999974E-6 : f32
    %239 = vector.broadcast %cst_147 : f32 to vector<24x1xf32>
    %240 = arith.addf %236, %239 : vector<24x1xf32>
    %241 = math.rsqrt %240 : vector<24x1xf32>
    %242 = vector.broadcast %241 : vector<24x1xf32> to vector<24x32xf32>
    %243 = arith.mulf %238, %242 : vector<24x32xf32>
    %244 = vector.broadcast %224 : vector<1x32xf32> to vector<24x32xf32>
    %245 = arith.mulf %243, %244 : vector<24x32xf32>
    %246 = vector.broadcast %225 : vector<1x32xf32> to vector<24x32xf32>
    %247 = arith.addf %245, %246 : vector<24x32xf32>
    %248 = arith.truncf %247 : vector<24x32xf32> to vector<24x32xbf16>
    %c0_148 = arith.constant 0 : index
    %c0_149 = arith.constant 0 : index
    %c0_150 = arith.constant 0 : index
    %249 = vector.load %arg14[%c0_148, %c0_149, %c0_150] : memref<2x32x128xbf16, #tpu.memory_space<vmem>>, vector<1x32x128xbf16>
    %250 = vector.shape_cast %249 : vector<1x32x128xbf16> to vector<32x128xbf16>
    %cst_151 = arith.constant dense<0.000000e+00> : vector<24x128xf32>
    %251 = tpu.matmul %248, %250, %cst_151 {dimension_numbers = #tpu.dot_dimension_numbers<[1], [0], [0], [1], [0, 0, 1, 1], [], []>} : vector<24x32xbf16>, vector<32x128xbf16>, vector<24x128xf32> -> vector<24x128xf32>
    %c0_152 = arith.constant 0 : index
    %c0_153 = arith.constant 0 : index
    %c0_154 = arith.constant 0 : index
    %252 = vector.load %arg15[%c0_152, %c0_153, %c0_154] : memref<2x1x128xf32, #tpu.memory_space<vmem>>, vector<1x1x128xf32>
    %253 = vector.shape_cast %252 : vector<1x1x128xf32> to vector<1x128xf32>
    %254 = vector.broadcast %253 : vector<1x128xf32> to vector<24x128xf32>
    %255 = arith.addf %251, %254 : vector<24x128xf32>
    %cst_155 = arith.constant 5.000000e-01 : f32
    %256 = vector.broadcast %cst_155 : f32 to vector<24x128xf32>
    %257 = arith.mulf %256, %255 : vector<24x128xf32>
    %258 = arith.mulf %255, %255 : vector<24x128xf32>
    %259 = arith.mulf %255, %258 : vector<24x128xf32>
    %cst_156 = arith.constant 4.471500e-02 : f32
    %260 = vector.broadcast %cst_156 : f32 to vector<24x128xf32>
    %261 = arith.mulf %260, %259 : vector<24x128xf32>
    %262 = arith.addf %255, %261 : vector<24x128xf32>
    %cst_157 = arith.constant 0.797884583 : f32
    %263 = vector.broadcast %cst_157 : f32 to vector<24x128xf32>
    %264 = arith.mulf %263, %262 : vector<24x128xf32>
    %265 = math.tanh %264 : vector<24x128xf32>
    %cst_158 = arith.constant 1.000000e+00 : f32
    %266 = vector.broadcast %cst_158 : f32 to vector<24x128xf32>
    %267 = arith.addf %266, %265 : vector<24x128xf32>
    %268 = arith.mulf %257, %267 : vector<24x128xf32>
    %269 = arith.truncf %268 : vector<24x128xf32> to vector<24x128xbf16>
    %c0_159 = arith.constant 0 : index
    %c0_160 = arith.constant 0 : index
    %c0_161 = arith.constant 0 : index
    %270 = vector.load %arg16[%c0_159, %c0_160, %c0_161] : memref<2x128x32xbf16, #tpu.memory_space<vmem>>, vector<1x128x32xbf16>
    %271 = vector.shape_cast %270 : vector<1x128x32xbf16> to vector<128x32xbf16>
    %cst_162 = arith.constant dense<0.000000e+00> : vector<24x32xf32>
    %272 = tpu.matmul %269, %271, %cst_162 {dimension_numbers = #tpu.dot_dimension_numbers<[1], [0], [0], [1], [0, 0, 1, 1], [], []>} : vector<24x128xbf16>, vector<128x32xbf16>, vector<24x32xf32> -> vector<24x32xf32>
    %273 = arith.addf %223, %272 : vector<24x32xf32>
    %c0_163 = arith.constant 0 : index
    %c0_164 = arith.constant 0 : index
    %c0_165 = arith.constant 0 : index
    %274 = vector.load %arg17[%c0_163, %c0_164, %c0_165] : memref<2x1x32xf32, #tpu.memory_space<vmem>>, vector<1x1x32xf32>
    %275 = vector.shape_cast %274 : vector<1x1x32xf32> to vector<1x32xf32>
    %276 = vector.broadcast %275 : vector<1x32xf32> to vector<24x32xf32>
    %277 = arith.addf %273, %276 : vector<24x32xf32>
    %c1_166 = arith.constant 1 : index
    %c0_167 = arith.constant 0 : index
    %c0_168 = arith.constant 0 : index
    %278 = vector.load %arg5[%c1_166, %c0_167, %c0_168] : memref<2x4x32xf32, #tpu.memory_space<vmem>>, vector<1x4x32xf32>
    %279 = vector.shape_cast %278 : vector<1x4x32xf32> to vector<4x32xf32>
    %280 = vector.extract_strided_slice %279 {offsets = [0, 0], sizes = [1, 32], strides = [1, 1]} : vector<4x32xf32> to vector<1x32xf32>
    %281 = vector.extract_strided_slice %279 {offsets = [1, 0], sizes = [1, 32], strides = [1, 1]} : vector<4x32xf32> to vector<1x32xf32>
    %cst_169 = arith.constant dense<0.000000e+00> : vector<24xf32>
    %282 = vector.multi_reduction <add>, %277, %cst_169 [1] : vector<24x32xf32> to vector<24xf32>
    %283 = vector.shape_cast %282 : vector<24xf32> to vector<24x1xf32>
    %cst_170 = arith.constant 3.200000e+01 : f32
    %284 = vector.broadcast %cst_170 : f32 to vector<24x1xf32>
    %285 = arith.divf %283, %284 : vector<24x1xf32>
    %286 = vector.broadcast %285 : vector<24x1xf32> to vector<24x32xf32>
    %287 = arith.subf %277, %286 : vector<24x32xf32>
    %288 = arith.mulf %287, %287 : vector<24x32xf32>
    %cst_171 = arith.constant dense<0.000000e+00> : vector<24xf32>
    %289 = vector.multi_reduction <add>, %288, %cst_171 [1] : vector<24x32xf32> to vector<24xf32>
    %290 = vector.shape_cast %289 : vector<24xf32> to vector<24x1xf32>
    %cst_172 = arith.constant 3.200000e+01 : f32
    %291 = vector.broadcast %cst_172 : f32 to vector<24x1xf32>
    %292 = arith.divf %290, %291 : vector<24x1xf32>
    %293 = vector.broadcast %285 : vector<24x1xf32> to vector<24x32xf32>
    %294 = arith.subf %277, %293 : vector<24x32xf32>
    %cst_173 = arith.constant 9.99999974E-6 : f32
    %295 = vector.broadcast %cst_173 : f32 to vector<24x1xf32>
    %296 = arith.addf %292, %295 : vector<24x1xf32>
    %297 = math.rsqrt %296 : vector<24x1xf32>
    %298 = vector.broadcast %297 : vector<24x1xf32> to vector<24x32xf32>
    %299 = arith.mulf %294, %298 : vector<24x32xf32>
    %300 = vector.broadcast %280 : vector<1x32xf32> to vector<24x32xf32>
    %301 = arith.mulf %299, %300 : vector<24x32xf32>
    %302 = vector.broadcast %281 : vector<1x32xf32> to vector<24x32xf32>
    %303 = arith.addf %301, %302 : vector<24x32xf32>
    %cst_174 = arith.constant 0.000000e+00 : f32
    %304 = vector.broadcast %cst_174 : f32 to vector<24x32xf32>
    %c4 = arith.constant 4 : index
    %c0_175 = arith.constant 0 : index
    %c0_176 = arith.constant 0 : index
    %305 = vector.load %arg6[%c4, %c0_175, %c0_176] : memref<8x32x8xf32, #tpu.memory_space<vmem>>, vector<1x32x8xf32>
    %306 = vector.shape_cast %305 : vector<1x32x8xf32> to vector<32x8xf32>
    %cst_177 = arith.constant dense<0.000000e+00> : vector<24x8xf32>
    %307 = tpu.matmul %303, %306, %cst_177 {dimension_numbers = #tpu.dot_dimension_numbers<[1], [0], [0], [1], [0, 0, 1, 1], [], []>} : vector<24x32xf32>, vector<32x8xf32>, vector<24x8xf32> -> vector<24x8xf32>
    %c4_178 = arith.constant 4 : index
    %c0_179 = arith.constant 0 : index
    %c0_180 = arith.constant 0 : index
    %308 = vector.load %arg9[%c4_178, %c0_179, %c0_180] : memref<8x1x8xf32, #tpu.memory_space<vmem>>, vector<1x1x8xf32>
    %309 = vector.shape_cast %308 : vector<1x1x8xf32> to vector<1x8xf32>
    %310 = vector.broadcast %309 : vector<1x8xf32> to vector<24x8xf32>
    %311 = arith.addf %307, %310 : vector<24x8xf32>
    %c4_181 = arith.constant 4 : index
    %c0_182 = arith.constant 0 : index
    %c0_183 = arith.constant 0 : index
    %312 = vector.load %arg7[%c4_181, %c0_182, %c0_183] : memref<8x32x8xf32, #tpu.memory_space<vmem>>, vector<1x32x8xf32>
    %313 = vector.shape_cast %312 : vector<1x32x8xf32> to vector<32x8xf32>
    %cst_184 = arith.constant dense<0.000000e+00> : vector<24x8xf32>
    %314 = tpu.matmul %303, %313, %cst_184 {dimension_numbers = #tpu.dot_dimension_numbers<[1], [0], [0], [1], [0, 0, 1, 1], [], []>} : vector<24x32xf32>, vector<32x8xf32>, vector<24x8xf32> -> vector<24x8xf32>
    %c4_185 = arith.constant 4 : index
    %c0_186 = arith.constant 0 : index
    %c0_187 = arith.constant 0 : index
    %315 = vector.load %arg10[%c4_185, %c0_186, %c0_187] : memref<8x1x8xf32, #tpu.memory_space<vmem>>, vector<1x1x8xf32>
    %316 = vector.shape_cast %315 : vector<1x1x8xf32> to vector<1x8xf32>
    %317 = vector.broadcast %316 : vector<1x8xf32> to vector<24x8xf32>
    %318 = arith.addf %314, %317 : vector<24x8xf32>
    %c4_188 = arith.constant 4 : index
    %c0_189 = arith.constant 0 : index
    %c0_190 = arith.constant 0 : index
    %319 = vector.load %arg8[%c4_188, %c0_189, %c0_190] : memref<8x32x8xf32, #tpu.memory_space<vmem>>, vector<1x32x8xf32>
    %320 = vector.shape_cast %319 : vector<1x32x8xf32> to vector<32x8xf32>
    %cst_191 = arith.constant dense<0.000000e+00> : vector<24x8xf32>
    %321 = tpu.matmul %303, %320, %cst_191 {dimension_numbers = #tpu.dot_dimension_numbers<[1], [0], [0], [1], [0, 0, 1, 1], [], []>} : vector<24x32xf32>, vector<32x8xf32>, vector<24x8xf32> -> vector<24x8xf32>
    %c4_192 = arith.constant 4 : index
    %c0_193 = arith.constant 0 : index
    %c0_194 = arith.constant 0 : index
    %322 = vector.load %arg11[%c4_192, %c0_193, %c0_194] : memref<8x1x8xf32, #tpu.memory_space<vmem>>, vector<1x1x8xf32>
    %323 = vector.shape_cast %322 : vector<1x1x8xf32> to vector<1x8xf32>
    %324 = vector.broadcast %323 : vector<1x8xf32> to vector<24x8xf32>
    %325 = arith.addf %321, %324 : vector<24x8xf32>
    %cst_195 = arith.constant dense<0.000000e+00> : vector<24x24xf32>
    %326 = tpu.matmul %311, %318, %cst_195 {dimension_numbers = #tpu.dot_dimension_numbers<[1], [1], [0], [0], [0, 0, 1, 0], [], []>} : vector<24x8xf32>, vector<24x8xf32>, vector<24x24xf32> -> vector<24x24xf32>
    %cst_196 = arith.constant 0.353553385 : f32
    %327 = vector.broadcast %cst_196 : f32 to vector<24x24xf32>
    %328 = arith.mulf %326, %327 : vector<24x24xf32>
    %329 = arith.addf %328, %3 : vector<24x24xf32>
    %cst_197 = arith.constant dense<0xFF800000> : vector<24xf32>
    %330 = vector.multi_reduction <maximumf>, %329, %cst_197 [1] : vector<24x24xf32> to vector<24xf32>
    %331 = vector.shape_cast %330 : vector<24xf32> to vector<24x1xf32>
    %332 = vector.broadcast %331 : vector<24x1xf32> to vector<24x24xf32>
    %333 = arith.subf %329, %332 : vector<24x24xf32>
    %334 = math.exp %333 : vector<24x24xf32>
    %cst_198 = arith.constant dense<0.000000e+00> : vector<24xf32>
    %335 = vector.multi_reduction <add>, %334, %cst_198 [1] : vector<24x24xf32> to vector<24xf32>
    %336 = vector.shape_cast %335 : vector<24xf32> to vector<24x1xf32>
    %337 = tpu.reciprocal %336 {approx = true} : vector<24x1xf32> -> vector<24x1xf32>
    %338 = vector.broadcast %337 : vector<24x1xf32> to vector<24x24xf32>
    %339 = arith.mulf %334, %338 : vector<24x24xf32>
    %cst_199 = arith.constant dense<0.000000e+00> : vector<24x8xf32>
    %340 = tpu.matmul %339, %325, %cst_199 {dimension_numbers = #tpu.dot_dimension_numbers<[1], [0], [0], [1], [0, 0, 1, 1], [], []>} : vector<24x24xf32>, vector<24x8xf32>, vector<24x8xf32> -> vector<24x8xf32>
    %c4_200 = arith.constant 4 : index
    %c0_201 = arith.constant 0 : index
    %c0_202 = arith.constant 0 : index
    %341 = vector.load %arg12[%c4_200, %c0_201, %c0_202] : memref<8x8x32xf32, #tpu.memory_space<vmem>>, vector<1x8x32xf32>
    %342 = vector.shape_cast %341 : vector<1x8x32xf32> to vector<8x32xf32>
    %cst_203 = arith.constant dense<0.000000e+00> : vector<24x32xf32>
    %343 = tpu.matmul %340, %342, %cst_203 {dimension_numbers = #tpu.dot_dimension_numbers<[1], [0], [0], [1], [0, 0, 1, 1], [], []>} : vector<24x8xf32>, vector<8x32xf32>, vector<24x32xf32> -> vector<24x32xf32>
    %344 = arith.addf %304, %343 : vector<24x32xf32>
    %c5 = arith.constant 5 : index
    %c0_204 = arith.constant 0 : index
    %c0_205 = arith.constant 0 : index
    %345 = vector.load %arg6[%c5, %c0_204, %c0_205] : memref<8x32x8xf32, #tpu.memory_space<vmem>>, vector<1x32x8xf32>
    %346 = vector.shape_cast %345 : vector<1x32x8xf32> to vector<32x8xf32>
    %cst_206 = arith.constant dense<0.000000e+00> : vector<24x8xf32>
    %347 = tpu.matmul %303, %346, %cst_206 {dimension_numbers = #tpu.dot_dimension_numbers<[1], [0], [0], [1], [0, 0, 1, 1], [], []>} : vector<24x32xf32>, vector<32x8xf32>, vector<24x8xf32> -> vector<24x8xf32>
    %c5_207 = arith.constant 5 : index
    %c0_208 = arith.constant 0 : index
    %c0_209 = arith.constant 0 : index
    %348 = vector.load %arg9[%c5_207, %c0_208, %c0_209] : memref<8x1x8xf32, #tpu.memory_space<vmem>>, vector<1x1x8xf32>
    %349 = vector.shape_cast %348 : vector<1x1x8xf32> to vector<1x8xf32>
    %350 = vector.broadcast %349 : vector<1x8xf32> to vector<24x8xf32>
    %351 = arith.addf %347, %350 : vector<24x8xf32>
    %c5_210 = arith.constant 5 : index
    %c0_211 = arith.constant 0 : index
    %c0_212 = arith.constant 0 : index
    %352 = vector.load %arg7[%c5_210, %c0_211, %c0_212] : memref<8x32x8xf32, #tpu.memory_space<vmem>>, vector<1x32x8xf32>
    %353 = vector.shape_cast %352 : vector<1x32x8xf32> to vector<32x8xf32>
    %cst_213 = arith.constant dense<0.000000e+00> : vector<24x8xf32>
    %354 = tpu.matmul %303, %353, %cst_213 {dimension_numbers = #tpu.dot_dimension_numbers<[1], [0], [0], [1], [0, 0, 1, 1], [], []>} : vector<24x32xf32>, vector<32x8xf32>, vector<24x8xf32> -> vector<24x8xf32>
    %c5_214 = arith.constant 5 : index
    %c0_215 = arith.constant 0 : index
    %c0_216 = arith.constant 0 : index
    %355 = vector.load %arg10[%c5_214, %c0_215, %c0_216] : memref<8x1x8xf32, #tpu.memory_space<vmem>>, vector<1x1x8xf32>
    %356 = vector.shape_cast %355 : vector<1x1x8xf32> to vector<1x8xf32>
    %357 = vector.broadcast %356 : vector<1x8xf32> to vector<24x8xf32>
    %358 = arith.addf %354, %357 : vector<24x8xf32>
    %c5_217 = arith.constant 5 : index
    %c0_218 = arith.constant 0 : index
    %c0_219 = arith.constant 0 : index
    %359 = vector.load %arg8[%c5_217, %c0_218, %c0_219] : memref<8x32x8xf32, #tpu.memory_space<vmem>>, vector<1x32x8xf32>
    %360 = vector.shape_cast %359 : vector<1x32x8xf32> to vector<32x8xf32>
    %cst_220 = arith.constant dense<0.000000e+00> : vector<24x8xf32>
    %361 = tpu.matmul %303, %360, %cst_220 {dimension_numbers = #tpu.dot_dimension_numbers<[1], [0], [0], [1], [0, 0, 1, 1], [], []>} : vector<24x32xf32>, vector<32x8xf32>, vector<24x8xf32> -> vector<24x8xf32>
    %c5_221 = arith.constant 5 : index
    %c0_222 = arith.constant 0 : index
    %c0_223 = arith.constant 0 : index
    %362 = vector.load %arg11[%c5_221, %c0_222, %c0_223] : memref<8x1x8xf32, #tpu.memory_space<vmem>>, vector<1x1x8xf32>
    %363 = vector.shape_cast %362 : vector<1x1x8xf32> to vector<1x8xf32>
    %364 = vector.broadcast %363 : vector<1x8xf32> to vector<24x8xf32>
    %365 = arith.addf %361, %364 : vector<24x8xf32>
    %cst_224 = arith.constant dense<0.000000e+00> : vector<24x24xf32>
    %366 = tpu.matmul %351, %358, %cst_224 {dimension_numbers = #tpu.dot_dimension_numbers<[1], [1], [0], [0], [0, 0, 1, 0], [], []>} : vector<24x8xf32>, vector<24x8xf32>, vector<24x24xf32> -> vector<24x24xf32>
    %cst_225 = arith.constant 0.353553385 : f32
    %367 = vector.broadcast %cst_225 : f32 to vector<24x24xf32>
    %368 = arith.mulf %366, %367 : vector<24x24xf32>
    %369 = arith.addf %368, %3 : vector<24x24xf32>
    %cst_226 = arith.constant dense<0xFF800000> : vector<24xf32>
    %370 = vector.multi_reduction <maximumf>, %369, %cst_226 [1] : vector<24x24xf32> to vector<24xf32>
    %371 = vector.shape_cast %370 : vector<24xf32> to vector<24x1xf32>
    %372 = vector.broadcast %371 : vector<24x1xf32> to vector<24x24xf32>
    %373 = arith.subf %369, %372 : vector<24x24xf32>
    %374 = math.exp %373 : vector<24x24xf32>
    %cst_227 = arith.constant dense<0.000000e+00> : vector<24xf32>
    %375 = vector.multi_reduction <add>, %374, %cst_227 [1] : vector<24x24xf32> to vector<24xf32>
    %376 = vector.shape_cast %375 : vector<24xf32> to vector<24x1xf32>
    %377 = tpu.reciprocal %376 {approx = true} : vector<24x1xf32> -> vector<24x1xf32>
    %378 = vector.broadcast %377 : vector<24x1xf32> to vector<24x24xf32>
    %379 = arith.mulf %374, %378 : vector<24x24xf32>
    %cst_228 = arith.constant dense<0.000000e+00> : vector<24x8xf32>
    %380 = tpu.matmul %379, %365, %cst_228 {dimension_numbers = #tpu.dot_dimension_numbers<[1], [0], [0], [1], [0, 0, 1, 1], [], []>} : vector<24x24xf32>, vector<24x8xf32>, vector<24x8xf32> -> vector<24x8xf32>
    %c5_229 = arith.constant 5 : index
    %c0_230 = arith.constant 0 : index
    %c0_231 = arith.constant 0 : index
    %381 = vector.load %arg12[%c5_229, %c0_230, %c0_231] : memref<8x8x32xf32, #tpu.memory_space<vmem>>, vector<1x8x32xf32>
    %382 = vector.shape_cast %381 : vector<1x8x32xf32> to vector<8x32xf32>
    %cst_232 = arith.constant dense<0.000000e+00> : vector<24x32xf32>
    %383 = tpu.matmul %380, %382, %cst_232 {dimension_numbers = #tpu.dot_dimension_numbers<[1], [0], [0], [1], [0, 0, 1, 1], [], []>} : vector<24x8xf32>, vector<8x32xf32>, vector<24x32xf32> -> vector<24x32xf32>
    %384 = arith.addf %344, %383 : vector<24x32xf32>
    %c6 = arith.constant 6 : index
    %c0_233 = arith.constant 0 : index
    %c0_234 = arith.constant 0 : index
    %385 = vector.load %arg6[%c6, %c0_233, %c0_234] : memref<8x32x8xf32, #tpu.memory_space<vmem>>, vector<1x32x8xf32>
    %386 = vector.shape_cast %385 : vector<1x32x8xf32> to vector<32x8xf32>
    %cst_235 = arith.constant dense<0.000000e+00> : vector<24x8xf32>
    %387 = tpu.matmul %303, %386, %cst_235 {dimension_numbers = #tpu.dot_dimension_numbers<[1], [0], [0], [1], [0, 0, 1, 1], [], []>} : vector<24x32xf32>, vector<32x8xf32>, vector<24x8xf32> -> vector<24x8xf32>
    %c6_236 = arith.constant 6 : index
    %c0_237 = arith.constant 0 : index
    %c0_238 = arith.constant 0 : index
    %388 = vector.load %arg9[%c6_236, %c0_237, %c0_238] : memref<8x1x8xf32, #tpu.memory_space<vmem>>, vector<1x1x8xf32>
    %389 = vector.shape_cast %388 : vector<1x1x8xf32> to vector<1x8xf32>
    %390 = vector.broadcast %389 : vector<1x8xf32> to vector<24x8xf32>
    %391 = arith.addf %387, %390 : vector<24x8xf32>
    %c6_239 = arith.constant 6 : index
    %c0_240 = arith.constant 0 : index
    %c0_241 = arith.constant 0 : index
    %392 = vector.load %arg7[%c6_239, %c0_240, %c0_241] : memref<8x32x8xf32, #tpu.memory_space<vmem>>, vector<1x32x8xf32>
    %393 = vector.shape_cast %392 : vector<1x32x8xf32> to vector<32x8xf32>
    %cst_242 = arith.constant dense<0.000000e+00> : vector<24x8xf32>
    %394 = tpu.matmul %303, %393, %cst_242 {dimension_numbers = #tpu.dot_dimension_numbers<[1], [0], [0], [1], [0, 0, 1, 1], [], []>} : vector<24x32xf32>, vector<32x8xf32>, vector<24x8xf32> -> vector<24x8xf32>
    %c6_243 = arith.constant 6 : index
    %c0_244 = arith.constant 0 : index
    %c0_245 = arith.constant 0 : index
    %395 = vector.load %arg10[%c6_243, %c0_244, %c0_245] : memref<8x1x8xf32, #tpu.memory_space<vmem>>, vector<1x1x8xf32>
    %396 = vector.shape_cast %395 : vector<1x1x8xf32> to vector<1x8xf32>
    %397 = vector.broadcast %396 : vector<1x8xf32> to vector<24x8xf32>
    %398 = arith.addf %394, %397 : vector<24x8xf32>
    %c6_246 = arith.constant 6 : index
    %c0_247 = arith.constant 0 : index
    %c0_248 = arith.constant 0 : index
    %399 = vector.load %arg8[%c6_246, %c0_247, %c0_248] : memref<8x32x8xf32, #tpu.memory_space<vmem>>, vector<1x32x8xf32>
    %400 = vector.shape_cast %399 : vector<1x32x8xf32> to vector<32x8xf32>
    %cst_249 = arith.constant dense<0.000000e+00> : vector<24x8xf32>
    %401 = tpu.matmul %303, %400, %cst_249 {dimension_numbers = #tpu.dot_dimension_numbers<[1], [0], [0], [1], [0, 0, 1, 1], [], []>} : vector<24x32xf32>, vector<32x8xf32>, vector<24x8xf32> -> vector<24x8xf32>
    %c6_250 = arith.constant 6 : index
    %c0_251 = arith.constant 0 : index
    %c0_252 = arith.constant 0 : index
    %402 = vector.load %arg11[%c6_250, %c0_251, %c0_252] : memref<8x1x8xf32, #tpu.memory_space<vmem>>, vector<1x1x8xf32>
    %403 = vector.shape_cast %402 : vector<1x1x8xf32> to vector<1x8xf32>
    %404 = vector.broadcast %403 : vector<1x8xf32> to vector<24x8xf32>
    %405 = arith.addf %401, %404 : vector<24x8xf32>
    %cst_253 = arith.constant dense<0.000000e+00> : vector<24x24xf32>
    %406 = tpu.matmul %391, %398, %cst_253 {dimension_numbers = #tpu.dot_dimension_numbers<[1], [1], [0], [0], [0, 0, 1, 0], [], []>} : vector<24x8xf32>, vector<24x8xf32>, vector<24x24xf32> -> vector<24x24xf32>
    %cst_254 = arith.constant 0.353553385 : f32
    %407 = vector.broadcast %cst_254 : f32 to vector<24x24xf32>
    %408 = arith.mulf %406, %407 : vector<24x24xf32>
    %409 = arith.addf %408, %3 : vector<24x24xf32>
    %cst_255 = arith.constant dense<0xFF800000> : vector<24xf32>
    %410 = vector.multi_reduction <maximumf>, %409, %cst_255 [1] : vector<24x24xf32> to vector<24xf32>
    %411 = vector.shape_cast %410 : vector<24xf32> to vector<24x1xf32>
    %412 = vector.broadcast %411 : vector<24x1xf32> to vector<24x24xf32>
    %413 = arith.subf %409, %412 : vector<24x24xf32>
    %414 = math.exp %413 : vector<24x24xf32>
    %cst_256 = arith.constant dense<0.000000e+00> : vector<24xf32>
    %415 = vector.multi_reduction <add>, %414, %cst_256 [1] : vector<24x24xf32> to vector<24xf32>
    %416 = vector.shape_cast %415 : vector<24xf32> to vector<24x1xf32>
    %417 = tpu.reciprocal %416 {approx = true} : vector<24x1xf32> -> vector<24x1xf32>
    %418 = vector.broadcast %417 : vector<24x1xf32> to vector<24x24xf32>
    %419 = arith.mulf %414, %418 : vector<24x24xf32>
    %cst_257 = arith.constant dense<0.000000e+00> : vector<24x8xf32>
    %420 = tpu.matmul %419, %405, %cst_257 {dimension_numbers = #tpu.dot_dimension_numbers<[1], [0], [0], [1], [0, 0, 1, 1], [], []>} : vector<24x24xf32>, vector<24x8xf32>, vector<24x8xf32> -> vector<24x8xf32>
    %c6_258 = arith.constant 6 : index
    %c0_259 = arith.constant 0 : index
    %c0_260 = arith.constant 0 : index
    %421 = vector.load %arg12[%c6_258, %c0_259, %c0_260] : memref<8x8x32xf32, #tpu.memory_space<vmem>>, vector<1x8x32xf32>
    %422 = vector.shape_cast %421 : vector<1x8x32xf32> to vector<8x32xf32>
    %cst_261 = arith.constant dense<0.000000e+00> : vector<24x32xf32>
    %423 = tpu.matmul %420, %422, %cst_261 {dimension_numbers = #tpu.dot_dimension_numbers<[1], [0], [0], [1], [0, 0, 1, 1], [], []>} : vector<24x8xf32>, vector<8x32xf32>, vector<24x32xf32> -> vector<24x32xf32>
    %424 = arith.addf %384, %423 : vector<24x32xf32>
    %c7 = arith.constant 7 : index
    %c0_262 = arith.constant 0 : index
    %c0_263 = arith.constant 0 : index
    %425 = vector.load %arg6[%c7, %c0_262, %c0_263] : memref<8x32x8xf32, #tpu.memory_space<vmem>>, vector<1x32x8xf32>
    %426 = vector.shape_cast %425 : vector<1x32x8xf32> to vector<32x8xf32>
    %cst_264 = arith.constant dense<0.000000e+00> : vector<24x8xf32>
    %427 = tpu.matmul %303, %426, %cst_264 {dimension_numbers = #tpu.dot_dimension_numbers<[1], [0], [0], [1], [0, 0, 1, 1], [], []>} : vector<24x32xf32>, vector<32x8xf32>, vector<24x8xf32> -> vector<24x8xf32>
    %c7_265 = arith.constant 7 : index
    %c0_266 = arith.constant 0 : index
    %c0_267 = arith.constant 0 : index
    %428 = vector.load %arg9[%c7_265, %c0_266, %c0_267] : memref<8x1x8xf32, #tpu.memory_space<vmem>>, vector<1x1x8xf32>
    %429 = vector.shape_cast %428 : vector<1x1x8xf32> to vector<1x8xf32>
    %430 = vector.broadcast %429 : vector<1x8xf32> to vector<24x8xf32>
    %431 = arith.addf %427, %430 : vector<24x8xf32>
    %c7_268 = arith.constant 7 : index
    %c0_269 = arith.constant 0 : index
    %c0_270 = arith.constant 0 : index
    %432 = vector.load %arg7[%c7_268, %c0_269, %c0_270] : memref<8x32x8xf32, #tpu.memory_space<vmem>>, vector<1x32x8xf32>
    %433 = vector.shape_cast %432 : vector<1x32x8xf32> to vector<32x8xf32>
    %cst_271 = arith.constant dense<0.000000e+00> : vector<24x8xf32>
    %434 = tpu.matmul %303, %433, %cst_271 {dimension_numbers = #tpu.dot_dimension_numbers<[1], [0], [0], [1], [0, 0, 1, 1], [], []>} : vector<24x32xf32>, vector<32x8xf32>, vector<24x8xf32> -> vector<24x8xf32>
    %c7_272 = arith.constant 7 : index
    %c0_273 = arith.constant 0 : index
    %c0_274 = arith.constant 0 : index
    %435 = vector.load %arg10[%c7_272, %c0_273, %c0_274] : memref<8x1x8xf32, #tpu.memory_space<vmem>>, vector<1x1x8xf32>
    %436 = vector.shape_cast %435 : vector<1x1x8xf32> to vector<1x8xf32>
    %437 = vector.broadcast %436 : vector<1x8xf32> to vector<24x8xf32>
    %438 = arith.addf %434, %437 : vector<24x8xf32>
    %c7_275 = arith.constant 7 : index
    %c0_276 = arith.constant 0 : index
    %c0_277 = arith.constant 0 : index
    %439 = vector.load %arg8[%c7_275, %c0_276, %c0_277] : memref<8x32x8xf32, #tpu.memory_space<vmem>>, vector<1x32x8xf32>
    %440 = vector.shape_cast %439 : vector<1x32x8xf32> to vector<32x8xf32>
    %cst_278 = arith.constant dense<0.000000e+00> : vector<24x8xf32>
    %441 = tpu.matmul %303, %440, %cst_278 {dimension_numbers = #tpu.dot_dimension_numbers<[1], [0], [0], [1], [0, 0, 1, 1], [], []>} : vector<24x32xf32>, vector<32x8xf32>, vector<24x8xf32> -> vector<24x8xf32>
    %c7_279 = arith.constant 7 : index
    %c0_280 = arith.constant 0 : index
    %c0_281 = arith.constant 0 : index
    %442 = vector.load %arg11[%c7_279, %c0_280, %c0_281] : memref<8x1x8xf32, #tpu.memory_space<vmem>>, vector<1x1x8xf32>
    %443 = vector.shape_cast %442 : vector<1x1x8xf32> to vector<1x8xf32>
    %444 = vector.broadcast %443 : vector<1x8xf32> to vector<24x8xf32>
    %445 = arith.addf %441, %444 : vector<24x8xf32>
    %cst_282 = arith.constant dense<0.000000e+00> : vector<24x24xf32>
    %446 = tpu.matmul %431, %438, %cst_282 {dimension_numbers = #tpu.dot_dimension_numbers<[1], [1], [0], [0], [0, 0, 1, 0], [], []>} : vector<24x8xf32>, vector<24x8xf32>, vector<24x24xf32> -> vector<24x24xf32>
    %cst_283 = arith.constant 0.353553385 : f32
    %447 = vector.broadcast %cst_283 : f32 to vector<24x24xf32>
    %448 = arith.mulf %446, %447 : vector<24x24xf32>
    %449 = arith.addf %448, %3 : vector<24x24xf32>
    %cst_284 = arith.constant dense<0xFF800000> : vector<24xf32>
    %450 = vector.multi_reduction <maximumf>, %449, %cst_284 [1] : vector<24x24xf32> to vector<24xf32>
    %451 = vector.shape_cast %450 : vector<24xf32> to vector<24x1xf32>
    %452 = vector.broadcast %451 : vector<24x1xf32> to vector<24x24xf32>
    %453 = arith.subf %449, %452 : vector<24x24xf32>
    %454 = math.exp %453 : vector<24x24xf32>
    %cst_285 = arith.constant dense<0.000000e+00> : vector<24xf32>
    %455 = vector.multi_reduction <add>, %454, %cst_285 [1] : vector<24x24xf32> to vector<24xf32>
    %456 = vector.shape_cast %455 : vector<24xf32> to vector<24x1xf32>
    %457 = tpu.reciprocal %456 {approx = true} : vector<24x1xf32> -> vector<24x1xf32>
    %458 = vector.broadcast %457 : vector<24x1xf32> to vector<24x24xf32>
    %459 = arith.mulf %454, %458 : vector<24x24xf32>
    %cst_286 = arith.constant dense<0.000000e+00> : vector<24x8xf32>
    %460 = tpu.matmul %459, %445, %cst_286 {dimension_numbers = #tpu.dot_dimension_numbers<[1], [0], [0], [1], [0, 0, 1, 1], [], []>} : vector<24x24xf32>, vector<24x8xf32>, vector<24x8xf32> -> vector<24x8xf32>
    %c7_287 = arith.constant 7 : index
    %c0_288 = arith.constant 0 : index
    %c0_289 = arith.constant 0 : index
    %461 = vector.load %arg12[%c7_287, %c0_288, %c0_289] : memref<8x8x32xf32, #tpu.memory_space<vmem>>, vector<1x8x32xf32>
    %462 = vector.shape_cast %461 : vector<1x8x32xf32> to vector<8x32xf32>
    %cst_290 = arith.constant dense<0.000000e+00> : vector<24x32xf32>
    %463 = tpu.matmul %460, %462, %cst_290 {dimension_numbers = #tpu.dot_dimension_numbers<[1], [0], [0], [1], [0, 0, 1, 1], [], []>} : vector<24x8xf32>, vector<8x32xf32>, vector<24x32xf32> -> vector<24x32xf32>
    %464 = arith.addf %424, %463 : vector<24x32xf32>
    %465 = arith.addf %277, %464 : vector<24x32xf32>
    %c1_291 = arith.constant 1 : index
    %c0_292 = arith.constant 0 : index
    %c0_293 = arith.constant 0 : index
    %466 = vector.load %arg13[%c1_291, %c0_292, %c0_293] : memref<2x1x32xf32, #tpu.memory_space<vmem>>, vector<1x1x32xf32>
    %467 = vector.shape_cast %466 : vector<1x1x32xf32> to vector<1x32xf32>
    %468 = vector.broadcast %467 : vector<1x32xf32> to vector<24x32xf32>
    %469 = arith.addf %465, %468 : vector<24x32xf32>
    %470 = vector.extract_strided_slice %279 {offsets = [2, 0], sizes = [1, 32], strides = [1, 1]} : vector<4x32xf32> to vector<1x32xf32>
    %471 = vector.extract_strided_slice %279 {offsets = [3, 0], sizes = [1, 32], strides = [1, 1]} : vector<4x32xf32> to vector<1x32xf32>
    %cst_294 = arith.constant dense<0.000000e+00> : vector<24xf32>
    %472 = vector.multi_reduction <add>, %469, %cst_294 [1] : vector<24x32xf32> to vector<24xf32>
    %473 = vector.shape_cast %472 : vector<24xf32> to vector<24x1xf32>
    %cst_295 = arith.constant 3.200000e+01 : f32
    %474 = vector.broadcast %cst_295 : f32 to vector<24x1xf32>
    %475 = arith.divf %473, %474 : vector<24x1xf32>
    %476 = vector.broadcast %475 : vector<24x1xf32> to vector<24x32xf32>
    %477 = arith.subf %469, %476 : vector<24x32xf32>
    %478 = arith.mulf %477, %477 : vector<24x32xf32>
    %cst_296 = arith.constant dense<0.000000e+00> : vector<24xf32>
    %479 = vector.multi_reduction <add>, %478, %cst_296 [1] : vector<24x32xf32> to vector<24xf32>
    %480 = vector.shape_cast %479 : vector<24xf32> to vector<24x1xf32>
    %cst_297 = arith.constant 3.200000e+01 : f32
    %481 = vector.broadcast %cst_297 : f32 to vector<24x1xf32>
    %482 = arith.divf %480, %481 : vector<24x1xf32>
    %483 = vector.broadcast %475 : vector<24x1xf32> to vector<24x32xf32>
    %484 = arith.subf %469, %483 : vector<24x32xf32>
    %cst_298 = arith.constant 9.99999974E-6 : f32
    %485 = vector.broadcast %cst_298 : f32 to vector<24x1xf32>
    %486 = arith.addf %482, %485 : vector<24x1xf32>
    %487 = math.rsqrt %486 : vector<24x1xf32>
    %488 = vector.broadcast %487 : vector<24x1xf32> to vector<24x32xf32>
    %489 = arith.mulf %484, %488 : vector<24x32xf32>
    %490 = vector.broadcast %470 : vector<1x32xf32> to vector<24x32xf32>
    %491 = arith.mulf %489, %490 : vector<24x32xf32>
    %492 = vector.broadcast %471 : vector<1x32xf32> to vector<24x32xf32>
    %493 = arith.addf %491, %492 : vector<24x32xf32>
    %494 = arith.truncf %493 : vector<24x32xf32> to vector<24x32xbf16>
    %c1_299 = arith.constant 1 : index
    %c0_300 = arith.constant 0 : index
    %c0_301 = arith.constant 0 : index
    %495 = vector.load %arg14[%c1_299, %c0_300, %c0_301] : memref<2x32x128xbf16, #tpu.memory_space<vmem>>, vector<1x32x128xbf16>
    %496 = vector.shape_cast %495 : vector<1x32x128xbf16> to vector<32x128xbf16>
    %cst_302 = arith.constant dense<0.000000e+00> : vector<24x128xf32>
    %497 = tpu.matmul %494, %496, %cst_302 {dimension_numbers = #tpu.dot_dimension_numbers<[1], [0], [0], [1], [0, 0, 1, 1], [], []>} : vector<24x32xbf16>, vector<32x128xbf16>, vector<24x128xf32> -> vector<24x128xf32>
    %c1_303 = arith.constant 1 : index
    %c0_304 = arith.constant 0 : index
    %c0_305 = arith.constant 0 : index
    %498 = vector.load %arg15[%c1_303, %c0_304, %c0_305] : memref<2x1x128xf32, #tpu.memory_space<vmem>>, vector<1x1x128xf32>
    %499 = vector.shape_cast %498 : vector<1x1x128xf32> to vector<1x128xf32>
    %500 = vector.broadcast %499 : vector<1x128xf32> to vector<24x128xf32>
    %501 = arith.addf %497, %500 : vector<24x128xf32>
    %cst_306 = arith.constant 5.000000e-01 : f32
    %502 = vector.broadcast %cst_306 : f32 to vector<24x128xf32>
    %503 = arith.mulf %502, %501 : vector<24x128xf32>
    %504 = arith.mulf %501, %501 : vector<24x128xf32>
    %505 = arith.mulf %501, %504 : vector<24x128xf32>
    %cst_307 = arith.constant 4.471500e-02 : f32
    %506 = vector.broadcast %cst_307 : f32 to vector<24x128xf32>
    %507 = arith.mulf %506, %505 : vector<24x128xf32>
    %508 = arith.addf %501, %507 : vector<24x128xf32>
    %cst_308 = arith.constant 0.797884583 : f32
    %509 = vector.broadcast %cst_308 : f32 to vector<24x128xf32>
    %510 = arith.mulf %509, %508 : vector<24x128xf32>
    %511 = math.tanh %510 : vector<24x128xf32>
    %cst_309 = arith.constant 1.000000e+00 : f32
    %512 = vector.broadcast %cst_309 : f32 to vector<24x128xf32>
    %513 = arith.addf %512, %511 : vector<24x128xf32>
    %514 = arith.mulf %503, %513 : vector<24x128xf32>
    %515 = arith.truncf %514 : vector<24x128xf32> to vector<24x128xbf16>
    %c1_310 = arith.constant 1 : index
    %c0_311 = arith.constant 0 : index
    %c0_312 = arith.constant 0 : index
    %516 = vector.load %arg16[%c1_310, %c0_311, %c0_312] : memref<2x128x32xbf16, #tpu.memory_space<vmem>>, vector<1x128x32xbf16>
    %517 = vector.shape_cast %516 : vector<1x128x32xbf16> to vector<128x32xbf16>
    %cst_313 = arith.constant dense<0.000000e+00> : vector<24x32xf32>
    %518 = tpu.matmul %515, %517, %cst_313 {dimension_numbers = #tpu.dot_dimension_numbers<[1], [0], [0], [1], [0, 0, 1, 1], [], []>} : vector<24x128xbf16>, vector<128x32xbf16>, vector<24x32xf32> -> vector<24x32xf32>
    %519 = arith.addf %469, %518 : vector<24x32xf32>
    %c1_314 = arith.constant 1 : index
    %c0_315 = arith.constant 0 : index
    %c0_316 = arith.constant 0 : index
    %520 = vector.load %arg17[%c1_314, %c0_315, %c0_316] : memref<2x1x32xf32, #tpu.memory_space<vmem>>, vector<1x1x32xf32>
    %521 = vector.shape_cast %520 : vector<1x1x32xf32> to vector<1x32xf32>
    %522 = vector.broadcast %521 : vector<1x32xf32> to vector<24x32xf32>
    %523 = arith.addf %519, %522 : vector<24x32xf32>
    %524 = vector.extract_strided_slice %4 {offsets = [2, 0], sizes = [1, 32], strides = [1, 1]} : vector<4x32xf32> to vector<1x32xf32>
    %525 = vector.extract_strided_slice %4 {offsets = [3, 0], sizes = [1, 32], strides = [1, 1]} : vector<4x32xf32> to vector<1x32xf32>
    %cst_317 = arith.constant dense<0.000000e+00> : vector<24xf32>
    %526 = vector.multi_reduction <add>, %523, %cst_317 [1] : vector<24x32xf32> to vector<24xf32>
    %527 = vector.shape_cast %526 : vector<24xf32> to vector<24x1xf32>
    %cst_318 = arith.constant 3.200000e+01 : f32
    %528 = vector.broadcast %cst_318 : f32 to vector<24x1xf32>
    %529 = arith.divf %527, %528 : vector<24x1xf32>
    %530 = vector.broadcast %529 : vector<24x1xf32> to vector<24x32xf32>
    %531 = arith.subf %523, %530 : vector<24x32xf32>
    %532 = arith.mulf %531, %531 : vector<24x32xf32>
    %cst_319 = arith.constant dense<0.000000e+00> : vector<24xf32>
    %533 = vector.multi_reduction <add>, %532, %cst_319 [1] : vector<24x32xf32> to vector<24xf32>
    %534 = vector.shape_cast %533 : vector<24xf32> to vector<24x1xf32>
    %cst_320 = arith.constant 3.200000e+01 : f32
    %535 = vector.broadcast %cst_320 : f32 to vector<24x1xf32>
    %536 = arith.divf %534, %535 : vector<24x1xf32>
    %537 = vector.broadcast %529 : vector<24x1xf32> to vector<24x32xf32>
    %538 = arith.subf %523, %537 : vector<24x32xf32>
    %cst_321 = arith.constant 9.99999974E-6 : f32
    %539 = vector.broadcast %cst_321 : f32 to vector<24x1xf32>
    %540 = arith.addf %536, %539 : vector<24x1xf32>
    %541 = math.rsqrt %540 : vector<24x1xf32>
    %542 = vector.broadcast %541 : vector<24x1xf32> to vector<24x32xf32>
    %543 = arith.mulf %538, %542 : vector<24x32xf32>
    %544 = vector.broadcast %524 : vector<1x32xf32> to vector<24x32xf32>
    %545 = arith.mulf %543, %544 : vector<24x32xf32>
    %546 = vector.broadcast %525 : vector<1x32xf32> to vector<24x32xf32>
    %547 = arith.addf %545, %546 : vector<24x32xf32>
    %c0_322 = arith.constant 0 : index
    %c0_323 = arith.constant 0 : index
    %548 = vector.load %arg18[%c0_322, %c0_323] : memref<32x128xf32, #tpu.memory_space<vmem>>, vector<32x128xf32>
    %cst_324 = arith.constant dense<0.000000e+00> : vector<24x128xf32>
    %549 = tpu.matmul %547, %548, %cst_324 {dimension_numbers = #tpu.dot_dimension_numbers<[1], [0], [0], [1], [0, 0, 1, 1], [], []>} : vector<24x32xf32>, vector<32x128xf32>, vector<24x128xf32> -> vector<24x128xf32>
    %c0_325 = arith.constant 0 : index
    %c0_326 = arith.constant 0 : index
    %550 = vector.load %arg19[%c0_325, %c0_326] : memref<1x128xf32, #tpu.memory_space<vmem>>, vector<1x128xf32>
    %551 = vector.broadcast %550 : vector<1x128xf32> to vector<24x128xf32>
    %552 = arith.addf %549, %551 : vector<24x128xf32>
    %c0_327 = arith.constant 0 : index
    %c0_328 = arith.constant 0 : index
    %c0_329 = arith.constant 0 : index
    %553 = vector.load %arg20[%c0_327, %c0_328, %c0_329] : memref<1x24x128xf32, #tpu.memory_space<vmem>>, vector<1x24x128xf32>
    %554 = vector.shape_cast %553 : vector<1x24x128xf32> to vector<24x128xf32>
    %555 = vector.shape_cast %552 : vector<24x128xf32> to vector<1x24x128xf32>
    tpu.vector_store %arg20[%c0_327, %c0_328, %c0_329], %555 {strides = array<i32>} : memref<1x24x128xf32, #tpu.memory_space<vmem>>, vector<1x24x128xf32>,
    return
  }
  func.func @transform_0(%arg0: i32) -> (i32, i32, i32) {
    %c0_i32 = arith.constant 0 : i32
    %c0_i32_0 = arith.constant 0 : i32
    %c0_i32_1 = arith.constant 0 : i32
    return %arg0, %c0_i32, %c0_i32_0 : i32, i32, i32
  }
  func.func @transform_1(%arg0: i32) -> (i32, i32, i32) {
    %c0_i32 = arith.constant 0 : i32
    %c0_i32_0 = arith.constant 0 : i32
    %c0_i32_1 = arith.constant 0 : i32
    return %arg0, %c0_i32, %c0_i32_0 : i32, i32, i32
  }
  func.func @transform_2(%arg0: i32) -> (i32, i32, i32) {
    %c0_i32 = arith.constant 0 : i32
    %c0_i32_0 = arith.constant 0 : i32
    %c0_i32_1 = arith.constant 0 : i32
    return %arg0, %c0_i32, %c0_i32_0 : i32, i32, i32
  }
  func.func @transform_3(%arg0: i32) -> (i32, i32) {
    %c0_i32 = arith.constant 0 : i32
    %c0_i32_0 = arith.constant 0 : i32
    %c0_i32_1 = arith.constant 0 : i32
    return %c0_i32, %c0_i32_0 : i32, i32
  }
  func.func @transform_4(%arg0: i32) -> (i32, i32, i32) {
    %c0_i32 = arith.constant 0 : i32
    %c0_i32_0 = arith.constant 0 : i32
    %c0_i32_1 = arith.constant 0 : i32
    %c0_i32_2 = arith.constant 0 : i32
    return %c0_i32, %c0_i32_0, %c0_i32_1 : i32, i32, i32
  }
  func.func @transform_5(%arg0: i32) -> (i32, i32, i32) {
    %c0_i32 = arith.constant 0 : i32
    %c0_i32_0 = arith.constant 0 : i32
    %c0_i32_1 = arith.constant 0 : i32
    %c0_i32_2 = arith.constant 0 : i32
    return %c0_i32, %c0_i32_0, %c0_i32_1 : i32, i32, i32
  }
  func.func @transform_6(%arg0: i32) -> (i32, i32, i32) {
    %c0_i32 = arith.constant 0 : i32
    %c0_i32_0 = arith.constant 0 : i32
    %c0_i32_1 = arith.constant 0 : i32
    %c0_i32_2 = arith.constant 0 : i32
    return %c0_i32, %c0_i32_0, %c0_i32_1 : i32, i32, i32
  }
  func.func @transform_7(%arg0: i32) -> (i32, i32, i32) {
    %c0_i32 = arith.constant 0 : i32
    %c0_i32_0 = arith.constant 0 : i32
    %c0_i32_1 = arith.constant 0 : i32
    %c0_i32_2 = arith.constant 0 : i32
    return %c0_i32, %c0_i32_0, %c0_i32_1 : i32, i32, i32
  }
  func.func @transform_8(%arg0: i32) -> (i32, i32, i32) {
    %c0_i32 = arith.constant 0 : i32
    %c0_i32_0 = arith.constant 0 : i32
    %c0_i32_1 = arith.constant 0 : i32
    %c0_i32_2 = arith.constant 0 : i32
    return %c0_i32, %c0_i32_0, %c0_i32_1 : i32, i32, i32
  }
  func.func @transform_9(%arg0: i32) -> (i32, i32, i32) {
    %c0_i32 = arith.constant 0 : i32
    %c0_i32_0 = arith.constant 0 : i32
    %c0_i32_1 = arith.constant 0 : i32
    %c0_i32_2 = arith.constant 0 : i32
    return %c0_i32, %c0_i32_0, %c0_i32_1 : i32, i32, i32
  }
  func.func @transform_10(%arg0: i32) -> (i32, i32, i32) {
    %c0_i32 = arith.constant 0 : i32
    %c0_i32_0 = arith.constant 0 : i32
    %c0_i32_1 = arith.constant 0 : i32
    %c0_i32_2 = arith.constant 0 : i32
    return %c0_i32, %c0_i32_0, %c0_i32_1 : i32, i32, i32
  }
  func.func @transform_11(%arg0: i32) -> (i32, i32, i32) {
    %c0_i32 = arith.constant 0 : i32
    %c0_i32_0 = arith.constant 0 : i32
    %c0_i32_1 = arith.constant 0 : i32
    %c0_i32_2 = arith.constant 0 : i32
    return %c0_i32, %c0_i32_0, %c0_i32_1 : i32, i32, i32
  }
  func.func @transform_12(%arg0: i32) -> (i32, i32, i32) {
    %c0_i32 = arith.constant 0 : i32
    %c0_i32_0 = arith.constant 0 : i32
    %c0_i32_1 = arith.constant 0 : i32
    %c0_i32_2 = arith.constant 0 : i32
    return %c0_i32, %c0_i32_0, %c0_i32_1 : i32, i32, i32
  }
  func.func @transform_13(%arg0: i32) -> (i32, i32, i32) {
    %c0_i32 = arith.constant 0 : i32
    %c0_i32_0 = arith.constant 0 : i32
    %c0_i32_1 = arith.constant 0 : i32
    %c0_i32_2 = arith.constant 0 : i32
    return %c0_i32, %c0_i32_0, %c0_i32_1 : i32, i32, i32
  }
  func.func @transform_14(%arg0: i32) -> (i32, i32, i32) {
    %c0_i32 = arith.constant 0 : i32
    %c0_i32_0 = arith.constant 0 : i32
    %c0_i32_1 = arith.constant 0 : i32
    %c0_i32_2 = arith.constant 0 : i32
    return %c0_i32, %c0_i32_0, %c0_i32_1 : i32, i32, i32
  }
  func.func @transform_15(%arg0: i32) -> (i32, i32, i32) {
    %c0_i32 = arith.constant 0 : i32
    %c0_i32_0 = arith.constant 0 : i32
    %c0_i32_1 = arith.constant 0 : i32
    %c0_i32_2 = arith.constant 0 : i32
    return %c0_i32, %c0_i32_0, %c0_i32_1 : i32, i32, i32
  }
  func.func @transform_16(%arg0: i32) -> (i32, i32, i32) {
    %c0_i32 = arith.constant 0 : i32
    %c0_i32_0 = arith.constant 0 : i32
    %c0_i32_1 = arith.constant 0 : i32
    %c0_i32_2 = arith.constant 0 : i32
    return %c0_i32, %c0_i32_0, %c0_i32_1 : i32, i32, i32
  }
  func.func @transform_17(%arg0: i32) -> (i32, i32) {
    %c0_i32 = arith.constant 0 : i32
    %c0_i32_0 = arith.constant 0 : i32
    %c0_i32_1 = arith.constant 0 : i32
    return %c0_i32, %c0_i32_0 : i32, i32
  }
  func.func @transform_18(%arg0: i32) -> (i32, i32) {
    %c0_i32 = arith.constant 0 : i32
    %c0_i32_0 = arith.constant 0 : i32
    %c0_i32_1 = arith.constant 0 : i32
    return %c0_i32, %c0_i32_0 : i32, i32
  }
  func.func @transform_19(%arg0: i32) -> (i32, i32, i32) {
    %c0_i32 = arith.constant 0 : i32
    %c0_i32_0 = arith.constant 0 : i32
    %c0_i32_1 = arith.constant 0 : i32
    return %arg0, %c0_i32, %c0_i32_0 : i32, i32, i32
  }
}

</mosaic_0001>

<llo_original>
// kernel: decision_transformer_forward.3
$region0: #{decision_transformer_forward.3}
  #allocation0 [shape = 'u32[]', space=smem, size = 0x4, offset = 0x4, fixed_abs, tag = 'smem constant byte address 0x4 - core index']
  #allocation1 [shape = 'u32[72,128]{1,0:T(1,128)}', space=vmem, size = 0x9000, scoped, tag = 'internal scratch']
  %s0 = inlined_call_operand.vmem [shape: f32[8,196,81], index: 0, kind: input, shape index: {}]
  %s1 = inlined_call_operand.vmem [shape: f32[8,196], index: 1, kind: input, shape index: {}]
  %s2 = inlined_call_operand.vmem [shape: f32[8,1], index: 2, kind: input, shape index: {}]
  %s3 = inlined_call_operand.vmem [shape: f32[8,8,81], index: 3, kind: output, shape index: {}]
  %s4 = sld [smem:[#allocation0]]
  $region45: #{decision_transformer_forward.3} parent=0
    _
  %s6 = ssub.s32 1, %s4
  %s7 = scalar_select 0, %s6, %s4
  loop: start=0, step=1, limit=4
  $region2: #{decision_transformer_forward.3} parent=0 // loop_pre_header
    _
  $region3: #{decision_transformer_forward.3} parent=0 // loop_header
    %s9 = sphi 0, %s13
    %p10 = scmp.ge.s32.totalorder %s9, 4
    %s19 = sphi 0, %s21
    %s22 = sphi 0, %s19
    %s23 = sphi 0, %s22
    %s39 = sphi 0, %s23
    %s43 = sphi 0, %s43
    %s45 = sphi 0, %s43
    %s46 = sphi 0, %s45
    %s60 = sphi 0, %s46
    %s64 = sphi 0, %s64
    %s66 = sphi 0, %s64
    %s67 = sphi 0, %s66
    %s81 = sphi 0, %s67
    %s87 = sphi 0, %s89
    %s90 = sphi 0, %s87
    %s91 = sphi 0, %s90
    %s107 = sphi 0, %s91
  $region4: #{decision_transformer_forward.3} parent=0 // loop_header_branch
    %12 = sbr.rel (%p10) target = $region8
  $region5: #{decision_transformer_forward.3} parent=0 // loop_body
    %s14 = ssub.s32 %s9, 1
    %s15 = ssub.s32 %s9, 2
    %s16 = sadd.s32 %s9, 1
    %s17 = ssub.s32 %s9, %s16
    %p18 = scmp.eq.s32.totalorder %s17, 0
    %s20 = sadd.s32 %s19, 1
    %s21 = scalar_select %p18, %s19, %s20
    %p24 = pneg %p18
    %p25 = scmp.eq.s32.totalorder %s9, 1
    %p26 = por %p24, %p25
    %p27 = scmp.ne.s32.totalorder %s19, %s22
    %p28 = scmp.eq.s32.totalorder %s9, 0
    %p29 = por %p27, %p28
    %p30 = scmp.ne.s32.totalorder %s19, %s22
    %p31 = scmp.eq.s32.totalorder %s14, 1
    %p32 = por %p30, %p31
    %p33 = scmp.ne.s32.totalorder %s22, %s23
    %p34 = scmp.eq.s32.totalorder %s14, 0
    %p35 = por %p33, %p34
    %p36 = scmp.ne.s32.totalorder %s22, %s23
    %p37 = scmp.eq.s32.totalorder %s15, 1
    %p38 = por %p36, %p37
    %p40 = scmp.ne.s32.totalorder %s23, %s39
    %p41 = scmp.eq.s32.totalorder %s15, 0
    %p42 = por %p40, %p41
    %s44 = sadd.s32 %s43, 1
    %p47 = scmp.eq.s32.totalorder %s9, 1
    %p48 = scmp.ne.s32.totalorder %s43, %s45
    %p49 = scmp.eq.s32.totalorder %s9, 0
    %p50 = por %p48, %p49
    %p51 = scmp.ne.s32.totalorder %s43, %s45
    %p52 = scmp.eq.s32.totalorder %s14, 1
    %p53 = por %p51, %p52
    %p54 = scmp.ne.s32.totalorder %s45, %s46
    %p55 = scmp.eq.s32.totalorder %s14, 0
    %p56 = por %p54, %p55
    %p57 = scmp.ne.s32.totalorder %s45, %s46
    %p58 = scmp.eq.s32.totalorder %s15, 1
    %p59 = por %p57, %p58
    %p61 = scmp.ne.s32.totalorder %s46, %s60
    %p62 = scmp.eq.s32.totalorder %s15, 0
    %p63 = por %p61, %p62
    %s65 = sadd.s32 %s64, 1
    %p68 = scmp.eq.s32.totalorder %s9, 1
    %p69 = scmp.ne.s32.totalorder %s64, %s66
    %p70 = scmp.eq.s32.totalorder %s9, 0
    %p71 = por %p69, %p70
    %p72 = scmp.ne.s32.totalorder %s64, %s66
    %p73 = scmp.eq.s32.totalorder %s14, 1
    %p74 = por %p72, %p73
    %p75 = scmp.ne.s32.totalorder %s66, %s67
    %p76 = scmp.eq.s32.totalorder %s14, 0
    %p77 = por %p75, %p76
    %p78 = scmp.ne.s32.totalorder %s66, %s67
    %p79 = scmp.eq.s32.totalorder %s15, 1
    %p80 = por %p78, %p79
    %p82 = scmp.ne.s32.totalorder %s67, %s81
    %p83 = scmp.eq.s32.totalorder %s15, 0
    %p84 = por %p82, %p83
    %s85 = ssub.s32 %s9, %s16
    %p86 = scmp.eq.s32.totalorder %s85, 0
    %s88 = sadd.s32 %s87, 1
    %s89 = scalar_select %p86, %s87, %s88
    %p92 = pneg %p86
    %p93 = scmp.eq.s32.totalorder %s9, 1
    %p94 = por %p92, %p93
    %p95 = scmp.ne.s32.totalorder %s87, %s90
    %p96 = scmp.eq.s32.totalorder %s9, 0
    %p97 = por %p95, %p96
    %p98 = scmp.ne.s32.totalorder %s87, %s90
    %p99 = scmp.eq.s32.totalorder %s14, 1
    %p100 = por %p98, %p99
    %p101 = scmp.ne.s32.totalorder %s90, %s91
    %p102 = scmp.eq.s32.totalorder %s14, 0
    %p103 = por %p101, %p102
    %p104 = scmp.ne.s32.totalorder %s90, %s91
    %p105 = scmp.eq.s32.totalorder %s15, 1
    %p106 = por %p104, %p105
    %p108 = scmp.ne.s32.totalorder %s91, %s107
    %p109 = scmp.eq.s32.totalorder %s15, 0
    %p110 = por %p108, %p109
    %p111 = scmp.le.s32.totalorder 1, %s9
    %p112 = scmp.lt.s32.totalorder %s9, 3
    %p113 = pnand %p111, %p112
    %p114 = pneg %p113
    // Predicated region
    $region9: #{decision_transformer_forward.3} parent=5 // pred_check
      _
    $region10: #{decision_transformer_forward.3} parent=5 // pred_check_branch
      %116 = sbr.rel (%p113) target = $region12
    $region11: #{decision_transformer_forward.3} parent=5 // pred_region
      %s117 = ssub.s32 %s9, 1
      // Predicated region
      $region13: #{decision_transformer_forward.3} parent=11 // pred_check
        %p118 = pneg %p56
      $region14: #{decision_transformer_forward.3} parent=11 // pred_check_branch
        %120 = sbr.rel (%p118) target = $region16
      $region15: #{decision_transformer_forward.3} parent=11 // pred_region
        _
      $region16: #{decision_transformer_forward.3} parent=11 // pred_fallthru
        _
      // Predicated region
      $region17: #{decision_transformer_forward.3} parent=11 // pred_check
        %p121 = pneg %p77
      $region18: #{decision_transformer_forward.3} parent=11 // pred_check_branch
        %123 = sbr.rel (%p121) target = $region20
      $region19: #{decision_transformer_forward.3} parent=11 // pred_region
        _
      $region20: #{decision_transformer_forward.3} parent=11 // pred_fallthru
        _
    $region12: #{decision_transformer_forward.3} parent=5 // pred_fallthru
      _
    %p124 = scmp.lt.s32.totalorder %s9, 2
    // Predicated region
    $region21: #{decision_transformer_forward.3} parent=5 // pred_check
      %p125 = pneg %p124
    $region22: #{decision_transformer_forward.3} parent=5 // pred_check_branch
      %127 = sbr.rel (%p125) target = $region24
    $region23: #{decision_transformer_forward.3} parent=5 // pred_region
      // Predicated region
      $region25: #{decision_transformer_forward.3} parent=23 // pred_check
        %p128 = pneg %p29
      $region26: #{decision_transformer_forward.3} parent=23 // pred_check_branch
        %130 = sbr.rel (%p128) target = $region28
      $region27: #{decision_transformer_forward.3} parent=23 // pred_region
        %s131 = smul.u32 4, %s9
        %p132 = scmp.lt.s32.totalorder %s131, 7
        %s133 = scalar_select %p132, %s131, 7
        %s134 = smul.addr %s133, 25
        %s135 = smul.addr %s134, 8
        %s136 = scalar_lea.vmem %s0, %s135
        %s137 = smul.u32 4, %s9
      $region28: #{decision_transformer_forward.3} parent=23 // pred_fallthru
        _
    $region24: #{decision_transformer_forward.3} parent=5 // pred_fallthru
      _
    %p138 = scmp.le.s32.totalorder 1, %s9
    %p139 = scmp.lt.s32.totalorder %s9, 3
    %p140 = pnand %p138, %p139
    %p141 = pneg %p140
    // Predicated region
    $region29: #{decision_transformer_forward.3} parent=5 // pred_check
      _
    $region30: #{decision_transformer_forward.3} parent=5 // pred_check_branch
      %143 = sbr.rel (%p140) target = $region32
    $region31: #{decision_transformer_forward.3} parent=5 // pred_region
      %s144 = ssub.s32 %s9, 1
      %s145 = smul.u32 4, %s14
      %p146 = scmp.lt.s32.totalorder %s145, 7
      %s147 = scalar_select %p146, %s145, 7
      %s148 = smul.addr %s147, 25
      %s149 = smul.addr %s148, 8
      %s150 = scalar_lea.vmem %s0, %s149
      %p151 = pneg %p35
      %p152 = pneg %p32
      %p153 = pneg %p56
      %p154 = pneg %p53
      %p155 = pneg %p77
      %p156 = pneg %p74
      %p157 = pneg %p103
      %p158 = pneg %p100
      %s159 = smul.u32 4, %s14
      %p160 = scmp.lt.s32.totalorder %s159, 7
      %s161 = scalar_select %p160, %s159, 7
      %s162 = smul.addr %s161, 8
      %s163 = scalar_lea.vmem %s3, %s162
      %s164 = smul.u32 4, %s14
      %p165 = scmp.lt.s32.totalorder %s164, 7
      %s166 = scalar_select %p165, %s164, 7
      %s167 = smul.addr %s166, 25
      %s168 = smul.addr %s167, 8
      %s169 = scalar_lea.vmem %s0, %s168
      %s170 = smul.u32 4, %s14
      %s171 = smul.u32 4, %s14
      %p172 = scmp.lt.s32.totalorder %s171, 7
      %s173 = scalar_select %p172, %s171, 7
      %s174 = smul.addr %s173, 8
      %s175 = scalar_lea.vmem %s3, %s174
      %s176 = smul.u32 4, %s14
      %v177 = vld [vmem:[%s1] sm:$0xff]
      %v178 = vld [vmem:[%s1 + $0x8] sm:$0xff]
      %v179 = vld [vmem:[%s2] sm:$0xff]
      %v180 = vld [vmem:[%s169] sm:$0xff]
      %v181 = vld [vmem:[%s169 + $0x8] sm:$0xff]
      %v182 = vld [vmem:[%s169 + $0x10] sm:$0xff]
      %v183 = vld [vmem:[%s169 + $0x18] sm:$0xff]
      %v184 = vld [vmem:[%s169 + $0x20] sm:$0xff]
      %v185 = vld [vmem:[%s169 + $0x28] sm:$0xff]
      %v186 = vld [vmem:[%s169 + $0x30] sm:$0xff]
      %v187 = vld [vmem:[%s169 + $0x38] sm:$0xff]
      %v188 = vld [vmem:[%s169 + $0x40] sm:$0xff]
      %v189 = vld [vmem:[%s169 + $0x48] sm:$0xff]
      %v190 = vld [vmem:[%s169 + $0x50] sm:$0xff]
      %v191 = vld [vmem:[%s169 + $0x58] sm:$0xff]
      %v192 = vld [vmem:[%s169 + $0x60] sm:$0xff]
      %v193 = vld [vmem:[%s169 + $0x68] sm:$0xff]
      %v194 = vld [vmem:[%s169 + $0x70] sm:$0xff]
      %v195 = vld [vmem:[%s169 + $0x78] sm:$0xff]
      %v196 = vld [vmem:[%s169 + $0x80] sm:$0xff]
      %v197 = vld [vmem:[%s169 + $0x88] sm:$0xff]
      %v198 = vld [vmem:[%s169 + $0x90] sm:$0xff]
      %v199 = vld [vmem:[%s169 + $0x98] sm:$0xff]
      %v200 = vld [vmem:[%s169 + $0xa0] sm:$0xff]
      %v201 = vld [vmem:[%s169 + $0xa8] sm:$0xff]
      %v202 = vld [vmem:[%s169 + $0xb0] sm:$0xff]
      %v203 = vld [vmem:[%s169 + $0xb8] sm:$0xff]
      %v204 = vld [vmem:[%s169 + $0xc0] sm:$0xf]
      %206 = vset.pattern.permute.xlu0 0
      %207 = vperm.xlu0 %206, %v179
      %v208 = vpop.permute.xlu0 %207
      %vm210 = vcmask 556032
      %v212 = vsel %vm210, %v178, 0
      %vm214 = vcmask 1043456
      %v216 = vsel %vm214, %v204, 0
      %218 = vmatpush.msra.mxu0 %v195
      %219 = vmatpush.msra.mxu0 %v194
      %220 = vmatpush.msra.mxu0 %v193
      %221 = vmatpush.msra.mxu0 %v192
      %222 = vmatpush.msra.mxu0 %v191
      %223 = vmatpush.msra.mxu0 %v190
      %224 = vmatpush.msra.mxu0 %v189
      %225 = vmatpush.msra.mxu0 %v188
      %226 = vmatpush.msra.mxu0 %v187
      %227 = vmatpush.msra.mxu0 %v186
      %228 = vmatpush.msra.mxu0 %v185
      %229 = vmatpush.msra.mxu0 %v184
      %230 = vmatpush.msra.mxu0 %v183
      %231 = vmatpush.msra.mxu0 %v182
      %232 = vmatpush.msra.mxu0 %v181
      %233 = vmatpush.msra.mxu0 %v180
      %234 = vmatmul.f32.gmra.mxu0 %v177
      %v235 = vpop.f32.mrf.mxu0
      %v236 = vadd.f32 %v208, %v235
      %237 = vdwg.mxu0
      %238 = vmatpush.msra.mxu0 0.0
      %239 = vmatpush.msra.mxu0 0.0
      %240 = vmatpush.msra.mxu0 0.0
      %241 = vmatpush.msra.mxu0 0.0
      %242 = vmatpush.msra.mxu0 0.0
      %243 = vmatpush.msra.mxu0 0.0
      %244 = vmatpush.msra.mxu0 0.0
      %245 = vmatpush.msra.mxu0 %v216
      %246 = vmatpush.msra.mxu0 %v203
      %247 = vmatpush.msra.mxu0 %v202
      %248 = vmatpush.msra.mxu0 %v201
      %249 = vmatpush.msra.mxu0 %v200
      %250 = vmatpush.msra.mxu0 %v199
      %251 = vmatpush.msra.mxu0 %v198
      %252 = vmatpush.msra.mxu0 %v197
      %253 = vmatpush.msra.mxu0 %v196
      %254 = vmatmul.f32.gmra.mxu0 %v212
      %v255 = vpop.f32.mrf.mxu0
      %v256 = vadd.f32 %v236, %v255
      %257 = vdwg.mxu0
      %vm258 = vcmp.ge.f32.partialorder %v256, 0.0
      %v259 = vmul.f32 %v256, 0.01
      %v260 = vsel %vm258, %v256, %v259
      %vm261 = vcmask 662528
      %v262 = vsel %vm261, %v260, 0.0
      %263 = vadd.xlane.f32.xlu0 %v262
      %v264 = vpop.xlane.xlu0 %263
      %v265 = vrcp.pop 81.0
      %v266 = vmul.f32 81.0, %v265
      %v267 = vsub.f32 1.0, %v266
      %v268 = vmul.f32 %v265, %v267
      %v269 = vadd.f32 %v265, %v268
      %vm270 = vweird.f32 %v265
      %v271 = vsel %vm270, %v265, %v269
      %v272 = vmul.f32 %v264, %v271
      %v273 = vsub.f32 %v260, %v272
      %v274 = vmul.f32 %v273, %v273
      %v275 = vsel %vm261, %v274, 0.0
      %276 = vadd.xlane.f32.xlu0 %v275
      %v277 = vpop.xlane.xlu0 %276
      %v278 = vmul.f32 %v277, %v271
      %v279 = vadd.f32 %v278, 1e-05
      %v280 = vrsqrt.pop %v279
      %v281 = vmul.f32 %v280, %v279
      %v282 = vmul.f32 %v281, %v280
      %v283 = vmul.f32 0.5, %v282
      %v284 = vsub.f32 1.5, %v283
      %v285 = vmul.f32 %v280, %v284
      %vm286 = vweird.f32 %v279
      %vm287 = vweird.f32 %v280
      %vm288 = vmor %vm286, %vm287
      %v289 = vsel %vm288, %v280, %v285
      %v290 = vmul.f32 %v273, %v289
      %291 = vst.msk [vmem:[%s175] sm:$0xff] %vm261, %v290
      %s292 = scalar_lea.vmem %s169, 200
      %v293 = vld [vmem:[%s292] sm:$0xff]
      %v294 = vld [vmem:[%s292 + $0x8] sm:$0xff]
      %v295 = vld [vmem:[%s292 + $0x10] sm:$0xff]
      %v296 = vld [vmem:[%s292 + $0x18] sm:$0xff]
      %v297 = vld [vmem:[%s292 + $0x20] sm:$0xff]
      %v298 = vld [vmem:[%s292 + $0x28] sm:$0xff]
      %v299 = vld [vmem:[%s292 + $0x30] sm:$0xff]
      %v300 = vld [vmem:[%s292 + $0x38] sm:$0xff]
      %v301 = vld [vmem:[%s292 + $0x40] sm:$0xff]
      %v302 = vld [vmem:[%s292 + $0x48] sm:$0xff]
      %v303 = vld [vmem:[%s292 + $0x50] sm:$0xff]
      %v304 = vld [vmem:[%s292 + $0x58] sm:$0xff]
      %v305 = vld [vmem:[%s292 + $0x60] sm:$0xff]
      %v306 = vld [vmem:[%s292 + $0x68] sm:$0xff]
      %v307 = vld [vmem:[%s292 + $0x70] sm:$0xff]
      %v308 = vld [vmem:[%s292 + $0x78] sm:$0xff]
      %v309 = vld [vmem:[%s292 + $0x80] sm:$0xff]
      %v310 = vld [vmem:[%s292 + $0x88] sm:$0xff]
      %v311 = vld [vmem:[%s292 + $0x90] sm:$0xff]
      %v312 = vld [vmem:[%s292 + $0x98] sm:$0xff]
      %v313 = vld [vmem:[%s292 + $0xa0] sm:$0xff]
      %v314 = vld [vmem:[%s292 + $0xa8] sm:$0xff]
      %v315 = vld [vmem:[%s292 + $0xb0] sm:$0xff]
      %v316 = vld [vmem:[%s292 + $0xb8] sm:$0xff]
      %v317 = vld [vmem:[%s292 + $0xc0] sm:$0xf]
      %v319 = vsel %vm214, %v317, 0
      %321 = vmatpush.msra.mxu0 %v308
      %322 = vmatpush.msra.mxu0 %v307
      %323 = vmatpush.msra.mxu0 %v306
      %324 = vmatpush.msra.mxu0 %v305
      %325 = vmatpush.msra.mxu0 %v304
      %326 = vmatpush.msra.mxu0 %v303
      %327 = vmatpush.msra.mxu0 %v302
      %328 = vmatpush.msra.mxu0 %v301
      %329 = vmatpush.msra.mxu0 %v300
      %330 = vmatpush.msra.mxu0 %v299
      %331 = vmatpush.msra.mxu0 %v298
      %332 = vmatpush.msra.mxu0 %v297
      %333 = vmatpush.msra.mxu0 %v296
      %334 = vmatpush.msra.mxu0 %v295
      %335 = vmatpush.msra.mxu0 %v294
      %336 = vmatpush.msra.mxu0 %v293
      %337 = vmatmul.f32.gmra.mxu0 %v177
      %v338 = vpop.f32.mrf.mxu0
      %v339 = vadd.f32 %v208, %v338
      %340 = vdwg.mxu0
      %341 = vmatpush.msra.mxu0 0.0
      %342 = vmatpush.msra.mxu0 0.0
      %343 = vmatpush.msra.mxu0 0.0
      %344 = vmatpush.msra.mxu0 0.0
      %345 = vmatpush.msra.mxu0 0.0
      %346 = vmatpush.msra.mxu0 0.0
      %347 = vmatpush.msra.mxu0 0.0
      %348 = vmatpush.msra.mxu0 %v319
      %349 = vmatpush.msra.mxu0 %v316
      %350 = vmatpush.msra.mxu0 %v315
      %351 = vmatpush.msra.mxu0 %v314
      %352 = vmatpush.msra.mxu0 %v313
      %353 = vmatpush.msra.mxu0 %v312
      %354 = vmatpush.msra.mxu0 %v311
      %355 = vmatpush.msra.mxu0 %v310
      %356 = vmatpush.msra.mxu0 %v309
      %357 = vmatmul.f32.gmra.mxu0 %v212
      %v358 = vpop.f32.mrf.mxu0
      %v359 = vadd.f32 %v339, %v358
      %360 = vdwg.mxu0
      %vm361 = vcmp.ge.f32.partialorder %v359, 0.0
      %v362 = vmul.f32 %v359, 0.01
      %v363 = vsel %vm361, %v359, %v362
      %v364 = vsel %vm261, %v363, 0.0
      %365 = vadd.xlane.f32.xlu0 %v364
      %v366 = vpop.xlane.xlu0 %365
      %v367 = vmul.f32 %v366, %v271
      %v368 = vsub.f32 %v363, %v367
      %v369 = vmul.f32 %v368, %v368
      %v370 = vsel %vm261, %v369, 0.0
      %371 = vadd.xlane.f32.xlu0 %v370
      %v372 = vpop.xlane.xlu0 %371
      %v373 = vmul.f32 %v372, %v271
      %v374 = vadd.f32 %v373, 1e-05
      %v375 = vrsqrt.pop %v374
      %v376 = vmul.f32 %v375, %v374
      %v377 = vmul.f32 %v376, %v375
      %v378 = vmul.f32 0.5, %v377
      %v379 = vsub.f32 1.5, %v378
      %v380 = vmul.f32 %v375, %v379
      %vm381 = vweird.f32 %v374
      %vm382 = vweird.f32 %v375
      %vm383 = vmor %vm381, %vm382
      %v384 = vsel %vm383, %v375, %v380
      %v385 = vmul.f32 %v368, %v384
      %s386 = scalar_lea.vmem %s175, 8
      %387 = vst.msk [vmem:[%s386] sm:$0xff] %vm261, %v385
      %s388 = scalar_lea.vmem %s169, 400
      %v389 = vld [vmem:[%s388] sm:$0xff]
      %v390 = vld [vmem:[%s388 + $0x8] sm:$0xff]
      %v391 = vld [vmem:[%s388 + $0x10] sm:$0xff]
      %v392 = vld [vmem:[%s388 + $0x18] sm:$0xff]
      %v393 = vld [vmem:[%s388 + $0x20] sm:$0xff]
      %v394 = vld [vmem:[%s388 + $0x28] sm:$0xff]
      %v395 = vld [vmem:[%s388 + $0x30] sm:$0xff]
      %v396 = vld [vmem:[%s388 + $0x38] sm:$0xff]
      %v397 = vld [vmem:[%s388 + $0x40] sm:$0xff]
      %v398 = vld [vmem:[%s388 + $0x48] sm:$0xff]
      %v399 = vld [vmem:[%s388 + $0x50] sm:$0xff]
      %v400 = vld [vmem:[%s388 + $0x58] sm:$0xff]
      %v401 = vld [vmem:[%s388 + $0x60] sm:$0xff]
      %v402 = vld [vmem:[%s388 + $0x68] sm:$0xff]
      %v403 = vld [vmem:[%s388 + $0x70] sm:$0xff]
      %v404 = vld [vmem:[%s388 + $0x78] sm:$0xff]
      %v405 = vld [vmem:[%s388 + $0x80] sm:$0xff]
      %v406 = vld [vmem:[%s388 + $0x88] sm:$0xff]
      %v407 = vld [vmem:[%s388 + $0x90] sm:$0xff]
      %v408 = vld [vmem:[%s388 + $0x98] sm:$0xff]
      %v409 = vld [vmem:[%s388 + $0xa0] sm:$0xff]
      %v410 = vld [vmem:[%s388 + $0xa8] sm:$0xff]
      %v411 = vld [vmem:[%s388 + $0xb0] sm:$0xff]
      %v412 = vld [vmem:[%s388 + $0xb8] sm:$0xff]
      %v413 = vld [vmem:[%s388 + $0xc0] sm:$0xf]
      %v415 = vsel %vm214, %v413, 0
      %417 = vmatpush.msra.mxu0 %v404
      %418 = vmatpush.msra.mxu0 %v403
      %419 = vmatpush.msra.mxu0 %v402
      %420 = vmatpush.msra.mxu0 %v401
      %421 = vmatpush.msra.mxu0 %v400
      %422 = vmatpush.msra.mxu0 %v399
      %423 = vmatpush.msra.mxu0 %v398
      %424 = vmatpush.msra.mxu0 %v397
      %425 = vmatpush.msra.mxu0 %v396
      %426 = vmatpush.msra.mxu0 %v395
      %427 = vmatpush.msra.mxu0 %v394
      %428 = vmatpush.msra.mxu0 %v393
      %429 = vmatpush.msra.mxu0 %v392
      %430 = vmatpush.msra.mxu0 %v391
      %431 = vmatpush.msra.mxu0 %v390
      %432 = vmatpush.msra.mxu0 %v389
      %433 = vmatmul.f32.gmra.mxu0 %v177
      %v434 = vpop.f32.mrf.mxu0
      %v435 = vadd.f32 %v208, %v434
      %436 = vdwg.mxu0
      %437 = vmatpush.msra.mxu0 0.0
      %438 = vmatpush.msra.mxu0 0.0
      %439 = vmatpush.msra.mxu0 0.0
      %440 = vmatpush.msra.mxu0 0.0
      %441 = vmatpush.msra.mxu0 0.0
      %442 = vmatpush.msra.mxu0 0.0
      %443 = vmatpush.msra.mxu0 0.0
      %444 = vmatpush.msra.mxu0 %v415
      %445 = vmatpush.msra.mxu0 %v412
      %446 = vmatpush.msra.mxu0 %v411
      %447 = vmatpush.msra.mxu0 %v410
      %448 = vmatpush.msra.mxu0 %v409
      %449 = vmatpush.msra.mxu0 %v408
      %450 = vmatpush.msra.mxu0 %v407
      %451 = vmatpush.msra.mxu0 %v406
      %452 = vmatpush.msra.mxu0 %v405
      %453 = vmatmul.f32.gmra.mxu0 %v212
      %v454 = vpop.f32.mrf.mxu0
      %v455 = vadd.f32 %v435, %v454
      %456 = vdwg.mxu0
      %vm457 = vcmp.ge.f32.partialorder %v455, 0.0
      %v458 = vmul.f32 %v455, 0.01
      %v459 = vsel %vm457, %v455, %v458
      %v460 = vsel %vm261, %v459, 0.0
      %461 = vadd.xlane.f32.xlu0 %v460
      %v462 = vpop.xlane.xlu0 %461
      %v463 = vmul.f32 %v462, %v271
      %v464 = vsub.f32 %v459, %v463
      %v465 = vmul.f32 %v464, %v464
      %v466 = vsel %vm261, %v465, 0.0
      %467 = vadd.xlane.f32.xlu0 %v466
      %v468 = vpop.xlane.xlu0 %467
      %v469 = vmul.f32 %v468, %v271
      %v470 = vadd.f32 %v469, 1e-05
      %v471 = vrsqrt.pop %v470
      %v472 = vmul.f32 %v471, %v470
      %v473 = vmul.f32 %v472, %v471
      %v474 = vmul.f32 0.5, %v473
      %v475 = vsub.f32 1.5, %v474
      %v476 = vmul.f32 %v471, %v475
      %vm477 = vweird.f32 %v470
      %vm478 = vweird.f32 %v471
      %vm479 = vmor %vm477, %vm478
      %v480 = vsel %vm479, %v471, %v476
      %v481 = vmul.f32 %v464, %v480
      %s482 = scalar_lea.vmem %s175, 16
      %483 = vst.msk [vmem:[%s482] sm:$0xff] %vm261, %v481
      %s484 = scalar_lea.vmem %s169, 600
      %v485 = vld [vmem:[%s484] sm:$0xff]
      %v486 = vld [vmem:[%s484 + $0x8] sm:$0xff]
      %v487 = vld [vmem:[%s484 + $0x10] sm:$0xff]
      %v488 = vld [vmem:[%s484 + $0x18] sm:$0xff]
      %v489 = vld [vmem:[%s484 + $0x20] sm:$0xff]
      %v490 = vld [vmem:[%s484 + $0x28] sm:$0xff]
      %v491 = vld [vmem:[%s484 + $0x30] sm:$0xff]
      %v492 = vld [vmem:[%s484 + $0x38] sm:$0xff]
      %v493 = vld [vmem:[%s484 + $0x40] sm:$0xff]
      %v494 = vld [vmem:[%s484 + $0x48] sm:$0xff]
      %v495 = vld [vmem:[%s484 + $0x50] sm:$0xff]
      %v496 = vld [vmem:[%s484 + $0x58] sm:$0xff]
      %v497 = vld [vmem:[%s484 + $0x60] sm:$0xff]
      %v498 = vld [vmem:[%s484 + $0x68] sm:$0xff]
      %v499 = vld [vmem:[%s484 + $0x70] sm:$0xff]
      %v500 = vld [vmem:[%s484 + $0x78] sm:$0xff]
      %v501 = vld [vmem:[%s484 + $0x80] sm:$0xff]
      %v502 = vld [vmem:[%s484 + $0x88] sm:$0xff]
      %v503 = vld [vmem:[%s484 + $0x90] sm:$0xff]
      %v504 = vld [vmem:[%s484 + $0x98] sm:$0xff]
      %v505 = vld [vmem:[%s484 + $0xa0] sm:$0xff]
      %v506 = vld [vmem:[%s484 + $0xa8] sm:$0xff]
      %v507 = vld [vmem:[%s484 + $0xb0] sm:$0xff]
      %v508 = vld [vmem:[%s484 + $0xb8] sm:$0xff]
      %v509 = vld [vmem:[%s484 + $0xc0] sm:$0xf]
      %v511 = vsel %vm214, %v509, 0
      %513 = vmatpush.msra.mxu0 %v500
      %514 = vmatpush.msra.mxu0 %v499
      %515 = vmatpush.msra.mxu0 %v498
      %516 = vmatpush.msra.mxu0 %v497
      %517 = vmatpush.msra.mxu0 %v496
      %518 = vmatpush.msra.mxu0 %v495
      %519 = vmatpush.msra.mxu0 %v494
      %520 = vmatpush.msra.mxu0 %v493
      %521 = vmatpush.msra.mxu0 %v492
      %522 = vmatpush.msra.mxu0 %v491
      %523 = vmatpush.msra.mxu0 %v490
      %524 = vmatpush.msra.mxu0 %v489
      %525 = vmatpush.msra.mxu0 %v488
      %526 = vmatpush.msra.mxu0 %v487
      %527 = vmatpush.msra.mxu0 %v486
      %528 = vmatpush.msra.mxu0 %v485
      %529 = vmatmul.f32.gmra.mxu0 %v177
      %v530 = vpop.f32.mrf.mxu0
      %v531 = vadd.f32 %v208, %v530
      %532 = vdwg.mxu0
      %533 = vmatpush.msra.mxu0 0.0
      %534 = vmatpush.msra.mxu0 0.0
      %535 = vmatpush.msra.mxu0 0.0
      %536 = vmatpush.msra.mxu0 0.0
      %537 = vmatpush.msra.mxu0 0.0
      %538 = vmatpush.msra.mxu0 0.0
      %539 = vmatpush.msra.mxu0 0.0
      %540 = vmatpush.msra.mxu0 %v511
      %541 = vmatpush.msra.mxu0 %v508
      %542 = vmatpush.msra.mxu0 %v507
      %543 = vmatpush.msra.mxu0 %v506
      %544 = vmatpush.msra.mxu0 %v505
      %545 = vmatpush.msra.mxu0 %v504
      %546 = vmatpush.msra.mxu0 %v503
      %547 = vmatpush.msra.mxu0 %v502
      %548 = vmatpush.msra.mxu0 %v501
      %549 = vmatmul.f32.gmra.mxu0 %v212
      %v550 = vpop.f32.mrf.mxu0
      %v551 = vadd.f32 %v531, %v550
      %552 = vdwg.mxu0
      %vm553 = vcmp.ge.f32.partialorder %v551, 0.0
      %v554 = vmul.f32 %v551, 0.01
      %v555 = vsel %vm553, %v551, %v554
      %v556 = vsel %vm261, %v555, 0.0
      %557 = vadd.xlane.f32.xlu0 %v556
      %v558 = vpop.xlane.xlu0 %557
      %v559 = vmul.f32 %v558, %v271
      %v560 = vsub.f32 %v555, %v559
      %v561 = vmul.f32 %v560, %v560
      %v562 = vsel %vm261, %v561, 0.0
      %563 = vadd.xlane.f32.xlu0 %v562
      %v564 = vpop.xlane.xlu0 %563
      %v565 = vmul.f32 %v564, %v271
      %v566 = vadd.f32 %v565, 1e-05
      %v567 = vrsqrt.pop %v566
      %v568 = vmul.f32 %v567, %v566
      %v569 = vmul.f32 %v568, %v567
      %v570 = vmul.f32 0.5, %v569
      %v571 = vsub.f32 1.5, %v570
      %v572 = vmul.f32 %v567, %v571
      %vm573 = vweird.f32 %v566
      %vm574 = vweird.f32 %v567
      %vm575 = vmor %vm573, %vm574
      %v576 = vsel %vm575, %v567, %v572
      %v577 = vmul.f32 %v560, %v576
      %s578 = scalar_lea.vmem %s175, 24
      %579 = vst.msk [vmem:[%s578] sm:$0xff] %vm261, %v577
      %s580 = smul.u32 4, %s14
      %p581 = scmp.lt.s32.totalorder %s580, 7
      %s582 = scalar_select %p581, %s580, 7
      %s583 = smul.addr %s582, 8
      %s584 = scalar_lea.vmem %s3, %s583
      // Predicated region
      $region33: #{decision_transformer_forward.3} parent=31 // pred_check
        %p585 = pneg %p100
      $region34: #{decision_transformer_forward.3} parent=31 // pred_check_branch
        %587 = sbr.rel (%p585) target = $region36
      $region35: #{decision_transformer_forward.3} parent=31 // pred_region
        %s588 = smul.u32 4, %s14
      $region36: #{decision_transformer_forward.3} parent=31 // pred_fallthru
        _
    $region32: #{decision_transformer_forward.3} parent=5 // pred_fallthru
      _
    %p589 = scmp.le.s32.totalorder 2, %s9
    // Predicated region
    $region37: #{decision_transformer_forward.3} parent=5 // pred_check
      %p590 = pneg %p589
    $region38: #{decision_transformer_forward.3} parent=5 // pred_check_branch
      %592 = sbr.rel (%p590) target = $region40
    $region39: #{decision_transformer_forward.3} parent=5 // pred_region
      %s593 = ssub.s32 %s9, 2
      // Predicated region
      $region41: #{decision_transformer_forward.3} parent=39 // pred_check
        %p594 = pneg %p106
      $region42: #{decision_transformer_forward.3} parent=39 // pred_check_branch
        %596 = sbr.rel (%p594) target = $region44
      $region43: #{decision_transformer_forward.3} parent=39 // pred_region
        %s597 = smul.u32 4, %s15
        %p598 = scmp.lt.s32.totalorder %s597, 7
        %s599 = scalar_select %p598, %s597, 7
        %s600 = smul.addr %s599, 8
        %s601 = scalar_lea.vmem %s3, %s600
      $region44: #{decision_transformer_forward.3} parent=39 // pred_fallthru
        _
    $region40: #{decision_transformer_forward.3} parent=5 // pred_fallthru
      _
  $region6: #{decision_transformer_forward.3} parent=0 // loop_footer
    %s13 = sadd.s32 1, %s9
  $region7: #{decision_transformer_forward.3} parent=0 // loop_footer_branch
    %8 = sbr.rel target = $region3
  $region8: #{decision_transformer_forward.3} parent=0 // loop_exit
    _

// kernel: decision_transformer_forward.4
$region0: #{decision_transformer_forward.4}
  #allocation0 [shape = 'u32[]', space=smem, size = 0x4, offset = 0x4, fixed_abs, tag = 'smem constant byte address 0x4 - core index']
  #allocation1 [shape = 'u32[72,128]{1,0:T(1,128)}', space=vmem, size = 0x9000, scoped, tag = 'internal scratch']
  %s0 = inlined_call_operand.vmem [shape: f32[200,200], index: 0, kind: input, shape index: {}]
  %s1 = inlined_call_operand.vmem [shape: f32[16,200], index: 1, kind: input, shape index: {}]
  %s2 = inlined_call_operand.vmem [shape: f32[16,1], index: 2, kind: input, shape index: {}]
  %s3 = inlined_call_operand.vmem [shape: f32[25,32,16], index: 3, kind: input, shape index: {}]
  %s4 = inlined_call_operand.vmem [shape: f32[32,1], index: 4, kind: input, shape index: {}]
  %s5 = inlined_call_operand.vmem [shape: f32[200,8], index: 5, kind: input, shape index: {}]
  %s6 = inlined_call_operand.vmem [shape: f32[8,200], index: 6, kind: input, shape index: {}]
  %s7 = inlined_call_operand.vmem [shape: f32[32,8], index: 7, kind: output, shape index: {}]
  %s8 = sld [smem:[#allocation0]]
  $region38: #{decision_transformer_forward.4} parent=0
    _
  %s10 = ssub.s32 1, %s8
  %s11 = scalar_select 0, %s10, %s8
  // Predicated region
  $region2: #{decision_transformer_forward.4} parent=0 // pred_check
    _
  $region3: #{decision_transformer_forward.4} parent=0 // pred_check_branch
    %13 = sbr.rel (0) target = $region5
  $region4: #{decision_transformer_forward.4} parent=0 // pred_region
    _
  $region5: #{decision_transformer_forward.4} parent=0 // pred_fallthru
    _
  // Predicated region
  $region6: #{decision_transformer_forward.4} parent=0 // pred_check
    _
  $region7: #{decision_transformer_forward.4} parent=0 // pred_check_branch
    %15 = sbr.rel (0) target = $region9
  $region8: #{decision_transformer_forward.4} parent=0 // pred_region
    _
  $region9: #{decision_transformer_forward.4} parent=0 // pred_fallthru
    _
  // Predicated region
  $region10: #{decision_transformer_forward.4} parent=0 // pred_check
    _
  $region11: #{decision_transformer_forward.4} parent=0 // pred_check_branch
    %17 = sbr.rel (0) target = $region13
  $region12: #{decision_transformer_forward.4} parent=0 // pred_region
    _
  $region13: #{decision_transformer_forward.4} parent=0 // pred_fallthru
    _
  // Predicated region
  $region14: #{decision_transformer_forward.4} parent=0 // pred_check
    _
  $region15: #{decision_transformer_forward.4} parent=0 // pred_check_branch
    %19 = sbr.rel (0) target = $region17
  $region16: #{decision_transformer_forward.4} parent=0 // pred_region
    _
  $region17: #{decision_transformer_forward.4} parent=0 // pred_fallthru
    _
  // Predicated region
  $region18: #{decision_transformer_forward.4} parent=0 // pred_check
    _
  $region19: #{decision_transformer_forward.4} parent=0 // pred_check_branch
    %21 = sbr.rel (0) target = $region21
  $region20: #{decision_transformer_forward.4} parent=0 // pred_region
    _
  $region21: #{decision_transformer_forward.4} parent=0 // pred_fallthru
    _
  // Predicated region
  $region22: #{decision_transformer_forward.4} parent=0 // pred_check
    _
  $region23: #{decision_transformer_forward.4} parent=0 // pred_check_branch
    %23 = sbr.rel (0) target = $region25
  $region24: #{decision_transformer_forward.4} parent=0 // pred_region
    _
  $region25: #{decision_transformer_forward.4} parent=0 // pred_fallthru
    _
  // Predicated region
  $region26: #{decision_transformer_forward.4} parent=0 // pred_check
    _
  $region27: #{decision_transformer_forward.4} parent=0 // pred_check_branch
    %25 = sbr.rel (0) target = $region29
  $region28: #{decision_transformer_forward.4} parent=0 // pred_region
    _
  $region29: #{decision_transformer_forward.4} parent=0 // pred_fallthru
    _
  %v26 = vld [vmem:[%s1] sm:$0xff]
  %v27 = vld [vmem:[%s1 + $0x8] sm:$0xff]
  %v28 = vld [vmem:[%s1 + $0x10] sm:$0xff]
  %v29 = vld [vmem:[%s1 + $0x18] sm:$0xff]
  %v30 = vld [vmem:[%s0] sm:$0xff]
  %v31 = vld [vmem:[%s0 + $0x8] sm:$0xff]
  %v32 = vld [vmem:[%s0 + $0x10] sm:$0xff]
  %v33 = vld [vmem:[%s0 + $0x18] sm:$0xff]
  %v34 = vld [vmem:[%s0 + $0x20] sm:$0xff]
  %v35 = vld [vmem:[%s0 + $0x28] sm:$0xff]
  %v36 = vld [vmem:[%s0 + $0x30] sm:$0xff]
  %v37 = vld [vmem:[%s0 + $0x38] sm:$0xff]
  %v38 = vld [vmem:[%s0 + $0x40] sm:$0xff]
  %v39 = vld [vmem:[%s0 + $0x48] sm:$0xff]
  %v40 = vld [vmem:[%s0 + $0x50] sm:$0xff]
  %v41 = vld [vmem:[%s0 + $0x58] sm:$0xff]
  %v42 = vld [vmem:[%s0 + $0x60] sm:$0xff]
  %v43 = vld [vmem:[%s0 + $0x68] sm:$0xff]
  %v44 = vld [vmem:[%s0 + $0x70] sm:$0xff]
  %v45 = vld [vmem:[%s0 + $0x78] sm:$0xff]
  %v46 = vld [vmem:[%s0 + $0x80] sm:$0xff]
  %v47 = vld [vmem:[%s0 + $0x88] sm:$0xff]
  %v48 = vld [vmem:[%s0 + $0x90] sm:$0xff]
  %v49 = vld [vmem:[%s0 + $0x98] sm:$0xff]
  %v50 = vld [vmem:[%s0 + $0xa0] sm:$0xff]
  %v51 = vld [vmem:[%s0 + $0xa8] sm:$0xff]
  %v52 = vld [vmem:[%s0 + $0xb0] sm:$0xff]
  %v53 = vld [vmem:[%s0 + $0xb8] sm:$0xff]
  %v54 = vld [vmem:[%s0 + $0xc0] sm:$0xff]
  %v55 = vld [vmem:[%s0 + $0xc8] sm:$0xff]
  %v56 = vld [vmem:[%s0 + $0xd0] sm:$0xff]
  %v57 = vld [vmem:[%s0 + $0xd8] sm:$0xff]
  %v58 = vld [vmem:[%s0 + $0xe0] sm:$0xff]
  %v59 = vld [vmem:[%s0 + $0xe8] sm:$0xff]
  %v60 = vld [vmem:[%s0 + $0xf0] sm:$0xff]
  %v61 = vld [vmem:[%s0 + $0xf8] sm:$0xff]
  %v62 = vld [vmem:[%s0 + $0x100] sm:$0xff]
  %v63 = vld [vmem:[%s0 + $0x108] sm:$0xff]
  %v64 = vld [vmem:[%s0 + $0x110] sm:$0xff]
  %v65 = vld [vmem:[%s0 + $0x118] sm:$0xff]
  %v66 = vld [vmem:[%s0 + $0x120] sm:$0xff]
  %v67 = vld [vmem:[%s0 + $0x128] sm:$0xff]
  %v68 = vld [vmem:[%s0 + $0x130] sm:$0xff]
  %v69 = vld [vmem:[%s0 + $0x138] sm:$0xff]
  %v70 = vld [vmem:[%s0 + $0x140] sm:$0xff]
  %v71 = vld [vmem:[%s0 + $0x148] sm:$0xff]
  %v72 = vld [vmem:[%s0 + $0x150] sm:$0xff]
  %v73 = vld [vmem:[%s0 + $0x158] sm:$0xff]
  %v74 = vld [vmem:[%s0 + $0x160] sm:$0xff]
  %v75 = vld [vmem:[%s0 + $0x168] sm:$0xff]
  %v76 = vld [vmem:[%s0 + $0x170] sm:$0xff]
  %v77 = vld [vmem:[%s0 + $0x178] sm:$0xff]
  %v78 = vld [vmem:[%s0 + $0x180] sm:$0xff]
  %v79 = vld [vmem:[%s0 + $0x188] sm:$0xff]
  %v80 = vld [vmem:[%s2] sm:$0xff]
  %v81 = vld [vmem:[%s2 + $0x8] sm:$0xff]
  %83 = vset.pattern.permute.xlu0 0
  %84 = vperm.xlu0 %83, %v80
  %v85 = vpop.permute.xlu0 %84
  %88 = vset.pattern.permute.xlu0 0
  %89 = vperm.xlu0 %88, %v81
  %v90 = vpop.permute.xlu0 %89
  %vm92 = vcmask 588800
  %v94 = vsel %vm92, %v27, 0
  %v97 = vsel %vm92, %v29, 0
  %99 = vmatpush.msra.mxu0 %v60
  %100 = vmatpush.msra.mxu0 %v58
  %101 = vmatpush.msra.mxu0 %v56
  %102 = vmatpush.msra.mxu0 %v54
  %103 = vmatpush.msra.mxu0 %v52
  %104 = vmatpush.msra.mxu0 %v50
  %105 = vmatpush.msra.mxu0 %v48
  %106 = vmatpush.msra.mxu0 %v46
  %107 = vmatpush.msra.mxu0 %v44
  %108 = vmatpush.msra.mxu0 %v42
  %109 = vmatpush.msra.mxu0 %v40
  %110 = vmatpush.msra.mxu0 %v38
  %111 = vmatpush.msra.mxu0 %v36
  %112 = vmatpush.msra.mxu0 %v34
  %113 = vmatpush.msra.mxu0 %v32
  %114 = vmatpush.msra.mxu0 %v30
  %115 = vmatmul.f32.gmra.mxu0 %v26
  %v116 = vpop.f32.mrf.mxu0
  %v117 = vadd.f32 %v85, %v116
  %118 = vmatmul.f32.gmra.mxu0 %v28
  %v119 = vpop.f32.mrf.mxu0
  %v120 = vadd.f32 %v90, %v119
  %121 = vdwg.mxu0
  %122 = vmatpush.msra.mxu0 0.0
  %123 = vmatpush.msra.mxu0 0.0
  %124 = vmatpush.msra.mxu0 0.0
  %125 = vmatpush.msra.mxu0 0.0
  %126 = vmatpush.msra.mxu0 0.0
  %127 = vmatpush.msra.mxu0 0.0
  %128 = vmatpush.msra.mxu0 0.0
  %129 = vmatpush.msra.mxu0 %v78
  %130 = vmatpush.msra.mxu0 %v76
  %131 = vmatpush.msra.mxu0 %v74
  %132 = vmatpush.msra.mxu0 %v72
  %133 = vmatpush.msra.mxu0 %v70
  %134 = vmatpush.msra.mxu0 %v68
  %135 = vmatpush.msra.mxu0 %v66
  %136 = vmatpush.msra.mxu0 %v64
  %137 = vmatpush.msra.mxu0 %v62
  %138 = vmatmul.f32.gmra.mxu0 %v94
  %v139 = vpop.f32.mrf.mxu0
  %v140 = vadd.f32 %v117, %v139
  %141 = vmatmul.f32.gmra.mxu0 %v97
  %v142 = vpop.f32.mrf.mxu0
  %v143 = vadd.f32 %v120, %v142
  %144 = vdwg.mxu0
  %145 = vmatpush.msra.mxu0 %v61
  %146 = vmatpush.msra.mxu0 %v59
  %147 = vmatpush.msra.mxu0 %v57
  %148 = vmatpush.msra.mxu0 %v55
  %149 = vmatpush.msra.mxu0 %v53
  %150 = vmatpush.msra.mxu0 %v51
  %151 = vmatpush.msra.mxu0 %v49
  %152 = vmatpush.msra.mxu0 %v47
  %153 = vmatpush.msra.mxu0 %v45
  %154 = vmatpush.msra.mxu0 %v43
  %155 = vmatpush.msra.mxu0 %v41
  %156 = vmatpush.msra.mxu0 %v39
  %157 = vmatpush.msra.mxu0 %v37
  %158 = vmatpush.msra.mxu0 %v35
  %159 = vmatpush.msra.mxu0 %v33
  %160 = vmatpush.msra.mxu0 %v31
  %161 = vmatmul.f32.gmra.mxu0 %v26
  %v162 = vpop.f32.mrf.mxu0
  %v163 = vadd.f32 %v85, %v162
  %164 = vmatmul.f32.gmra.mxu0 %v28
  %v165 = vpop.f32.mrf.mxu0
  %v166 = vadd.f32 %v90, %v165
  %167 = vdwg.mxu0
  %168 = vmatpush.msra.mxu0 0.0
  %169 = vmatpush.msra.mxu0 0.0
  %170 = vmatpush.msra.mxu0 0.0
  %171 = vmatpush.msra.mxu0 0.0
  %172 = vmatpush.msra.mxu0 0.0
  %173 = vmatpush.msra.mxu0 0.0
  %174 = vmatpush.msra.mxu0 0.0
  %175 = vmatpush.msra.mxu0 %v79
  %176 = vmatpush.msra.mxu0 %v77
  %177 = vmatpush.msra.mxu0 %v75
  %178 = vmatpush.msra.mxu0 %v73
  %179 = vmatpush.msra.mxu0 %v71
  %180 = vmatpush.msra.mxu0 %v69
  %181 = vmatpush.msra.mxu0 %v67
  %182 = vmatpush.msra.mxu0 %v65
  %183 = vmatpush.msra.mxu0 %v63
  %184 = vmatmul.f32.gmra.mxu0 %v94
  %v185 = vpop.f32.mrf.mxu0
  %v186 = vadd.f32 %v163, %v185
  %187 = vmatmul.f32.gmra.mxu0 %v97
  %v188 = vpop.f32.mrf.mxu0
  %v189 = vadd.f32 %v166, %v188
  %190 = vdwg.mxu0
  %vm191 = vcmp.ge.f32.partialorder %v140, 0.0
  %vm192 = vcmp.ge.f32.partialorder %v186, 0.0
  %vm193 = vcmp.ge.f32.partialorder %v143, 0.0
  %vm194 = vcmp.ge.f32.partialorder %v189, 0.0
  %v195 = vmul.f32 %v140, 0.01
  %v196 = vmul.f32 %v186, 0.01
  %v197 = vmul.f32 %v143, 0.01
  %v198 = vmul.f32 %v189, 0.01
  %v199 = vsel %vm191, %v140, %v195
  %v200 = vsel %vm192, %v186, %v196
  %v201 = vsel %vm193, %v143, %v197
  %v202 = vsel %vm194, %v189, %v198
  %v203 = vld [vmem:[%s5] sm:$0xff]
  %v204 = vld [vmem:[%s5 + $0x8] sm:$0xff]
  %v205 = vld [vmem:[%s5 + $0x10] sm:$0xff]
  %v206 = vld [vmem:[%s5 + $0x18] sm:$0xff]
  %v207 = vld [vmem:[%s5 + $0x20] sm:$0xff]
  %v208 = vld [vmem:[%s5 + $0x28] sm:$0xff]
  %v209 = vld [vmem:[%s5 + $0x30] sm:$0xff]
  %v210 = vld [vmem:[%s5 + $0x38] sm:$0xff]
  %v211 = vld [vmem:[%s5 + $0x40] sm:$0xff]
  %v212 = vld [vmem:[%s5 + $0x48] sm:$0xff]
  %v213 = vld [vmem:[%s5 + $0x50] sm:$0xff]
  %v214 = vld [vmem:[%s5 + $0x58] sm:$0xff]
  %v215 = vld [vmem:[%s5 + $0x60] sm:$0xff]
  %v216 = vld [vmem:[%s5 + $0x68] sm:$0xff]
  %v217 = vld [vmem:[%s5 + $0x70] sm:$0xff]
  %v218 = vld [vmem:[%s5 + $0x78] sm:$0xff]
  %v219 = vld [vmem:[%s5 + $0x80] sm:$0xff]
  %v220 = vld [vmem:[%s5 + $0x88] sm:$0xff]
  %v221 = vld [vmem:[%s5 + $0x90] sm:$0xff]
  %v222 = vld [vmem:[%s5 + $0x98] sm:$0xff]
  %v223 = vld [vmem:[%s5 + $0xa0] sm:$0xff]
  %v224 = vld [vmem:[%s5 + $0xa8] sm:$0xff]
  %v225 = vld [vmem:[%s5 + $0xb0] sm:$0xff]
  %v226 = vld [vmem:[%s5 + $0xb8] sm:$0xff]
  %v227 = vld [vmem:[%s5 + $0xc0] sm:$0xff]
  %v228 = vld [vmem:[%s6] sm:$0xff]
  %v229 = vld [vmem:[%s6 + $0x8] sm:$0xff]
  %v231 = vsel %vm92, %v200, 0
  %v234 = vsel %vm92, %v202, 0
  %236 = vmatpush.msra.mxu0 %v218
  %237 = vmatpush.msra.mxu0 %v217
  %238 = vmatpush.msra.mxu0 %v216
  %239 = vmatpush.msra.mxu0 %v215
  %240 = vmatpush.msra.mxu0 %v214
  %241 = vmatpush.msra.mxu0 %v213
  %242 = vmatpush.msra.mxu0 %v212
  %243 = vmatpush.msra.mxu0 %v211
  %244 = vmatpush.msra.mxu0 %v210
  %245 = vmatpush.msra.mxu0 %v209
  %246 = vmatpush.msra.mxu0 %v208
  %247 = vmatpush.msra.mxu0 %v207
  %248 = vmatpush.msra.mxu0 %v206
  %249 = vmatpush.msra.mxu0 %v205
  %250 = vmatpush.msra.mxu0 %v204
  %251 = vmatpush.msra.mxu0 %v203
  %252 = vmatmul.f32.gmra.mxu0 %v199
  %v253 = vpop.f32.mrf.mxu0
  %v254 = vadd.f32 0.0, %v253
  %255 = vmatmul.f32.gmra.mxu0 %v201
  %v256 = vpop.f32.mrf.mxu0
  %v257 = vadd.f32 0.0, %v256
  %258 = vdwg.mxu0
  %259 = vmatpush.msra.mxu0 0.0
  %260 = vmatpush.msra.mxu0 0.0
  %261 = vmatpush.msra.mxu0 0.0
  %262 = vmatpush.msra.mxu0 0.0
  %263 = vmatpush.msra.mxu0 0.0
  %264 = vmatpush.msra.mxu0 0.0
  %265 = vmatpush.msra.mxu0 0.0
  %266 = vmatpush.msra.mxu0 %v227
  %267 = vmatpush.msra.mxu0 %v226
  %268 = vmatpush.msra.mxu0 %v225
  %269 = vmatpush.msra.mxu0 %v224
  %270 = vmatpush.msra.mxu0 %v223
  %271 = vmatpush.msra.mxu0 %v222
  %272 = vmatpush.msra.mxu0 %v221
  %273 = vmatpush.msra.mxu0 %v220
  %274 = vmatpush.msra.mxu0 %v219
  %275 = vmatmul.f32.gmra.mxu0 %v231
  %v276 = vpop.f32.mrf.mxu0
  %v277 = vadd.f32 %v254, %v276
  %278 = vmatmul.f32.gmra.mxu0 %v234
  %v279 = vpop.f32.mrf.mxu0
  %v280 = vadd.f32 %v257, %v279
  %281 = vdwg.mxu0
  %v282 = vmul.f32 %v199, %v199
  %v283 = vmul.f32 %v200, %v200
  %v284 = vmul.f32 %v201, %v201
  %v285 = vmul.f32 %v202, %v202
  %v287 = vsel %vm92, %v283, 0
  %v290 = vsel %vm92, %v285, 0
  %292 = vmatpush.msra.mxu0 %v218
  %293 = vmatpush.msra.mxu0 %v217
  %294 = vmatpush.msra.mxu0 %v216
  %295 = vmatpush.msra.mxu0 %v215
  %296 = vmatpush.msra.mxu0 %v214
  %297 = vmatpush.msra.mxu0 %v213
  %298 = vmatpush.msra.mxu0 %v212
  %299 = vmatpush.msra.mxu0 %v211
  %300 = vmatpush.msra.mxu0 %v210
  %301 = vmatpush.msra.mxu0 %v209
  %302 = vmatpush.msra.mxu0 %v208
  %303 = vmatpush.msra.mxu0 %v207
  %304 = vmatpush.msra.mxu0 %v206
  %305 = vmatpush.msra.mxu0 %v205
  %306 = vmatpush.msra.mxu0 %v204
  %307 = vmatpush.msra.mxu0 %v203
  %308 = vmatmul.f32.gmra.mxu0 %v282
  %v309 = vpop.f32.mrf.mxu0
  %v310 = vadd.f32 0.0, %v309
  %311 = vmatmul.f32.gmra.mxu0 %v284
  %v312 = vpop.f32.mrf.mxu0
  %v313 = vadd.f32 0.0, %v312
  %314 = vdwg.mxu0
  %315 = vmatpush.msra.mxu0 0.0
  %316 = vmatpush.msra.mxu0 0.0
  %317 = vmatpush.msra.mxu0 0.0
  %318 = vmatpush.msra.mxu0 0.0
  %319 = vmatpush.msra.mxu0 0.0
  %320 = vmatpush.msra.mxu0 0.0
  %321 = vmatpush.msra.mxu0 0.0
  %322 = vmatpush.msra.mxu0 %v227
  %323 = vmatpush.msra.mxu0 %v226
  %324 = vmatpush.msra.mxu0 %v225
  %325 = vmatpush.msra.mxu0 %v224
  %326 = vmatpush.msra.mxu0 %v223
  %327 = vmatpush.msra.mxu0 %v222
  %328 = vmatpush.msra.mxu0 %v221
  %329 = vmatpush.msra.mxu0 %v220
  %330 = vmatpush.msra.mxu0 %v219
  %331 = vmatmul.f32.gmra.mxu0 %v287
  %v332 = vpop.f32.mrf.mxu0
  %v333 = vadd.f32 %v310, %v332
  %334 = vmatmul.f32.gmra.mxu0 %v290
  %v335 = vpop.f32.mrf.mxu0
  %v336 = vadd.f32 %v313, %v335
  %337 = vdwg.mxu0
  %v338 = vmul.f32 %v277, %v277
  %v339 = vmul.f32 %v280, %v280
  %v340 = vsub.f32 %v333, %v338
  %v341 = vsub.f32 %v336, %v339
  %v342 = vmax.f32 %v340, 0.0
  %v343 = vmax.f32 %v341, 0.0
  %vm344 = vcmask 64512
  %v346 = vsel %vm344, %v277, 0
  %v349 = vsel %vm344, %v280, 0
  %351 = vmatpush.msra.mxu0 0.0
  %352 = vmatpush.msra.mxu0 0.0
  %353 = vmatpush.msra.mxu0 0.0
  %354 = vmatpush.msra.mxu0 0.0
  %355 = vmatpush.msra.mxu0 0.0
  %356 = vmatpush.msra.mxu0 0.0
  %357 = vmatpush.msra.mxu0 0.0
  %358 = vmatpush.msra.mxu0 0.0
  %359 = vmatpush.msra.mxu0 0.0
  %360 = vmatpush.msra.mxu0 0.0
  %361 = vmatpush.msra.mxu0 0.0
  %362 = vmatpush.msra.mxu0 0.0
  %363 = vmatpush.msra.mxu0 0.0
  %364 = vmatpush.msra.mxu0 0.0
  %365 = vmatpush.msra.mxu0 0.0
  %366 = vmatpush.msra.mxu0 %v228
  %367 = vmatmul.f32.gmra.mxu0 %v346
  %v368 = vpop.f32.mrf.mxu0
  %v369 = vadd.f32 0.0, %v368
  %370 = vmatmul.f32.gmra.mxu0 %v349
  %v371 = vpop.f32.mrf.mxu0
  %v372 = vadd.f32 0.0, %v371
  %373 = vdwg.mxu0
  %374 = vmatpush.msra.mxu0 0.0
  %375 = vmatpush.msra.mxu0 0.0
  %376 = vmatpush.msra.mxu0 0.0
  %377 = vmatpush.msra.mxu0 0.0
  %378 = vmatpush.msra.mxu0 0.0
  %379 = vmatpush.msra.mxu0 0.0
  %380 = vmatpush.msra.mxu0 0.0
  %381 = vmatpush.msra.mxu0 0.0
  %382 = vmatpush.msra.mxu0 0.0
  %383 = vmatpush.msra.mxu0 0.0
  %384 = vmatpush.msra.mxu0 0.0
  %385 = vmatpush.msra.mxu0 0.0
  %386 = vmatpush.msra.mxu0 0.0
  %387 = vmatpush.msra.mxu0 0.0
  %388 = vmatpush.msra.mxu0 0.0
  %389 = vmatpush.msra.mxu0 %v229
  %390 = vmatmul.f32.gmra.mxu0 %v346
  %v391 = vpop.f32.mrf.mxu0
  %v392 = vadd.f32 0.0, %v391
  %393 = vmatmul.f32.gmra.mxu0 %v349
  %v394 = vpop.f32.mrf.mxu0
  %v395 = vadd.f32 0.0, %v394
  %396 = vdwg.mxu0
  %v397 = vsub.f32 %v199, %v369
  %v398 = vsub.f32 %v200, %v392
  %v399 = vsub.f32 %v201, %v372
  %v400 = vsub.f32 %v202, %v395
  %v401 = vadd.f32 %v342, 1e-05
  %v402 = vadd.f32 %v343, 1e-05
  %v403 = vrsqrt.pop %v401
  %v404 = vmul.f32 %v403, %v401
  %v405 = vmul.f32 %v404, %v403
  %v406 = vmul.f32 0.5, %v405
  %v407 = vsub.f32 1.5, %v406
  %v408 = vmul.f32 %v403, %v407
  %vm409 = vweird.f32 %v401
  %vm410 = vweird.f32 %v403
  %vm411 = vmor %vm409, %vm410
  %v412 = vsel %vm411, %v403, %v408
  %v413 = vrsqrt.pop %v402
  %v414 = vmul.f32 %v413, %v402
  %v415 = vmul.f32 %v414, %v413
  %v416 = vmul.f32 0.5, %v415
  %v417 = vsub.f32 1.5, %v416
  %v418 = vmul.f32 %v413, %v417
  %vm419 = vweird.f32 %v402
  %vm420 = vweird.f32 %v413
  %vm421 = vmor %vm419, %vm420
  %v422 = vsel %vm421, %v413, %v418
  %v424 = vsel %vm344, %v412, 0
  %v427 = vsel %vm344, %v422, 0
  %429 = vmatpush.msra.mxu0 0.0
  %430 = vmatpush.msra.mxu0 0.0
  %431 = vmatpush.msra.mxu0 0.0
  %432 = vmatpush.msra.mxu0 0.0
  %433 = vmatpush.msra.mxu0 0.0
  %434 = vmatpush.msra.mxu0 0.0
  %435 = vmatpush.msra.mxu0 0.0
  %436 = vmatpush.msra.mxu0 0.0
  %437 = vmatpush.msra.mxu0 0.0
  %438 = vmatpush.msra.mxu0 0.0
  %439 = vmatpush.msra.mxu0 0.0
  %440 = vmatpush.msra.mxu0 0.0
  %441 = vmatpush.msra.mxu0 0.0
  %442 = vmatpush.msra.mxu0 0.0
  %443 = vmatpush.msra.mxu0 0.0
  %444 = vmatpush.msra.mxu0 %v228
  %445 = vmatmul.f32.gmra.mxu0 %v424
  %v446 = vpop.f32.mrf.mxu0
  %v447 = vadd.f32 0.0, %v446
  %448 = vmatmul.f32.gmra.mxu0 %v427
  %v449 = vpop.f32.mrf.mxu0
  %v450 = vadd.f32 0.0, %v449
  %451 = vdwg.mxu0
  %452 = vmatpush.msra.mxu0 0.0
  %453 = vmatpush.msra.mxu0 0.0
  %454 = vmatpush.msra.mxu0 0.0
  %455 = vmatpush.msra.mxu0 0.0
  %456 = vmatpush.msra.mxu0 0.0
  %457 = vmatpush.msra.mxu0 0.0
  %458 = vmatpush.msra.mxu0 0.0
  %459 = vmatpush.msra.mxu0 0.0
  %460 = vmatpush.msra.mxu0 0.0
  %461 = vmatpush.msra.mxu0 0.0
  %462 = vmatpush.msra.mxu0 0.0
  %463 = vmatpush.msra.mxu0 0.0
  %464 = vmatpush.msra.mxu0 0.0
  %465 = vmatpush.msra.mxu0 0.0
  %466 = vmatpush.msra.mxu0 0.0
  %467 = vmatpush.msra.mxu0 %v229
  %468 = vmatmul.f32.gmra.mxu0 %v424
  %v469 = vpop.f32.mrf.mxu0
  %v470 = vadd.f32 0.0, %v469
  %471 = vmatmul.f32.gmra.mxu0 %v427
  %v472 = vpop.f32.mrf.mxu0
  %v473 = vadd.f32 0.0, %v472
  %474 = vdwg.mxu0
  %v475 = vmul.f32 %v397, %v447
  %v476 = vmul.f32 %v398, %v470
  %v477 = vmul.f32 %v399, %v450
  %v478 = vmul.f32 %v400, %v473
  %v479 = vld [vmem:[%s3] sm:$0xff]
  %v480 = vld [vmem:[%s3 + $0x8] sm:$0xff]
  %v481 = vld [vmem:[%s3 + $0x10] sm:$0xff]
  %v482 = vld [vmem:[%s3 + $0x18] sm:$0xff]
  %v483 = vld [vmem:[%s3 + $0x20] sm:$0xff]
  %v484 = vld [vmem:[%s3 + $0x28] sm:$0xff]
  %v485 = vld [vmem:[%s3 + $0x30] sm:$0xff]
  %v486 = vld [vmem:[%s3 + $0x38] sm:$0xff]
  %v487 = vld [vmem:[%s3 + $0x40] sm:$0xff]
  %v488 = vld [vmem:[%s3 + $0x48] sm:$0xff]
  %v489 = vld [vmem:[%s3 + $0x50] sm:$0xff]
  %v490 = vld [vmem:[%s3 + $0x58] sm:$0xff]
  %v491 = vld [vmem:[%s3 + $0x60] sm:$0xff]
  %v492 = vld [vmem:[%s3 + $0x68] sm:$0xff]
  %v493 = vld [vmem:[%s3 + $0x70] sm:$0xff]
  %v494 = vld [vmem:[%s3 + $0x78] sm:$0xff]
  %v495 = vld [vmem:[%s3 + $0x80] sm:$0xff]
  %v496 = vld [vmem:[%s3 + $0x88] sm:$0xff]
  %v497 = vld [vmem:[%s3 + $0x90] sm:$0xff]
  %v498 = vld [vmem:[%s3 + $0x98] sm:$0xff]
  %v499 = vld [vmem:[%s3 + $0xa0] sm:$0xff]
  %v500 = vld [vmem:[%s3 + $0xa8] sm:$0xff]
  %v501 = vld [vmem:[%s3 + $0xb0] sm:$0xff]
  %v502 = vld [vmem:[%s3 + $0xb8] sm:$0xff]
  %v503 = vld [vmem:[%s3 + $0xc0] sm:$0xff]
  %v504 = vld [vmem:[%s3 + $0xc8] sm:$0xff]
  %v505 = vld [vmem:[%s3 + $0xd0] sm:$0xff]
  %v506 = vld [vmem:[%s3 + $0xd8] sm:$0xff]
  %v507 = vld [vmem:[%s3 + $0xe0] sm:$0xff]
  %v508 = vld [vmem:[%s3 + $0xe8] sm:$0xff]
  %v509 = vld [vmem:[%s3 + $0xf0] sm:$0xff]
  %v510 = vld [vmem:[%s3 + $0xf8] sm:$0xff]
  %v511 = vld [vmem:[%s3 + $0x100] sm:$0xff]
  %v512 = vld [vmem:[%s3 + $0x108] sm:$0xff]
  %v513 = vld [vmem:[%s3 + $0x110] sm:$0xff]
  %v514 = vld [vmem:[%s3 + $0x118] sm:$0xff]
  %v515 = vld [vmem:[%s3 + $0x120] sm:$0xff]
  %v516 = vld [vmem:[%s3 + $0x128] sm:$0xff]
  %v517 = vld [vmem:[%s3 + $0x130] sm:$0xff]
  %v518 = vld [vmem:[%s3 + $0x138] sm:$0xff]
  %v519 = vld [vmem:[%s3 + $0x140] sm:$0xff]
  %v520 = vld [vmem:[%s3 + $0x148] sm:$0xff]
  %v521 = vld [vmem:[%s3 + $0x150] sm:$0xff]
  %v522 = vld [vmem:[%s3 + $0x158] sm:$0xff]
  %v523 = vld [vmem:[%s3 + $0x160] sm:$0xff]
  %v524 = vld [vmem:[%s3 + $0x168] sm:$0xff]
  %v525 = vld [vmem:[%s3 + $0x170] sm:$0xff]
  %v526 = vld [vmem:[%s3 + $0x178] sm:$0xff]
  %v527 = vld [vmem:[%s3 + $0x180] sm:$0xff]
  %v528 = vld [vmem:[%s3 + $0x188] sm:$0xff]
  %v529 = vld [vmem:[%s3 + $0x190] sm:$0xff]
  %v530 = vld [vmem:[%s3 + $0x198] sm:$0xff]
  %v531 = vld [vmem:[%s3 + $0x1a0] sm:$0xff]
  %v532 = vld [vmem:[%s3 + $0x1a8] sm:$0xff]
  %v533 = vld [vmem:[%s3 + $0x1b0] sm:$0xff]
  %v534 = vld [vmem:[%s3 + $0x1b8] sm:$0xff]
  %v535 = vld [vmem:[%s3 + $0x1c0] sm:$0xff]
  %v536 = vld [vmem:[%s3 + $0x1c8] sm:$0xff]
  %v537 = vld [vmem:[%s3 + $0x1d0] sm:$0xff]
  %v538 = vld [vmem:[%s3 + $0x1d8] sm:$0xff]
  %v539 = vld [vmem:[%s3 + $0x1e0] sm:$0xff]
  %v540 = vld [vmem:[%s3 + $0x1e8] sm:$0xff]
  %v541 = vld [vmem:[%s3 + $0x1f0] sm:$0xff]
  %v542 = vld [vmem:[%s3 + $0x1f8] sm:$0xff]
  %v543 = vld [vmem:[%s3 + $0x200] sm:$0xff]
  %v544 = vld [vmem:[%s3 + $0x208] sm:$0xff]
  %v545 = vld [vmem:[%s3 + $0x210] sm:$0xff]
  %v546 = vld [vmem:[%s3 + $0x218] sm:$0xff]
  %v547 = vld [vmem:[%s3 + $0x220] sm:$0xff]
  %v548 = vld [vmem:[%s3 + $0x228] sm:$0xff]
  %v549 = vld [vmem:[%s3 + $0x230] sm:$0xff]
  %v550 = vld [vmem:[%s3 + $0x238] sm:$0xff]
  %v551 = vld [vmem:[%s3 + $0x240] sm:$0xff]
  %v552 = vld [vmem:[%s3 + $0x248] sm:$0xff]
  %v553 = vld [vmem:[%s3 + $0x250] sm:$0xff]
  %v554 = vld [vmem:[%s3 + $0x258] sm:$0xff]
  %v555 = vld [vmem:[%s3 + $0x260] sm:$0xff]
  %v556 = vld [vmem:[%s3 + $0x268] sm:$0xff]
  %v557 = vld [vmem:[%s3 + $0x270] sm:$0xff]
  %v558 = vld [vmem:[%s3 + $0x278] sm:$0xff]
  %v559 = vld [vmem:[%s3 + $0x280] sm:$0xff]
  %v560 = vld [vmem:[%s3 + $0x288] sm:$0xff]
  %v561 = vld [vmem:[%s3 + $0x290] sm:$0xff]
  %v562 = vld [vmem:[%s3 + $0x298] sm:$0xff]
  %v563 = vld [vmem:[%s3 + $0x2a0] sm:$0xff]
  %v564 = vld [vmem:[%s3 + $0x2a8] sm:$0xff]
  %v565 = vld [vmem:[%s3 + $0x2b0] sm:$0xff]
  %v566 = vld [vmem:[%s3 + $0x2b8] sm:$0xff]
  %v567 = vld [vmem:[%s3 + $0x2c0] sm:$0xff]
  %v568 = vld [vmem:[%s3 + $0x2c8] sm:$0xff]
  %v569 = vld [vmem:[%s3 + $0x2d0] sm:$0xff]
  %v570 = vld [vmem:[%s3 + $0x2d8] sm:$0xff]
  %v571 = vld [vmem:[%s3 + $0x2e0] sm:$0xff]
  %v572 = vld [vmem:[%s3 + $0x2e8] sm:$0xff]
  %v573 = vld [vmem:[%s3 + $0x2f0] sm:$0xff]
  %v574 = vld [vmem:[%s3 + $0x2f8] sm:$0xff]
  %v575 = vld [vmem:[%s3 + $0x300] sm:$0xff]
  %v576 = vld [vmem:[%s3 + $0x308] sm:$0xff]
  %v577 = vld [vmem:[%s3 + $0x310] sm:$0xff]
  %v578 = vld [vmem:[%s3 + $0x318] sm:$0xff]
  %v579 = vld [vmem:[%s4] sm:$0xff]
  %v580 = vld [vmem:[%s4 + $0x8] sm:$0xff]
  %v581 = vld [vmem:[%s4 + $0x10] sm:$0xff]
  %v582 = vld [vmem:[%s4 + $0x18] sm:$0xff]
  %584 = vset.pattern.permute.xlu0 0
  %585 = vperm.xlu0 %584, %v579
  %v586 = vpop.permute.xlu0 %585
  %589 = vset.pattern.permute.xlu0 0
  %590 = vperm.xlu0 %589, %v580
  %v591 = vpop.permute.xlu0 %590
  %594 = vset.pattern.permute.xlu0 0
  %595 = vperm.xlu0 %594, %v581
  %v596 = vpop.permute.xlu0 %595
  %599 = vset.pattern.permute.xlu0 0
  %600 = vperm.xlu0 %599, %v582
  %v601 = vpop.permute.xlu0 %600
  %v603 = vadd.f32 %v586, 0.0
  %v604 = vadd.f32 %v591, 0.0
  %v605 = vadd.f32 %v596, 0.0
  %v606 = vadd.f32 %v601, 0.0
  %vm607 = vcmask 130048
  %v609 = vsel %vm607, %v479, 0
  %v612 = vsel %vm607, %v480, 0
  %v615 = vsel %vm607, %v481, 0
  %v618 = vsel %vm607, %v482, 0
  %620 = vmatpush.msra.mxu0 0.0
  %621 = vmatpush.msra.mxu0 0.0
  %622 = vmatpush.msra.mxu0 0.0
  %623 = vmatpush.msra.mxu0 0.0
  %624 = vmatpush.msra.mxu0 0.0
  %625 = vmatpush.msra.mxu0 0.0
  %626 = vmatpush.msra.mxu0 0.0
  %627 = vmatpush.msra.mxu0 0.0
  %628 = vmatpush.msra.mxu0 0.0
  %629 = vmatpush.msra.mxu0 0.0
  %630 = vmatpush.msra.mxu0 0.0
  %631 = vmatpush.msra.mxu0 0.0
  %632 = vmatpush.msra.mxu0 0.0
  %633 = vmatpush.msra.mxu0 0.0
  %634 = vmatpush.msra.mxu0 %v477
  %635 = vmatpush.msra.mxu0 %v475
  %636 = vmatmul.f32.gmra.mxu0 %v609
  %v637 = vpop.f32.mrf.mxu0
  %v638 = vadd.f32 0.0, %v637
  %639 = vmatmul.f32.gmra.mxu0 %v612
  %v640 = vpop.f32.mrf.mxu0
  %v641 = vadd.f32 0.0, %v640
  %642 = vmatmul.f32.gmra.mxu0 %v615
  %v643 = vpop.f32.mrf.mxu0
  %v644 = vadd.f32 0.0, %v643
  %645 = vmatmul.f32.gmra.mxu0 %v618
  %v646 = vpop.f32.mrf.mxu0
  %v647 = vadd.f32 0.0, %v646
  %648 = vdwg.mxu0
  %v649 = vadd.f32 %v603, %v638
  %v650 = vadd.f32 %v604, %v641
  %v651 = vadd.f32 %v605, %v644
  %v652 = vadd.f32 %v606, %v647
  %655 = vrot.lane.b32.xlu0 %v475, 120
  %v656 = vpop.permute.xlu0 %655
  %657 = vrot.lane.b32.xlu0 %v477, 120
  %v658 = vpop.permute.xlu0 %657
  %v662 = vsel %vm607, %v483, 0
  %v665 = vsel %vm607, %v484, 0
  %v668 = vsel %vm607, %v485, 0
  %v671 = vsel %vm607, %v486, 0
  %673 = vmatpush.msra.mxu0 0.0
  %674 = vmatpush.msra.mxu0 0.0
  %675 = vmatpush.msra.mxu0 0.0
  %676 = vmatpush.msra.mxu0 0.0
  %677 = vmatpush.msra.mxu0 0.0
  %678 = vmatpush.msra.mxu0 0.0
  %679 = vmatpush.msra.mxu0 0.0
  %680 = vmatpush.msra.mxu0 0.0
  %681 = vmatpush.msra.mxu0 0.0
  %682 = vmatpush.msra.mxu0 0.0
  %683 = vmatpush.msra.mxu0 0.0
  %684 = vmatpush.msra.mxu0 0.0
  %685 = vmatpush.msra.mxu0 0.0
  %686 = vmatpush.msra.mxu0 0.0
  %687 = vmatpush.msra.mxu0 %v658
  %688 = vmatpush.msra.mxu0 %v656
  %689 = vmatmul.f32.gmra.mxu0 %v662
  %v690 = vpop.f32.mrf.mxu0
  %v691 = vadd.f32 0.0, %v690
  %692 = vmatmul.f32.gmra.mxu0 %v665
  %v693 = vpop.f32.mrf.mxu0
  %v694 = vadd.f32 0.0, %v693
  %695 = vmatmul.f32.gmra.mxu0 %v668
  %v696 = vpop.f32.mrf.mxu0
  %v697 = vadd.f32 0.0, %v696
  %698 = vmatmul.f32.gmra.mxu0 %v671
  %v699 = vpop.f32.mrf.mxu0
  %v700 = vadd.f32 0.0, %v699
  %701 = vdwg.mxu0
  %v702 = vadd.f32 %v649, %v691
  %v703 = vadd.f32 %v650, %v694
  %v704 = vadd.f32 %v651, %v697
  %v705 = vadd.f32 %v652, %v700
  %706 = vrot.lane.b32.xlu0 %v475, 112
  %v707 = vpop.permute.xlu0 %706
  %708 = vrot.lane.b32.xlu0 %v477, 112
  %v709 = vpop.permute.xlu0 %708
  %v713 = vsel %vm607, %v487, 0
  %v716 = vsel %vm607, %v488, 0
  %v719 = vsel %vm607, %v489, 0
  %v722 = vsel %vm607, %v490, 0
  %724 = vmatpush.msra.mxu0 0.0
  %725 = vmatpush.msra.mxu0 0.0
  %726 = vmatpush.msra.mxu0 0.0
  %727 = vmatpush.msra.mxu0 0.0
  %728 = vmatpush.msra.mxu0 0.0
  %729 = vmatpush.msra.mxu0 0.0
  %730 = vmatpush.msra.mxu0 0.0
  %731 = vmatpush.msra.mxu0 0.0
  %732 = vmatpush.msra.mxu0 0.0
  %733 = vmatpush.msra.mxu0 0.0
  %734 = vmatpush.msra.mxu0 0.0
  %735 = vmatpush.msra.mxu0 0.0
  %736 = vmatpush.msra.mxu0 0.0
  %737 = vmatpush.msra.mxu0 0.0
  %738 = vmatpush.msra.mxu0 %v709
  %739 = vmatpush.msra.mxu0 %v707
  %740 = vmatmul.f32.gmra.mxu0 %v713
  %v741 = vpop.f32.mrf.mxu0
  %v742 = vadd.f32 0.0, %v741
  %743 = vmatmul.f32.gmra.mxu0 %v716
  %v744 = vpop.f32.mrf.mxu0
  %v745 = vadd.f32 0.0, %v744
  %746 = vmatmul.f32.gmra.mxu0 %v719
  %v747 = vpop.f32.mrf.mxu0
  %v748 = vadd.f32 0.0, %v747
  %749 = vmatmul.f32.gmra.mxu0 %v722
  %v750 = vpop.f32.mrf.mxu0
  %v751 = vadd.f32 0.0, %v750
  %752 = vdwg.mxu0
  %v753 = vadd.f32 %v702, %v742
  %v754 = vadd.f32 %v703, %v745
  %v755 = vadd.f32 %v704, %v748
  %v756 = vadd.f32 %v705, %v751
  %757 = vrot.lane.b32.xlu0 %v475, 104
  %v758 = vpop.permute.xlu0 %757
  %759 = vrot.lane.b32.xlu0 %v477, 104
  %v760 = vpop.permute.xlu0 %759
  %v764 = vsel %vm607, %v491, 0
  %v767 = vsel %vm607, %v492, 0
  %v770 = vsel %vm607, %v493, 0
  %v773 = vsel %vm607, %v494, 0
  %775 = vmatpush.msra.mxu0 0.0
  %776 = vmatpush.msra.mxu0 0.0
  %777 = vmatpush.msra.mxu0 0.0
  %778 = vmatpush.msra.mxu0 0.0
  %779 = vmatpush.msra.mxu0 0.0
  %780 = vmatpush.msra.mxu0 0.0
  %781 = vmatpush.msra.mxu0 0.0
  %782 = vmatpush.msra.mxu0 0.0
  %783 = vmatpush.msra.mxu0 0.0
  %784 = vmatpush.msra.mxu0 0.0
  %785 = vmatpush.msra.mxu0 0.0
  %786 = vmatpush.msra.mxu0 0.0
  %787 = vmatpush.msra.mxu0 0.0
  %788 = vmatpush.msra.mxu0 0.0
  %789 = vmatpush.msra.mxu0 %v760
  %790 = vmatpush.msra.mxu0 %v758
  %791 = vmatmul.f32.gmra.mxu0 %v764
  %v792 = vpop.f32.mrf.mxu0
  %v793 = vadd.f32 0.0, %v792
  %794 = vmatmul.f32.gmra.mxu0 %v767
  %v795 = vpop.f32.mrf.mxu0
  %v796 = vadd.f32 0.0, %v795
  %797 = vmatmul.f32.gmra.mxu0 %v770
  %v798 = vpop.f32.mrf.mxu0
  %v799 = vadd.f32 0.0, %v798
  %800 = vmatmul.f32.gmra.mxu0 %v773
  %v801 = vpop.f32.mrf.mxu0
  %v802 = vadd.f32 0.0, %v801
  %803 = vdwg.mxu0
  %v804 = vadd.f32 %v753, %v793
  %v805 = vadd.f32 %v754, %v796
  %v806 = vadd.f32 %v755, %v799
  %v807 = vadd.f32 %v756, %v802
  %808 = vrot.lane.b32.xlu0 %v475, 96
  %v809 = vpop.permute.xlu0 %808
  %810 = vrot.lane.b32.xlu0 %v477, 96
  %v811 = vpop.permute.xlu0 %810
  %v815 = vsel %vm607, %v495, 0
  %v818 = vsel %vm607, %v496, 0
  %v821 = vsel %vm607, %v497, 0
  %v824 = vsel %vm607, %v498, 0
  %826 = vmatpush.msra.mxu0 0.0
  %827 = vmatpush.msra.mxu0 0.0
  %828 = vmatpush.msra.mxu0 0.0
  %829 = vmatpush.msra.mxu0 0.0
  %830 = vmatpush.msra.mxu0 0.0
  %831 = vmatpush.msra.mxu0 0.0
  %832 = vmatpush.msra.mxu0 0.0
  %833 = vmatpush.msra.mxu0 0.0
  %834 = vmatpush.msra.mxu0 0.0
  %835 = vmatpush.msra.mxu0 0.0
  %836 = vmatpush.msra.mxu0 0.0
  %837 = vmatpush.msra.mxu0 0.0
  %838 = vmatpush.msra.mxu0 0.0
  %839 = vmatpush.msra.mxu0 0.0
  %840 = vmatpush.msra.mxu0 %v811
  %841 = vmatpush.msra.mxu0 %v809
  %842 = vmatmul.f32.gmra.mxu0 %v815
  %v843 = vpop.f32.mrf.mxu0
  %v844 = vadd.f32 0.0, %v843
  %845 = vmatmul.f32.gmra.mxu0 %v818
  %v846 = vpop.f32.mrf.mxu0
  %v847 = vadd.f32 0.0, %v846
  %848 = vmatmul.f32.gmra.mxu0 %v821
  %v849 = vpop.f32.mrf.mxu0
  %v850 = vadd.f32 0.0, %v849
  %851 = vmatmul.f32.gmra.mxu0 %v824
  %v852 = vpop.f32.mrf.mxu0
  %v853 = vadd.f32 0.0, %v852
  %854 = vdwg.mxu0
  %v855 = vadd.f32 %v804, %v844
  %v856 = vadd.f32 %v805, %v847
  %v857 = vadd.f32 %v806, %v850
  %v858 = vadd.f32 %v807, %v853
  %859 = vrot.lane.b32.xlu0 %v475, 88
  %v860 = vpop.permute.xlu0 %859
  %861 = vrot.lane.b32.xlu0 %v477, 88
  %v862 = vpop.permute.xlu0 %861
  %v866 = vsel %vm607, %v499, 0
  %v869 = vsel %vm607, %v500, 0
  %v872 = vsel %vm607, %v501, 0
  %v875 = vsel %vm607, %v502, 0
  %877 = vmatpush.msra.mxu0 0.0
  %878 = vmatpush.msra.mxu0 0.0
  %879 = vmatpush.msra.mxu0 0.0
  %880 = vmatpush.msra.mxu0 0.0
  %881 = vmatpush.msra.mxu0 0.0
  %882 = vmatpush.msra.mxu0 0.0
  %883 = vmatpush.msra.mxu0 0.0
  %884 = vmatpush.msra.mxu0 0.0
  %885 = vmatpush.msra.mxu0 0.0
  %886 = vmatpush.msra.mxu0 0.0
  %887 = vmatpush.msra.mxu0 0.0
  %888 = vmatpush.msra.mxu0 0.0
  %889 = vmatpush.msra.mxu0 0.0
  %890 = vmatpush.msra.mxu0 0.0
  %891 = vmatpush.msra.mxu0 %v862
  %892 = vmatpush.msra.mxu0 %v860
  %893 = vmatmul.f32.gmra.mxu0 %v866
  %v894 = vpop.f32.mrf.mxu0
  %v895 = vadd.f32 0.0, %v894
  %896 = vmatmul.f32.gmra.mxu0 %v869
  %v897 = vpop.f32.mrf.mxu0
  %v898 = vadd.f32 0.0, %v897
  %899 = vmatmul.f32.gmra.mxu0 %v872
  %v900 = vpop.f32.mrf.mxu0
  %v901 = vadd.f32 0.0, %v900
  %902 = vmatmul.f32.gmra.mxu0 %v875
  %v903 = vpop.f32.mrf.mxu0
  %v904 = vadd.f32 0.0, %v903
  %905 = vdwg.mxu0
  %v906 = vadd.f32 %v855, %v895
  %v907 = vadd.f32 %v856, %v898
  %v908 = vadd.f32 %v857, %v901
  %v909 = vadd.f32 %v858, %v904
  %910 = vrot.lane.b32.xlu0 %v475, 80
  %v911 = vpop.permute.xlu0 %910
  %912 = vrot.lane.b32.xlu0 %v477, 80
  %v913 = vpop.permute.xlu0 %912
  %v917 = vsel %vm607, %v503, 0
  %v920 = vsel %vm607, %v504, 0
  %v923 = vsel %vm607, %v505, 0
  %v926 = vsel %vm607, %v506, 0
  %928 = vmatpush.msra.mxu0 0.0
  %929 = vmatpush.msra.mxu0 0.0
  %930 = vmatpush.msra.mxu0 0.0
  %931 = vmatpush.msra.mxu0 0.0
  %932 = vmatpush.msra.mxu0 0.0
  %933 = vmatpush.msra.mxu0 0.0
  %934 = vmatpush.msra.mxu0 0.0
  %935 = vmatpush.msra.mxu0 0.0
  %936 = vmatpush.msra.mxu0 0.0
  %937 = vmatpush.msra.mxu0 0.0
  %938 = vmatpush.msra.mxu0 0.0
  %939 = vmatpush.msra.mxu0 0.0
  %940 = vmatpush.msra.mxu0 0.0
  %941 = vmatpush.msra.mxu0 0.0
  %942 = vmatpush.msra.mxu0 %v913
  %943 = vmatpush.msra.mxu0 %v911
  %944 = vmatmul.f32.gmra.mxu0 %v917
  %v945 = vpop.f32.mrf.mxu0
  %v946 = vadd.f32 0.0, %v945
  %947 = vmatmul.f32.gmra.mxu0 %v920
  %v948 = vpop.f32.mrf.mxu0
  %v949 = vadd.f32 0.0, %v948
  %950 = vmatmul.f32.gmra.mxu0 %v923
  %v951 = vpop.f32.mrf.mxu0
  %v952 = vadd.f32 0.0, %v951
  %953 = vmatmul.f32.gmra.mxu0 %v926
  %v954 = vpop.f32.mrf.mxu0
  %v955 = vadd.f32 0.0, %v954
  %956 = vdwg.mxu0
  %v957 = vadd.f32 %v906, %v946
  %v958 = vadd.f32 %v907, %v949
  %v959 = vadd.f32 %v908, %v952
  %v960 = vadd.f32 %v909, %v955
  %961 = vrot.lane.b32.xlu0 %v475, 72
  %v962 = vpop.permute.xlu0 %961
  %963 = vrot.lane.b32.xlu0 %v477, 72
  %v964 = vpop.permute.xlu0 %963
  %v968 = vsel %vm607, %v507, 0
  %v971 = vsel %vm607, %v508, 0
  %v974 = vsel %vm607, %v509, 0
  %v977 = vsel %vm607, %v510, 0
  %979 = vmatpush.msra.mxu0 0.0
  %980 = vmatpush.msra.mxu0 0.0
  %981 = vmatpush.msra.mxu0 0.0
  %982 = vmatpush.msra.mxu0 0.0
  %983 = vmatpush.msra.mxu0 0.0
  %984 = vmatpush.msra.mxu0 0.0
  %985 = vmatpush.msra.mxu0 0.0
  %986 = vmatpush.msra.mxu0 0.0
  %987 = vmatpush.msra.mxu0 0.0
  %988 = vmatpush.msra.mxu0 0.0
  %989 = vmatpush.msra.mxu0 0.0
  %990 = vmatpush.msra.mxu0 0.0
  %991 = vmatpush.msra.mxu0 0.0
  %992 = vmatpush.msra.mxu0 0.0
  %993 = vmatpush.msra.mxu0 %v964
  %994 = vmatpush.msra.mxu0 %v962
  %995 = vmatmul.f32.gmra.mxu0 %v968
  %v996 = vpop.f32.mrf.mxu0
  %v997 = vadd.f32 0.0, %v996
  %998 = vmatmul.f32.gmra.mxu0 %v971
  %v999 = vpop.f32.mrf.mxu0
  %v1000 = vadd.f32 0.0, %v999
  %1001 = vmatmul.f32.gmra.mxu0 %v974
  %v1002 = vpop.f32.mrf.mxu0
  %v1003 = vadd.f32 0.0, %v1002
  %1004 = vmatmul.f32.gmra.mxu0 %v977
  %v1005 = vpop.f32.mrf.mxu0
  %v1006 = vadd.f32 0.0, %v1005
  %1007 = vdwg.mxu0
  %v1008 = vadd.f32 %v957, %v997
  %v1009 = vadd.f32 %v958, %v1000
  %v1010 = vadd.f32 %v959, %v1003
  %v1011 = vadd.f32 %v960, %v1006
  %1012 = vrot.lane.b32.xlu0 %v475, 64
  %v1013 = vpop.permute.xlu0 %1012
  %1014 = vrot.lane.b32.xlu0 %v477, 64
  %v1015 = vpop.permute.xlu0 %1014
  %v1019 = vsel %vm607, %v511, 0
  %v1022 = vsel %vm607, %v512, 0
  %v1025 = vsel %vm607, %v513, 0
  %v1028 = vsel %vm607, %v514, 0
  %1030 = vmatpush.msra.mxu0 0.0
  %1031 = vmatpush.msra.mxu0 0.0
  %1032 = vmatpush.msra.mxu0 0.0
  %1033 = vmatpush.msra.mxu0 0.0
  %1034 = vmatpush.msra.mxu0 0.0
  %1035 = vmatpush.msra.mxu0 0.0
  %1036 = vmatpush.msra.mxu0 0.0
  %1037 = vmatpush.msra.mxu0 0.0
  %1038 = vmatpush.msra.mxu0 0.0
  %1039 = vmatpush.msra.mxu0 0.0
  %1040 = vmatpush.msra.mxu0 0.0
  %1041 = vmatpush.msra.mxu0 0.0
  %1042 = vmatpush.msra.mxu0 0.0
  %1043 = vmatpush.msra.mxu0 0.0
  %1044 = vmatpush.msra.mxu0 %v1015
  %1045 = vmatpush.msra.mxu0 %v1013
  %1046 = vmatmul.f32.gmra.mxu0 %v1019
  %v1047 = vpop.f32.mrf.mxu0
  %v1048 = vadd.f32 0.0, %v1047
  %1049 = vmatmul.f32.gmra.mxu0 %v1022
  %v1050 = vpop.f32.mrf.mxu0
  %v1051 = vadd.f32 0.0, %v1050
  %1052 = vmatmul.f32.gmra.mxu0 %v1025
  %v1053 = vpop.f32.mrf.mxu0
  %v1054 = vadd.f32 0.0, %v1053
  %1055 = vmatmul.f32.gmra.mxu0 %v1028
  %v1056 = vpop.f32.mrf.mxu0
  %v1057 = vadd.f32 0.0, %v1056
  %1058 = vdwg.mxu0
  %v1059 = vadd.f32 %v1008, %v1048
  %v1060 = vadd.f32 %v1009, %v1051
  %v1061 = vadd.f32 %v1010, %v1054
  %v1062 = vadd.f32 %v1011, %v1057
  %1063 = vrot.lane.b32.xlu0 %v475, 56
  %v1064 = vpop.permute.xlu0 %1063
  %1065 = vrot.lane.b32.xlu0 %v477, 56
  %v1066 = vpop.permute.xlu0 %1065
  %v1070 = vsel %vm607, %v515, 0
  %v1073 = vsel %vm607, %v516, 0
  %v1076 = vsel %vm607, %v517, 0
  %v1079 = vsel %vm607, %v518, 0
  %1081 = vmatpush.msra.mxu0 0.0
  %1082 = vmatpush.msra.mxu0 0.0
  %1083 = vmatpush.msra.mxu0 0.0
  %1084 = vmatpush.msra.mxu0 0.0
  %1085 = vmatpush.msra.mxu0 0.0
  %1086 = vmatpush.msra.mxu0 0.0
  %1087 = vmatpush.msra.mxu0 0.0
  %1088 = vmatpush.msra.mxu0 0.0
  %1089 = vmatpush.msra.mxu0 0.0
  %1090 = vmatpush.msra.mxu0 0.0
  %1091 = vmatpush.msra.mxu0 0.0
  %1092 = vmatpush.msra.mxu0 0.0
  %1093 = vmatpush.msra.mxu0 0.0
  %1094 = vmatpush.msra.mxu0 0.0
  %1095 = vmatpush.msra.mxu0 %v1066
  %1096 = vmatpush.msra.mxu0 %v1064
  %1097 = vmatmul.f32.gmra.mxu0 %v1070
  %v1098 = vpop.f32.mrf.mxu0
  %v1099 = vadd.f32 0.0, %v1098
  %1100 = vmatmul.f32.gmra.mxu0 %v1073
  %v1101 = vpop.f32.mrf.mxu0
  %v1102 = vadd.f32 0.0, %v1101
  %1103 = vmatmul.f32.gmra.mxu0 %v1076
  %v1104 = vpop.f32.mrf.mxu0
  %v1105 = vadd.f32 0.0, %v1104
  %1106 = vmatmul.f32.gmra.mxu0 %v1079
  %v1107 = vpop.f32.mrf.mxu0
  %v1108 = vadd.f32 0.0, %v1107
  %1109 = vdwg.mxu0
  %v1110 = vadd.f32 %v1059, %v1099
  %v1111 = vadd.f32 %v1060, %v1102
  %v1112 = vadd.f32 %v1061, %v1105
  %v1113 = vadd.f32 %v1062, %v1108
  %1114 = vrot.lane.b32.xlu0 %v475, 48
  %v1115 = vpop.permute.xlu0 %1114
  %1116 = vrot.lane.b32.xlu0 %v477, 48
  %v1117 = vpop.permute.xlu0 %1116
  %v1121 = vsel %vm607, %v519, 0
  %v1124 = vsel %vm607, %v520, 0
  %v1127 = vsel %vm607, %v521, 0
  %v1130 = vsel %vm607, %v522, 0
  %1132 = vmatpush.msra.mxu0 0.0
  %1133 = vmatpush.msra.mxu0 0.0
  %1134 = vmatpush.msra.mxu0 0.0
  %1135 = vmatpush.msra.mxu0 0.0
  %1136 = vmatpush.msra.mxu0 0.0
  %1137 = vmatpush.msra.mxu0 0.0
  %1138 = vmatpush.msra.mxu0 0.0
  %1139 = vmatpush.msra.mxu0 0.0
  %1140 = vmatpush.msra.mxu0 0.0
  %1141 = vmatpush.msra.mxu0 0.0
  %1142 = vmatpush.msra.mxu0 0.0
  %1143 = vmatpush.msra.mxu0 0.0
  %1144 = vmatpush.msra.mxu0 0.0
  %1145 = vmatpush.msra.mxu0 0.0
  %1146 = vmatpush.msra.mxu0 %v1117
  %1147 = vmatpush.msra.mxu0 %v1115
  %1148 = vmatmul.f32.gmra.mxu0 %v1121
  %v1149 = vpop.f32.mrf.mxu0
  %v1150 = vadd.f32 0.0, %v1149
  %1151 = vmatmul.f32.gmra.mxu0 %v1124
  %v1152 = vpop.f32.mrf.mxu0
  %v1153 = vadd.f32 0.0, %v1152
  %1154 = vmatmul.f32.gmra.mxu0 %v1127
  %v1155 = vpop.f32.mrf.mxu0
  %v1156 = vadd.f32 0.0, %v1155
  %1157 = vmatmul.f32.gmra.mxu0 %v1130
  %v1158 = vpop.f32.mrf.mxu0
  %v1159 = vadd.f32 0.0, %v1158
  %1160 = vdwg.mxu0
  %v1161 = vadd.f32 %v1110, %v1150
  %v1162 = vadd.f32 %v1111, %v1153
  %v1163 = vadd.f32 %v1112, %v1156
  %v1164 = vadd.f32 %v1113, %v1159
  %1165 = vrot.lane.b32.xlu0 %v475, 40
  %v1166 = vpop.permute.xlu0 %1165
  %1167 = vrot.lane.b32.xlu0 %v477, 40
  %v1168 = vpop.permute.xlu0 %1167
  %v1172 = vsel %vm607, %v523, 0
  %v1175 = vsel %vm607, %v524, 0
  %v1178 = vsel %vm607, %v525, 0
  %v1181 = vsel %vm607, %v526, 0
  %1183 = vmatpush.msra.mxu0 0.0
  %1184 = vmatpush.msra.mxu0 0.0
  %1185 = vmatpush.msra.mxu0 0.0
  %1186 = vmatpush.msra.mxu0 0.0
  %1187 = vmatpush.msra.mxu0 0.0
  %1188 = vmatpush.msra.mxu0 0.0
  %1189 = vmatpush.msra.mxu0 0.0
  %1190 = vmatpush.msra.mxu0 0.0
  %1191 = vmatpush.msra.mxu0 0.0
  %1192 = vmatpush.msra.mxu0 0.0
  %1193 = vmatpush.msra.mxu0 0.0
  %1194 = vmatpush.msra.mxu0 0.0
  %1195 = vmatpush.msra.mxu0 0.0
  %1196 = vmatpush.msra.mxu0 0.0
  %1197 = vmatpush.msra.mxu0 %v1168
  %1198 = vmatpush.msra.mxu0 %v1166
  %1199 = vmatmul.f32.gmra.mxu0 %v1172
  %v1200 = vpop.f32.mrf.mxu0
  %v1201 = vadd.f32 0.0, %v1200
  %1202 = vmatmul.f32.gmra.mxu0 %v1175
  %v1203 = vpop.f32.mrf.mxu0
  %v1204 = vadd.f32 0.0, %v1203
  %1205 = vmatmul.f32.gmra.mxu0 %v1178
  %v1206 = vpop.f32.mrf.mxu0
  %v1207 = vadd.f32 0.0, %v1206
  %1208 = vmatmul.f32.gmra.mxu0 %v1181
  %v1209 = vpop.f32.mrf.mxu0
  %v1210 = vadd.f32 0.0, %v1209
  %1211 = vdwg.mxu0
  %v1212 = vadd.f32 %v1161, %v1201
  %v1213 = vadd.f32 %v1162, %v1204
  %v1214 = vadd.f32 %v1163, %v1207
  %v1215 = vadd.f32 %v1164, %v1210
  %1216 = vrot.lane.b32.xlu0 %v475, 32
  %v1217 = vpop.permute.xlu0 %1216
  %1218 = vrot.lane.b32.xlu0 %v477, 32
  %v1219 = vpop.permute.xlu0 %1218
  %v1223 = vsel %vm607, %v527, 0
  %v1226 = vsel %vm607, %v528, 0
  %v1229 = vsel %vm607, %v529, 0
  %v1232 = vsel %vm607, %v530, 0
  %1234 = vmatpush.msra.mxu0 0.0
  %1235 = vmatpush.msra.mxu0 0.0
  %1236 = vmatpush.msra.mxu0 0.0
  %1237 = vmatpush.msra.mxu0 0.0
  %1238 = vmatpush.msra.mxu0 0.0
  %1239 = vmatpush.msra.mxu0 0.0
  %1240 = vmatpush.msra.mxu0 0.0
  %1241 = vmatpush.msra.mxu0 0.0
  %1242 = vmatpush.msra.mxu0 0.0
  %1243 = vmatpush.msra.mxu0 0.0
  %1244 = vmatpush.msra.mxu0 0.0
  %1245 = vmatpush.msra.mxu0 0.0
  %1246 = vmatpush.msra.mxu0 0.0
  %1247 = vmatpush.msra.mxu0 0.0
  %1248 = vmatpush.msra.mxu0 %v1219
  %1249 = vmatpush.msra.mxu0 %v1217
  %1250 = vmatmul.f32.gmra.mxu0 %v1223
  %v1251 = vpop.f32.mrf.mxu0
  %v1252 = vadd.f32 0.0, %v1251
  %1253 = vmatmul.f32.gmra.mxu0 %v1226
  %v1254 = vpop.f32.mrf.mxu0
  %v1255 = vadd.f32 0.0, %v1254
  %1256 = vmatmul.f32.gmra.mxu0 %v1229
  %v1257 = vpop.f32.mrf.mxu0
  %v1258 = vadd.f32 0.0, %v1257
  %1259 = vmatmul.f32.gmra.mxu0 %v1232
  %v1260 = vpop.f32.mrf.mxu0
  %v1261 = vadd.f32 0.0, %v1260
  %1262 = vdwg.mxu0
  %v1263 = vadd.f32 %v1212, %v1252
  %v1264 = vadd.f32 %v1213, %v1255
  %v1265 = vadd.f32 %v1214, %v1258
  %v1266 = vadd.f32 %v1215, %v1261
  %1267 = vrot.lane.b32.xlu0 %v475, 24
  %v1268 = vpop.permute.xlu0 %1267
  %1269 = vrot.lane.b32.xlu0 %v477, 24
  %v1270 = vpop.permute.xlu0 %1269
  %v1274 = vsel %vm607, %v531, 0
  %v1277 = vsel %vm607, %v532, 0
  %v1280 = vsel %vm607, %v533, 0
  %v1283 = vsel %vm607, %v534, 0
  %1285 = vmatpush.msra.mxu0 0.0
  %1286 = vmatpush.msra.mxu0 0.0
  %1287 = vmatpush.msra.mxu0 0.0
  %1288 = vmatpush.msra.mxu0 0.0
  %1289 = vmatpush.msra.mxu0 0.0
  %1290 = vmatpush.msra.mxu0 0.0
  %1291 = vmatpush.msra.mxu0 0.0
  %1292 = vmatpush.msra.mxu0 0.0
  %1293 = vmatpush.msra.mxu0 0.0
  %1294 = vmatpush.msra.mxu0 0.0
  %1295 = vmatpush.msra.mxu0 0.0
  %1296 = vmatpush.msra.mxu0 0.0
  %1297 = vmatpush.msra.mxu0 0.0
  %1298 = vmatpush.msra.mxu0 0.0
  %1299 = vmatpush.msra.mxu0 %v1270
  %1300 = vmatpush.msra.mxu0 %v1268
  %1301 = vmatmul.f32.gmra.mxu0 %v1274
  %v1302 = vpop.f32.mrf.mxu0
  %v1303 = vadd.f32 0.0, %v1302
  %1304 = vmatmul.f32.gmra.mxu0 %v1277
  %v1305 = vpop.f32.mrf.mxu0
  %v1306 = vadd.f32 0.0, %v1305
  %1307 = vmatmul.f32.gmra.mxu0 %v1280
  %v1308 = vpop.f32.mrf.mxu0
  %v1309 = vadd.f32 0.0, %v1308
  %1310 = vmatmul.f32.gmra.mxu0 %v1283
  %v1311 = vpop.f32.mrf.mxu0
  %v1312 = vadd.f32 0.0, %v1311
  %1313 = vdwg.mxu0
  %v1314 = vadd.f32 %v1263, %v1303
  %v1315 = vadd.f32 %v1264, %v1306
  %v1316 = vadd.f32 %v1265, %v1309
  %v1317 = vadd.f32 %v1266, %v1312
  %1318 = vrot.lane.b32.xlu0 %v475, 16
  %v1319 = vpop.permute.xlu0 %1318
  %1320 = vrot.lane.b32.xlu0 %v477, 16
  %v1321 = vpop.permute.xlu0 %1320
  %v1325 = vsel %vm607, %v535, 0
  %v1328 = vsel %vm607, %v536, 0
  %v1331 = vsel %vm607, %v537, 0
  %v1334 = vsel %vm607, %v538, 0
  %1336 = vmatpush.msra.mxu0 0.0
  %1337 = vmatpush.msra.mxu0 0.0
  %1338 = vmatpush.msra.mxu0 0.0
  %1339 = vmatpush.msra.mxu0 0.0
  %1340 = vmatpush.msra.mxu0 0.0
  %1341 = vmatpush.msra.mxu0 0.0
  %1342 = vmatpush.msra.mxu0 0.0
  %1343 = vmatpush.msra.mxu0 0.0
  %1344 = vmatpush.msra.mxu0 0.0
  %1345 = vmatpush.msra.mxu0 0.0
  %1346 = vmatpush.msra.mxu0 0.0
  %1347 = vmatpush.msra.mxu0 0.0
  %1348 = vmatpush.msra.mxu0 0.0
  %1349 = vmatpush.msra.mxu0 0.0
  %1350 = vmatpush.msra.mxu0 %v1321
  %1351 = vmatpush.msra.mxu0 %v1319
  %1352 = vmatmul.f32.gmra.mxu0 %v1325
  %v1353 = vpop.f32.mrf.mxu0
  %v1354 = vadd.f32 0.0, %v1353
  %1355 = vmatmul.f32.gmra.mxu0 %v1328
  %v1356 = vpop.f32.mrf.mxu0
  %v1357 = vadd.f32 0.0, %v1356
  %1358 = vmatmul.f32.gmra.mxu0 %v1331
  %v1359 = vpop.f32.mrf.mxu0
  %v1360 = vadd.f32 0.0, %v1359
  %1361 = vmatmul.f32.gmra.mxu0 %v1334
  %v1362 = vpop.f32.mrf.mxu0
  %v1363 = vadd.f32 0.0, %v1362
  %1364 = vdwg.mxu0
  %v1365 = vadd.f32 %v1314, %v1354
  %v1366 = vadd.f32 %v1315, %v1357
  %v1367 = vadd.f32 %v1316, %v1360
  %v1368 = vadd.f32 %v1317, %v1363
  %1369 = vrot.lane.b32.xlu0 %v475, 8
  %v1370 = vpop.permute.xlu0 %1369
  %1371 = vrot.lane.b32.xlu0 %v477, 8
  %v1372 = vpop.permute.xlu0 %1371
  %v1376 = vsel %vm607, %v539, 0
  %v1379 = vsel %vm607, %v540, 0
  %v1382 = vsel %vm607, %v541, 0
  %v1385 = vsel %vm607, %v542, 0
  %1387 = vmatpush.msra.mxu0 0.0
  %1388 = vmatpush.msra.mxu0 0.0
  %1389 = vmatpush.msra.mxu0 0.0
  %1390 = vmatpush.msra.mxu0 0.0
  %1391 = vmatpush.msra.mxu0 0.0
  %1392 = vmatpush.msra.mxu0 0.0
  %1393 = vmatpush.msra.mxu0 0.0
  %1394 = vmatpush.msra.mxu0 0.0
  %1395 = vmatpush.msra.mxu0 0.0
  %1396 = vmatpush.msra.mxu0 0.0
  %1397 = vmatpush.msra.mxu0 0.0
  %1398 = vmatpush.msra.mxu0 0.0
  %1399 = vmatpush.msra.mxu0 0.0
  %1400 = vmatpush.msra.mxu0 0.0
  %1401 = vmatpush.msra.mxu0 %v1372
  %1402 = vmatpush.msra.mxu0 %v1370
  %1403 = vmatmul.f32.gmra.mxu0 %v1376
  %v1404 = vpop.f32.mrf.mxu0
  %v1405 = vadd.f32 0.0, %v1404
  %1406 = vmatmul.f32.gmra.mxu0 %v1379
  %v1407 = vpop.f32.mrf.mxu0
  %v1408 = vadd.f32 0.0, %v1407
  %1409 = vmatmul.f32.gmra.mxu0 %v1382
  %v1410 = vpop.f32.mrf.mxu0
  %v1411 = vadd.f32 0.0, %v1410
  %1412 = vmatmul.f32.gmra.mxu0 %v1385
  %v1413 = vpop.f32.mrf.mxu0
  %v1414 = vadd.f32 0.0, %v1413
  %1415 = vdwg.mxu0
  %v1416 = vadd.f32 %v1365, %v1405
  %v1417 = vadd.f32 %v1366, %v1408
  %v1418 = vadd.f32 %v1367, %v1411
  %v1419 = vadd.f32 %v1368, %v1414
  %v1421 = vsel %vm607, %v543, 0
  %v1424 = vsel %vm607, %v544, 0
  %v1427 = vsel %vm607, %v545, 0
  %v1430 = vsel %vm607, %v546, 0
  %1432 = vmatpush.msra.mxu0 0.0
  %1433 = vmatpush.msra.mxu0 0.0
  %1434 = vmatpush.msra.mxu0 0.0
  %1435 = vmatpush.msra.mxu0 0.0
  %1436 = vmatpush.msra.mxu0 0.0
  %1437 = vmatpush.msra.mxu0 0.0
  %1438 = vmatpush.msra.mxu0 0.0
  %1439 = vmatpush.msra.mxu0 0.0
  %1440 = vmatpush.msra.mxu0 0.0
  %1441 = vmatpush.msra.mxu0 0.0
  %1442 = vmatpush.msra.mxu0 0.0
  %1443 = vmatpush.msra.mxu0 0.0
  %1444 = vmatpush.msra.mxu0 0.0
  %1445 = vmatpush.msra.mxu0 0.0
  %1446 = vmatpush.msra.mxu0 %v478
  %1447 = vmatpush.msra.mxu0 %v476
  %1448 = vmatmul.f32.gmra.mxu0 %v1421
  %v1449 = vpop.f32.mrf.mxu0
  %v1450 = vadd.f32 0.0, %v1449
  %1451 = vmatmul.f32.gmra.mxu0 %v1424
  %v1452 = vpop.f32.mrf.mxu0
  %v1453 = vadd.f32 0.0, %v1452
  %1454 = vmatmul.f32.gmra.mxu0 %v1427
  %v1455 = vpop.f32.mrf.mxu0
  %v1456 = vadd.f32 0.0, %v1455
  %1457 = vmatmul.f32.gmra.mxu0 %v1430
  %v1458 = vpop.f32.mrf.mxu0
  %v1459 = vadd.f32 0.0, %v1458
  %1460 = vdwg.mxu0
  %v1461 = vadd.f32 %v1416, %v1450
  %v1462 = vadd.f32 %v1417, %v1453
  %v1463 = vadd.f32 %v1418, %v1456
  %v1464 = vadd.f32 %v1419, %v1459
  %1467 = vrot.lane.b32.xlu0 %v476, 120
  %v1468 = vpop.permute.xlu0 %1467
  %1469 = vrot.lane.b32.xlu0 %v478, 120
  %v1470 = vpop.permute.xlu0 %1469
  %v1474 = vsel %vm607, %v547, 0
  %v1477 = vsel %vm607, %v548, 0
  %v1480 = vsel %vm607, %v549, 0
  %v1483 = vsel %vm607, %v550, 0
  %1485 = vmatpush.msra.mxu0 0.0
  %1486 = vmatpush.msra.mxu0 0.0
  %1487 = vmatpush.msra.mxu0 0.0
  %1488 = vmatpush.msra.mxu0 0.0
  %1489 = vmatpush.msra.mxu0 0.0
  %1490 = vmatpush.msra.mxu0 0.0
  %1491 = vmatpush.msra.mxu0 0.0
  %1492 = vmatpush.msra.mxu0 0.0
  %1493 = vmatpush.msra.mxu0 0.0
  %1494 = vmatpush.msra.mxu0 0.0
  %1495 = vmatpush.msra.mxu0 0.0
  %1496 = vmatpush.msra.mxu0 0.0
  %1497 = vmatpush.msra.mxu0 0.0
  %1498 = vmatpush.msra.mxu0 0.0
  %1499 = vmatpush.msra.mxu0 %v1470
  %1500 = vmatpush.msra.mxu0 %v1468
  %1501 = vmatmul.f32.gmra.mxu0 %v1474
  %v1502 = vpop.f32.mrf.mxu0
  %v1503 = vadd.f32 0.0, %v1502
  %1504 = vmatmul.f32.gmra.mxu0 %v1477
  %v1505 = vpop.f32.mrf.mxu0
  %v1506 = vadd.f32 0.0, %v1505
  %1507 = vmatmul.f32.gmra.mxu0 %v1480
  %v1508 = vpop.f32.mrf.mxu0
  %v1509 = vadd.f32 0.0, %v1508
  %1510 = vmatmul.f32.gmra.mxu0 %v1483
  %v1511 = vpop.f32.mrf.mxu0
  %v1512 = vadd.f32 0.0, %v1511
  %1513 = vdwg.mxu0
  %v1514 = vadd.f32 %v1461, %v1503
  %v1515 = vadd.f32 %v1462, %v1506
  %v1516 = vadd.f32 %v1463, %v1509
  %v1517 = vadd.f32 %v1464, %v1512
  %1518 = vrot.lane.b32.xlu0 %v476, 112
  %v1519 = vpop.permute.xlu0 %1518
  %1520 = vrot.lane.b32.xlu0 %v478, 112
  %v1521 = vpop.permute.xlu0 %1520
  %v1525 = vsel %vm607, %v551, 0
  %v1528 = vsel %vm607, %v552, 0
  %v1531 = vsel %vm607, %v553, 0
  %v1534 = vsel %vm607, %v554, 0
  %1536 = vmatpush.msra.mxu0 0.0
  %1537 = vmatpush.msra.mxu0 0.0
  %1538 = vmatpush.msra.mxu0 0.0
  %1539 = vmatpush.msra.mxu0 0.0
  %1540 = vmatpush.msra.mxu0 0.0
  %1541 = vmatpush.msra.mxu0 0.0
  %1542 = vmatpush.msra.mxu0 0.0
  %1543 = vmatpush.msra.mxu0 0.0
  %1544 = vmatpush.msra.mxu0 0.0
  %1545 = vmatpush.msra.mxu0 0.0
  %1546 = vmatpush.msra.mxu0 0.0
  %1547 = vmatpush.msra.mxu0 0.0
  %1548 = vmatpush.msra.mxu0 0.0
  %1549 = vmatpush.msra.mxu0 0.0
  %1550 = vmatpush.msra.mxu0 %v1521
  %1551 = vmatpush.msra.mxu0 %v1519
  %1552 = vmatmul.f32.gmra.mxu0 %v1525
  %v1553 = vpop.f32.mrf.mxu0
  %v1554 = vadd.f32 0.0, %v1553
  %1555 = vmatmul.f32.gmra.mxu0 %v1528
  %v1556 = vpop.f32.mrf.mxu0
  %v1557 = vadd.f32 0.0, %v1556
  %1558 = vmatmul.f32.gmra.mxu0 %v1531
  %v1559 = vpop.f32.mrf.mxu0
  %v1560 = vadd.f32 0.0, %v1559
  %1561 = vmatmul.f32.gmra.mxu0 %v1534
  %v1562 = vpop.f32.mrf.mxu0
  %v1563 = vadd.f32 0.0, %v1562
  %1564 = vdwg.mxu0
  %v1565 = vadd.f32 %v1514, %v1554
  %v1566 = vadd.f32 %v1515, %v1557
  %v1567 = vadd.f32 %v1516, %v1560
  %v1568 = vadd.f32 %v1517, %v1563
  %1569 = vrot.lane.b32.xlu0 %v476, 104
  %v1570 = vpop.permute.xlu0 %1569
  %1571 = vrot.lane.b32.xlu0 %v478, 104
  %v1572 = vpop.permute.xlu0 %1571
  %v1576 = vsel %vm607, %v555, 0
  %v1579 = vsel %vm607, %v556, 0
  %v1582 = vsel %vm607, %v557, 0
  %v1585 = vsel %vm607, %v558, 0
  %1587 = vmatpush.msra.mxu0 0.0
  %1588 = vmatpush.msra.mxu0 0.0
  %1589 = vmatpush.msra.mxu0 0.0
  %1590 = vmatpush.msra.mxu0 0.0
  %1591 = vmatpush.msra.mxu0 0.0
  %1592 = vmatpush.msra.mxu0 0.0
  %1593 = vmatpush.msra.mxu0 0.0
  %1594 = vmatpush.msra.mxu0 0.0
  %1595 = vmatpush.msra.mxu0 0.0
  %1596 = vmatpush.msra.mxu0 0.0
  %1597 = vmatpush.msra.mxu0 0.0
  %1598 = vmatpush.msra.mxu0 0.0
  %1599 = vmatpush.msra.mxu0 0.0
  %1600 = vmatpush.msra.mxu0 0.0
  %1601 = vmatpush.msra.mxu0 %v1572
  %1602 = vmatpush.msra.mxu0 %v1570
  %1603 = vmatmul.f32.gmra.mxu0 %v1576
  %v1604 = vpop.f32.mrf.mxu0
  %v1605 = vadd.f32 0.0, %v1604
  %1606 = vmatmul.f32.gmra.mxu0 %v1579
  %v1607 = vpop.f32.mrf.mxu0
  %v1608 = vadd.f32 0.0, %v1607
  %1609 = vmatmul.f32.gmra.mxu0 %v1582
  %v1610 = vpop.f32.mrf.mxu0
  %v1611 = vadd.f32 0.0, %v1610
  %1612 = vmatmul.f32.gmra.mxu0 %v1585
  %v1613 = vpop.f32.mrf.mxu0
  %v1614 = vadd.f32 0.0, %v1613
  %1615 = vdwg.mxu0
  %v1616 = vadd.f32 %v1565, %v1605
  %v1617 = vadd.f32 %v1566, %v1608
  %v1618 = vadd.f32 %v1567, %v1611
  %v1619 = vadd.f32 %v1568, %v1614
  %1620 = vrot.lane.b32.xlu0 %v476, 96
  %v1621 = vpop.permute.xlu0 %1620
  %1622 = vrot.lane.b32.xlu0 %v478, 96
  %v1623 = vpop.permute.xlu0 %1622
  %v1627 = vsel %vm607, %v559, 0
  %v1630 = vsel %vm607, %v560, 0
  %v1633 = vsel %vm607, %v561, 0
  %v1636 = vsel %vm607, %v562, 0
  %1638 = vmatpush.msra.mxu0 0.0
  %1639 = vmatpush.msra.mxu0 0.0
  %1640 = vmatpush.msra.mxu0 0.0
  %1641 = vmatpush.msra.mxu0 0.0
  %1642 = vmatpush.msra.mxu0 0.0
  %1643 = vmatpush.msra.mxu0 0.0
  %1644 = vmatpush.msra.mxu0 0.0
  %1645 = vmatpush.msra.mxu0 0.0
  %1646 = vmatpush.msra.mxu0 0.0
  %1647 = vmatpush.msra.mxu0 0.0
  %1648 = vmatpush.msra.mxu0 0.0
  %1649 = vmatpush.msra.mxu0 0.0
  %1650 = vmatpush.msra.mxu0 0.0
  %1651 = vmatpush.msra.mxu0 0.0
  %1652 = vmatpush.msra.mxu0 %v1623
  %1653 = vmatpush.msra.mxu0 %v1621
  %1654 = vmatmul.f32.gmra.mxu0 %v1627
  %v1655 = vpop.f32.mrf.mxu0
  %v1656 = vadd.f32 0.0, %v1655
  %1657 = vmatmul.f32.gmra.mxu0 %v1630
  %v1658 = vpop.f32.mrf.mxu0
  %v1659 = vadd.f32 0.0, %v1658
  %1660 = vmatmul.f32.gmra.mxu0 %v1633
  %v1661 = vpop.f32.mrf.mxu0
  %v1662 = vadd.f32 0.0, %v1661
  %1663 = vmatmul.f32.gmra.mxu0 %v1636
  %v1664 = vpop.f32.mrf.mxu0
  %v1665 = vadd.f32 0.0, %v1664
  %1666 = vdwg.mxu0
  %v1667 = vadd.f32 %v1616, %v1656
  %v1668 = vadd.f32 %v1617, %v1659
  %v1669 = vadd.f32 %v1618, %v1662
  %v1670 = vadd.f32 %v1619, %v1665
  %1671 = vrot.lane.b32.xlu0 %v476, 88
  %v1672 = vpop.permute.xlu0 %1671
  %1673 = vrot.lane.b32.xlu0 %v478, 88
  %v1674 = vpop.permute.xlu0 %1673
  %v1678 = vsel %vm607, %v563, 0
  %v1681 = vsel %vm607, %v564, 0
  %v1684 = vsel %vm607, %v565, 0
  %v1687 = vsel %vm607, %v566, 0
  %1689 = vmatpush.msra.mxu0 0.0
  %1690 = vmatpush.msra.mxu0 0.0
  %1691 = vmatpush.msra.mxu0 0.0
  %1692 = vmatpush.msra.mxu0 0.0
  %1693 = vmatpush.msra.mxu0 0.0
  %1694 = vmatpush.msra.mxu0 0.0
  %1695 = vmatpush.msra.mxu0 0.0
  %1696 = vmatpush.msra.mxu0 0.0
  %1697 = vmatpush.msra.mxu0 0.0
  %1698 = vmatpush.msra.mxu0 0.0
  %1699 = vmatpush.msra.mxu0 0.0
  %1700 = vmatpush.msra.mxu0 0.0
  %1701 = vmatpush.msra.mxu0 0.0
  %1702 = vmatpush.msra.mxu0 0.0
  %1703 = vmatpush.msra.mxu0 %v1674
  %1704 = vmatpush.msra.mxu0 %v1672
  %1705 = vmatmul.f32.gmra.mxu0 %v1678
  %v1706 = vpop.f32.mrf.mxu0
  %v1707 = vadd.f32 0.0, %v1706
  %1708 = vmatmul.f32.gmra.mxu0 %v1681
  %v1709 = vpop.f32.mrf.mxu0
  %v1710 = vadd.f32 0.0, %v1709
  %1711 = vmatmul.f32.gmra.mxu0 %v1684
  %v1712 = vpop.f32.mrf.mxu0
  %v1713 = vadd.f32 0.0, %v1712
  %1714 = vmatmul.f32.gmra.mxu0 %v1687
  %v1715 = vpop.f32.mrf.mxu0
  %v1716 = vadd.f32 0.0, %v1715
  %1717 = vdwg.mxu0
  %v1718 = vadd.f32 %v1667, %v1707
  %v1719 = vadd.f32 %v1668, %v1710
  %v1720 = vadd.f32 %v1669, %v1713
  %v1721 = vadd.f32 %v1670, %v1716
  %1722 = vrot.lane.b32.xlu0 %v476, 80
  %v1723 = vpop.permute.xlu0 %1722
  %1724 = vrot.lane.b32.xlu0 %v478, 80
  %v1725 = vpop.permute.xlu0 %1724
  %v1729 = vsel %vm607, %v567, 0
  %v1732 = vsel %vm607, %v568, 0
  %v1735 = vsel %vm607, %v569, 0
  %v1738 = vsel %vm607, %v570, 0
  %1740 = vmatpush.msra.mxu0 0.0
  %1741 = vmatpush.msra.mxu0 0.0
  %1742 = vmatpush.msra.mxu0 0.0
  %1743 = vmatpush.msra.mxu0 0.0
  %1744 = vmatpush.msra.mxu0 0.0
  %1745 = vmatpush.msra.mxu0 0.0
  %1746 = vmatpush.msra.mxu0 0.0
  %1747 = vmatpush.msra.mxu0 0.0
  %1748 = vmatpush.msra.mxu0 0.0
  %1749 = vmatpush.msra.mxu0 0.0
  %1750 = vmatpush.msra.mxu0 0.0
  %1751 = vmatpush.msra.mxu0 0.0
  %1752 = vmatpush.msra.mxu0 0.0
  %1753 = vmatpush.msra.mxu0 0.0
  %1754 = vmatpush.msra.mxu0 %v1725
  %1755 = vmatpush.msra.mxu0 %v1723
  %1756 = vmatmul.f32.gmra.mxu0 %v1729
  %v1757 = vpop.f32.mrf.mxu0
  %v1758 = vadd.f32 0.0, %v1757
  %1759 = vmatmul.f32.gmra.mxu0 %v1732
  %v1760 = vpop.f32.mrf.mxu0
  %v1761 = vadd.f32 0.0, %v1760
  %1762 = vmatmul.f32.gmra.mxu0 %v1735
  %v1763 = vpop.f32.mrf.mxu0
  %v1764 = vadd.f32 0.0, %v1763
  %1765 = vmatmul.f32.gmra.mxu0 %v1738
  %v1766 = vpop.f32.mrf.mxu0
  %v1767 = vadd.f32 0.0, %v1766
  %1768 = vdwg.mxu0
  %v1769 = vadd.f32 %v1718, %v1758
  %v1770 = vadd.f32 %v1719, %v1761
  %v1771 = vadd.f32 %v1720, %v1764
  %v1772 = vadd.f32 %v1721, %v1767
  %1773 = vrot.lane.b32.xlu0 %v476, 72
  %v1774 = vpop.permute.xlu0 %1773
  %1775 = vrot.lane.b32.xlu0 %v478, 72
  %v1776 = vpop.permute.xlu0 %1775
  %v1780 = vsel %vm607, %v571, 0
  %v1783 = vsel %vm607, %v572, 0
  %v1786 = vsel %vm607, %v573, 0
  %v1789 = vsel %vm607, %v574, 0
  %1791 = vmatpush.msra.mxu0 0.0
  %1792 = vmatpush.msra.mxu0 0.0
  %1793 = vmatpush.msra.mxu0 0.0
  %1794 = vmatpush.msra.mxu0 0.0
  %1795 = vmatpush.msra.mxu0 0.0
  %1796 = vmatpush.msra.mxu0 0.0
  %1797 = vmatpush.msra.mxu0 0.0
  %1798 = vmatpush.msra.mxu0 0.0
  %1799 = vmatpush.msra.mxu0 0.0
  %1800 = vmatpush.msra.mxu0 0.0
  %1801 = vmatpush.msra.mxu0 0.0
  %1802 = vmatpush.msra.mxu0 0.0
  %1803 = vmatpush.msra.mxu0 0.0
  %1804 = vmatpush.msra.mxu0 0.0
  %1805 = vmatpush.msra.mxu0 %v1776
  %1806 = vmatpush.msra.mxu0 %v1774
  %1807 = vmatmul.f32.gmra.mxu0 %v1780
  %v1808 = vpop.f32.mrf.mxu0
  %v1809 = vadd.f32 0.0, %v1808
  %1810 = vmatmul.f32.gmra.mxu0 %v1783
  %v1811 = vpop.f32.mrf.mxu0
  %v1812 = vadd.f32 0.0, %v1811
  %1813 = vmatmul.f32.gmra.mxu0 %v1786
  %v1814 = vpop.f32.mrf.mxu0
  %v1815 = vadd.f32 0.0, %v1814
  %1816 = vmatmul.f32.gmra.mxu0 %v1789
  %v1817 = vpop.f32.mrf.mxu0
  %v1818 = vadd.f32 0.0, %v1817
  %1819 = vdwg.mxu0
  %v1820 = vadd.f32 %v1769, %v1809
  %v1821 = vadd.f32 %v1770, %v1812
  %v1822 = vadd.f32 %v1771, %v1815
  %v1823 = vadd.f32 %v1772, %v1818
  %1824 = vrot.lane.b32.xlu0 %v476, 64
  %v1825 = vpop.permute.xlu0 %1824
  %1826 = vrot.lane.b32.xlu0 %v478, 64
  %v1827 = vpop.permute.xlu0 %1826
  %v1831 = vsel %vm607, %v575, 0
  %v1834 = vsel %vm607, %v576, 0
  %v1837 = vsel %vm607, %v577, 0
  %v1840 = vsel %vm607, %v578, 0
  %1842 = vmatpush.msra.mxu0 0.0
  %1843 = vmatpush.msra.mxu0 0.0
  %1844 = vmatpush.msra.mxu0 0.0
  %1845 = vmatpush.msra.mxu0 0.0
  %1846 = vmatpush.msra.mxu0 0.0
  %1847 = vmatpush.msra.mxu0 0.0
  %1848 = vmatpush.msra.mxu0 0.0
  %1849 = vmatpush.msra.mxu0 0.0
  %1850 = vmatpush.msra.mxu0 0.0
  %1851 = vmatpush.msra.mxu0 0.0
  %1852 = vmatpush.msra.mxu0 0.0
  %1853 = vmatpush.msra.mxu0 0.0
  %1854 = vmatpush.msra.mxu0 0.0
  %1855 = vmatpush.msra.mxu0 0.0
  %1856 = vmatpush.msra.mxu0 %v1827
  %1857 = vmatpush.msra.mxu0 %v1825
  %1858 = vmatmul.f32.gmra.mxu0 %v1831
  %v1859 = vpop.f32.mrf.mxu0
  %v1860 = vadd.f32 0.0, %v1859
  %1861 = vmatmul.f32.gmra.mxu0 %v1834
  %v1862 = vpop.f32.mrf.mxu0
  %v1863 = vadd.f32 0.0, %v1862
  %1864 = vmatmul.f32.gmra.mxu0 %v1837
  %v1865 = vpop.f32.mrf.mxu0
  %v1866 = vadd.f32 0.0, %v1865
  %1867 = vmatmul.f32.gmra.mxu0 %v1840
  %v1868 = vpop.f32.mrf.mxu0
  %v1869 = vadd.f32 0.0, %v1868
  %1870 = vdwg.mxu0
  %v1871 = vadd.f32 %v1820, %v1860
  %v1872 = vadd.f32 %v1821, %v1863
  %v1873 = vadd.f32 %v1822, %v1866
  %v1874 = vadd.f32 %v1823, %v1869
  %vm1875 = vcmp.ge.f32.partialorder %v1871, 0.0
  %vm1876 = vcmp.ge.f32.partialorder %v1872, 0.0
  %vm1877 = vcmp.ge.f32.partialorder %v1873, 0.0
  %vm1878 = vcmp.ge.f32.partialorder %v1874, 0.0
  %v1879 = vmul.f32 %v1871, 0.01
  %v1880 = vmul.f32 %v1872, 0.01
  %v1881 = vmul.f32 %v1873, 0.01
  %v1882 = vmul.f32 %v1874, 0.01
  %v1883 = vsel %vm1875, %v1871, %v1879
  %v1884 = vsel %vm1876, %v1872, %v1880
  %v1885 = vsel %vm1877, %v1873, %v1881
  %v1886 = vsel %vm1878, %v1874, %v1882
  %1887 = vst.msk [vmem:[%s7] sm:$0xff] %vm344, %v1883
  %1888 = vst.msk [vmem:[%s7 + $0x8] sm:$0xff] %vm344, %v1884
  %1889 = vst.msk [vmem:[%s7 + $0x10] sm:$0xff] %vm344, %v1885
  %1890 = vst.msk [vmem:[%s7 + $0x18] sm:$0xff] %vm344, %v1886
  // Predicated region
  $region30: #{decision_transformer_forward.4} parent=0 // pred_check
    _
  $region31: #{decision_transformer_forward.4} parent=0 // pred_check_branch
    %1892 = sbr.rel (0) target = $region33
  $region32: #{decision_transformer_forward.4} parent=0 // pred_region
    _
  $region33: #{decision_transformer_forward.4} parent=0 // pred_fallthru
    _
  // Predicated region
  $region34: #{decision_transformer_forward.4} parent=0 // pred_check
    _
  $region35: #{decision_transformer_forward.4} parent=0 // pred_check_branch
    %1894 = sbr.rel (0) target = $region37
  $region36: #{decision_transformer_forward.4} parent=0 // pred_region
    _
  $region37: #{decision_transformer_forward.4} parent=0 // pred_fallthru
    _

// kernel: decision_transformer_forward.5
$region0: #{decision_transformer_forward.5}
  #allocation0 [shape = 'u32[]', space=smem, size = 0x4, offset = 0x4, fixed_abs, tag = 'smem constant byte address 0x4 - core index']
  #allocation1 [shape = 'u32[72,128]{1,0:T(1,128)}', space=vmem, size = 0x9000, scoped, tag = 'internal scratch']
  %s0 = inlined_call_operand.vmem [shape: f32[1,24,32], index: 0, kind: input, shape index: {}]
  %s1 = inlined_call_operand.vmem [shape: f32[1,24,32], index: 1, kind: input, shape index: {}]
  %s2 = inlined_call_operand.vmem [shape: f32[1,24,24], index: 2, kind: input, shape index: {}]
  %s3 = inlined_call_operand.vmem [shape: f32[4,32], index: 3, kind: input, shape index: {}]
  %s4 = inlined_call_operand.vmem [shape: f32[2,4,32], index: 4, kind: input, shape index: {}]
  %s5 = inlined_call_operand.vmem [shape: f32[8,32,8], index: 5, kind: input, shape index: {}]
  %s6 = inlined_call_operand.vmem [shape: f32[8,32,8], index: 6, kind: input, shape index: {}]
  %s7 = inlined_call_operand.vmem [shape: f32[8,32,8], index: 7, kind: input, shape index: {}]
  %s8 = inlined_call_operand.vmem [shape: f32[8,1,8], index: 8, kind: input, shape index: {}]
  %s9 = inlined_call_operand.vmem [shape: f32[8,1,8], index: 9, kind: input, shape index: {}]
  %s10 = inlined_call_operand.vmem [shape: f32[8,1,8], index: 10, kind: input, shape index: {}]
  %s11 = inlined_call_operand.vmem [shape: f32[8,8,32], index: 11, kind: input, shape index: {}]
  %s12 = inlined_call_operand.vmem [shape: f32[2,1,32], index: 12, kind: input, shape index: {}]
  %s13 = inlined_call_operand.vmem [shape: bf16[2,32,128], index: 13, kind: input, shape index: {}]
  %s14 = inlined_call_operand.vmem [shape: f32[2,1,128], index: 14, kind: input, shape index: {}]
  %s15 = inlined_call_operand.vmem [shape: bf16[2,128,32], index: 15, kind: input, shape index: {}]
  %s16 = inlined_call_operand.vmem [shape: f32[2,1,32], index: 16, kind: input, shape index: {}]
  %s17 = inlined_call_operand.vmem [shape: f32[32,128], index: 17, kind: input, shape index: {}]
  %s18 = inlined_call_operand.vmem [shape: f32[1,128], index: 18, kind: input, shape index: {}]
  %s19 = inlined_call_operand.vmem [shape: f32[1,24,128], index: 19, kind: output, shape index: {}]
  %s20 = sld [smem:[#allocation0]]
  $region86: #{decision_transformer_forward.5} parent=0
    _
  %s22 = ssub.s32 1, %s20
  %s23 = scalar_select 0, %s22, %s20
  // Predicated region
  $region2: #{decision_transformer_forward.5} parent=0 // pred_check
    _
  $region3: #{decision_transformer_forward.5} parent=0 // pred_check_branch
    %25 = sbr.rel (0) target = $region5
  $region4: #{decision_transformer_forward.5} parent=0 // pred_region
    _
  $region5: #{decision_transformer_forward.5} parent=0 // pred_fallthru
    _
  // Predicated region
  $region6: #{decision_transformer_forward.5} parent=0 // pred_check
    _
  $region7: #{decision_transformer_forward.5} parent=0 // pred_check_branch
    %27 = sbr.rel (0) target = $region9
  $region8: #{decision_transformer_forward.5} parent=0 // pred_region
    _
  $region9: #{decision_transformer_forward.5} parent=0 // pred_fallthru
    _
  // Predicated region
  $region10: #{decision_transformer_forward.5} parent=0 // pred_check
    _
  $region11: #{decision_transformer_forward.5} parent=0 // pred_check_branch
    %29 = sbr.rel (0) target = $region13
  $region12: #{decision_transformer_forward.5} parent=0 // pred_region
    _
  $region13: #{decision_transformer_forward.5} parent=0 // pred_fallthru
    _
  // Predicated region
  $region14: #{decision_transformer_forward.5} parent=0 // pred_check
    _
  $region15: #{decision_transformer_forward.5} parent=0 // pred_check_branch
    %31 = sbr.rel (0) target = $region17
  $region16: #{decision_transformer_forward.5} parent=0 // pred_region
    _
  $region17: #{decision_transformer_forward.5} parent=0 // pred_fallthru
    _
  // Predicated region
  $region18: #{decision_transformer_forward.5} parent=0 // pred_check
    _
  $region19: #{decision_transformer_forward.5} parent=0 // pred_check_branch
    %33 = sbr.rel (0) target = $region21
  $region20: #{decision_transformer_forward.5} parent=0 // pred_region
    _
  $region21: #{decision_transformer_forward.5} parent=0 // pred_fallthru
    _
  // Predicated region
  $region22: #{decision_transformer_forward.5} parent=0 // pred_check
    _
  $region23: #{decision_transformer_forward.5} parent=0 // pred_check_branch
    %35 = sbr.rel (0) target = $region25
  $region24: #{decision_transformer_forward.5} parent=0 // pred_region
    _
  $region25: #{decision_transformer_forward.5} parent=0 // pred_fallthru
    _
  // Predicated region
  $region26: #{decision_transformer_forward.5} parent=0 // pred_check
    _
  $region27: #{decision_transformer_forward.5} parent=0 // pred_check_branch
    %37 = sbr.rel (0) target = $region29
  $region28: #{decision_transformer_forward.5} parent=0 // pred_region
    _
  $region29: #{decision_transformer_forward.5} parent=0 // pred_fallthru
    _
  // Predicated region
  $region30: #{decision_transformer_forward.5} parent=0 // pred_check
    _
  $region31: #{decision_transformer_forward.5} parent=0 // pred_check_branch
    %39 = sbr.rel (0) target = $region33
  $region32: #{decision_transformer_forward.5} parent=0 // pred_region
    _
  $region33: #{decision_transformer_forward.5} parent=0 // pred_fallthru
    _
  // Predicated region
  $region34: #{decision_transformer_forward.5} parent=0 // pred_check
    _
  $region35: #{decision_transformer_forward.5} parent=0 // pred_check_branch
    %41 = sbr.rel (0) target = $region37
  $region36: #{decision_transformer_forward.5} parent=0 // pred_region
    _
  $region37: #{decision_transformer_forward.5} parent=0 // pred_fallthru
    _
  // Predicated region
  $region38: #{decision_transformer_forward.5} parent=0 // pred_check
    _
  $region39: #{decision_transformer_forward.5} parent=0 // pred_check_branch
    %43 = sbr.rel (0) target = $region41
  $region40: #{decision_transformer_forward.5} parent=0 // pred_region
    _
  $region41: #{decision_transformer_forward.5} parent=0 // pred_fallthru
    _
  // Predicated region
  $region42: #{decision_transformer_forward.5} parent=0 // pred_check
    _
  $region43: #{decision_transformer_forward.5} parent=0 // pred_check_branch
    %45 = sbr.rel (0) target = $region45
  $region44: #{decision_transformer_forward.5} parent=0 // pred_region
    _
  $region45: #{decision_transformer_forward.5} parent=0 // pred_fallthru
    _
  // Predicated region
  $region46: #{decision_transformer_forward.5} parent=0 // pred_check
    _
  $region47: #{decision_transformer_forward.5} parent=0 // pred_check_branch
    %47 = sbr.rel (0) target = $region49
  $region48: #{decision_transformer_forward.5} parent=0 // pred_region
    _
  $region49: #{decision_transformer_forward.5} parent=0 // pred_fallthru
    _
  // Predicated region
  $region50: #{decision_transformer_forward.5} parent=0 // pred_check
    _
  $region51: #{decision_transformer_forward.5} parent=0 // pred_check_branch
    %49 = sbr.rel (0) target = $region53
  $region52: #{decision_transformer_forward.5} parent=0 // pred_region
    _
  $region53: #{decision_transformer_forward.5} parent=0 // pred_fallthru
    _
  // Predicated region
  $region54: #{decision_transformer_forward.5} parent=0 // pred_check
    _
  $region55: #{decision_transformer_forward.5} parent=0 // pred_check_branch
    %51 = sbr.rel (0) target = $region57
  $region56: #{decision_transformer_forward.5} parent=0 // pred_region
    _
  $region57: #{decision_transformer_forward.5} parent=0 // pred_fallthru
    _
  // Predicated region
  $region58: #{decision_transformer_forward.5} parent=0 // pred_check
    _
  $region59: #{decision_transformer_forward.5} parent=0 // pred_check_branch
    %53 = sbr.rel (0) target = $region61
  $region60: #{decision_transformer_forward.5} parent=0 // pred_region
    _
  $region61: #{decision_transformer_forward.5} parent=0 // pred_fallthru
    _
  // Predicated region
  $region62: #{decision_transformer_forward.5} parent=0 // pred_check
    _
  $region63: #{decision_transformer_forward.5} parent=0 // pred_check_branch
    %55 = sbr.rel (0) target = $region65
  $region64: #{decision_transformer_forward.5} parent=0 // pred_region
    _
  $region65: #{decision_transformer_forward.5} parent=0 // pred_fallthru
    _
  // Predicated region
  $region66: #{decision_transformer_forward.5} parent=0 // pred_check
    _
  $region67: #{decision_transformer_forward.5} parent=0 // pred_check_branch
    %57 = sbr.rel (0) target = $region69
  $region68: #{decision_transformer_forward.5} parent=0 // pred_region
    _
  $region69: #{decision_transformer_forward.5} parent=0 // pred_fallthru
    _
  // Predicated region
  $region70: #{decision_transformer_forward.5} parent=0 // pred_check
    _
  $region71: #{decision_transformer_forward.5} parent=0 // pred_check_branch
    %59 = sbr.rel (0) target = $region73
  $region72: #{decision_transformer_forward.5} parent=0 // pred_region
    _
  $region73: #{decision_transformer_forward.5} parent=0 // pred_fallthru
    _
  // Predicated region
  $region74: #{decision_transformer_forward.5} parent=0 // pred_check
    _
  $region75: #{decision_transformer_forward.5} parent=0 // pred_check_branch
    %61 = sbr.rel (0) target = $region77
  $region76: #{decision_transformer_forward.5} parent=0 // pred_region
    _
  $region77: #{decision_transformer_forward.5} parent=0 // pred_fallthru
    _
  %v63 = vld [vmem:[%s0] sm:$0xff]
  %v64 = vld [vmem:[%s0 + $0x8] sm:$0xff]
  %v65 = vld [vmem:[%s0 + $0x10] sm:$0xff]
  %v66 = vld [vmem:[%s2] sm:$0xff]
  %v67 = vld [vmem:[%s2 + $0x8] sm:$0xff]
  %v68 = vld [vmem:[%s2 + $0x10] sm:$0xff]
  %v69 = vld [vmem:[%s3] sm:$0xf]
  %vm70 = vcmask 261120
  %v71 = vsel %vm70, %v63, 0.0
  %72 = vadd.xlane.f32.xlu0 %v71
  %v73 = vpop.xlane.xlu0 %72
  %v74 = vsel %vm70, %v64, 0.0
  %75 = vadd.xlane.f32.xlu0 %v74
  %v76 = vpop.xlane.xlu0 %75
  %v77 = vsel %vm70, %v65, 0.0
  %78 = vadd.xlane.f32.xlu0 %v77
  %v79 = vpop.xlane.xlu0 %78
  %v80 = vrcp.pop 32.0
  %v81 = vmul.f32 32.0, %v80
  %v82 = vsub.f32 1.0, %v81
  %v83 = vmul.f32 %v80, %v82
  %v84 = vadd.f32 %v80, %v83
  %vm85 = vweird.f32 %v80
  %v86 = vsel %vm85, %v80, %v84
  %v87 = vmul.f32 %v73, %v86
  %v88 = vmul.f32 %v76, %v86
  %v89 = vmul.f32 %v79, %v86
  %v90 = vsub.f32 %v63, %v87
  %v91 = vsub.f32 %v64, %v88
  %v92 = vsub.f32 %v65, %v89
  %v93 = vmul.f32 %v90, %v90
  %v94 = vmul.f32 %v91, %v91
  %v95 = vmul.f32 %v92, %v92
  %v96 = vsel %vm70, %v93, 0.0
  %97 = vadd.xlane.f32.xlu0 %v96
  %v98 = vpop.xlane.xlu0 %97
  %v99 = vsel %vm70, %v94, 0.0
  %100 = vadd.xlane.f32.xlu0 %v99
  %v101 = vpop.xlane.xlu0 %100
  %v102 = vsel %vm70, %v95, 0.0
  %103 = vadd.xlane.f32.xlu0 %v102
  %v104 = vpop.xlane.xlu0 %103
  %v105 = vmul.f32 %v98, %v86
  %v106 = vmul.f32 %v101, %v86
  %v107 = vmul.f32 %v104, %v86
  %v108 = vadd.f32 %v105, 1e-05
  %v109 = vadd.f32 %v106, 1e-05
  %v110 = vadd.f32 %v107, 1e-05
  %v111 = vrsqrt.pop %v108
  %v112 = vmul.f32 %v111, %v108
  %v113 = vmul.f32 %v112, %v111
  %v114 = vmul.f32 0.5, %v113
  %v115 = vsub.f32 1.5, %v114
  %v116 = vmul.f32 %v111, %v115
  %vm117 = vweird.f32 %v108
  %vm118 = vweird.f32 %v111
  %vm119 = vmor %vm117, %vm118
  %v120 = vsel %vm119, %v111, %v116
  %v121 = vrsqrt.pop %v109
  %v122 = vmul.f32 %v121, %v109
  %v123 = vmul.f32 %v122, %v121
  %v124 = vmul.f32 0.5, %v123
  %v125 = vsub.f32 1.5, %v124
  %v126 = vmul.f32 %v121, %v125
  %vm127 = vweird.f32 %v109
  %vm128 = vweird.f32 %v121
  %vm129 = vmor %vm127, %vm128
  %v130 = vsel %vm129, %v121, %v126
  %v131 = vrsqrt.pop %v110
  %v132 = vmul.f32 %v131, %v110
  %v133 = vmul.f32 %v132, %v131
  %v134 = vmul.f32 0.5, %v133
  %v135 = vsub.f32 1.5, %v134
  %v136 = vmul.f32 %v131, %v135
  %vm137 = vweird.f32 %v110
  %vm138 = vweird.f32 %v131
  %vm139 = vmor %vm137, %vm138
  %v140 = vsel %vm139, %v131, %v136
  %v141 = vmul.f32 %v90, %v120
  %v142 = vmul.f32 %v91, %v130
  %v143 = vmul.f32 %v92, %v140
  %v144 = vperm.slane %v69, 0
  %v145 = vmul.f32 %v141, %v144
  %v146 = vmul.f32 %v142, %v144
  %v147 = vmul.f32 %v143, %v144
  %v148 = vperm.slane %v69, 1
  %v149 = vadd.f32 %v145, %v148
  %v150 = vadd.f32 %v146, %v148
  %v151 = vadd.f32 %v147, %v148
  %v152 = vld [vmem:[%s1] sm:$0xff]
  %v153 = vld [vmem:[%s1 + $0x8] sm:$0xff]
  %v154 = vld [vmem:[%s1 + $0x10] sm:$0xff]
  %v155 = vadd.f32 %v149, %v152
  %v156 = vadd.f32 %v150, %v153
  %v157 = vadd.f32 %v151, %v154
  %v158 = vld [vmem:[%s4] sm:$0xf]
  %v159 = vsel %vm70, %v155, 0.0
  %160 = vadd.xlane.f32.xlu0 %v159
  %v161 = vpop.xlane.xlu0 %160
  %v162 = vsel %vm70, %v156, 0.0
  %163 = vadd.xlane.f32.xlu0 %v162
  %v164 = vpop.xlane.xlu0 %163
  %v165 = vsel %vm70, %v157, 0.0
  %166 = vadd.xlane.f32.xlu0 %v165
  %v167 = vpop.xlane.xlu0 %166
  %v168 = vmul.f32 %v161, %v86
  %v169 = vmul.f32 %v164, %v86
  %v170 = vmul.f32 %v167, %v86
  %v171 = vsub.f32 %v155, %v168
  %v172 = vsub.f32 %v156, %v169
  %v173 = vsub.f32 %v157, %v170
  %v174 = vmul.f32 %v171, %v171
  %v175 = vmul.f32 %v172, %v172
  %v176 = vmul.f32 %v173, %v173
  %v177 = vsel %vm70, %v174, 0.0
  %178 = vadd.xlane.f32.xlu0 %v177
  %v179 = vpop.xlane.xlu0 %178
  %v180 = vsel %vm70, %v175, 0.0
  %181 = vadd.xlane.f32.xlu0 %v180
  %v182 = vpop.xlane.xlu0 %181
  %v183 = vsel %vm70, %v176, 0.0
  %184 = vadd.xlane.f32.xlu0 %v183
  %v185 = vpop.xlane.xlu0 %184
  %v186 = vmul.f32 %v179, %v86
  %v187 = vmul.f32 %v182, %v86
  %v188 = vmul.f32 %v185, %v86
  %v189 = vadd.f32 %v186, 1e-05
  %v190 = vadd.f32 %v187, 1e-05
  %v191 = vadd.f32 %v188, 1e-05
  %v192 = vrsqrt.pop %v189
  %v193 = vmul.f32 %v192, %v189
  %v194 = vmul.f32 %v193, %v192
  %v195 = vmul.f32 0.5, %v194
  %v196 = vsub.f32 1.5, %v195
  %v197 = vmul.f32 %v192, %v196
  %vm198 = vweird.f32 %v189
  %vm199 = vweird.f32 %v192
  %vm200 = vmor %vm198, %vm199
  %v201 = vsel %vm200, %v192, %v197
  %v202 = vrsqrt.pop %v190
  %v203 = vmul.f32 %v202, %v190
  %v204 = vmul.f32 %v203, %v202
  %v205 = vmul.f32 0.5, %v204
  %v206 = vsub.f32 1.5, %v205
  %v207 = vmul.f32 %v202, %v206
  %vm208 = vweird.f32 %v190
  %vm209 = vweird.f32 %v202
  %vm210 = vmor %vm208, %vm209
  %v211 = vsel %vm210, %v202, %v207
  %v212 = vrsqrt.pop %v191
  %v213 = vmul.f32 %v212, %v191
  %v214 = vmul.f32 %v213, %v212
  %v215 = vmul.f32 0.5, %v214
  %v216 = vsub.f32 1.5, %v215
  %v217 = vmul.f32 %v212, %v216
  %vm218 = vweird.f32 %v191
  %vm219 = vweird.f32 %v212
  %vm220 = vmor %vm218, %vm219
  %v221 = vsel %vm220, %v212, %v217
  %v222 = vmul.f32 %v171, %v201
  %v223 = vmul.f32 %v172, %v211
  %v224 = vmul.f32 %v173, %v221
  %v225 = vperm.slane %v158, 0
  %v226 = vmul.f32 %v222, %v225
  %v227 = vmul.f32 %v223, %v225
  %v228 = vmul.f32 %v224, %v225
  %v229 = vperm.slane %v158, 1
  %v230 = vadd.f32 %v226, %v229
  %v231 = vadd.f32 %v227, %v229
  %v232 = vadd.f32 %v228, %v229
  %v233 = vld [vmem:[%s5] sm:$0xff]
  %v234 = vld [vmem:[%s5 + $0x8] sm:$0xff]
  %v235 = vld [vmem:[%s5 + $0x10] sm:$0xff]
  %v236 = vld [vmem:[%s5 + $0x18] sm:$0xff]
  %v237 = vld [vmem:[%s8] sm:$0x1]
  %v239 = vperm.slane %v237, 0
  %v242 = vsel %vm70, %v230, 0
  %v245 = vsel %vm70, %v231, 0
  %v248 = vsel %vm70, %v232, 0
  %250 = vmatpush.msra.mxu0 0.0
  %251 = vmatpush.msra.mxu0 0.0
  %252 = vmatpush.msra.mxu0 0.0
  %253 = vmatpush.msra.mxu0 0.0
  %254 = vmatpush.msra.mxu0 0.0
  %255 = vmatpush.msra.mxu0 0.0
  %256 = vmatpush.msra.mxu0 0.0
  %257 = vmatpush.msra.mxu0 0.0
  %258 = vmatpush.msra.mxu0 0.0
  %259 = vmatpush.msra.mxu0 0.0
  %260 = vmatpush.msra.mxu0 0.0
  %261 = vmatpush.msra.mxu0 0.0
  %262 = vmatpush.msra.mxu0 %v236
  %263 = vmatpush.msra.mxu0 %v235
  %264 = vmatpush.msra.mxu0 %v234
  %265 = vmatpush.msra.mxu0 %v233
  %266 = vmatmul.f32.gmra.mxu0 %v242
  %v267 = vpop.f32.mrf.mxu0
  %v268 = vadd.f32 %v239, %v267
  %269 = vmatmul.f32.gmra.mxu0 %v245
  %v270 = vpop.f32.mrf.mxu0
  %v271 = vadd.f32 %v239, %v270
  %272 = vmatmul.f32.gmra.mxu0 %v248
  %v273 = vpop.f32.mrf.mxu0
  %v274 = vadd.f32 %v239, %v273
  %275 = vdwg.mxu0
  %v276 = vld [vmem:[%s6] sm:$0xff]
  %v277 = vld [vmem:[%s6 + $0x8] sm:$0xff]
  %v278 = vld [vmem:[%s6 + $0x10] sm:$0xff]
  %v279 = vld [vmem:[%s6 + $0x18] sm:$0xff]
  %v280 = vld [vmem:[%s9] sm:$0x1]
  %v282 = vperm.slane %v280, 0
  %284 = vmatpush.msra.mxu0 0.0
  %285 = vmatpush.msra.mxu0 0.0
  %286 = vmatpush.msra.mxu0 0.0
  %287 = vmatpush.msra.mxu0 0.0
  %288 = vmatpush.msra.mxu0 0.0
  %289 = vmatpush.msra.mxu0 0.0
  %290 = vmatpush.msra.mxu0 0.0
  %291 = vmatpush.msra.mxu0 0.0
  %292 = vmatpush.msra.mxu0 0.0
  %293 = vmatpush.msra.mxu0 0.0
  %294 = vmatpush.msra.mxu0 0.0
  %295 = vmatpush.msra.mxu0 0.0
  %296 = vmatpush.msra.mxu0 %v279
  %297 = vmatpush.msra.mxu0 %v278
  %298 = vmatpush.msra.mxu0 %v277
  %299 = vmatpush.msra.mxu0 %v276
  %300 = vmatmul.f32.gmra.mxu0 %v242
  %v301 = vpop.f32.mrf.mxu0
  %v302 = vadd.f32 %v282, %v301
  %303 = vmatmul.f32.gmra.mxu0 %v245
  %v304 = vpop.f32.mrf.mxu0
  %v305 = vadd.f32 %v282, %v304
  %306 = vmatmul.f32.gmra.mxu0 %v248
  %v307 = vpop.f32.mrf.mxu0
  %v308 = vadd.f32 %v282, %v307
  %309 = vdwg.mxu0
  %v310 = vld [vmem:[%s7] sm:$0xff]
  %v311 = vld [vmem:[%s7 + $0x8] sm:$0xff]
  %v312 = vld [vmem:[%s7 + $0x10] sm:$0xff]
  %v313 = vld [vmem:[%s7 + $0x18] sm:$0xff]
  %v314 = vld [vmem:[%s10] sm:$0x1]
  %v316 = vperm.slane %v314, 0
  %318 = vmatpush.msra.mxu0 0.0
  %319 = vmatpush.msra.mxu0 0.0
  %320 = vmatpush.msra.mxu0 0.0
  %321 = vmatpush.msra.mxu0 0.0
  %322 = vmatpush.msra.mxu0 0.0
  %323 = vmatpush.msra.mxu0 0.0
  %324 = vmatpush.msra.mxu0 0.0
  %325 = vmatpush.msra.mxu0 0.0
  %326 = vmatpush.msra.mxu0 0.0
  %327 = vmatpush.msra.mxu0 0.0
  %328 = vmatpush.msra.mxu0 0.0
  %329 = vmatpush.msra.mxu0 0.0
  %330 = vmatpush.msra.mxu0 %v313
  %331 = vmatpush.msra.mxu0 %v312
  %332 = vmatpush.msra.mxu0 %v311
  %333 = vmatpush.msra.mxu0 %v310
  %334 = vmatmul.f32.gmra.mxu0 %v242
  %v335 = vpop.f32.mrf.mxu0
  %v336 = vadd.f32 %v316, %v335
  %337 = vmatmul.f32.gmra.mxu0 %v245
  %v338 = vpop.f32.mrf.mxu0
  %v339 = vadd.f32 %v316, %v338
  %340 = vmatmul.f32.gmra.mxu0 %v248
  %v341 = vpop.f32.mrf.mxu0
  %v342 = vadd.f32 %v316, %v341
  %343 = vdwg.mxu0
  %vm344 = vcmask 64512
  %v346 = vsel %vm344, %v268, 0
  %v349 = vsel %vm344, %v271, 0
  %v352 = vsel %vm344, %v274, 0
  %v355 = vsel %vm344, %v302, 0
  %v358 = vsel %vm344, %v305, 0
  %v361 = vsel %vm344, %v308, 0
  %363 = vmatpush.xpose.msra.mxu0 0.0
  %364 = vmatpush.xpose.msra.mxu0 0.0
  %365 = vmatpush.xpose.msra.mxu0 0.0
  %366 = vmatpush.xpose.msra.mxu0 0.0
  %367 = vmatpush.xpose.msra.mxu0 0.0
  %368 = vmatpush.xpose.msra.mxu0 0.0
  %369 = vmatpush.xpose.msra.mxu0 0.0
  %370 = vmatpush.xpose.msra.mxu0 0.0
  %371 = vmatpush.xpose.msra.mxu0 0.0
  %372 = vmatpush.xpose.msra.mxu0 0.0
  %373 = vmatpush.xpose.msra.mxu0 0.0
  %374 = vmatpush.xpose.msra.mxu0 0.0
  %375 = vmatpush.xpose.msra.mxu0 0.0
  %376 = vmatpush.xpose.msra.mxu0 %v361
  %377 = vmatpush.xpose.msra.mxu0 %v358
  %378 = vmatpush.xpose.msra.mxu0 %v355
  %379 = vmatmul.f32.gmra.mxu0 %v346
  %v380 = vpop.f32.mrf.mxu0
  %v381 = vadd.f32 0.0, %v380
  %382 = vmatmul.f32.gmra.mxu0 %v349
  %v383 = vpop.f32.mrf.mxu0
  %v384 = vadd.f32 0.0, %v383
  %385 = vmatmul.f32.gmra.mxu0 %v352
  %v386 = vpop.f32.mrf.mxu0
  %v387 = vadd.f32 0.0, %v386
  %388 = vdwg.mxu0
  %v389 = vmul.f32 %v381, 0.35355338
  %v390 = vmul.f32 %v384, 0.35355338
  %v391 = vmul.f32 %v387, 0.35355338
  %v392 = vadd.f32 %v389, %v66
  %v393 = vadd.f32 %v390, %v67
  %v394 = vadd.f32 %v391, %v68
  %vm395 = vcmask 195584
  %v396 = vsel %vm395, %v392, -inf
  %397 = vmax.xlane.f32.xlu0 %v396
  %v398 = vpop.xlane.xlu0 %397
  %v399 = vsel %vm395, %v393, -inf
  %400 = vmax.xlane.f32.xlu0 %v399
  %v401 = vpop.xlane.xlu0 %400
  %v402 = vsel %vm395, %v394, -inf
  %403 = vmax.xlane.f32.xlu0 %v402
  %v404 = vpop.xlane.xlu0 %403
  %v405 = vsub.f32 %v392, %v398
  %v406 = vsub.f32 %v393, %v401
  %v407 = vsub.f32 %v394, %v404
  %v408 = vmul.f32 %v405, 1.442695
  %v409 = vpow.pop %v408
  %v410 = vmul.f32 %v406, 1.442695
  %v411 = vpow.pop %v410
  %v412 = vmul.f32 %v407, 1.442695
  %v413 = vpow.pop %v412
  %v414 = vsel %vm395, %v409, 0.0
  %415 = vadd.xlane.f32.xlu0 %v414
  %v416 = vpop.xlane.xlu0 %415
  %v417 = vsel %vm395, %v411, 0.0
  %418 = vadd.xlane.f32.xlu0 %v417
  %v419 = vpop.xlane.xlu0 %418
  %v420 = vsel %vm395, %v413, 0.0
  %421 = vadd.xlane.f32.xlu0 %v420
  %v422 = vpop.xlane.xlu0 %421
  %v423 = vrcp.pop %v416
  %v424 = vrcp.pop %v419
  %v425 = vrcp.pop %v422
  %v426 = vmul.f32 %v409, %v423
  %v427 = vmul.f32 %v411, %v424
  %v428 = vmul.f32 %v413, %v425
  %v430 = vsel %vm395, %v426, 0
  %v433 = vsel %vm395, %v427, 0
  %v436 = vsel %vm395, %v428, 0
  %438 = vmatpush.msra.mxu0 0.0
  %439 = vmatpush.msra.mxu0 0.0
  %440 = vmatpush.msra.mxu0 0.0
  %441 = vmatpush.msra.mxu0 0.0
  %442 = vmatpush.msra.mxu0 0.0
  %443 = vmatpush.msra.mxu0 0.0
  %444 = vmatpush.msra.mxu0 0.0
  %445 = vmatpush.msra.mxu0 0.0
  %446 = vmatpush.msra.mxu0 0.0
  %447 = vmatpush.msra.mxu0 0.0
  %448 = vmatpush.msra.mxu0 0.0
  %449 = vmatpush.msra.mxu0 0.0
  %450 = vmatpush.msra.mxu0 0.0
  %451 = vmatpush.msra.mxu0 %v342
  %452 = vmatpush.msra.mxu0 %v339
  %453 = vmatpush.msra.mxu0 %v336
  %454 = vmatmul.f32.gmra.mxu0 %v430
  %v455 = vpop.f32.mrf.mxu0
  %v456 = vadd.f32 0.0, %v455
  %457 = vmatmul.f32.gmra.mxu0 %v433
  %v458 = vpop.f32.mrf.mxu0
  %v459 = vadd.f32 0.0, %v458
  %460 = vmatmul.f32.gmra.mxu0 %v436
  %v461 = vpop.f32.mrf.mxu0
  %v462 = vadd.f32 0.0, %v461
  %463 = vdwg.mxu0
  %v464 = vld [vmem:[%s11] sm:$0xff]
  %s465 = scalar_lea.vmem %s5, 32
  %v466 = vld [vmem:[%s465] sm:$0xff]
  %v467 = vld [vmem:[%s465 + $0x8] sm:$0xff]
  %v468 = vld [vmem:[%s465 + $0x10] sm:$0xff]
  %v469 = vld [vmem:[%s465 + $0x18] sm:$0xff]
  %s470 = scalar_lea.vmem %s8, 1
  %v471 = vld [vmem:[%s470] sm:$0x1]
  %v473 = vperm.slane %v471, 0
  %475 = vmatpush.msra.mxu0 0.0
  %476 = vmatpush.msra.mxu0 0.0
  %477 = vmatpush.msra.mxu0 0.0
  %478 = vmatpush.msra.mxu0 0.0
  %479 = vmatpush.msra.mxu0 0.0
  %480 = vmatpush.msra.mxu0 0.0
  %481 = vmatpush.msra.mxu0 0.0
  %482 = vmatpush.msra.mxu0 0.0
  %483 = vmatpush.msra.mxu0 0.0
  %484 = vmatpush.msra.mxu0 0.0
  %485 = vmatpush.msra.mxu0 0.0
  %486 = vmatpush.msra.mxu0 0.0
  %487 = vmatpush.msra.mxu0 %v469
  %488 = vmatpush.msra.mxu0 %v468
  %489 = vmatpush.msra.mxu0 %v467
  %490 = vmatpush.msra.mxu0 %v466
  %491 = vmatmul.f32.gmra.mxu0 %v242
  %v492 = vpop.f32.mrf.mxu0
  %v493 = vadd.f32 %v473, %v492
  %494 = vmatmul.f32.gmra.mxu0 %v245
  %v495 = vpop.f32.mrf.mxu0
  %v496 = vadd.f32 %v473, %v495
  %497 = vmatmul.f32.gmra.mxu0 %v248
  %v498 = vpop.f32.mrf.mxu0
  %v499 = vadd.f32 %v473, %v498
  %500 = vdwg.mxu0
  %s501 = scalar_lea.vmem %s6, 32
  %v502 = vld [vmem:[%s501] sm:$0xff]
  %v503 = vld [vmem:[%s501 + $0x8] sm:$0xff]
  %v504 = vld [vmem:[%s501 + $0x10] sm:$0xff]
  %v505 = vld [vmem:[%s501 + $0x18] sm:$0xff]
  %s506 = scalar_lea.vmem %s9, 1
  %v507 = vld [vmem:[%s506] sm:$0x1]
  %v509 = vperm.slane %v507, 0
  %511 = vmatpush.msra.mxu0 0.0
  %512 = vmatpush.msra.mxu0 0.0
  %513 = vmatpush.msra.mxu0 0.0
  %514 = vmatpush.msra.mxu0 0.0
  %515 = vmatpush.msra.mxu0 0.0
  %516 = vmatpush.msra.mxu0 0.0
  %517 = vmatpush.msra.mxu0 0.0
  %518 = vmatpush.msra.mxu0 0.0
  %519 = vmatpush.msra.mxu0 0.0
  %520 = vmatpush.msra.mxu0 0.0
  %521 = vmatpush.msra.mxu0 0.0
  %522 = vmatpush.msra.mxu0 0.0
  %523 = vmatpush.msra.mxu0 %v505
  %524 = vmatpush.msra.mxu0 %v504
  %525 = vmatpush.msra.mxu0 %v503
  %526 = vmatpush.msra.mxu0 %v502
  %527 = vmatmul.f32.gmra.mxu0 %v242
  %v528 = vpop.f32.mrf.mxu0
  %v529 = vadd.f32 %v509, %v528
  %530 = vmatmul.f32.gmra.mxu0 %v245
  %v531 = vpop.f32.mrf.mxu0
  %v532 = vadd.f32 %v509, %v531
  %533 = vmatmul.f32.gmra.mxu0 %v248
  %v534 = vpop.f32.mrf.mxu0
  %v535 = vadd.f32 %v509, %v534
  %536 = vdwg.mxu0
  %s537 = scalar_lea.vmem %s7, 32
  %v538 = vld [vmem:[%s537] sm:$0xff]
  %v539 = vld [vmem:[%s537 + $0x8] sm:$0xff]
  %v540 = vld [vmem:[%s537 + $0x10] sm:$0xff]
  %v541 = vld [vmem:[%s537 + $0x18] sm:$0xff]
  %s542 = scalar_lea.vmem %s10, 1
  %v543 = vld [vmem:[%s542] sm:$0x1]
  %v545 = vperm.slane %v543, 0
  %547 = vmatpush.msra.mxu0 0.0
  %548 = vmatpush.msra.mxu0 0.0
  %549 = vmatpush.msra.mxu0 0.0
  %550 = vmatpush.msra.mxu0 0.0
  %551 = vmatpush.msra.mxu0 0.0
  %552 = vmatpush.msra.mxu0 0.0
  %553 = vmatpush.msra.mxu0 0.0
  %554 = vmatpush.msra.mxu0 0.0
  %555 = vmatpush.msra.mxu0 0.0
  %556 = vmatpush.msra.mxu0 0.0
  %557 = vmatpush.msra.mxu0 0.0
  %558 = vmatpush.msra.mxu0 0.0
  %559 = vmatpush.msra.mxu0 %v541
  %560 = vmatpush.msra.mxu0 %v540
  %561 = vmatpush.msra.mxu0 %v539
  %562 = vmatpush.msra.mxu0 %v538
  %563 = vmatmul.f32.gmra.mxu0 %v242
  %v564 = vpop.f32.mrf.mxu0
  %v565 = vadd.f32 %v545, %v564
  %566 = vmatmul.f32.gmra.mxu0 %v245
  %v567 = vpop.f32.mrf.mxu0
  %v568 = vadd.f32 %v545, %v567
  %569 = vmatmul.f32.gmra.mxu0 %v248
  %v570 = vpop.f32.mrf.mxu0
  %v571 = vadd.f32 %v545, %v570
  %572 = vdwg.mxu0
  %v574 = vsel %vm344, %v493, 0
  %v577 = vsel %vm344, %v496, 0
  %v580 = vsel %vm344, %v499, 0
  %v583 = vsel %vm344, %v529, 0
  %v586 = vsel %vm344, %v532, 0
  %v589 = vsel %vm344, %v535, 0
  %591 = vmatpush.xpose.msra.mxu0 0.0
  %592 = vmatpush.xpose.msra.mxu0 0.0
  %593 = vmatpush.xpose.msra.mxu0 0.0
  %594 = vmatpush.xpose.msra.mxu0 0.0
  %595 = vmatpush.xpose.msra.mxu0 0.0
  %596 = vmatpush.xpose.msra.mxu0 0.0
  %597 = vmatpush.xpose.msra.mxu0 0.0
  %598 = vmatpush.xpose.msra.mxu0 0.0
  %599 = vmatpush.xpose.msra.mxu0 0.0
  %600 = vmatpush.xpose.msra.mxu0 0.0
  %601 = vmatpush.xpose.msra.mxu0 0.0
  %602 = vmatpush.xpose.msra.mxu0 0.0
  %603 = vmatpush.xpose.msra.mxu0 0.0
  %604 = vmatpush.xpose.msra.mxu0 %v589
  %605 = vmatpush.xpose.msra.mxu0 %v586
  %606 = vmatpush.xpose.msra.mxu0 %v583
  %607 = vmatmul.f32.gmra.mxu0 %v574
  %v608 = vpop.f32.mrf.mxu0
  %v609 = vadd.f32 0.0, %v608
  %610 = vmatmul.f32.gmra.mxu0 %v577
  %v611 = vpop.f32.mrf.mxu0
  %v612 = vadd.f32 0.0, %v611
  %613 = vmatmul.f32.gmra.mxu0 %v580
  %v614 = vpop.f32.mrf.mxu0
  %v615 = vadd.f32 0.0, %v614
  %616 = vdwg.mxu0
  %v617 = vmul.f32 %v609, 0.35355338
  %v618 = vmul.f32 %v612, 0.35355338
  %v619 = vmul.f32 %v615, 0.35355338
  %v620 = vadd.f32 %v617, %v66
  %v621 = vadd.f32 %v618, %v67
  %v622 = vadd.f32 %v619, %v68
  %v623 = vsel %vm395, %v620, -inf
  %624 = vmax.xlane.f32.xlu0 %v623
  %v625 = vpop.xlane.xlu0 %624
  %v626 = vsel %vm395, %v621, -inf
  %627 = vmax.xlane.f32.xlu0 %v626
  %v628 = vpop.xlane.xlu0 %627
  %v629 = vsel %vm395, %v622, -inf
  %630 = vmax.xlane.f32.xlu0 %v629
  %v631 = vpop.xlane.xlu0 %630
  %v632 = vsub.f32 %v620, %v625
  %v633 = vsub.f32 %v621, %v628
  %v634 = vsub.f32 %v622, %v631
  %v635 = vmul.f32 %v632, 1.442695
  %v636 = vpow.pop %v635
  %v637 = vmul.f32 %v633, 1.442695
  %v638 = vpow.pop %v637
  %v639 = vmul.f32 %v634, 1.442695
  %v640 = vpow.pop %v639
  %v641 = vsel %vm395, %v636, 0.0
  %642 = vadd.xlane.f32.xlu0 %v641
  %v643 = vpop.xlane.xlu0 %642
  %v644 = vsel %vm395, %v638, 0.0
  %645 = vadd.xlane.f32.xlu0 %v644
  %v646 = vpop.xlane.xlu0 %645
  %v647 = vsel %vm395, %v640, 0.0
  %648 = vadd.xlane.f32.xlu0 %v647
  %v649 = vpop.xlane.xlu0 %648
  %v650 = vrcp.pop %v643
  %v651 = vrcp.pop %v646
  %v652 = vrcp.pop %v649
  %v653 = vmul.f32 %v636, %v650
  %v654 = vmul.f32 %v638, %v651
  %v655 = vmul.f32 %v640, %v652
  %v657 = vsel %vm395, %v653, 0
  %v660 = vsel %vm395, %v654, 0
  %v663 = vsel %vm395, %v655, 0
  %665 = vmatpush.msra.mxu0 0.0
  %666 = vmatpush.msra.mxu0 0.0
  %667 = vmatpush.msra.mxu0 0.0
  %668 = vmatpush.msra.mxu0 0.0
  %669 = vmatpush.msra.mxu0 0.0
  %670 = vmatpush.msra.mxu0 0.0
  %671 = vmatpush.msra.mxu0 0.0
  %672 = vmatpush.msra.mxu0 0.0
  %673 = vmatpush.msra.mxu0 0.0
  %674 = vmatpush.msra.mxu0 0.0
  %675 = vmatpush.msra.mxu0 0.0
  %676 = vmatpush.msra.mxu0 0.0
  %677 = vmatpush.msra.mxu0 0.0
  %678 = vmatpush.msra.mxu0 %v571
  %679 = vmatpush.msra.mxu0 %v568
  %680 = vmatpush.msra.mxu0 %v565
  %681 = vmatmul.f32.gmra.mxu0 %v657
  %v682 = vpop.f32.mrf.mxu0
  %v683 = vadd.f32 0.0, %v682
  %684 = vmatmul.f32.gmra.mxu0 %v660
  %v685 = vpop.f32.mrf.mxu0
  %v686 = vadd.f32 0.0, %v685
  %687 = vmatmul.f32.gmra.mxu0 %v663
  %v688 = vpop.f32.mrf.mxu0
  %v689 = vadd.f32 0.0, %v688
  %690 = vdwg.mxu0
  %s691 = scalar_lea.vmem %s11, 8
  %v692 = vld [vmem:[%s691] sm:$0xff]
  %v694 = vsel %vm344, %v683, 0
  %v697 = vsel %vm344, %v686, 0
  %v700 = vsel %vm344, %v689, 0
  %702 = vmatpush.msra.mxu0 0.0
  %703 = vmatpush.msra.mxu0 0.0
  %704 = vmatpush.msra.mxu0 0.0
  %705 = vmatpush.msra.mxu0 0.0
  %706 = vmatpush.msra.mxu0 0.0
  %707 = vmatpush.msra.mxu0 0.0
  %708 = vmatpush.msra.mxu0 0.0
  %709 = vmatpush.msra.mxu0 0.0
  %710 = vmatpush.msra.mxu0 0.0
  %711 = vmatpush.msra.mxu0 0.0
  %712 = vmatpush.msra.mxu0 0.0
  %713 = vmatpush.msra.mxu0 0.0
  %714 = vmatpush.msra.mxu0 0.0
  %715 = vmatpush.msra.mxu0 0.0
  %716 = vmatpush.msra.mxu0 0.0
  %717 = vmatpush.msra.mxu0 %v692
  %718 = vmatmul.f32.gmra.mxu0 %v694
  %v719 = vpop.f32.mrf.mxu0
  %v720 = vadd.f32 0.0, %v719
  %721 = vmatmul.f32.gmra.mxu0 %v697
  %v722 = vpop.f32.mrf.mxu0
  %v723 = vadd.f32 0.0, %v722
  %724 = vmatmul.f32.gmra.mxu0 %v700
  %v725 = vpop.f32.mrf.mxu0
  %v726 = vadd.f32 0.0, %v725
  %727 = vdwg.mxu0
  %v729 = vsel %vm344, %v456, 0
  %v732 = vsel %vm344, %v459, 0
  %v735 = vsel %vm344, %v462, 0
  %737 = vmatpush.msra.mxu0 0.0
  %738 = vmatpush.msra.mxu0 0.0
  %739 = vmatpush.msra.mxu0 0.0
  %740 = vmatpush.msra.mxu0 0.0
  %741 = vmatpush.msra.mxu0 0.0
  %742 = vmatpush.msra.mxu0 0.0
  %743 = vmatpush.msra.mxu0 0.0
  %744 = vmatpush.msra.mxu0 0.0
  %745 = vmatpush.msra.mxu0 0.0
  %746 = vmatpush.msra.mxu0 0.0
  %747 = vmatpush.msra.mxu0 0.0
  %748 = vmatpush.msra.mxu0 0.0
  %749 = vmatpush.msra.mxu0 0.0
  %750 = vmatpush.msra.mxu0 0.0
  %751 = vmatpush.msra.mxu0 0.0
  %752 = vmatpush.msra.mxu0 %v464
  %753 = vmatmul.f32.gmra.mxu0 %v729
  %v754 = vpop.f32.mrf.mxu0
  %v755 = vadd.f32 %v720, %v754
  %756 = vmatmul.f32.gmra.mxu0 %v732
  %v757 = vpop.f32.mrf.mxu0
  %v758 = vadd.f32 %v723, %v757
  %759 = vmatmul.f32.gmra.mxu0 %v735
  %v760 = vpop.f32.mrf.mxu0
  %v761 = vadd.f32 %v726, %v760
  %762 = vdwg.mxu0
  %s763 = scalar_lea.vmem %s5, 64
  %v764 = vld [vmem:[%s763] sm:$0xff]
  %v765 = vld [vmem:[%s763 + $0x8] sm:$0xff]
  %v766 = vld [vmem:[%s763 + $0x10] sm:$0xff]
  %v767 = vld [vmem:[%s763 + $0x18] sm:$0xff]
  %s768 = scalar_lea.vmem %s8, 2
  %v769 = vld [vmem:[%s768] sm:$0x1]
  %v771 = vperm.slane %v769, 0
  %773 = vmatpush.msra.mxu0 0.0
  %774 = vmatpush.msra.mxu0 0.0
  %775 = vmatpush.msra.mxu0 0.0
  %776 = vmatpush.msra.mxu0 0.0
  %777 = vmatpush.msra.mxu0 0.0
  %778 = vmatpush.msra.mxu0 0.0
  %779 = vmatpush.msra.mxu0 0.0
  %780 = vmatpush.msra.mxu0 0.0
  %781 = vmatpush.msra.mxu0 0.0
  %782 = vmatpush.msra.mxu0 0.0
  %783 = vmatpush.msra.mxu0 0.0
  %784 = vmatpush.msra.mxu0 0.0
  %785 = vmatpush.msra.mxu0 %v767
  %786 = vmatpush.msra.mxu0 %v766
  %787 = vmatpush.msra.mxu0 %v765
  %788 = vmatpush.msra.mxu0 %v764
  %789 = vmatmul.f32.gmra.mxu0 %v242
  %v790 = vpop.f32.mrf.mxu0
  %v791 = vadd.f32 %v771, %v790
  %792 = vmatmul.f32.gmra.mxu0 %v245
  %v793 = vpop.f32.mrf.mxu0
  %v794 = vadd.f32 %v771, %v793
  %795 = vmatmul.f32.gmra.mxu0 %v248
  %v796 = vpop.f32.mrf.mxu0
  %v797 = vadd.f32 %v771, %v796
  %798 = vdwg.mxu0
  %s799 = scalar_lea.vmem %s6, 64
  %v800 = vld [vmem:[%s799] sm:$0xff]
  %v801 = vld [vmem:[%s799 + $0x8] sm:$0xff]
  %v802 = vld [vmem:[%s799 + $0x10] sm:$0xff]
  %v803 = vld [vmem:[%s799 + $0x18] sm:$0xff]
  %s804 = scalar_lea.vmem %s9, 2
  %v805 = vld [vmem:[%s804] sm:$0x1]
  %v807 = vperm.slane %v805, 0
  %809 = vmatpush.msra.mxu0 0.0
  %810 = vmatpush.msra.mxu0 0.0
  %811 = vmatpush.msra.mxu0 0.0
  %812 = vmatpush.msra.mxu0 0.0
  %813 = vmatpush.msra.mxu0 0.0
  %814 = vmatpush.msra.mxu0 0.0
  %815 = vmatpush.msra.mxu0 0.0
  %816 = vmatpush.msra.mxu0 0.0
  %817 = vmatpush.msra.mxu0 0.0
  %818 = vmatpush.msra.mxu0 0.0
  %819 = vmatpush.msra.mxu0 0.0
  %820 = vmatpush.msra.mxu0 0.0
  %821 = vmatpush.msra.mxu0 %v803
  %822 = vmatpush.msra.mxu0 %v802
  %823 = vmatpush.msra.mxu0 %v801
  %824 = vmatpush.msra.mxu0 %v800
  %825 = vmatmul.f32.gmra.mxu0 %v242
  %v826 = vpop.f32.mrf.mxu0
  %v827 = vadd.f32 %v807, %v826
  %828 = vmatmul.f32.gmra.mxu0 %v245
  %v829 = vpop.f32.mrf.mxu0
  %v830 = vadd.f32 %v807, %v829
  %831 = vmatmul.f32.gmra.mxu0 %v248
  %v832 = vpop.f32.mrf.mxu0
  %v833 = vadd.f32 %v807, %v832
  %834 = vdwg.mxu0
  %s835 = scalar_lea.vmem %s7, 64
  %v836 = vld [vmem:[%s835] sm:$0xff]
  %v837 = vld [vmem:[%s835 + $0x8] sm:$0xff]
  %v838 = vld [vmem:[%s835 + $0x10] sm:$0xff]
  %v839 = vld [vmem:[%s835 + $0x18] sm:$0xff]
  %s840 = scalar_lea.vmem %s10, 2
  %v841 = vld [vmem:[%s840] sm:$0x1]
  %v843 = vperm.slane %v841, 0
  %845 = vmatpush.msra.mxu0 0.0
  %846 = vmatpush.msra.mxu0 0.0
  %847 = vmatpush.msra.mxu0 0.0
  %848 = vmatpush.msra.mxu0 0.0
  %849 = vmatpush.msra.mxu0 0.0
  %850 = vmatpush.msra.mxu0 0.0
  %851 = vmatpush.msra.mxu0 0.0
  %852 = vmatpush.msra.mxu0 0.0
  %853 = vmatpush.msra.mxu0 0.0
  %854 = vmatpush.msra.mxu0 0.0
  %855 = vmatpush.msra.mxu0 0.0
  %856 = vmatpush.msra.mxu0 0.0
  %857 = vmatpush.msra.mxu0 %v839
  %858 = vmatpush.msra.mxu0 %v838
  %859 = vmatpush.msra.mxu0 %v837
  %860 = vmatpush.msra.mxu0 %v836
  %861 = vmatmul.f32.gmra.mxu0 %v242
  %v862 = vpop.f32.mrf.mxu0
  %v863 = vadd.f32 %v843, %v862
  %864 = vmatmul.f32.gmra.mxu0 %v245
  %v865 = vpop.f32.mrf.mxu0
  %v866 = vadd.f32 %v843, %v865
  %867 = vmatmul.f32.gmra.mxu0 %v248
  %v868 = vpop.f32.mrf.mxu0
  %v869 = vadd.f32 %v843, %v868
  %870 = vdwg.mxu0
  %v872 = vsel %vm344, %v791, 0
  %v875 = vsel %vm344, %v794, 0
  %v878 = vsel %vm344, %v797, 0
  %v881 = vsel %vm344, %v827, 0
  %v884 = vsel %vm344, %v830, 0
  %v887 = vsel %vm344, %v833, 0
  %889 = vmatpush.xpose.msra.mxu0 0.0
  %890 = vmatpush.xpose.msra.mxu0 0.0
  %891 = vmatpush.xpose.msra.mxu0 0.0
  %892 = vmatpush.xpose.msra.mxu0 0.0
  %893 = vmatpush.xpose.msra.mxu0 0.0
  %894 = vmatpush.xpose.msra.mxu0 0.0
  %895 = vmatpush.xpose.msra.mxu0 0.0
  %896 = vmatpush.xpose.msra.mxu0 0.0
  %897 = vmatpush.xpose.msra.mxu0 0.0
  %898 = vmatpush.xpose.msra.mxu0 0.0
  %899 = vmatpush.xpose.msra.mxu0 0.0
  %900 = vmatpush.xpose.msra.mxu0 0.0
  %901 = vmatpush.xpose.msra.mxu0 0.0
  %902 = vmatpush.xpose.msra.mxu0 %v887
  %903 = vmatpush.xpose.msra.mxu0 %v884
  %904 = vmatpush.xpose.msra.mxu0 %v881
  %905 = vmatmul.f32.gmra.mxu0 %v872
  %v906 = vpop.f32.mrf.mxu0
  %v907 = vadd.f32 0.0, %v906
  %908 = vmatmul.f32.gmra.mxu0 %v875
  %v909 = vpop.f32.mrf.mxu0
  %v910 = vadd.f32 0.0, %v909
  %911 = vmatmul.f32.gmra.mxu0 %v878
  %v912 = vpop.f32.mrf.mxu0
  %v913 = vadd.f32 0.0, %v912
  %914 = vdwg.mxu0
  %v915 = vmul.f32 %v907, 0.35355338
  %v916 = vmul.f32 %v910, 0.35355338
  %v917 = vmul.f32 %v913, 0.35355338
  %v918 = vadd.f32 %v915, %v66
  %v919 = vadd.f32 %v916, %v67
  %v920 = vadd.f32 %v917, %v68
  %v921 = vsel %vm395, %v918, -inf
  %922 = vmax.xlane.f32.xlu0 %v921
  %v923 = vpop.xlane.xlu0 %922
  %v924 = vsel %vm395, %v919, -inf
  %925 = vmax.xlane.f32.xlu0 %v924
  %v926 = vpop.xlane.xlu0 %925
  %v927 = vsel %vm395, %v920, -inf
  %928 = vmax.xlane.f32.xlu0 %v927
  %v929 = vpop.xlane.xlu0 %928
  %v930 = vsub.f32 %v918, %v923
  %v931 = vsub.f32 %v919, %v926
  %v932 = vsub.f32 %v920, %v929
  %v933 = vmul.f32 %v930, 1.442695
  %v934 = vpow.pop %v933
  %v935 = vmul.f32 %v931, 1.442695
  %v936 = vpow.pop %v935
  %v937 = vmul.f32 %v932, 1.442695
  %v938 = vpow.pop %v937
  %v939 = vsel %vm395, %v934, 0.0
  %940 = vadd.xlane.f32.xlu0 %v939
  %v941 = vpop.xlane.xlu0 %940
  %v942 = vsel %vm395, %v936, 0.0
  %943 = vadd.xlane.f32.xlu0 %v942
  %v944 = vpop.xlane.xlu0 %943
  %v945 = vsel %vm395, %v938, 0.0
  %946 = vadd.xlane.f32.xlu0 %v945
  %v947 = vpop.xlane.xlu0 %946
  %v948 = vrcp.pop %v941
  %v949 = vrcp.pop %v944
  %v950 = vrcp.pop %v947
  %v951 = vmul.f32 %v934, %v948
  %v952 = vmul.f32 %v936, %v949
  %v953 = vmul.f32 %v938, %v950
  %v955 = vsel %vm395, %v951, 0
  %v958 = vsel %vm395, %v952, 0
  %v961 = vsel %vm395, %v953, 0
  %963 = vmatpush.msra.mxu0 0.0
  %964 = vmatpush.msra.mxu0 0.0
  %965 = vmatpush.msra.mxu0 0.0
  %966 = vmatpush.msra.mxu0 0.0
  %967 = vmatpush.msra.mxu0 0.0
  %968 = vmatpush.msra.mxu0 0.0
  %969 = vmatpush.msra.mxu0 0.0
  %970 = vmatpush.msra.mxu0 0.0
  %971 = vmatpush.msra.mxu0 0.0
  %972 = vmatpush.msra.mxu0 0.0
  %973 = vmatpush.msra.mxu0 0.0
  %974 = vmatpush.msra.mxu0 0.0
  %975 = vmatpush.msra.mxu0 0.0
  %976 = vmatpush.msra.mxu0 %v869
  %977 = vmatpush.msra.mxu0 %v866
  %978 = vmatpush.msra.mxu0 %v863
  %979 = vmatmul.f32.gmra.mxu0 %v955
  %v980 = vpop.f32.mrf.mxu0
  %v981 = vadd.f32 0.0, %v980
  %982 = vmatmul.f32.gmra.mxu0 %v958
  %v983 = vpop.f32.mrf.mxu0
  %v984 = vadd.f32 0.0, %v983
  %985 = vmatmul.f32.gmra.mxu0 %v961
  %v986 = vpop.f32.mrf.mxu0
  %v987 = vadd.f32 0.0, %v986
  %988 = vdwg.mxu0
  %s989 = scalar_lea.vmem %s11, 16
  %v990 = vld [vmem:[%s989] sm:$0xff]
  %v992 = vsel %vm344, %v981, 0
  %v995 = vsel %vm344, %v984, 0
  %v998 = vsel %vm344, %v987, 0
  %1000 = vmatpush.msra.mxu0 0.0
  %1001 = vmatpush.msra.mxu0 0.0
  %1002 = vmatpush.msra.mxu0 0.0
  %1003 = vmatpush.msra.mxu0 0.0
  %1004 = vmatpush.msra.mxu0 0.0
  %1005 = vmatpush.msra.mxu0 0.0
  %1006 = vmatpush.msra.mxu0 0.0
  %1007 = vmatpush.msra.mxu0 0.0
  %1008 = vmatpush.msra.mxu0 0.0
  %1009 = vmatpush.msra.mxu0 0.0
  %1010 = vmatpush.msra.mxu0 0.0
  %1011 = vmatpush.msra.mxu0 0.0
  %1012 = vmatpush.msra.mxu0 0.0
  %1013 = vmatpush.msra.mxu0 0.0
  %1014 = vmatpush.msra.mxu0 0.0
  %1015 = vmatpush.msra.mxu0 %v990
  %1016 = vmatmul.f32.gmra.mxu0 %v992
  %v1017 = vpop.f32.mrf.mxu0
  %v1018 = vadd.f32 0.0, %v1017
  %1019 = vmatmul.f32.gmra.mxu0 %v995
  %v1020 = vpop.f32.mrf.mxu0
  %v1021 = vadd.f32 0.0, %v1020
  %1022 = vmatmul.f32.gmra.mxu0 %v998
  %v1023 = vpop.f32.mrf.mxu0
  %v1024 = vadd.f32 0.0, %v1023
  %1025 = vdwg.mxu0
  %v1026 = vadd.f32 %v755, %v1018
  %v1027 = vadd.f32 %v758, %v1021
  %v1028 = vadd.f32 %v761, %v1024
  %s1029 = scalar_lea.vmem %s5, 96
  %v1030 = vld [vmem:[%s1029] sm:$0xff]
  %v1031 = vld [vmem:[%s1029 + $0x8] sm:$0xff]
  %v1032 = vld [vmem:[%s1029 + $0x10] sm:$0xff]
  %v1033 = vld [vmem:[%s1029 + $0x18] sm:$0xff]
  %s1034 = scalar_lea.vmem %s8, 3
  %v1035 = vld [vmem:[%s1034] sm:$0x1]
  %v1037 = vperm.slane %v1035, 0
  %1039 = vmatpush.msra.mxu0 0.0
  %1040 = vmatpush.msra.mxu0 0.0
  %1041 = vmatpush.msra.mxu0 0.0
  %1042 = vmatpush.msra.mxu0 0.0
  %1043 = vmatpush.msra.mxu0 0.0
  %1044 = vmatpush.msra.mxu0 0.0
  %1045 = vmatpush.msra.mxu0 0.0
  %1046 = vmatpush.msra.mxu0 0.0
  %1047 = vmatpush.msra.mxu0 0.0
  %1048 = vmatpush.msra.mxu0 0.0
  %1049 = vmatpush.msra.mxu0 0.0
  %1050 = vmatpush.msra.mxu0 0.0
  %1051 = vmatpush.msra.mxu0 %v1033
  %1052 = vmatpush.msra.mxu0 %v1032
  %1053 = vmatpush.msra.mxu0 %v1031
  %1054 = vmatpush.msra.mxu0 %v1030
  %1055 = vmatmul.f32.gmra.mxu0 %v242
  %v1056 = vpop.f32.mrf.mxu0
  %v1057 = vadd.f32 %v1037, %v1056
  %1058 = vmatmul.f32.gmra.mxu0 %v245
  %v1059 = vpop.f32.mrf.mxu0
  %v1060 = vadd.f32 %v1037, %v1059
  %1061 = vmatmul.f32.gmra.mxu0 %v248
  %v1062 = vpop.f32.mrf.mxu0
  %v1063 = vadd.f32 %v1037, %v1062
  %1064 = vdwg.mxu0
  %s1065 = scalar_lea.vmem %s6, 96
  %v1066 = vld [vmem:[%s1065] sm:$0xff]
  %v1067 = vld [vmem:[%s1065 + $0x8] sm:$0xff]
  %v1068 = vld [vmem:[%s1065 + $0x10] sm:$0xff]
  %v1069 = vld [vmem:[%s1065 + $0x18] sm:$0xff]
  %s1070 = scalar_lea.vmem %s9, 3
  %v1071 = vld [vmem:[%s1070] sm:$0x1]
  %v1073 = vperm.slane %v1071, 0
  %1075 = vmatpush.msra.mxu0 0.0
  %1076 = vmatpush.msra.mxu0 0.0
  %1077 = vmatpush.msra.mxu0 0.0
  %1078 = vmatpush.msra.mxu0 0.0
  %1079 = vmatpush.msra.mxu0 0.0
  %1080 = vmatpush.msra.mxu0 0.0
  %1081 = vmatpush.msra.mxu0 0.0
  %1082 = vmatpush.msra.mxu0 0.0
  %1083 = vmatpush.msra.mxu0 0.0
  %1084 = vmatpush.msra.mxu0 0.0
  %1085 = vmatpush.msra.mxu0 0.0
  %1086 = vmatpush.msra.mxu0 0.0
  %1087 = vmatpush.msra.mxu0 %v1069
  %1088 = vmatpush.msra.mxu0 %v1068
  %1089 = vmatpush.msra.mxu0 %v1067
  %1090 = vmatpush.msra.mxu0 %v1066
  %1091 = vmatmul.f32.gmra.mxu0 %v242
  %v1092 = vpop.f32.mrf.mxu0
  %v1093 = vadd.f32 %v1073, %v1092
  %1094 = vmatmul.f32.gmra.mxu0 %v245
  %v1095 = vpop.f32.mrf.mxu0
  %v1096 = vadd.f32 %v1073, %v1095
  %1097 = vmatmul.f32.gmra.mxu0 %v248
  %v1098 = vpop.f32.mrf.mxu0
  %v1099 = vadd.f32 %v1073, %v1098
  %1100 = vdwg.mxu0
  %s1101 = scalar_lea.vmem %s7, 96
  %v1102 = vld [vmem:[%s1101] sm:$0xff]
  %v1103 = vld [vmem:[%s1101 + $0x8] sm:$0xff]
  %v1104 = vld [vmem:[%s1101 + $0x10] sm:$0xff]
  %v1105 = vld [vmem:[%s1101 + $0x18] sm:$0xff]
  %s1106 = scalar_lea.vmem %s10, 3
  %v1107 = vld [vmem:[%s1106] sm:$0x1]
  %v1109 = vperm.slane %v1107, 0
  %1111 = vmatpush.msra.mxu0 0.0
  %1112 = vmatpush.msra.mxu0 0.0
  %1113 = vmatpush.msra.mxu0 0.0
  %1114 = vmatpush.msra.mxu0 0.0
  %1115 = vmatpush.msra.mxu0 0.0
  %1116 = vmatpush.msra.mxu0 0.0
  %1117 = vmatpush.msra.mxu0 0.0
  %1118 = vmatpush.msra.mxu0 0.0
  %1119 = vmatpush.msra.mxu0 0.0
  %1120 = vmatpush.msra.mxu0 0.0
  %1121 = vmatpush.msra.mxu0 0.0
  %1122 = vmatpush.msra.mxu0 0.0
  %1123 = vmatpush.msra.mxu0 %v1105
  %1124 = vmatpush.msra.mxu0 %v1104
  %1125 = vmatpush.msra.mxu0 %v1103
  %1126 = vmatpush.msra.mxu0 %v1102
  %1127 = vmatmul.f32.gmra.mxu0 %v242
  %v1128 = vpop.f32.mrf.mxu0
  %v1129 = vadd.f32 %v1109, %v1128
  %1130 = vmatmul.f32.gmra.mxu0 %v245
  %v1131 = vpop.f32.mrf.mxu0
  %v1132 = vadd.f32 %v1109, %v1131
  %1133 = vmatmul.f32.gmra.mxu0 %v248
  %v1134 = vpop.f32.mrf.mxu0
  %v1135 = vadd.f32 %v1109, %v1134
  %1136 = vdwg.mxu0
  %v1138 = vsel %vm344, %v1057, 0
  %v1141 = vsel %vm344, %v1060, 0
  %v1144 = vsel %vm344, %v1063, 0
  %v1147 = vsel %vm344, %v1093, 0
  %v1150 = vsel %vm344, %v1096, 0
  %v1153 = vsel %vm344, %v1099, 0
  %1155 = vmatpush.xpose.msra.mxu0 0.0
  %1156 = vmatpush.xpose.msra.mxu0 0.0
  %1157 = vmatpush.xpose.msra.mxu0 0.0
  %1158 = vmatpush.xpose.msra.mxu0 0.0
  %1159 = vmatpush.xpose.msra.mxu0 0.0
  %1160 = vmatpush.xpose.msra.mxu0 0.0
  %1161 = vmatpush.xpose.msra.mxu0 0.0
  %1162 = vmatpush.xpose.msra.mxu0 0.0
  %1163 = vmatpush.xpose.msra.mxu0 0.0
  %1164 = vmatpush.xpose.msra.mxu0 0.0
  %1165 = vmatpush.xpose.msra.mxu0 0.0
  %1166 = vmatpush.xpose.msra.mxu0 0.0
  %1167 = vmatpush.xpose.msra.mxu0 0.0
  %1168 = vmatpush.xpose.msra.mxu0 %v1153
  %1169 = vmatpush.xpose.msra.mxu0 %v1150
  %1170 = vmatpush.xpose.msra.mxu0 %v1147
  %1171 = vmatmul.f32.gmra.mxu0 %v1138
  %v1172 = vpop.f32.mrf.mxu0
  %v1173 = vadd.f32 0.0, %v1172
  %1174 = vmatmul.f32.gmra.mxu0 %v1141
  %v1175 = vpop.f32.mrf.mxu0
  %v1176 = vadd.f32 0.0, %v1175
  %1177 = vmatmul.f32.gmra.mxu0 %v1144
  %v1178 = vpop.f32.mrf.mxu0
  %v1179 = vadd.f32 0.0, %v1178
  %1180 = vdwg.mxu0
  %v1181 = vmul.f32 %v1173, 0.35355338
  %v1182 = vmul.f32 %v1176, 0.35355338
  %v1183 = vmul.f32 %v1179, 0.35355338
  %v1184 = vadd.f32 %v1181, %v66
  %v1185 = vadd.f32 %v1182, %v67
  %v1186 = vadd.f32 %v1183, %v68
  %v1187 = vsel %vm395, %v1184, -inf
  %1188 = vmax.xlane.f32.xlu0 %v1187
  %v1189 = vpop.xlane.xlu0 %1188
  %v1190 = vsel %vm395, %v1185, -inf
  %1191 = vmax.xlane.f32.xlu0 %v1190
  %v1192 = vpop.xlane.xlu0 %1191
  %v1193 = vsel %vm395, %v1186, -inf
  %1194 = vmax.xlane.f32.xlu0 %v1193
  %v1195 = vpop.xlane.xlu0 %1194
  %v1196 = vsub.f32 %v1184, %v1189
  %v1197 = vsub.f32 %v1185, %v1192
  %v1198 = vsub.f32 %v1186, %v1195
  %v1199 = vmul.f32 %v1196, 1.442695
  %v1200 = vpow.pop %v1199
  %v1201 = vmul.f32 %v1197, 1.442695
  %v1202 = vpow.pop %v1201
  %v1203 = vmul.f32 %v1198, 1.442695
  %v1204 = vpow.pop %v1203
  %v1205 = vsel %vm395, %v1200, 0.0
  %1206 = vadd.xlane.f32.xlu0 %v1205
  %v1207 = vpop.xlane.xlu0 %1206
  %v1208 = vsel %vm395, %v1202, 0.0
  %1209 = vadd.xlane.f32.xlu0 %v1208
  %v1210 = vpop.xlane.xlu0 %1209
  %v1211 = vsel %vm395, %v1204, 0.0
  %1212 = vadd.xlane.f32.xlu0 %v1211
  %v1213 = vpop.xlane.xlu0 %1212
  %v1214 = vrcp.pop %v1207
  %v1215 = vrcp.pop %v1210
  %v1216 = vrcp.pop %v1213
  %v1217 = vmul.f32 %v1200, %v1214
  %v1218 = vmul.f32 %v1202, %v1215
  %v1219 = vmul.f32 %v1204, %v1216
  %v1221 = vsel %vm395, %v1217, 0
  %v1224 = vsel %vm395, %v1218, 0
  %v1227 = vsel %vm395, %v1219, 0
  %1229 = vmatpush.msra.mxu0 0.0
  %1230 = vmatpush.msra.mxu0 0.0
  %1231 = vmatpush.msra.mxu0 0.0
  %1232 = vmatpush.msra.mxu0 0.0
  %1233 = vmatpush.msra.mxu0 0.0
  %1234 = vmatpush.msra.mxu0 0.0
  %1235 = vmatpush.msra.mxu0 0.0
  %1236 = vmatpush.msra.mxu0 0.0
  %1237 = vmatpush.msra.mxu0 0.0
  %1238 = vmatpush.msra.mxu0 0.0
  %1239 = vmatpush.msra.mxu0 0.0
  %1240 = vmatpush.msra.mxu0 0.0
  %1241 = vmatpush.msra.mxu0 0.0
  %1242 = vmatpush.msra.mxu0 %v1135
  %1243 = vmatpush.msra.mxu0 %v1132
  %1244 = vmatpush.msra.mxu0 %v1129
  %1245 = vmatmul.f32.gmra.mxu0 %v1221
  %v1246 = vpop.f32.mrf.mxu0
  %v1247 = vadd.f32 0.0, %v1246
  %1248 = vmatmul.f32.gmra.mxu0 %v1224
  %v1249 = vpop.f32.mrf.mxu0
  %v1250 = vadd.f32 0.0, %v1249
  %1251 = vmatmul.f32.gmra.mxu0 %v1227
  %v1252 = vpop.f32.mrf.mxu0
  %v1253 = vadd.f32 0.0, %v1252
  %1254 = vdwg.mxu0
  %s1255 = scalar_lea.vmem %s11, 24
  %v1256 = vld [vmem:[%s1255] sm:$0xff]
  %v1258 = vsel %vm344, %v1247, 0
  %v1261 = vsel %vm344, %v1250, 0
  %v1264 = vsel %vm344, %v1253, 0
  %1266 = vmatpush.msra.mxu0 0.0
  %1267 = vmatpush.msra.mxu0 0.0
  %1268 = vmatpush.msra.mxu0 0.0
  %1269 = vmatpush.msra.mxu0 0.0
  %1270 = vmatpush.msra.mxu0 0.0
  %1271 = vmatpush.msra.mxu0 0.0
  %1272 = vmatpush.msra.mxu0 0.0
  %1273 = vmatpush.msra.mxu0 0.0
  %1274 = vmatpush.msra.mxu0 0.0
  %1275 = vmatpush.msra.mxu0 0.0
  %1276 = vmatpush.msra.mxu0 0.0
  %1277 = vmatpush.msra.mxu0 0.0
  %1278 = vmatpush.msra.mxu0 0.0
  %1279 = vmatpush.msra.mxu0 0.0
  %1280 = vmatpush.msra.mxu0 0.0
  %1281 = vmatpush.msra.mxu0 %v1256
  %1282 = vmatmul.f32.gmra.mxu0 %v1258
  %v1283 = vpop.f32.mrf.mxu0
  %v1284 = vadd.f32 0.0, %v1283
  %1285 = vmatmul.f32.gmra.mxu0 %v1261
  %v1286 = vpop.f32.mrf.mxu0
  %v1287 = vadd.f32 0.0, %v1286
  %1288 = vmatmul.f32.gmra.mxu0 %v1264
  %v1289 = vpop.f32.mrf.mxu0
  %v1290 = vadd.f32 0.0, %v1289
  %1291 = vdwg.mxu0
  %v1292 = vadd.f32 %v1026, %v1284
  %v1293 = vadd.f32 %v1027, %v1287
  %v1294 = vadd.f32 %v1028, %v1290
  %v1295 = vadd.f32 %v155, %v1292
  %v1296 = vadd.f32 %v156, %v1293
  %v1297 = vadd.f32 %v157, %v1294
  %v1298 = vld [vmem:[%s12] sm:$0x1]
  %v1300 = vperm.slane %v1298, 0
  %v1302 = vadd.f32 %v1295, %v1300
  %v1303 = vadd.f32 %v1296, %v1300
  %v1304 = vadd.f32 %v1297, %v1300
  %v1305 = vsel %vm70, %v1302, 0.0
  %1306 = vadd.xlane.f32.xlu0 %v1305
  %v1307 = vpop.xlane.xlu0 %1306
  %v1308 = vsel %vm70, %v1303, 0.0
  %1309 = vadd.xlane.f32.xlu0 %v1308
  %v1310 = vpop.xlane.xlu0 %1309
  %v1311 = vsel %vm70, %v1304, 0.0
  %1312 = vadd.xlane.f32.xlu0 %v1311
  %v1313 = vpop.xlane.xlu0 %1312
  %v1314 = vmul.f32 %v1307, %v86
  %v1315 = vmul.f32 %v1310, %v86
  %v1316 = vmul.f32 %v1313, %v86
  %v1317 = vsub.f32 %v1302, %v1314
  %v1318 = vsub.f32 %v1303, %v1315
  %v1319 = vsub.f32 %v1304, %v1316
  %v1320 = vmul.f32 %v1317, %v1317
  %v1321 = vmul.f32 %v1318, %v1318
  %v1322 = vmul.f32 %v1319, %v1319
  %v1323 = vsel %vm70, %v1320, 0.0
  %1324 = vadd.xlane.f32.xlu0 %v1323
  %v1325 = vpop.xlane.xlu0 %1324
  %v1326 = vsel %vm70, %v1321, 0.0
  %1327 = vadd.xlane.f32.xlu0 %v1326
  %v1328 = vpop.xlane.xlu0 %1327
  %v1329 = vsel %vm70, %v1322, 0.0
  %1330 = vadd.xlane.f32.xlu0 %v1329
  %v1331 = vpop.xlane.xlu0 %1330
  %v1332 = vmul.f32 %v1325, %v86
  %v1333 = vmul.f32 %v1328, %v86
  %v1334 = vmul.f32 %v1331, %v86
  %v1335 = vadd.f32 %v1332, 1e-05
  %v1336 = vadd.f32 %v1333, 1e-05
  %v1337 = vadd.f32 %v1334, 1e-05
  %v1338 = vrsqrt.pop %v1335
  %v1339 = vmul.f32 %v1338, %v1335
  %v1340 = vmul.f32 %v1339, %v1338
  %v1341 = vmul.f32 0.5, %v1340
  %v1342 = vsub.f32 1.5, %v1341
  %v1343 = vmul.f32 %v1338, %v1342
  %vm1344 = vweird.f32 %v1335
  %vm1345 = vweird.f32 %v1338
  %vm1346 = vmor %vm1344, %vm1345
  %v1347 = vsel %vm1346, %v1338, %v1343
  %v1348 = vrsqrt.pop %v1336
  %v1349 = vmul.f32 %v1348, %v1336
  %v1350 = vmul.f32 %v1349, %v1348
  %v1351 = vmul.f32 0.5, %v1350
  %v1352 = vsub.f32 1.5, %v1351
  %v1353 = vmul.f32 %v1348, %v1352
  %vm1354 = vweird.f32 %v1336
  %vm1355 = vweird.f32 %v1348
  %vm1356 = vmor %vm1354, %vm1355
  %v1357 = vsel %vm1356, %v1348, %v1353
  %v1358 = vrsqrt.pop %v1337
  %v1359 = vmul.f32 %v1358, %v1337
  %v1360 = vmul.f32 %v1359, %v1358
  %v1361 = vmul.f32 0.5, %v1360
  %v1362 = vsub.f32 1.5, %v1361
  %v1363 = vmul.f32 %v1358, %v1362
  %vm1364 = vweird.f32 %v1337
  %vm1365 = vweird.f32 %v1358
  %vm1366 = vmor %vm1364, %vm1365
  %v1367 = vsel %vm1366, %v1358, %v1363
  %v1368 = vmul.f32 %v1317, %v1347
  %v1369 = vmul.f32 %v1318, %v1357
  %v1370 = vmul.f32 %v1319, %v1367
  %v1371 = vperm.slane %v158, 2
  %v1372 = vmul.f32 %v1368, %v1371
  %v1373 = vmul.f32 %v1369, %v1371
  %v1374 = vmul.f32 %v1370, %v1371
  %v1375 = vperm.slane %v158, 3
  %v1376 = vadd.f32 %v1372, %v1375
  %v1377 = vadd.f32 %v1373, %v1375
  %v1378 = vadd.f32 %v1374, %v1375
  %v1379 = vpack.c.bf16 %v1377, %v1376
  %v1380 = vpack.c.bf16 %v1378, %v1378
  %v1381 = vld [vmem:[%s13] sm:$0xf]
  %v1382 = vld [vmem:[%s13 + $0x4] sm:$0xf]
  %v1383 = vld [vmem:[%s13 + $0x8] sm:$0xf]
  %v1384 = vld [vmem:[%s13 + $0xc] sm:$0xf]
  %v1385 = vld [vmem:[%s14] sm:$0x1]
  %v1387 = vperm.slane %v1385, 0
  %v1393 = vunpack.c.l.b16 %v1381
  %v1394 = vunpack.c.l.b16 %v1382
  %v1395 = vunpack.c.l.b16 %v1383
  %v1396 = vunpack.c.l.b16 %v1384
  %v1397 = vpack.c.b16 %v1394, %v1393
  %v1398 = vpack.c.b16 %v1396, %v1395
  %v1402 = vsel %vm70, %v1379, 0
  %v1405 = vsel %vm70, %v1380, 0
  %1407 = vmatpush.bf16.msra.mxu0 0
  %1408 = vmatpush.bf16.msra.mxu0 0
  %1409 = vmatpush.bf16.msra.mxu0 0
  %1410 = vmatpush.bf16.msra.mxu0 0
  %1411 = vmatpush.bf16.msra.mxu0 0
  %1412 = vmatpush.bf16.msra.mxu0 0
  %1413 = vmatpush.bf16.msra.mxu0 %v1398
  %1414 = vmatpush.bf16.msra.mxu0 %v1397
  %1415 = vmatmul.bf16.gmra.mxu0 %v1402
  %v1416 = vpop.f32.mrf.mxu0
  %v1417 = vadd.f32 %v1387, %v1416
  %v1418 = vpop.f32.mrf.mxu0
  %v1419 = vadd.f32 %v1387, %v1418
  %1420 = vmatmul.bf16.gmra.mxu0 %v1405
  %v1421 = vpop.f32.mrf.mxu0
  %v1422 = vadd.f32 %v1387, %v1421
  %v1423 = vpop.f32.mrf.mxu0
  %1424 = vdwg.mxu0
  %v1425 = vmul.f32 %v1417, 0.5
  %v1426 = vmul.f32 %v1419, 0.5
  %v1427 = vmul.f32 %v1422, 0.5
  %v1428 = vmul.f32 %v1417, %v1417
  %v1429 = vmul.f32 %v1419, %v1419
  %v1430 = vmul.f32 %v1422, %v1422
  %v1431 = vmul.f32 %v1417, %v1428
  %v1432 = vmul.f32 %v1419, %v1429
  %v1433 = vmul.f32 %v1422, %v1430
  %v1434 = vmul.f32 %v1431, 0.044715
  %v1435 = vmul.f32 %v1432, 0.044715
  %v1436 = vmul.f32 %v1433, 0.044715
  %v1437 = vadd.f32 %v1417, %v1434
  %v1438 = vadd.f32 %v1419, %v1435
  %v1439 = vadd.f32 %v1422, %v1436
  %v1440 = vmul.f32 %v1437, 0.7978846
  %v1441 = vmul.f32 %v1438, 0.7978846
  %v1442 = vmul.f32 %v1439, 0.7978846
  %v1443 = vtanh.pop %v1440
  %v1444 = vtanh.pop %v1441
  %v1445 = vtanh.pop %v1442
  %v1446 = vadd.f32 %v1443, 1.0
  %v1447 = vadd.f32 %v1444, 1.0
  %v1448 = vadd.f32 %v1445, 1.0
  %v1449 = vmul.f32 %v1425, %v1446
  %v1450 = vmul.f32 %v1426, %v1447
  %v1451 = vmul.f32 %v1427, %v1448
  %v1452 = vpack.c.bf16 %v1450, %v1449
  %v1453 = vpack.c.bf16 %v1451, %v1451
  %v1454 = vld [vmem:[%s15] sm:$0xf]
  %v1455 = vld [vmem:[%s15 + $0x4] sm:$0xf]
  %v1456 = vld [vmem:[%s15 + $0x8] sm:$0xf]
  %v1457 = vld [vmem:[%s15 + $0xc] sm:$0xf]
  %v1458 = vld [vmem:[%s15 + $0x10] sm:$0xf]
  %v1459 = vld [vmem:[%s15 + $0x14] sm:$0xf]
  %v1460 = vld [vmem:[%s15 + $0x18] sm:$0xf]
  %v1461 = vld [vmem:[%s15 + $0x1c] sm:$0xf]
  %v1462 = vld [vmem:[%s15 + $0x20] sm:$0xf]
  %v1463 = vld [vmem:[%s15 + $0x24] sm:$0xf]
  %v1464 = vld [vmem:[%s15 + $0x28] sm:$0xf]
  %v1465 = vld [vmem:[%s15 + $0x2c] sm:$0xf]
  %v1466 = vld [vmem:[%s15 + $0x30] sm:$0xf]
  %v1467 = vld [vmem:[%s15 + $0x34] sm:$0xf]
  %v1468 = vld [vmem:[%s15 + $0x38] sm:$0xf]
  %v1469 = vld [vmem:[%s15 + $0x3c] sm:$0xf]
  %v1486 = vunpack.c.l.b16 %v1454
  %v1487 = vunpack.c.l.b16 %v1455
  %v1488 = vunpack.c.l.b16 %v1456
  %v1489 = vunpack.c.l.b16 %v1457
  %v1490 = vunpack.c.l.b16 %v1458
  %v1491 = vunpack.c.l.b16 %v1459
  %v1492 = vunpack.c.l.b16 %v1460
  %v1493 = vunpack.c.l.b16 %v1461
  %v1494 = vunpack.c.l.b16 %v1462
  %v1495 = vunpack.c.l.b16 %v1463
  %v1496 = vunpack.c.l.b16 %v1464
  %v1497 = vunpack.c.l.b16 %v1465
  %v1498 = vunpack.c.l.b16 %v1466
  %v1499 = vunpack.c.l.b16 %v1467
  %v1500 = vunpack.c.l.b16 %v1468
  %v1501 = vunpack.c.l.b16 %v1469
  %v1502 = vpack.c.b16 %v1487, %v1486
  %v1503 = vpack.c.b16 %v1489, %v1488
  %v1504 = vpack.c.b16 %v1491, %v1490
  %v1505 = vpack.c.b16 %v1493, %v1492
  %v1506 = vpack.c.b16 %v1495, %v1494
  %v1507 = vpack.c.b16 %v1497, %v1496
  %v1508 = vpack.c.b16 %v1499, %v1498
  %v1509 = vpack.c.b16 %v1501, %v1500
  %1518 = vmatpush.bf16.msra.mxu0 %v1509
  %1519 = vmatpush.bf16.msra.mxu0 %v1508
  %1520 = vmatpush.bf16.msra.mxu0 %v1507
  %1521 = vmatpush.bf16.msra.mxu0 %v1506
  %1522 = vmatpush.bf16.msra.mxu0 %v1505
  %1523 = vmatpush.bf16.msra.mxu0 %v1504
  %1524 = vmatpush.bf16.msra.mxu0 %v1503
  %1525 = vmatpush.bf16.msra.mxu0 %v1502
  %1526 = vmatmul.bf16.gmra.mxu0 %v1452
  %v1527 = vpop.f32.mrf.mxu0
  %v1528 = vadd.f32 0.0, %v1527
  %v1529 = vpop.f32.mrf.mxu0
  %v1530 = vadd.f32 0.0, %v1529
  %1531 = vmatmul.bf16.gmra.mxu0 %v1453
  %v1532 = vpop.f32.mrf.mxu0
  %v1533 = vadd.f32 0.0, %v1532
  %v1534 = vpop.f32.mrf.mxu0
  %1535 = vdwg.mxu0
  %v1536 = vadd.f32 %v1302, %v1528
  %v1537 = vadd.f32 %v1303, %v1530
  %v1538 = vadd.f32 %v1304, %v1533
  %v1539 = vld [vmem:[%s16] sm:$0x1]
  %v1541 = vperm.slane %v1539, 0
  %v1543 = vadd.f32 %v1536, %v1541
  %v1544 = vadd.f32 %v1537, %v1541
  %v1545 = vadd.f32 %v1538, %v1541
  %s1546 = scalar_lea.vmem %s4, 4
  %v1547 = vld [vmem:[%s1546] sm:$0xf]
  %v1548 = vsel %vm70, %v1543, 0.0
  %1549 = vadd.xlane.f32.xlu0 %v1548
  %v1550 = vpop.xlane.xlu0 %1549
  %v1551 = vsel %vm70, %v1544, 0.0
  %1552 = vadd.xlane.f32.xlu0 %v1551
  %v1553 = vpop.xlane.xlu0 %1552
  %v1554 = vsel %vm70, %v1545, 0.0
  %1555 = vadd.xlane.f32.xlu0 %v1554
  %v1556 = vpop.xlane.xlu0 %1555
  %v1557 = vmul.f32 %v1550, %v86
  %v1558 = vmul.f32 %v1553, %v86
  %v1559 = vmul.f32 %v1556, %v86
  %v1560 = vsub.f32 %v1543, %v1557
  %v1561 = vsub.f32 %v1544, %v1558
  %v1562 = vsub.f32 %v1545, %v1559
  %v1563 = vmul.f32 %v1560, %v1560
  %v1564 = vmul.f32 %v1561, %v1561
  %v1565 = vmul.f32 %v1562, %v1562
  %v1566 = vsel %vm70, %v1563, 0.0
  %1567 = vadd.xlane.f32.xlu0 %v1566
  %v1568 = vpop.xlane.xlu0 %1567
  %v1569 = vsel %vm70, %v1564, 0.0
  %1570 = vadd.xlane.f32.xlu0 %v1569
  %v1571 = vpop.xlane.xlu0 %1570
  %v1572 = vsel %vm70, %v1565, 0.0
  %1573 = vadd.xlane.f32.xlu0 %v1572
  %v1574 = vpop.xlane.xlu0 %1573
  %v1575 = vmul.f32 %v1568, %v86
  %v1576 = vmul.f32 %v1571, %v86
  %v1577 = vmul.f32 %v1574, %v86
  %v1578 = vadd.f32 %v1575, 1e-05
  %v1579 = vadd.f32 %v1576, 1e-05
  %v1580 = vadd.f32 %v1577, 1e-05
  %v1581 = vrsqrt.pop %v1578
  %v1582 = vmul.f32 %v1581, %v1578
  %v1583 = vmul.f32 %v1582, %v1581
  %v1584 = vmul.f32 0.5, %v1583
  %v1585 = vsub.f32 1.5, %v1584
  %v1586 = vmul.f32 %v1581, %v1585
  %vm1587 = vweird.f32 %v1578
  %vm1588 = vweird.f32 %v1581
  %vm1589 = vmor %vm1587, %vm1588
  %v1590 = vsel %vm1589, %v1581, %v1586
  %v1591 = vrsqrt.pop %v1579
  %v1592 = vmul.f32 %v1591, %v1579
  %v1593 = vmul.f32 %v1592, %v1591
  %v1594 = vmul.f32 0.5, %v1593
  %v1595 = vsub.f32 1.5, %v1594
  %v1596 = vmul.f32 %v1591, %v1595
  %vm1597 = vweird.f32 %v1579
  %vm1598 = vweird.f32 %v1591
  %vm1599 = vmor %vm1597, %vm1598
  %v1600 = vsel %vm1599, %v1591, %v1596
  %v1601 = vrsqrt.pop %v1580
  %v1602 = vmul.f32 %v1601, %v1580
  %v1603 = vmul.f32 %v1602, %v1601
  %v1604 = vmul.f32 0.5, %v1603
  %v1605 = vsub.f32 1.5, %v1604
  %v1606 = vmul.f32 %v1601, %v1605
  %vm1607 = vweird.f32 %v1580
  %vm1608 = vweird.f32 %v1601
  %vm1609 = vmor %vm1607, %vm1608
  %v1610 = vsel %vm1609, %v1601, %v1606
  %v1611 = vmul.f32 %v1560, %v1590
  %v1612 = vmul.f32 %v1561, %v1600
  %v1613 = vmul.f32 %v1562, %v1610
  %v1614 = vperm.slane %v1547, 0
  %v1615 = vmul.f32 %v1611, %v1614
  %v1616 = vmul.f32 %v1612, %v1614
  %v1617 = vmul.f32 %v1613, %v1614
  %v1618 = vperm.slane %v1547, 1
  %v1619 = vadd.f32 %v1615, %v1618
  %v1620 = vadd.f32 %v1616, %v1618
  %v1621 = vadd.f32 %v1617, %v1618
  %s1622 = scalar_lea.vmem %s5, 128
  %v1623 = vld [vmem:[%s1622] sm:$0xff]
  %v1624 = vld [vmem:[%s1622 + $0x8] sm:$0xff]
  %v1625 = vld [vmem:[%s1622 + $0x10] sm:$0xff]
  %v1626 = vld [vmem:[%s1622 + $0x18] sm:$0xff]
  %s1627 = scalar_lea.vmem %s8, 4
  %v1628 = vld [vmem:[%s1627] sm:$0x1]
  %v1630 = vperm.slane %v1628, 0
  %v1633 = vsel %vm70, %v1619, 0
  %v1636 = vsel %vm70, %v1620, 0
  %v1639 = vsel %vm70, %v1621, 0
  %1641 = vmatpush.msra.mxu0 0.0
  %1642 = vmatpush.msra.mxu0 0.0
  %1643 = vmatpush.msra.mxu0 0.0
  %1644 = vmatpush.msra.mxu0 0.0
  %1645 = vmatpush.msra.mxu0 0.0
  %1646 = vmatpush.msra.mxu0 0.0
  %1647 = vmatpush.msra.mxu0 0.0
  %1648 = vmatpush.msra.mxu0 0.0
  %1649 = vmatpush.msra.mxu0 0.0
  %1650 = vmatpush.msra.mxu0 0.0
  %1651 = vmatpush.msra.mxu0 0.0
  %1652 = vmatpush.msra.mxu0 0.0
  %1653 = vmatpush.msra.mxu0 %v1626
  %1654 = vmatpush.msra.mxu0 %v1625
  %1655 = vmatpush.msra.mxu0 %v1624
  %1656 = vmatpush.msra.mxu0 %v1623
  %1657 = vmatmul.f32.gmra.mxu0 %v1633
  %v1658 = vpop.f32.mrf.mxu0
  %v1659 = vadd.f32 %v1630, %v1658
  %1660 = vmatmul.f32.gmra.mxu0 %v1636
  %v1661 = vpop.f32.mrf.mxu0
  %v1662 = vadd.f32 %v1630, %v1661
  %1663 = vmatmul.f32.gmra.mxu0 %v1639
  %v1664 = vpop.f32.mrf.mxu0
  %v1665 = vadd.f32 %v1630, %v1664
  %1666 = vdwg.mxu0
  %s1667 = scalar_lea.vmem %s6, 128
  %v1668 = vld [vmem:[%s1667] sm:$0xff]
  %v1669 = vld [vmem:[%s1667 + $0x8] sm:$0xff]
  %v1670 = vld [vmem:[%s1667 + $0x10] sm:$0xff]
  %v1671 = vld [vmem:[%s1667 + $0x18] sm:$0xff]
  %s1672 = scalar_lea.vmem %s9, 4
  %v1673 = vld [vmem:[%s1672] sm:$0x1]
  %v1675 = vperm.slane %v1673, 0
  %1677 = vmatpush.msra.mxu0 0.0
  %1678 = vmatpush.msra.mxu0 0.0
  %1679 = vmatpush.msra.mxu0 0.0
  %1680 = vmatpush.msra.mxu0 0.0
  %1681 = vmatpush.msra.mxu0 0.0
  %1682 = vmatpush.msra.mxu0 0.0
  %1683 = vmatpush.msra.mxu0 0.0
  %1684 = vmatpush.msra.mxu0 0.0
  %1685 = vmatpush.msra.mxu0 0.0
  %1686 = vmatpush.msra.mxu0 0.0
  %1687 = vmatpush.msra.mxu0 0.0
  %1688 = vmatpush.msra.mxu0 0.0
  %1689 = vmatpush.msra.mxu0 %v1671
  %1690 = vmatpush.msra.mxu0 %v1670
  %1691 = vmatpush.msra.mxu0 %v1669
  %1692 = vmatpush.msra.mxu0 %v1668
  %1693 = vmatmul.f32.gmra.mxu0 %v1633
  %v1694 = vpop.f32.mrf.mxu0
  %v1695 = vadd.f32 %v1675, %v1694
  %1696 = vmatmul.f32.gmra.mxu0 %v1636
  %v1697 = vpop.f32.mrf.mxu0
  %v1698 = vadd.f32 %v1675, %v1697
  %1699 = vmatmul.f32.gmra.mxu0 %v1639
  %v1700 = vpop.f32.mrf.mxu0
  %v1701 = vadd.f32 %v1675, %v1700
  %1702 = vdwg.mxu0
  %s1703 = scalar_lea.vmem %s7, 128
  %v1704 = vld [vmem:[%s1703] sm:$0xff]
  %v1705 = vld [vmem:[%s1703 + $0x8] sm:$0xff]
  %v1706 = vld [vmem:[%s1703 + $0x10] sm:$0xff]
  %v1707 = vld [vmem:[%s1703 + $0x18] sm:$0xff]
  %s1708 = scalar_lea.vmem %s10, 4
  %v1709 = vld [vmem:[%s1708] sm:$0x1]
  %v1711 = vperm.slane %v1709, 0
  %1713 = vmatpush.msra.mxu0 0.0
  %1714 = vmatpush.msra.mxu0 0.0
  %1715 = vmatpush.msra.mxu0 0.0
  %1716 = vmatpush.msra.mxu0 0.0
  %1717 = vmatpush.msra.mxu0 0.0
  %1718 = vmatpush.msra.mxu0 0.0
  %1719 = vmatpush.msra.mxu0 0.0
  %1720 = vmatpush.msra.mxu0 0.0
  %1721 = vmatpush.msra.mxu0 0.0
  %1722 = vmatpush.msra.mxu0 0.0
  %1723 = vmatpush.msra.mxu0 0.0
  %1724 = vmatpush.msra.mxu0 0.0
  %1725 = vmatpush.msra.mxu0 %v1707
  %1726 = vmatpush.msra.mxu0 %v1706
  %1727 = vmatpush.msra.mxu0 %v1705
  %1728 = vmatpush.msra.mxu0 %v1704
  %1729 = vmatmul.f32.gmra.mxu0 %v1633
  %v1730 = vpop.f32.mrf.mxu0
  %v1731 = vadd.f32 %v1711, %v1730
  %1732 = vmatmul.f32.gmra.mxu0 %v1636
  %v1733 = vpop.f32.mrf.mxu0
  %v1734 = vadd.f32 %v1711, %v1733
  %1735 = vmatmul.f32.gmra.mxu0 %v1639
  %v1736 = vpop.f32.mrf.mxu0
  %v1737 = vadd.f32 %v1711, %v1736
  %1738 = vdwg.mxu0
  %v1740 = vsel %vm344, %v1659, 0
  %v1743 = vsel %vm344, %v1662, 0
  %v1746 = vsel %vm344, %v1665, 0
  %v1749 = vsel %vm344, %v1695, 0
  %v1752 = vsel %vm344, %v1698, 0
  %v1755 = vsel %vm344, %v1701, 0
  %1757 = vmatpush.xpose.msra.mxu0 0.0
  %1758 = vmatpush.xpose.msra.mxu0 0.0
  %1759 = vmatpush.xpose.msra.mxu0 0.0
  %1760 = vmatpush.xpose.msra.mxu0 0.0
  %1761 = vmatpush.xpose.msra.mxu0 0.0
  %1762 = vmatpush.xpose.msra.mxu0 0.0
  %1763 = vmatpush.xpose.msra.mxu0 0.0
  %1764 = vmatpush.xpose.msra.mxu0 0.0
  %1765 = vmatpush.xpose.msra.mxu0 0.0
  %1766 = vmatpush.xpose.msra.mxu0 0.0
  %1767 = vmatpush.xpose.msra.mxu0 0.0
  %1768 = vmatpush.xpose.msra.mxu0 0.0
  %1769 = vmatpush.xpose.msra.mxu0 0.0
  %1770 = vmatpush.xpose.msra.mxu0 %v1755
  %1771 = vmatpush.xpose.msra.mxu0 %v1752
  %1772 = vmatpush.xpose.msra.mxu0 %v1749
  %1773 = vmatmul.f32.gmra.mxu0 %v1740
  %v1774 = vpop.f32.mrf.mxu0
  %v1775 = vadd.f32 0.0, %v1774
  %1776 = vmatmul.f32.gmra.mxu0 %v1743
  %v1777 = vpop.f32.mrf.mxu0
  %v1778 = vadd.f32 0.0, %v1777
  %1779 = vmatmul.f32.gmra.mxu0 %v1746
  %v1780 = vpop.f32.mrf.mxu0
  %v1781 = vadd.f32 0.0, %v1780
  %1782 = vdwg.mxu0
  %v1783 = vmul.f32 %v1775, 0.35355338
  %v1784 = vmul.f32 %v1778, 0.35355338
  %v1785 = vmul.f32 %v1781, 0.35355338
  %v1786 = vadd.f32 %v1783, %v66
  %v1787 = vadd.f32 %v1784, %v67
  %v1788 = vadd.f32 %v1785, %v68
  %v1789 = vsel %vm395, %v1786, -inf
  %1790 = vmax.xlane.f32.xlu0 %v1789
  %v1791 = vpop.xlane.xlu0 %1790
  %v1792 = vsel %vm395, %v1787, -inf
  %1793 = vmax.xlane.f32.xlu0 %v1792
  %v1794 = vpop.xlane.xlu0 %1793
  %v1795 = vsel %vm395, %v1788, -inf
  %1796 = vmax.xlane.f32.xlu0 %v1795
  %v1797 = vpop.xlane.xlu0 %1796
  %v1798 = vsub.f32 %v1786, %v1791
  %v1799 = vsub.f32 %v1787, %v1794
  %v1800 = vsub.f32 %v1788, %v1797
  %v1801 = vmul.f32 %v1798, 1.442695
  %v1802 = vpow.pop %v1801
  %v1803 = vmul.f32 %v1799, 1.442695
  %v1804 = vpow.pop %v1803
  %v1805 = vmul.f32 %v1800, 1.442695
  %v1806 = vpow.pop %v1805
  %v1807 = vsel %vm395, %v1802, 0.0
  %1808 = vadd.xlane.f32.xlu0 %v1807
  %v1809 = vpop.xlane.xlu0 %1808
  %v1810 = vsel %vm395, %v1804, 0.0
  %1811 = vadd.xlane.f32.xlu0 %v1810
  %v1812 = vpop.xlane.xlu0 %1811
  %v1813 = vsel %vm395, %v1806, 0.0
  %1814 = vadd.xlane.f32.xlu0 %v1813
  %v1815 = vpop.xlane.xlu0 %1814
  %v1816 = vrcp.pop %v1809
  %v1817 = vrcp.pop %v1812
  %v1818 = vrcp.pop %v1815
  %v1819 = vmul.f32 %v1802, %v1816
  %v1820 = vmul.f32 %v1804, %v1817
  %v1821 = vmul.f32 %v1806, %v1818
  %v1823 = vsel %vm395, %v1819, 0
  %v1826 = vsel %vm395, %v1820, 0
  %v1829 = vsel %vm395, %v1821, 0
  %1831 = vmatpush.msra.mxu0 0.0
  %1832 = vmatpush.msra.mxu0 0.0
  %1833 = vmatpush.msra.mxu0 0.0
  %1834 = vmatpush.msra.mxu0 0.0
  %1835 = vmatpush.msra.mxu0 0.0
  %1836 = vmatpush.msra.mxu0 0.0
  %1837 = vmatpush.msra.mxu0 0.0
  %1838 = vmatpush.msra.mxu0 0.0
  %1839 = vmatpush.msra.mxu0 0.0
  %1840 = vmatpush.msra.mxu0 0.0
  %1841 = vmatpush.msra.mxu0 0.0
  %1842 = vmatpush.msra.mxu0 0.0
  %1843 = vmatpush.msra.mxu0 0.0
  %1844 = vmatpush.msra.mxu0 %v1737
  %1845 = vmatpush.msra.mxu0 %v1734
  %1846 = vmatpush.msra.mxu0 %v1731
  %1847 = vmatmul.f32.gmra.mxu0 %v1823
  %v1848 = vpop.f32.mrf.mxu0
  %v1849 = vadd.f32 0.0, %v1848
  %1850 = vmatmul.f32.gmra.mxu0 %v1826
  %v1851 = vpop.f32.mrf.mxu0
  %v1852 = vadd.f32 0.0, %v1851
  %1853 = vmatmul.f32.gmra.mxu0 %v1829
  %v1854 = vpop.f32.mrf.mxu0
  %v1855 = vadd.f32 0.0, %v1854
  %1856 = vdwg.mxu0
  %s1857 = scalar_lea.vmem %s11, 32
  %v1858 = vld [vmem:[%s1857] sm:$0xff]
  %s1859 = scalar_lea.vmem %s5, 160
  %v1860 = vld [vmem:[%s1859] sm:$0xff]
  %v1861 = vld [vmem:[%s1859 + $0x8] sm:$0xff]
  %v1862 = vld [vmem:[%s1859 + $0x10] sm:$0xff]
  %v1863 = vld [vmem:[%s1859 + $0x18] sm:$0xff]
  %s1864 = scalar_lea.vmem %s8, 5
  %v1865 = vld [vmem:[%s1864] sm:$0x1]
  %v1867 = vperm.slane %v1865, 0
  %1869 = vmatpush.msra.mxu0 0.0
  %1870 = vmatpush.msra.mxu0 0.0
  %1871 = vmatpush.msra.mxu0 0.0
  %1872 = vmatpush.msra.mxu0 0.0
  %1873 = vmatpush.msra.mxu0 0.0
  %1874 = vmatpush.msra.mxu0 0.0
  %1875 = vmatpush.msra.mxu0 0.0
  %1876 = vmatpush.msra.mxu0 0.0
  %1877 = vmatpush.msra.mxu0 0.0
  %1878 = vmatpush.msra.mxu0 0.0
  %1879 = vmatpush.msra.mxu0 0.0
  %1880 = vmatpush.msra.mxu0 0.0
  %1881 = vmatpush.msra.mxu0 %v1863
  %1882 = vmatpush.msra.mxu0 %v1862
  %1883 = vmatpush.msra.mxu0 %v1861
  %1884 = vmatpush.msra.mxu0 %v1860
  %1885 = vmatmul.f32.gmra.mxu0 %v1633
  %v1886 = vpop.f32.mrf.mxu0
  %v1887 = vadd.f32 %v1867, %v1886
  %1888 = vmatmul.f32.gmra.mxu0 %v1636
  %v1889 = vpop.f32.mrf.mxu0
  %v1890 = vadd.f32 %v1867, %v1889
  %1891 = vmatmul.f32.gmra.mxu0 %v1639
  %v1892 = vpop.f32.mrf.mxu0
  %v1893 = vadd.f32 %v1867, %v1892
  %1894 = vdwg.mxu0
  %s1895 = scalar_lea.vmem %s6, 160
  %v1896 = vld [vmem:[%s1895] sm:$0xff]
  %v1897 = vld [vmem:[%s1895 + $0x8] sm:$0xff]
  %v1898 = vld [vmem:[%s1895 + $0x10] sm:$0xff]
  %v1899 = vld [vmem:[%s1895 + $0x18] sm:$0xff]
  %s1900 = scalar_lea.vmem %s9, 5
  %v1901 = vld [vmem:[%s1900] sm:$0x1]
  %v1903 = vperm.slane %v1901, 0
  %1905 = vmatpush.msra.mxu0 0.0
  %1906 = vmatpush.msra.mxu0 0.0
  %1907 = vmatpush.msra.mxu0 0.0
  %1908 = vmatpush.msra.mxu0 0.0
  %1909 = vmatpush.msra.mxu0 0.0
  %1910 = vmatpush.msra.mxu0 0.0
  %1911 = vmatpush.msra.mxu0 0.0
  %1912 = vmatpush.msra.mxu0 0.0
  %1913 = vmatpush.msra.mxu0 0.0
  %1914 = vmatpush.msra.mxu0 0.0
  %1915 = vmatpush.msra.mxu0 0.0
  %1916 = vmatpush.msra.mxu0 0.0
  %1917 = vmatpush.msra.mxu0 %v1899
  %1918 = vmatpush.msra.mxu0 %v1898
  %1919 = vmatpush.msra.mxu0 %v1897
  %1920 = vmatpush.msra.mxu0 %v1896
  %1921 = vmatmul.f32.gmra.mxu0 %v1633
  %v1922 = vpop.f32.mrf.mxu0
  %v1923 = vadd.f32 %v1903, %v1922
  %1924 = vmatmul.f32.gmra.mxu0 %v1636
  %v1925 = vpop.f32.mrf.mxu0
  %v1926 = vadd.f32 %v1903, %v1925
  %1927 = vmatmul.f32.gmra.mxu0 %v1639
  %v1928 = vpop.f32.mrf.mxu0
  %v1929 = vadd.f32 %v1903, %v1928
  %1930 = vdwg.mxu0
  %s1931 = scalar_lea.vmem %s7, 160
  %v1932 = vld [vmem:[%s1931] sm:$0xff]
  %v1933 = vld [vmem:[%s1931 + $0x8] sm:$0xff]
  %v1934 = vld [vmem:[%s1931 + $0x10] sm:$0xff]
  %v1935 = vld [vmem:[%s1931 + $0x18] sm:$0xff]
  %s1936 = scalar_lea.vmem %s10, 5
  %v1937 = vld [vmem:[%s1936] sm:$0x1]
  %v1939 = vperm.slane %v1937, 0
  %1941 = vmatpush.msra.mxu0 0.0
  %1942 = vmatpush.msra.mxu0 0.0
  %1943 = vmatpush.msra.mxu0 0.0
  %1944 = vmatpush.msra.mxu0 0.0
  %1945 = vmatpush.msra.mxu0 0.0
  %1946 = vmatpush.msra.mxu0 0.0
  %1947 = vmatpush.msra.mxu0 0.0
  %1948 = vmatpush.msra.mxu0 0.0
  %1949 = vmatpush.msra.mxu0 0.0
  %1950 = vmatpush.msra.mxu0 0.0
  %1951 = vmatpush.msra.mxu0 0.0
  %1952 = vmatpush.msra.mxu0 0.0
  %1953 = vmatpush.msra.mxu0 %v1935
  %1954 = vmatpush.msra.mxu0 %v1934
  %1955 = vmatpush.msra.mxu0 %v1933
  %1956 = vmatpush.msra.mxu0 %v1932
  %1957 = vmatmul.f32.gmra.mxu0 %v1633
  %v1958 = vpop.f32.mrf.mxu0
  %v1959 = vadd.f32 %v1939, %v1958
  %1960 = vmatmul.f32.gmra.mxu0 %v1636
  %v1961 = vpop.f32.mrf.mxu0
  %v1962 = vadd.f32 %v1939, %v1961
  %1963 = vmatmul.f32.gmra.mxu0 %v1639
  %v1964 = vpop.f32.mrf.mxu0
  %v1965 = vadd.f32 %v1939, %v1964
  %1966 = vdwg.mxu0
  %v1968 = vsel %vm344, %v1887, 0
  %v1971 = vsel %vm344, %v1890, 0
  %v1974 = vsel %vm344, %v1893, 0
  %v1977 = vsel %vm344, %v1923, 0
  %v1980 = vsel %vm344, %v1926, 0
  %v1983 = vsel %vm344, %v1929, 0
  %1985 = vmatpush.xpose.msra.mxu0 0.0
  %1986 = vmatpush.xpose.msra.mxu0 0.0
  %1987 = vmatpush.xpose.msra.mxu0 0.0
  %1988 = vmatpush.xpose.msra.mxu0 0.0
  %1989 = vmatpush.xpose.msra.mxu0 0.0
  %1990 = vmatpush.xpose.msra.mxu0 0.0
  %1991 = vmatpush.xpose.msra.mxu0 0.0
  %1992 = vmatpush.xpose.msra.mxu0 0.0
  %1993 = vmatpush.xpose.msra.mxu0 0.0
  %1994 = vmatpush.xpose.msra.mxu0 0.0
  %1995 = vmatpush.xpose.msra.mxu0 0.0
  %1996 = vmatpush.xpose.msra.mxu0 0.0
  %1997 = vmatpush.xpose.msra.mxu0 0.0
  %1998 = vmatpush.xpose.msra.mxu0 %v1983
  %1999 = vmatpush.xpose.msra.mxu0 %v1980
  %2000 = vmatpush.xpose.msra.mxu0 %v1977
  %2001 = vmatmul.f32.gmra.mxu0 %v1968
  %v2002 = vpop.f32.mrf.mxu0
  %v2003 = vadd.f32 0.0, %v2002
  %2004 = vmatmul.f32.gmra.mxu0 %v1971
  %v2005 = vpop.f32.mrf.mxu0
  %v2006 = vadd.f32 0.0, %v2005
  %2007 = vmatmul.f32.gmra.mxu0 %v1974
  %v2008 = vpop.f32.mrf.mxu0
  %v2009 = vadd.f32 0.0, %v2008
  %2010 = vdwg.mxu0
  %v2011 = vmul.f32 %v2003, 0.35355338
  %v2012 = vmul.f32 %v2006, 0.35355338
  %v2013 = vmul.f32 %v2009, 0.35355338
  %v2014 = vadd.f32 %v2011, %v66
  %v2015 = vadd.f32 %v2012, %v67
  %v2016 = vadd.f32 %v2013, %v68
  %v2017 = vsel %vm395, %v2014, -inf
  %2018 = vmax.xlane.f32.xlu0 %v2017
  %v2019 = vpop.xlane.xlu0 %2018
  %v2020 = vsel %vm395, %v2015, -inf
  %2021 = vmax.xlane.f32.xlu0 %v2020
  %v2022 = vpop.xlane.xlu0 %2021
  %v2023 = vsel %vm395, %v2016, -inf
  %2024 = vmax.xlane.f32.xlu0 %v2023
  %v2025 = vpop.xlane.xlu0 %2024
  %v2026 = vsub.f32 %v2014, %v2019
  %v2027 = vsub.f32 %v2015, %v2022
  %v2028 = vsub.f32 %v2016, %v2025
  %v2029 = vmul.f32 %v2026, 1.442695
  %v2030 = vpow.pop %v2029
  %v2031 = vmul.f32 %v2027, 1.442695
  %v2032 = vpow.pop %v2031
  %v2033 = vmul.f32 %v2028, 1.442695
  %v2034 = vpow.pop %v2033
  %v2035 = vsel %vm395, %v2030, 0.0
  %2036 = vadd.xlane.f32.xlu0 %v2035
  %v2037 = vpop.xlane.xlu0 %2036
  %v2038 = vsel %vm395, %v2032, 0.0
  %2039 = vadd.xlane.f32.xlu0 %v2038
  %v2040 = vpop.xlane.xlu0 %2039
  %v2041 = vsel %vm395, %v2034, 0.0
  %2042 = vadd.xlane.f32.xlu0 %v2041
  %v2043 = vpop.xlane.xlu0 %2042
  %v2044 = vrcp.pop %v2037
  %v2045 = vrcp.pop %v2040
  %v2046 = vrcp.pop %v2043
  %v2047 = vmul.f32 %v2030, %v2044
  %v2048 = vmul.f32 %v2032, %v2045
  %v2049 = vmul.f32 %v2034, %v2046
  %v2051 = vsel %vm395, %v2047, 0
  %v2054 = vsel %vm395, %v2048, 0
  %v2057 = vsel %vm395, %v2049, 0
  %2059 = vmatpush.msra.mxu0 0.0
  %2060 = vmatpush.msra.mxu0 0.0
  %2061 = vmatpush.msra.mxu0 0.0
  %2062 = vmatpush.msra.mxu0 0.0
  %2063 = vmatpush.msra.mxu0 0.0
  %2064 = vmatpush.msra.mxu0 0.0
  %2065 = vmatpush.msra.mxu0 0.0
  %2066 = vmatpush.msra.mxu0 0.0
  %2067 = vmatpush.msra.mxu0 0.0
  %2068 = vmatpush.msra.mxu0 0.0
  %2069 = vmatpush.msra.mxu0 0.0
  %2070 = vmatpush.msra.mxu0 0.0
  %2071 = vmatpush.msra.mxu0 0.0
  %2072 = vmatpush.msra.mxu0 %v1965
  %2073 = vmatpush.msra.mxu0 %v1962
  %2074 = vmatpush.msra.mxu0 %v1959
  %2075 = vmatmul.f32.gmra.mxu0 %v2051
  %v2076 = vpop.f32.mrf.mxu0
  %v2077 = vadd.f32 0.0, %v2076
  %2078 = vmatmul.f32.gmra.mxu0 %v2054
  %v2079 = vpop.f32.mrf.mxu0
  %v2080 = vadd.f32 0.0, %v2079
  %2081 = vmatmul.f32.gmra.mxu0 %v2057
  %v2082 = vpop.f32.mrf.mxu0
  %v2083 = vadd.f32 0.0, %v2082
  %2084 = vdwg.mxu0
  %s2085 = scalar_lea.vmem %s11, 40
  %v2086 = vld [vmem:[%s2085] sm:$0xff]
  %v2088 = vsel %vm344, %v2077, 0
  %v2091 = vsel %vm344, %v2080, 0
  %v2094 = vsel %vm344, %v2083, 0
  %2096 = vmatpush.msra.mxu0 0.0
  %2097 = vmatpush.msra.mxu0 0.0
  %2098 = vmatpush.msra.mxu0 0.0
  %2099 = vmatpush.msra.mxu0 0.0
  %2100 = vmatpush.msra.mxu0 0.0
  %2101 = vmatpush.msra.mxu0 0.0
  %2102 = vmatpush.msra.mxu0 0.0
  %2103 = vmatpush.msra.mxu0 0.0
  %2104 = vmatpush.msra.mxu0 0.0
  %2105 = vmatpush.msra.mxu0 0.0
  %2106 = vmatpush.msra.mxu0 0.0
  %2107 = vmatpush.msra.mxu0 0.0
  %2108 = vmatpush.msra.mxu0 0.0
  %2109 = vmatpush.msra.mxu0 0.0
  %2110 = vmatpush.msra.mxu0 0.0
  %2111 = vmatpush.msra.mxu0 %v2086
  %2112 = vmatmul.f32.gmra.mxu0 %v2088
  %v2113 = vpop.f32.mrf.mxu0
  %v2114 = vadd.f32 0.0, %v2113
  %2115 = vmatmul.f32.gmra.mxu0 %v2091
  %v2116 = vpop.f32.mrf.mxu0
  %v2117 = vadd.f32 0.0, %v2116
  %2118 = vmatmul.f32.gmra.mxu0 %v2094
  %v2119 = vpop.f32.mrf.mxu0
  %v2120 = vadd.f32 0.0, %v2119
  %2121 = vdwg.mxu0
  %v2123 = vsel %vm344, %v1849, 0
  %v2126 = vsel %vm344, %v1852, 0
  %v2129 = vsel %vm344, %v1855, 0
  %2131 = vmatpush.msra.mxu0 0.0
  %2132 = vmatpush.msra.mxu0 0.0
  %2133 = vmatpush.msra.mxu0 0.0
  %2134 = vmatpush.msra.mxu0 0.0
  %2135 = vmatpush.msra.mxu0 0.0
  %2136 = vmatpush.msra.mxu0 0.0
  %2137 = vmatpush.msra.mxu0 0.0
  %2138 = vmatpush.msra.mxu0 0.0
  %2139 = vmatpush.msra.mxu0 0.0
  %2140 = vmatpush.msra.mxu0 0.0
  %2141 = vmatpush.msra.mxu0 0.0
  %2142 = vmatpush.msra.mxu0 0.0
  %2143 = vmatpush.msra.mxu0 0.0
  %2144 = vmatpush.msra.mxu0 0.0
  %2145 = vmatpush.msra.mxu0 0.0
  %2146 = vmatpush.msra.mxu0 %v1858
  %2147 = vmatmul.f32.gmra.mxu0 %v2123
  %v2148 = vpop.f32.mrf.mxu0
  %v2149 = vadd.f32 %v2114, %v2148
  %2150 = vmatmul.f32.gmra.mxu0 %v2126
  %v2151 = vpop.f32.mrf.mxu0
  %v2152 = vadd.f32 %v2117, %v2151
  %2153 = vmatmul.f32.gmra.mxu0 %v2129
  %v2154 = vpop.f32.mrf.mxu0
  %v2155 = vadd.f32 %v2120, %v2154
  %2156 = vdwg.mxu0
  %s2157 = scalar_lea.vmem %s5, 192
  %v2158 = vld [vmem:[%s2157] sm:$0xff]
  %v2159 = vld [vmem:[%s2157 + $0x8] sm:$0xff]
  %v2160 = vld [vmem:[%s2157 + $0x10] sm:$0xff]
  %v2161 = vld [vmem:[%s2157 + $0x18] sm:$0xff]
  %s2162 = scalar_lea.vmem %s8, 6
  %v2163 = vld [vmem:[%s2162] sm:$0x1]
  %v2165 = vperm.slane %v2163, 0
  %2167 = vmatpush.msra.mxu0 0.0
  %2168 = vmatpush.msra.mxu0 0.0
  %2169 = vmatpush.msra.mxu0 0.0
  %2170 = vmatpush.msra.mxu0 0.0
  %2171 = vmatpush.msra.mxu0 0.0
  %2172 = vmatpush.msra.mxu0 0.0
  %2173 = vmatpush.msra.mxu0 0.0
  %2174 = vmatpush.msra.mxu0 0.0
  %2175 = vmatpush.msra.mxu0 0.0
  %2176 = vmatpush.msra.mxu0 0.0
  %2177 = vmatpush.msra.mxu0 0.0
  %2178 = vmatpush.msra.mxu0 0.0
  %2179 = vmatpush.msra.mxu0 %v2161
  %2180 = vmatpush.msra.mxu0 %v2160
  %2181 = vmatpush.msra.mxu0 %v2159
  %2182 = vmatpush.msra.mxu0 %v2158
  %2183 = vmatmul.f32.gmra.mxu0 %v1633
  %v2184 = vpop.f32.mrf.mxu0
  %v2185 = vadd.f32 %v2165, %v2184
  %2186 = vmatmul.f32.gmra.mxu0 %v1636
  %v2187 = vpop.f32.mrf.mxu0
  %v2188 = vadd.f32 %v2165, %v2187
  %2189 = vmatmul.f32.gmra.mxu0 %v1639
  %v2190 = vpop.f32.mrf.mxu0
  %v2191 = vadd.f32 %v2165, %v2190
  %2192 = vdwg.mxu0
  %s2193 = scalar_lea.vmem %s6, 192
  %v2194 = vld [vmem:[%s2193] sm:$0xff]
  %v2195 = vld [vmem:[%s2193 + $0x8] sm:$0xff]
  %v2196 = vld [vmem:[%s2193 + $0x10] sm:$0xff]
  %v2197 = vld [vmem:[%s2193 + $0x18] sm:$0xff]
  %s2198 = scalar_lea.vmem %s9, 6
  %v2199 = vld [vmem:[%s2198] sm:$0x1]
  %v2201 = vperm.slane %v2199, 0
  %2203 = vmatpush.msra.mxu0 0.0
  %2204 = vmatpush.msra.mxu0 0.0
  %2205 = vmatpush.msra.mxu0 0.0
  %2206 = vmatpush.msra.mxu0 0.0
  %2207 = vmatpush.msra.mxu0 0.0
  %2208 = vmatpush.msra.mxu0 0.0
  %2209 = vmatpush.msra.mxu0 0.0
  %2210 = vmatpush.msra.mxu0 0.0
  %2211 = vmatpush.msra.mxu0 0.0
  %2212 = vmatpush.msra.mxu0 0.0
  %2213 = vmatpush.msra.mxu0 0.0
  %2214 = vmatpush.msra.mxu0 0.0
  %2215 = vmatpush.msra.mxu0 %v2197
  %2216 = vmatpush.msra.mxu0 %v2196
  %2217 = vmatpush.msra.mxu0 %v2195
  %2218 = vmatpush.msra.mxu0 %v2194
  %2219 = vmatmul.f32.gmra.mxu0 %v1633
  %v2220 = vpop.f32.mrf.mxu0
  %v2221 = vadd.f32 %v2201, %v2220
  %2222 = vmatmul.f32.gmra.mxu0 %v1636
  %v2223 = vpop.f32.mrf.mxu0
  %v2224 = vadd.f32 %v2201, %v2223
  %2225 = vmatmul.f32.gmra.mxu0 %v1639
  %v2226 = vpop.f32.mrf.mxu0
  %v2227 = vadd.f32 %v2201, %v2226
  %2228 = vdwg.mxu0
  %s2229 = scalar_lea.vmem %s7, 192
  %v2230 = vld [vmem:[%s2229] sm:$0xff]
  %v2231 = vld [vmem:[%s2229 + $0x8] sm:$0xff]
  %v2232 = vld [vmem:[%s2229 + $0x10] sm:$0xff]
  %v2233 = vld [vmem:[%s2229 + $0x18] sm:$0xff]
  %s2234 = scalar_lea.vmem %s10, 6
  %v2235 = vld [vmem:[%s2234] sm:$0x1]
  %v2237 = vperm.slane %v2235, 0
  %2239 = vmatpush.msra.mxu0 0.0
  %2240 = vmatpush.msra.mxu0 0.0
  %2241 = vmatpush.msra.mxu0 0.0
  %2242 = vmatpush.msra.mxu0 0.0
  %2243 = vmatpush.msra.mxu0 0.0
  %2244 = vmatpush.msra.mxu0 0.0
  %2245 = vmatpush.msra.mxu0 0.0
  %2246 = vmatpush.msra.mxu0 0.0
  %2247 = vmatpush.msra.mxu0 0.0
  %2248 = vmatpush.msra.mxu0 0.0
  %2249 = vmatpush.msra.mxu0 0.0
  %2250 = vmatpush.msra.mxu0 0.0
  %2251 = vmatpush.msra.mxu0 %v2233
  %2252 = vmatpush.msra.mxu0 %v2232
  %2253 = vmatpush.msra.mxu0 %v2231
  %2254 = vmatpush.msra.mxu0 %v2230
  %2255 = vmatmul.f32.gmra.mxu0 %v1633
  %v2256 = vpop.f32.mrf.mxu0
  %v2257 = vadd.f32 %v2237, %v2256
  %2258 = vmatmul.f32.gmra.mxu0 %v1636
  %v2259 = vpop.f32.mrf.mxu0
  %v2260 = vadd.f32 %v2237, %v2259
  %2261 = vmatmul.f32.gmra.mxu0 %v1639
  %v2262 = vpop.f32.mrf.mxu0
  %v2263 = vadd.f32 %v2237, %v2262
  %2264 = vdwg.mxu0
  %v2266 = vsel %vm344, %v2185, 0
  %v2269 = vsel %vm344, %v2188, 0
  %v2272 = vsel %vm344, %v2191, 0
  %v2275 = vsel %vm344, %v2221, 0
  %v2278 = vsel %vm344, %v2224, 0
  %v2281 = vsel %vm344, %v2227, 0
  %2283 = vmatpush.xpose.msra.mxu0 0.0
  %2284 = vmatpush.xpose.msra.mxu0 0.0
  %2285 = vmatpush.xpose.msra.mxu0 0.0
  %2286 = vmatpush.xpose.msra.mxu0 0.0
  %2287 = vmatpush.xpose.msra.mxu0 0.0
  %2288 = vmatpush.xpose.msra.mxu0 0.0
  %2289 = vmatpush.xpose.msra.mxu0 0.0
  %2290 = vmatpush.xpose.msra.mxu0 0.0
  %2291 = vmatpush.xpose.msra.mxu0 0.0
  %2292 = vmatpush.xpose.msra.mxu0 0.0
  %2293 = vmatpush.xpose.msra.mxu0 0.0
  %2294 = vmatpush.xpose.msra.mxu0 0.0
  %2295 = vmatpush.xpose.msra.mxu0 0.0
  %2296 = vmatpush.xpose.msra.mxu0 %v2281
  %2297 = vmatpush.xpose.msra.mxu0 %v2278
  %2298 = vmatpush.xpose.msra.mxu0 %v2275
  %2299 = vmatmul.f32.gmra.mxu0 %v2266
  %v2300 = vpop.f32.mrf.mxu0
  %v2301 = vadd.f32 0.0, %v2300
  %2302 = vmatmul.f32.gmra.mxu0 %v2269
  %v2303 = vpop.f32.mrf.mxu0
  %v2304 = vadd.f32 0.0, %v2303
  %2305 = vmatmul.f32.gmra.mxu0 %v2272
  %v2306 = vpop.f32.mrf.mxu0
  %v2307 = vadd.f32 0.0, %v2306
  %2308 = vdwg.mxu0
  %v2309 = vmul.f32 %v2301, 0.35355338
  %v2310 = vmul.f32 %v2304, 0.35355338
  %v2311 = vmul.f32 %v2307, 0.35355338
  %v2312 = vadd.f32 %v2309, %v66
  %v2313 = vadd.f32 %v2310, %v67
  %v2314 = vadd.f32 %v2311, %v68
  %v2315 = vsel %vm395, %v2312, -inf
  %2316 = vmax.xlane.f32.xlu0 %v2315
  %v2317 = vpop.xlane.xlu0 %2316
  %v2318 = vsel %vm395, %v2313, -inf
  %2319 = vmax.xlane.f32.xlu0 %v2318
  %v2320 = vpop.xlane.xlu0 %2319
  %v2321 = vsel %vm395, %v2314, -inf
  %2322 = vmax.xlane.f32.xlu0 %v2321
  %v2323 = vpop.xlane.xlu0 %2322
  %v2324 = vsub.f32 %v2312, %v2317
  %v2325 = vsub.f32 %v2313, %v2320
  %v2326 = vsub.f32 %v2314, %v2323
  %v2327 = vmul.f32 %v2324, 1.442695
  %v2328 = vpow.pop %v2327
  %v2329 = vmul.f32 %v2325, 1.442695
  %v2330 = vpow.pop %v2329
  %v2331 = vmul.f32 %v2326, 1.442695
  %v2332 = vpow.pop %v2331
  %v2333 = vsel %vm395, %v2328, 0.0
  %2334 = vadd.xlane.f32.xlu0 %v2333
  %v2335 = vpop.xlane.xlu0 %2334
  %v2336 = vsel %vm395, %v2330, 0.0
  %2337 = vadd.xlane.f32.xlu0 %v2336
  %v2338 = vpop.xlane.xlu0 %2337
  %v2339 = vsel %vm395, %v2332, 0.0
  %2340 = vadd.xlane.f32.xlu0 %v2339
  %v2341 = vpop.xlane.xlu0 %2340
  %v2342 = vrcp.pop %v2335
  %v2343 = vrcp.pop %v2338
  %v2344 = vrcp.pop %v2341
  %v2345 = vmul.f32 %v2328, %v2342
  %v2346 = vmul.f32 %v2330, %v2343
  %v2347 = vmul.f32 %v2332, %v2344
  %v2349 = vsel %vm395, %v2345, 0
  %v2352 = vsel %vm395, %v2346, 0
  %v2355 = vsel %vm395, %v2347, 0
  %2357 = vmatpush.msra.mxu0 0.0
  %2358 = vmatpush.msra.mxu0 0.0
  %2359 = vmatpush.msra.mxu0 0.0
  %2360 = vmatpush.msra.mxu0 0.0
  %2361 = vmatpush.msra.mxu0 0.0
  %2362 = vmatpush.msra.mxu0 0.0
  %2363 = vmatpush.msra.mxu0 0.0
  %2364 = vmatpush.msra.mxu0 0.0
  %2365 = vmatpush.msra.mxu0 0.0
  %2366 = vmatpush.msra.mxu0 0.0
  %2367 = vmatpush.msra.mxu0 0.0
  %2368 = vmatpush.msra.mxu0 0.0
  %2369 = vmatpush.msra.mxu0 0.0
  %2370 = vmatpush.msra.mxu0 %v2263
  %2371 = vmatpush.msra.mxu0 %v2260
  %2372 = vmatpush.msra.mxu0 %v2257
  %2373 = vmatmul.f32.gmra.mxu0 %v2349
  %v2374 = vpop.f32.mrf.mxu0
  %v2375 = vadd.f32 0.0, %v2374
  %2376 = vmatmul.f32.gmra.mxu0 %v2352
  %v2377 = vpop.f32.mrf.mxu0
  %v2378 = vadd.f32 0.0, %v2377
  %2379 = vmatmul.f32.gmra.mxu0 %v2355
  %v2380 = vpop.f32.mrf.mxu0
  %v2381 = vadd.f32 0.0, %v2380
  %2382 = vdwg.mxu0
  %s2383 = scalar_lea.vmem %s11, 48
  %v2384 = vld [vmem:[%s2383] sm:$0xff]
  %v2386 = vsel %vm344, %v2375, 0
  %v2389 = vsel %vm344, %v2378, 0
  %v2392 = vsel %vm344, %v2381, 0
  %2394 = vmatpush.msra.mxu0 0.0
  %2395 = vmatpush.msra.mxu0 0.0
  %2396 = vmatpush.msra.mxu0 0.0
  %2397 = vmatpush.msra.mxu0 0.0
  %2398 = vmatpush.msra.mxu0 0.0
  %2399 = vmatpush.msra.mxu0 0.0
  %2400 = vmatpush.msra.mxu0 0.0
  %2401 = vmatpush.msra.mxu0 0.0
  %2402 = vmatpush.msra.mxu0 0.0
  %2403 = vmatpush.msra.mxu0 0.0
  %2404 = vmatpush.msra.mxu0 0.0
  %2405 = vmatpush.msra.mxu0 0.0
  %2406 = vmatpush.msra.mxu0 0.0
  %2407 = vmatpush.msra.mxu0 0.0
  %2408 = vmatpush.msra.mxu0 0.0
  %2409 = vmatpush.msra.mxu0 %v2384
  %2410 = vmatmul.f32.gmra.mxu0 %v2386
  %v2411 = vpop.f32.mrf.mxu0
  %v2412 = vadd.f32 0.0, %v2411
  %2413 = vmatmul.f32.gmra.mxu0 %v2389
  %v2414 = vpop.f32.mrf.mxu0
  %v2415 = vadd.f32 0.0, %v2414
  %2416 = vmatmul.f32.gmra.mxu0 %v2392
  %v2417 = vpop.f32.mrf.mxu0
  %v2418 = vadd.f32 0.0, %v2417
  %2419 = vdwg.mxu0
  %v2420 = vadd.f32 %v2149, %v2412
  %v2421 = vadd.f32 %v2152, %v2415
  %v2422 = vadd.f32 %v2155, %v2418
  %s2423 = scalar_lea.vmem %s5, 224
  %v2424 = vld [vmem:[%s2423] sm:$0xff]
  %v2425 = vld [vmem:[%s2423 + $0x8] sm:$0xff]
  %v2426 = vld [vmem:[%s2423 + $0x10] sm:$0xff]
  %v2427 = vld [vmem:[%s2423 + $0x18] sm:$0xff]
  %s2428 = scalar_lea.vmem %s8, 7
  %v2429 = vld [vmem:[%s2428] sm:$0x1]
  %v2431 = vperm.slane %v2429, 0
  %2433 = vmatpush.msra.mxu0 0.0
  %2434 = vmatpush.msra.mxu0 0.0
  %2435 = vmatpush.msra.mxu0 0.0
  %2436 = vmatpush.msra.mxu0 0.0
  %2437 = vmatpush.msra.mxu0 0.0
  %2438 = vmatpush.msra.mxu0 0.0
  %2439 = vmatpush.msra.mxu0 0.0
  %2440 = vmatpush.msra.mxu0 0.0
  %2441 = vmatpush.msra.mxu0 0.0
  %2442 = vmatpush.msra.mxu0 0.0
  %2443 = vmatpush.msra.mxu0 0.0
  %2444 = vmatpush.msra.mxu0 0.0
  %2445 = vmatpush.msra.mxu0 %v2427
  %2446 = vmatpush.msra.mxu0 %v2426
  %2447 = vmatpush.msra.mxu0 %v2425
  %2448 = vmatpush.msra.mxu0 %v2424
  %2449 = vmatmul.f32.gmra.mxu0 %v1633
  %v2450 = vpop.f32.mrf.mxu0
  %v2451 = vadd.f32 %v2431, %v2450
  %2452 = vmatmul.f32.gmra.mxu0 %v1636
  %v2453 = vpop.f32.mrf.mxu0
  %v2454 = vadd.f32 %v2431, %v2453
  %2455 = vmatmul.f32.gmra.mxu0 %v1639
  %v2456 = vpop.f32.mrf.mxu0
  %v2457 = vadd.f32 %v2431, %v2456
  %2458 = vdwg.mxu0
  %s2459 = scalar_lea.vmem %s6, 224
  %v2460 = vld [vmem:[%s2459] sm:$0xff]
  %v2461 = vld [vmem:[%s2459 + $0x8] sm:$0xff]
  %v2462 = vld [vmem:[%s2459 + $0x10] sm:$0xff]
  %v2463 = vld [vmem:[%s2459 + $0x18] sm:$0xff]
  %s2464 = scalar_lea.vmem %s9, 7
  %v2465 = vld [vmem:[%s2464] sm:$0x1]
  %v2467 = vperm.slane %v2465, 0
  %2469 = vmatpush.msra.mxu0 0.0
  %2470 = vmatpush.msra.mxu0 0.0
  %2471 = vmatpush.msra.mxu0 0.0
  %2472 = vmatpush.msra.mxu0 0.0
  %2473 = vmatpush.msra.mxu0 0.0
  %2474 = vmatpush.msra.mxu0 0.0
  %2475 = vmatpush.msra.mxu0 0.0
  %2476 = vmatpush.msra.mxu0 0.0
  %2477 = vmatpush.msra.mxu0 0.0
  %2478 = vmatpush.msra.mxu0 0.0
  %2479 = vmatpush.msra.mxu0 0.0
  %2480 = vmatpush.msra.mxu0 0.0
  %2481 = vmatpush.msra.mxu0 %v2463
  %2482 = vmatpush.msra.mxu0 %v2462
  %2483 = vmatpush.msra.mxu0 %v2461
  %2484 = vmatpush.msra.mxu0 %v2460
  %2485 = vmatmul.f32.gmra.mxu0 %v1633
  %v2486 = vpop.f32.mrf.mxu0
  %v2487 = vadd.f32 %v2467, %v2486
  %2488 = vmatmul.f32.gmra.mxu0 %v1636
  %v2489 = vpop.f32.mrf.mxu0
  %v2490 = vadd.f32 %v2467, %v2489
  %2491 = vmatmul.f32.gmra.mxu0 %v1639
  %v2492 = vpop.f32.mrf.mxu0
  %v2493 = vadd.f32 %v2467, %v2492
  %2494 = vdwg.mxu0
  %s2495 = scalar_lea.vmem %s7, 224
  %v2496 = vld [vmem:[%s2495] sm:$0xff]
  %v2497 = vld [vmem:[%s2495 + $0x8] sm:$0xff]
  %v2498 = vld [vmem:[%s2495 + $0x10] sm:$0xff]
  %v2499 = vld [vmem:[%s2495 + $0x18] sm:$0xff]
  %s2500 = scalar_lea.vmem %s10, 7
  %v2501 = vld [vmem:[%s2500] sm:$0x1]
  %v2503 = vperm.slane %v2501, 0
  %2505 = vmatpush.msra.mxu0 0.0
  %2506 = vmatpush.msra.mxu0 0.0
  %2507 = vmatpush.msra.mxu0 0.0
  %2508 = vmatpush.msra.mxu0 0.0
  %2509 = vmatpush.msra.mxu0 0.0
  %2510 = vmatpush.msra.mxu0 0.0
  %2511 = vmatpush.msra.mxu0 0.0
  %2512 = vmatpush.msra.mxu0 0.0
  %2513 = vmatpush.msra.mxu0 0.0
  %2514 = vmatpush.msra.mxu0 0.0
  %2515 = vmatpush.msra.mxu0 0.0
  %2516 = vmatpush.msra.mxu0 0.0
  %2517 = vmatpush.msra.mxu0 %v2499
  %2518 = vmatpush.msra.mxu0 %v2498
  %2519 = vmatpush.msra.mxu0 %v2497
  %2520 = vmatpush.msra.mxu0 %v2496
  %2521 = vmatmul.f32.gmra.mxu0 %v1633
  %v2522 = vpop.f32.mrf.mxu0
  %v2523 = vadd.f32 %v2503, %v2522
  %2524 = vmatmul.f32.gmra.mxu0 %v1636
  %v2525 = vpop.f32.mrf.mxu0
  %v2526 = vadd.f32 %v2503, %v2525
  %2527 = vmatmul.f32.gmra.mxu0 %v1639
  %v2528 = vpop.f32.mrf.mxu0
  %v2529 = vadd.f32 %v2503, %v2528
  %2530 = vdwg.mxu0
  %v2532 = vsel %vm344, %v2451, 0
  %v2535 = vsel %vm344, %v2454, 0
  %v2538 = vsel %vm344, %v2457, 0
  %v2541 = vsel %vm344, %v2487, 0
  %v2544 = vsel %vm344, %v2490, 0
  %v2547 = vsel %vm344, %v2493, 0
  %2549 = vmatpush.xpose.msra.mxu0 0.0
  %2550 = vmatpush.xpose.msra.mxu0 0.0
  %2551 = vmatpush.xpose.msra.mxu0 0.0
  %2552 = vmatpush.xpose.msra.mxu0 0.0
  %2553 = vmatpush.xpose.msra.mxu0 0.0
  %2554 = vmatpush.xpose.msra.mxu0 0.0
  %2555 = vmatpush.xpose.msra.mxu0 0.0
  %2556 = vmatpush.xpose.msra.mxu0 0.0
  %2557 = vmatpush.xpose.msra.mxu0 0.0
  %2558 = vmatpush.xpose.msra.mxu0 0.0
  %2559 = vmatpush.xpose.msra.mxu0 0.0
  %2560 = vmatpush.xpose.msra.mxu0 0.0
  %2561 = vmatpush.xpose.msra.mxu0 0.0
  %2562 = vmatpush.xpose.msra.mxu0 %v2547
  %2563 = vmatpush.xpose.msra.mxu0 %v2544
  %2564 = vmatpush.xpose.msra.mxu0 %v2541
  %2565 = vmatmul.f32.gmra.mxu0 %v2532
  %v2566 = vpop.f32.mrf.mxu0
  %v2567 = vadd.f32 0.0, %v2566
  %2568 = vmatmul.f32.gmra.mxu0 %v2535
  %v2569 = vpop.f32.mrf.mxu0
  %v2570 = vadd.f32 0.0, %v2569
  %2571 = vmatmul.f32.gmra.mxu0 %v2538
  %v2572 = vpop.f32.mrf.mxu0
  %v2573 = vadd.f32 0.0, %v2572
  %2574 = vdwg.mxu0
  %v2575 = vmul.f32 %v2567, 0.35355338
  %v2576 = vmul.f32 %v2570, 0.35355338
  %v2577 = vmul.f32 %v2573, 0.35355338
  %v2578 = vadd.f32 %v2575, %v66
  %v2579 = vadd.f32 %v2576, %v67
  %v2580 = vadd.f32 %v2577, %v68
  %v2581 = vsel %vm395, %v2578, -inf
  %2582 = vmax.xlane.f32.xlu0 %v2581
  %v2583 = vpop.xlane.xlu0 %2582
  %v2584 = vsel %vm395, %v2579, -inf
  %2585 = vmax.xlane.f32.xlu0 %v2584
  %v2586 = vpop.xlane.xlu0 %2585
  %v2587 = vsel %vm395, %v2580, -inf
  %2588 = vmax.xlane.f32.xlu0 %v2587
  %v2589 = vpop.xlane.xlu0 %2588
  %v2590 = vsub.f32 %v2578, %v2583
  %v2591 = vsub.f32 %v2579, %v2586
  %v2592 = vsub.f32 %v2580, %v2589
  %v2593 = vmul.f32 %v2590, 1.442695
  %v2594 = vpow.pop %v2593
  %v2595 = vmul.f32 %v2591, 1.442695
  %v2596 = vpow.pop %v2595
  %v2597 = vmul.f32 %v2592, 1.442695
  %v2598 = vpow.pop %v2597
  %v2599 = vsel %vm395, %v2594, 0.0
  %2600 = vadd.xlane.f32.xlu0 %v2599
  %v2601 = vpop.xlane.xlu0 %2600
  %v2602 = vsel %vm395, %v2596, 0.0
  %2603 = vadd.xlane.f32.xlu0 %v2602
  %v2604 = vpop.xlane.xlu0 %2603
  %v2605 = vsel %vm395, %v2598, 0.0
  %2606 = vadd.xlane.f32.xlu0 %v2605
  %v2607 = vpop.xlane.xlu0 %2606
  %v2608 = vrcp.pop %v2601
  %v2609 = vrcp.pop %v2604
  %v2610 = vrcp.pop %v2607
  %v2611 = vmul.f32 %v2594, %v2608
  %v2612 = vmul.f32 %v2596, %v2609
  %v2613 = vmul.f32 %v2598, %v2610
  %v2615 = vsel %vm395, %v2611, 0
  %v2618 = vsel %vm395, %v2612, 0
  %v2621 = vsel %vm395, %v2613, 0
  %2623 = vmatpush.msra.mxu0 0.0
  %2624 = vmatpush.msra.mxu0 0.0
  %2625 = vmatpush.msra.mxu0 0.0
  %2626 = vmatpush.msra.mxu0 0.0
  %2627 = vmatpush.msra.mxu0 0.0
  %2628 = vmatpush.msra.mxu0 0.0
  %2629 = vmatpush.msra.mxu0 0.0
  %2630 = vmatpush.msra.mxu0 0.0
  %2631 = vmatpush.msra.mxu0 0.0
  %2632 = vmatpush.msra.mxu0 0.0
  %2633 = vmatpush.msra.mxu0 0.0
  %2634 = vmatpush.msra.mxu0 0.0
  %2635 = vmatpush.msra.mxu0 0.0
  %2636 = vmatpush.msra.mxu0 %v2529
  %2637 = vmatpush.msra.mxu0 %v2526
  %2638 = vmatpush.msra.mxu0 %v2523
  %2639 = vmatmul.f32.gmra.mxu0 %v2615
  %v2640 = vpop.f32.mrf.mxu0
  %v2641 = vadd.f32 0.0, %v2640
  %2642 = vmatmul.f32.gmra.mxu0 %v2618
  %v2643 = vpop.f32.mrf.mxu0
  %v2644 = vadd.f32 0.0, %v2643
  %2645 = vmatmul.f32.gmra.mxu0 %v2621
  %v2646 = vpop.f32.mrf.mxu0
  %v2647 = vadd.f32 0.0, %v2646
  %2648 = vdwg.mxu0
  %s2649 = scalar_lea.vmem %s11, 56
  %v2650 = vld [vmem:[%s2649] sm:$0xff]
  %v2652 = vsel %vm344, %v2641, 0
  %v2655 = vsel %vm344, %v2644, 0
  %v2658 = vsel %vm344, %v2647, 0
  %2660 = vmatpush.msra.mxu0 0.0
  %2661 = vmatpush.msra.mxu0 0.0
  %2662 = vmatpush.msra.mxu0 0.0
  %2663 = vmatpush.msra.mxu0 0.0
  %2664 = vmatpush.msra.mxu0 0.0
  %2665 = vmatpush.msra.mxu0 0.0
  %2666 = vmatpush.msra.mxu0 0.0
  %2667 = vmatpush.msra.mxu0 0.0
  %2668 = vmatpush.msra.mxu0 0.0
  %2669 = vmatpush.msra.mxu0 0.0
  %2670 = vmatpush.msra.mxu0 0.0
  %2671 = vmatpush.msra.mxu0 0.0
  %2672 = vmatpush.msra.mxu0 0.0
  %2673 = vmatpush.msra.mxu0 0.0
  %2674 = vmatpush.msra.mxu0 0.0
  %2675 = vmatpush.msra.mxu0 %v2650
  %2676 = vmatmul.f32.gmra.mxu0 %v2652
  %v2677 = vpop.f32.mrf.mxu0
  %v2678 = vadd.f32 0.0, %v2677
  %2679 = vmatmul.f32.gmra.mxu0 %v2655
  %v2680 = vpop.f32.mrf.mxu0
  %v2681 = vadd.f32 0.0, %v2680
  %2682 = vmatmul.f32.gmra.mxu0 %v2658
  %v2683 = vpop.f32.mrf.mxu0
  %v2684 = vadd.f32 0.0, %v2683
  %2685 = vdwg.mxu0
  %v2686 = vadd.f32 %v2420, %v2678
  %v2687 = vadd.f32 %v2421, %v2681
  %v2688 = vadd.f32 %v2422, %v2684
  %v2689 = vadd.f32 %v1543, %v2686
  %v2690 = vadd.f32 %v1544, %v2687
  %v2691 = vadd.f32 %v1545, %v2688
  %s2692 = scalar_lea.vmem %s12, 1
  %v2693 = vld [vmem:[%s2692] sm:$0x1]
  %v2695 = vperm.slane %v2693, 0
  %v2697 = vadd.f32 %v2689, %v2695
  %v2698 = vadd.f32 %v2690, %v2695
  %v2699 = vadd.f32 %v2691, %v2695
  %v2700 = vsel %vm70, %v2697, 0.0
  %2701 = vadd.xlane.f32.xlu0 %v2700
  %v2702 = vpop.xlane.xlu0 %2701
  %v2703 = vsel %vm70, %v2698, 0.0
  %2704 = vadd.xlane.f32.xlu0 %v2703
  %v2705 = vpop.xlane.xlu0 %2704
  %v2706 = vsel %vm70, %v2699, 0.0
  %2707 = vadd.xlane.f32.xlu0 %v2706
  %v2708 = vpop.xlane.xlu0 %2707
  %v2709 = vmul.f32 %v2702, %v86
  %v2710 = vmul.f32 %v2705, %v86
  %v2711 = vmul.f32 %v2708, %v86
  %v2712 = vsub.f32 %v2697, %v2709
  %v2713 = vsub.f32 %v2698, %v2710
  %v2714 = vsub.f32 %v2699, %v2711
  %v2715 = vmul.f32 %v2712, %v2712
  %v2716 = vmul.f32 %v2713, %v2713
  %v2717 = vmul.f32 %v2714, %v2714
  %v2718 = vsel %vm70, %v2715, 0.0
  %2719 = vadd.xlane.f32.xlu0 %v2718
  %v2720 = vpop.xlane.xlu0 %2719
  %v2721 = vsel %vm70, %v2716, 0.0
  %2722 = vadd.xlane.f32.xlu0 %v2721
  %v2723 = vpop.xlane.xlu0 %2722
  %v2724 = vsel %vm70, %v2717, 0.0
  %2725 = vadd.xlane.f32.xlu0 %v2724
  %v2726 = vpop.xlane.xlu0 %2725
  %v2727 = vmul.f32 %v2720, %v86
  %v2728 = vmul.f32 %v2723, %v86
  %v2729 = vmul.f32 %v2726, %v86
  %v2730 = vadd.f32 %v2727, 1e-05
  %v2731 = vadd.f32 %v2728, 1e-05
  %v2732 = vadd.f32 %v2729, 1e-05
  %v2733 = vrsqrt.pop %v2730
  %v2734 = vmul.f32 %v2733, %v2730
  %v2735 = vmul.f32 %v2734, %v2733
  %v2736 = vmul.f32 0.5, %v2735
  %v2737 = vsub.f32 1.5, %v2736
  %v2738 = vmul.f32 %v2733, %v2737
  %vm2739 = vweird.f32 %v2730
  %vm2740 = vweird.f32 %v2733
  %vm2741 = vmor %vm2739, %vm2740
  %v2742 = vsel %vm2741, %v2733, %v2738
  %v2743 = vrsqrt.pop %v2731
  %v2744 = vmul.f32 %v2743, %v2731
  %v2745 = vmul.f32 %v2744, %v2743
  %v2746 = vmul.f32 0.5, %v2745
  %v2747 = vsub.f32 1.5, %v2746
  %v2748 = vmul.f32 %v2743, %v2747
  %vm2749 = vweird.f32 %v2731
  %vm2750 = vweird.f32 %v2743
  %vm2751 = vmor %vm2749, %vm2750
  %v2752 = vsel %vm2751, %v2743, %v2748
  %v2753 = vrsqrt.pop %v2732
  %v2754 = vmul.f32 %v2753, %v2732
  %v2755 = vmul.f32 %v2754, %v2753
  %v2756 = vmul.f32 0.5, %v2755
  %v2757 = vsub.f32 1.5, %v2756
  %v2758 = vmul.f32 %v2753, %v2757
  %vm2759 = vweird.f32 %v2732
  %vm2760 = vweird.f32 %v2753
  %vm2761 = vmor %vm2759, %vm2760
  %v2762 = vsel %vm2761, %v2753, %v2758
  %v2763 = vmul.f32 %v2712, %v2742
  %v2764 = vmul.f32 %v2713, %v2752
  %v2765 = vmul.f32 %v2714, %v2762
  %v2766 = vperm.slane %v1547, 2
  %v2767 = vmul.f32 %v2763, %v2766
  %v2768 = vmul.f32 %v2764, %v2766
  %v2769 = vmul.f32 %v2765, %v2766
  %v2770 = vperm.slane %v1547, 3
  %v2771 = vadd.f32 %v2767, %v2770
  %v2772 = vadd.f32 %v2768, %v2770
  %v2773 = vadd.f32 %v2769, %v2770
  %v2774 = vpack.c.bf16 %v2772, %v2771
  %v2775 = vpack.c.bf16 %v2773, %v2773
  %s2776 = scalar_lea.vmem %s13, 16
  %v2777 = vld [vmem:[%s2776] sm:$0xf]
  %v2778 = vld [vmem:[%s2776 + $0x4] sm:$0xf]
  %v2779 = vld [vmem:[%s2776 + $0x8] sm:$0xf]
  %v2780 = vld [vmem:[%s2776 + $0xc] sm:$0xf]
  %s2781 = scalar_lea.vmem %s14, 1
  %v2782 = vld [vmem:[%s2781] sm:$0x1]
  %v2784 = vperm.slane %v2782, 0
  %v2790 = vunpack.c.l.b16 %v2777
  %v2791 = vunpack.c.l.b16 %v2778
  %v2792 = vunpack.c.l.b16 %v2779
  %v2793 = vunpack.c.l.b16 %v2780
  %v2794 = vpack.c.b16 %v2791, %v2790
  %v2795 = vpack.c.b16 %v2793, %v2792
  %v2799 = vsel %vm70, %v2774, 0
  %v2802 = vsel %vm70, %v2775, 0
  %2804 = vmatpush.bf16.msra.mxu0 0
  %2805 = vmatpush.bf16.msra.mxu0 0
  %2806 = vmatpush.bf16.msra.mxu0 0
  %2807 = vmatpush.bf16.msra.mxu0 0
  %2808 = vmatpush.bf16.msra.mxu0 0
  %2809 = vmatpush.bf16.msra.mxu0 0
  %2810 = vmatpush.bf16.msra.mxu0 %v2795
  %2811 = vmatpush.bf16.msra.mxu0 %v2794
  %2812 = vmatmul.bf16.gmra.mxu0 %v2799
  %v2813 = vpop.f32.mrf.mxu0
  %v2814 = vadd.f32 %v2784, %v2813
  %v2815 = vpop.f32.mrf.mxu0
  %v2816 = vadd.f32 %v2784, %v2815
  %2817 = vmatmul.bf16.gmra.mxu0 %v2802
  %v2818 = vpop.f32.mrf.mxu0
  %v2819 = vadd.f32 %v2784, %v2818
  %v2820 = vpop.f32.mrf.mxu0
  %2821 = vdwg.mxu0
  %v2822 = vmul.f32 %v2814, 0.5
  %v2823 = vmul.f32 %v2816, 0.5
  %v2824 = vmul.f32 %v2819, 0.5
  %v2825 = vmul.f32 %v2814, %v2814
  %v2826 = vmul.f32 %v2816, %v2816
  %v2827 = vmul.f32 %v2819, %v2819
  %v2828 = vmul.f32 %v2814, %v2825
  %v2829 = vmul.f32 %v2816, %v2826
  %v2830 = vmul.f32 %v2819, %v2827
  %v2831 = vmul.f32 %v2828, 0.044715
  %v2832 = vmul.f32 %v2829, 0.044715
  %v2833 = vmul.f32 %v2830, 0.044715
  %v2834 = vadd.f32 %v2814, %v2831
  %v2835 = vadd.f32 %v2816, %v2832
  %v2836 = vadd.f32 %v2819, %v2833
  %v2837 = vmul.f32 %v2834, 0.7978846
  %v2838 = vmul.f32 %v2835, 0.7978846
  %v2839 = vmul.f32 %v2836, 0.7978846
  %v2840 = vtanh.pop %v2837
  %v2841 = vtanh.pop %v2838
  %v2842 = vtanh.pop %v2839
  %v2843 = vadd.f32 %v2840, 1.0
  %v2844 = vadd.f32 %v2841, 1.0
  %v2845 = vadd.f32 %v2842, 1.0
  %v2846 = vmul.f32 %v2822, %v2843
  %v2847 = vmul.f32 %v2823, %v2844
  %v2848 = vmul.f32 %v2824, %v2845
  %v2849 = vpack.c.bf16 %v2847, %v2846
  %v2850 = vpack.c.bf16 %v2848, %v2848
  %s2851 = scalar_lea.vmem %s15, 64
  %v2852 = vld [vmem:[%s2851] sm:$0xf]
  %v2853 = vld [vmem:[%s2851 + $0x4] sm:$0xf]
  %v2854 = vld [vmem:[%s2851 + $0x8] sm:$0xf]
  %v2855 = vld [vmem:[%s2851 + $0xc] sm:$0xf]
  %v2856 = vld [vmem:[%s2851 + $0x10] sm:$0xf]
  %v2857 = vld [vmem:[%s2851 + $0x14] sm:$0xf]
  %v2858 = vld [vmem:[%s2851 + $0x18] sm:$0xf]
  %v2859 = vld [vmem:[%s2851 + $0x1c] sm:$0xf]
  %v2860 = vld [vmem:[%s2851 + $0x20] sm:$0xf]
  %v2861 = vld [vmem:[%s2851 + $0x24] sm:$0xf]
  %v2862 = vld [vmem:[%s2851 + $0x28] sm:$0xf]
  %v2863 = vld [vmem:[%s2851 + $0x2c] sm:$0xf]
  %v2864 = vld [vmem:[%s2851 + $0x30] sm:$0xf]
  %v2865 = vld [vmem:[%s2851 + $0x34] sm:$0xf]
  %v2866 = vld [vmem:[%s2851 + $0x38] sm:$0xf]
  %v2867 = vld [vmem:[%s2851 + $0x3c] sm:$0xf]
  %v2884 = vunpack.c.l.b16 %v2852
  %v2885 = vunpack.c.l.b16 %v2853
  %v2886 = vunpack.c.l.b16 %v2854
  %v2887 = vunpack.c.l.b16 %v2855
  %v2888 = vunpack.c.l.b16 %v2856
  %v2889 = vunpack.c.l.b16 %v2857
  %v2890 = vunpack.c.l.b16 %v2858
  %v2891 = vunpack.c.l.b16 %v2859
  %v2892 = vunpack.c.l.b16 %v2860
  %v2893 = vunpack.c.l.b16 %v2861
  %v2894 = vunpack.c.l.b16 %v2862
  %v2895 = vunpack.c.l.b16 %v2863
  %v2896 = vunpack.c.l.b16 %v2864
  %v2897 = vunpack.c.l.b16 %v2865
  %v2898 = vunpack.c.l.b16 %v2866
  %v2899 = vunpack.c.l.b16 %v2867
  %v2900 = vpack.c.b16 %v2885, %v2884
  %v2901 = vpack.c.b16 %v2887, %v2886
  %v2902 = vpack.c.b16 %v2889, %v2888
  %v2903 = vpack.c.b16 %v2891, %v2890
  %v2904 = vpack.c.b16 %v2893, %v2892
  %v2905 = vpack.c.b16 %v2895, %v2894
  %v2906 = vpack.c.b16 %v2897, %v2896
  %v2907 = vpack.c.b16 %v2899, %v2898
  %2916 = vmatpush.bf16.msra.mxu0 %v2907
  %2917 = vmatpush.bf16.msra.mxu0 %v2906
  %2918 = vmatpush.bf16.msra.mxu0 %v2905
  %2919 = vmatpush.bf16.msra.mxu0 %v2904
  %2920 = vmatpush.bf16.msra.mxu0 %v2903
  %2921 = vmatpush.bf16.msra.mxu0 %v2902
  %2922 = vmatpush.bf16.msra.mxu0 %v2901
  %2923 = vmatpush.bf16.msra.mxu0 %v2900
  %2924 = vmatmul.bf16.gmra.mxu0 %v2849
  %v2925 = vpop.f32.mrf.mxu0
  %v2926 = vadd.f32 0.0, %v2925
  %v2927 = vpop.f32.mrf.mxu0
  %v2928 = vadd.f32 0.0, %v2927
  %2929 = vmatmul.bf16.gmra.mxu0 %v2850
  %v2930 = vpop.f32.mrf.mxu0
  %v2931 = vadd.f32 0.0, %v2930
  %v2932 = vpop.f32.mrf.mxu0
  %2933 = vdwg.mxu0
  %v2934 = vadd.f32 %v2697, %v2926
  %v2935 = vadd.f32 %v2698, %v2928
  %v2936 = vadd.f32 %v2699, %v2931
  %s2937 = scalar_lea.vmem %s16, 1
  %v2938 = vld [vmem:[%s2937] sm:$0x1]
  %v2940 = vperm.slane %v2938, 0
  %v2942 = vadd.f32 %v2934, %v2940
  %v2943 = vadd.f32 %v2935, %v2940
  %v2944 = vadd.f32 %v2936, %v2940
  %v2945 = vsel %vm70, %v2942, 0.0
  %2946 = vadd.xlane.f32.xlu0 %v2945
  %v2947 = vpop.xlane.xlu0 %2946
  %v2948 = vsel %vm70, %v2943, 0.0
  %2949 = vadd.xlane.f32.xlu0 %v2948
  %v2950 = vpop.xlane.xlu0 %2949
  %v2951 = vsel %vm70, %v2944, 0.0
  %2952 = vadd.xlane.f32.xlu0 %v2951
  %v2953 = vpop.xlane.xlu0 %2952
  %v2954 = vmul.f32 %v2947, %v86
  %v2955 = vmul.f32 %v2950, %v86
  %v2956 = vmul.f32 %v2953, %v86
  %v2957 = vsub.f32 %v2942, %v2954
  %v2958 = vsub.f32 %v2943, %v2955
  %v2959 = vsub.f32 %v2944, %v2956
  %v2960 = vmul.f32 %v2957, %v2957
  %v2961 = vmul.f32 %v2958, %v2958
  %v2962 = vmul.f32 %v2959, %v2959
  %v2963 = vsel %vm70, %v2960, 0.0
  %2964 = vadd.xlane.f32.xlu0 %v2963
  %v2965 = vpop.xlane.xlu0 %2964
  %v2966 = vsel %vm70, %v2961, 0.0
  %2967 = vadd.xlane.f32.xlu0 %v2966
  %v2968 = vpop.xlane.xlu0 %2967
  %v2969 = vsel %vm70, %v2962, 0.0
  %2970 = vadd.xlane.f32.xlu0 %v2969
  %v2971 = vpop.xlane.xlu0 %2970
  %v2972 = vmul.f32 %v2965, %v86
  %v2973 = vmul.f32 %v2968, %v86
  %v2974 = vmul.f32 %v2971, %v86
  %v2975 = vadd.f32 %v2972, 1e-05
  %v2976 = vadd.f32 %v2973, 1e-05
  %v2977 = vadd.f32 %v2974, 1e-05
  %v2978 = vrsqrt.pop %v2975
  %v2979 = vmul.f32 %v2978, %v2975
  %v2980 = vmul.f32 %v2979, %v2978
  %v2981 = vmul.f32 0.5, %v2980
  %v2982 = vsub.f32 1.5, %v2981
  %v2983 = vmul.f32 %v2978, %v2982
  %vm2984 = vweird.f32 %v2975
  %vm2985 = vweird.f32 %v2978
  %vm2986 = vmor %vm2984, %vm2985
  %v2987 = vsel %vm2986, %v2978, %v2983
  %v2988 = vrsqrt.pop %v2976
  %v2989 = vmul.f32 %v2988, %v2976
  %v2990 = vmul.f32 %v2989, %v2988
  %v2991 = vmul.f32 0.5, %v2990
  %v2992 = vsub.f32 1.5, %v2991
  %v2993 = vmul.f32 %v2988, %v2992
  %vm2994 = vweird.f32 %v2976
  %vm2995 = vweird.f32 %v2988
  %vm2996 = vmor %vm2994, %vm2995
  %v2997 = vsel %vm2996, %v2988, %v2993
  %v2998 = vrsqrt.pop %v2977
  %v2999 = vmul.f32 %v2998, %v2977
  %v3000 = vmul.f32 %v2999, %v2998
  %v3001 = vmul.f32 0.5, %v3000
  %v3002 = vsub.f32 1.5, %v3001
  %v3003 = vmul.f32 %v2998, %v3002
  %vm3004 = vweird.f32 %v2977
  %vm3005 = vweird.f32 %v2998
  %vm3006 = vmor %vm3004, %vm3005
  %v3007 = vsel %vm3006, %v2998, %v3003
  %v3008 = vmul.f32 %v2957, %v2987
  %v3009 = vmul.f32 %v2958, %v2997
  %v3010 = vmul.f32 %v2959, %v3007
  %v3011 = vperm.slane %v69, 2
  %v3012 = vmul.f32 %v3008, %v3011
  %v3013 = vmul.f32 %v3009, %v3011
  %v3014 = vmul.f32 %v3010, %v3011
  %v3015 = vperm.slane %v69, 3
  %v3016 = vadd.f32 %v3012, %v3015
  %v3017 = vadd.f32 %v3013, %v3015
  %v3018 = vadd.f32 %v3014, %v3015
  %v3019 = vld [vmem:[%s17] sm:$0xff]
  %v3020 = vld [vmem:[%s17 + $0x8] sm:$0xff]
  %v3021 = vld [vmem:[%s17 + $0x10] sm:$0xff]
  %v3022 = vld [vmem:[%s17 + $0x18] sm:$0xff]
  %v3023 = vld [vmem:[%s18] sm:$0x1]
  %v3025 = vperm.slane %v3023, 0
  %v3028 = vsel %vm70, %v3016, 0
  %v3031 = vsel %vm70, %v3017, 0
  %v3034 = vsel %vm70, %v3018, 0
  %3036 = vmatpush.msra.mxu0 0.0
  %3037 = vmatpush.msra.mxu0 0.0
  %3038 = vmatpush.msra.mxu0 0.0
  %3039 = vmatpush.msra.mxu0 0.0
  %3040 = vmatpush.msra.mxu0 0.0
  %3041 = vmatpush.msra.mxu0 0.0
  %3042 = vmatpush.msra.mxu0 0.0
  %3043 = vmatpush.msra.mxu0 0.0
  %3044 = vmatpush.msra.mxu0 0.0
  %3045 = vmatpush.msra.mxu0 0.0
  %3046 = vmatpush.msra.mxu0 0.0
  %3047 = vmatpush.msra.mxu0 0.0
  %3048 = vmatpush.msra.mxu0 %v3022
  %3049 = vmatpush.msra.mxu0 %v3021
  %3050 = vmatpush.msra.mxu0 %v3020
  %3051 = vmatpush.msra.mxu0 %v3019
  %3052 = vmatmul.f32.gmra.mxu0 %v3028
  %v3053 = vpop.f32.mrf.mxu0
  %v3054 = vadd.f32 %v3025, %v3053
  %3055 = vmatmul.f32.gmra.mxu0 %v3031
  %v3056 = vpop.f32.mrf.mxu0
  %v3057 = vadd.f32 %v3025, %v3056
  %3058 = vmatmul.f32.gmra.mxu0 %v3034
  %v3059 = vpop.f32.mrf.mxu0
  %v3060 = vadd.f32 %v3025, %v3059
  %3061 = vdwg.mxu0
  %3062 = vst [vmem:[%s19] sm:$0xff] %v3054
  %3063 = vst [vmem:[%s19 + $0x8] sm:$0xff] %v3057
  %3064 = vst [vmem:[%s19 + $0x10] sm:$0xff] %v3060
  // Predicated region
  $region78: #{decision_transformer_forward.5} parent=0 // pred_check
    _
  $region79: #{decision_transformer_forward.5} parent=0 // pred_check_branch
    %3066 = sbr.rel (0) target = $region81
  $region80: #{decision_transformer_forward.5} parent=0 // pred_region
    _
  $region81: #{decision_transformer_forward.5} parent=0 // pred_fallthru
    _
  // Predicated region
  $region82: #{decision_transformer_forward.5} parent=0 // pred_check
    _
  $region83: #{decision_transformer_forward.5} parent=0 // pred_check_branch
    %3068 = sbr.rel (0) target = $region85
  $region84: #{decision_transformer_forward.5} parent=0 // pred_region
    _
  $region85: #{decision_transformer_forward.5} parent=0 // pred_fallthru
    _

</llo_original>
